<compile_context>
chip_gen: v7x
topology: tpu7x:2x2x1
jax: 0.10.0
libtpu: 0.0.40
codegen_flags: <defaults>
</compile_context>

<pallas_src>
import functools

import jax
import jax.numpy as jnp
from jax.experimental import pallas as pl
from jax.experimental.pallas import tpu as pltpu

# ----------------------------- configuration --------------------------------
B = 2            # batch (videos)
T = 4            # frames per video (feat_len analogue)
IMG = 32         # image height/width
PATCH = 16       # CLIP patch size
GRID = IMG // PATCH
NP = GRID * GRID                 # patches per frame
N_TOK = NP + 1                   # cls + patches (197 analogue -> 5)

D_VIT = 64       # ViT width (768 analogue)
HEADS_VIT = 4    # ViT heads (12 analogue)
MLP_VIT = 4 * D_VIT
N_LAYERS = 2     # transformer depth (12 analogue)

D_EMB = 128      # CLIP projection / regression dim (512 analogue)
D_CROSS1 = 32    # down_proj output dim (64 analogue), CrossAttention(64) analogue
HEADS_CA = 8     # both cross attentions use 8 heads

DIST_DIM = 256   # distortion feature dim (4096 analogue)
VMAE_DIM = 96    # videomae feature dim (1408 analogue)
N_VM = 8         # videomae tokens

MXU_DTYPE = jnp.bfloat16         # matmul operand dtype (f32 accumulation)
NEG_INF = -1e30                  # additive mask value (exp() underflows to 0)


# ------------------------- in-kernel helper math -----------------------------
# All helpers operate on already-loaded jnp arrays; everything is 2-D.

def _mm(x, w):
    """MXU matmul: bf16 operands, f32 accumulation."""
    return jnp.dot(x.astype(MXU_DTYPE), w.astype(MXU_DTYPE),
                   preferred_element_type=jnp.float32)


def _ln(x, g, b):
    """LayerNorm over the last axis (f32 VPU math)."""
    mu = jnp.mean(x, axis=-1, keepdims=True)
    xc = x - mu
    var = jnp.mean(xc * xc, axis=-1, keepdims=True)
    return xc * jax.lax.rsqrt(var + 1e-5) * g + b


def _reg(x, w1, b1, w2, b2):
    """base_quality_regression: Linear -> ReLU -> Linear."""
    h = jnp.maximum(_mm(x, w1) + b1, 0.0)
    return _mm(h, w2) + b2


def _mha_core(q, k, v, mask_bias, num_heads):
    """Multi-head attention on flattened 2-D activations.

    q: (Mq, C), k/v: (Mk, C); mask_bias: (Mq, Mk) with 0 for same-batch pairs
    and -1e30 otherwise, so softmax is exactly the per-batch softmax (masked
    probabilities are exactly 0).  Per-head static loop keeps every op a plain
    2-D matmul / lane slice.
    """
    C = q.shape[-1]
    hd = C // num_heads
    q = q * (hd ** -0.5)                       # fold scale into q once
    heads = []
    for h in range(num_heads):
        sl = slice(h * hd, (h + 1) * hd)
        s = jnp.einsum("md,nd->mn", q[:, sl].astype(MXU_DTYPE),
                       k[:, sl].astype(MXU_DTYPE),
                       preferred_element_type=jnp.float32)
        s = s + mask_bias
        s = s - jnp.max(s, axis=-1, keepdims=True)
        p = jnp.exp(s)
        denom = jnp.sum(p, axis=-1, keepdims=True)
        p = p * pl.reciprocal(denom, approx=True)      # EUP reciprocal
        heads.append(jnp.dot(p.astype(MXU_DTYPE), v[:, sl].astype(MXU_DTYPE),
                             preferred_element_type=jnp.float32))
    return jnp.concatenate(heads, axis=-1)


def _resblock_body(x, ln1_g, ln1_b, in_w, in_b, out_w, out_b,
                   ln2_g, ln2_b, fc_w, fc_b, pj_w, pj_b, mask_bias, num_heads):
    """CLIP ResidualAttentionBlock on flattened (M, E) activations."""
    E = x.shape[-1]
    h = _ln(x, ln1_g, ln1_b)
    qkv = _mm(h, in_w) + in_b                          # (M, 3E)
    att = _mha_core(qkv[:, :E], qkv[:, E:2 * E], qkv[:, 2 * E:],
                    mask_bias, num_heads)
    x = x + (_mm(att, out_w) + out_b)
    h = _ln(x, ln2_g, ln2_b)
    h = _mm(h, fc_w) + fc_b
    h = h * jax.nn.sigmoid(1.702 * h)                  # QuickGELU
    return x + (_mm(h, pj_w) + pj_b)


# ------------------------------ Pallas kernels --------------------------------
def embed_kernel(p_ref, w_ref, pos_ref, o_ref):
    """Patch embedding (im2col matmul) fused with the positional-embedding add."""
    o_ref[...] = _mm(p_ref[...], w_ref[...]) + pos_ref[...]


def lnpre_kernel(x_ref, g_ref, b_ref, o_ref):
    """ln_pre on the shared token tensor (used by both ViT paths)."""
    o_ref[...] = _ln(x_ref[...], g_ref[...], b_ref[...])


def dist_prep_kernel(d_ref, uw1, ub1, uw2, ub2, dw1, db1, dw2, db2,
                     kvv_ref, pw_ref, pb_ref, o_ref):
    """Distortion branch, fully fused and hoisted out of the layer loop.

    unify_distortion_rec_loda -> down_proj -> cross_atten_1 collapsed:
    the distortion tokens fed to cross_atten_1 are one vector repeated over
    all token positions, so its keys/values are identical across positions,
    the softmax is uniform, and the attention output equals the value vector
    itself (independent of the query and of the q projection).  Hence
    cross_atten_1(query, dist_tokens) == proj(kv_value(dist_down)) broadcast
    over query tokens — exact algebra, computed once per frame here.
    """
    d = _reg(d_ref[...], uw1[...], ub1[...], uw2[...], ub2[...])   # (BT, D_VIT)
    d = _reg(d, dw1[...], db1[...], dw2[...], db2[...])            # (BT, D_CROSS1)
    v = _mm(d, kvv_ref[...])                                       # value half of kv
    o_ref[...] = _mm(v, pw_ref[...]) + pb_ref[...]                 # cross1.proj


def loda_layer_kernel(x_ref, ca1_ref, scale_ref, mask_ref,
                      dw1, db1, dw2, db2, uw1, ub1, uw2, ub2,
                      ln1g, ln1b, inw, inb, outw, outb, ln2g, ln2b,
                      fcw, fcb, pjw, pjb, o_ref, *, num_heads):
    """One loda layer: adapter (down -> +cross1 -> up -> scale-add) + block.

    x rows are (frame*N_TOK + token); the residual block is applied WITHOUT
    the NLD->LND permute (as in the reference), i.e. attention mixes rows with
    the same token index across frames — enforced by mask_ref.
    """
    x = x_ref[...]                                                   # (M, E)
    xd = _reg(x, dw1[...], db1[...], dw2[...], db2[...]) + ca1_ref[...]
    xu = _reg(xd, uw1[...], ub1[...], uw2[...], ub2[...])
    x = x + xu * scale_ref[...]
    o_ref[...] = _resblock_body(
        x, ln1g[...], ln1b[...], inw[...], inb[...], outw[...], outb[...],
        ln2g[...], ln2b[...], fcw[...], fcb[...], pjw[...], pjb[...],
        mask_ref[...], num_heads)


def clip_layer_kernel(x_ref, mask_ref, ln1g, ln1b, inw, inb, outw, outb,
                      ln2g, ln2b, fcw, fcb, pjw, pjb, o_ref, *, num_heads):
    """Plain CLIP ResidualAttentionBlock (LND layout, attention over tokens)."""
    o_ref[...] = _resblock_body(
        x_ref[...], ln1g[...], ln1b[...], inw[...], inb[...], outw[...], outb[...],
        ln2g[...], ln2b[...], fcw[...], fcb[...], pjw[...], pjb[...],
        mask_ref[...], num_heads)


def tail_kernel(xl_ref, xc_ref, vm_ref, mask_ref, lng, lnb, proj_ref,
                uvw, uvb, qw, kvw, pw, pb,
                lw1, lb1, lw2, lb2, bw1, bb1, bw2, bb2, o_ref, *, num_heads):
    """Fused tail: ln_post+proj (both paths), unify_videomae, cross_atten_2,
    residual add, linear_param and base_quality regressions."""
    xl = _mm(_ln(xl_ref[...], lng[...], lnb[...]), proj_ref[...])    # loda  -> (BT, D_EMB)
    xc = _mm(_ln(xc_ref[...], lng[...], lnb[...]), proj_ref[...])    # clip  -> (BT, D_EMB)
    vm = _mm(vm_ref[...], uvw[...]) + uvb[...]                       # (B*N_VM, D_EMB)
    q = _mm(xl, qw[...])
    kv = _mm(vm, kvw[...])
    C = q.shape[-1]
    att = _mha_core(q, kv[:, :C], kv[:, C:], mask_ref[...], num_heads)
    ca2 = _mm(att, pw[...]) + pb[...]
    xf = xc + ca2
    xf = _reg(xf, lw1[...], lb1[...], lw2[...], lb2[...])            # linear_param
    o_ref[...] = _reg(xf, bw1[...], bb1[...], bw2[...], bb2[...])    # base_quality


# --------------------------- pallas_call wrapper ------------------------------
def _zero_map(nd):
    return lambda i, nd=nd: (0,) * nd


def _sds(shape):
    return jax.ShapeDtypeStruct(shape, jnp.float32)


def _pcall(kernel_fn, out_shape, *arrays):
    """Single-step pallas_call with whole-array VMEM blocks (tensors are tiny)."""
    return pl.pallas_call(
        kernel_fn,
        grid=(1,),
        in_specs=[pl.BlockSpec(a.shape, _zero_map(a.ndim)) for a in arrays],
        out_specs=pl.BlockSpec(out_shape.shape, _zero_map(len(out_shape.shape))),
        out_shape=out_shape,
        compiler_params=pltpu.CompilerParams(dimension_semantics=("arbitrary",)),
    )(*arrays)


# --------------------------------- forward ------------------------------------
def forward(params, x, x_3D_features, lp, dist, aes, videomae):
    # x_3D_features, lp, aes are accepted but unused (matches PyTorch forward).
    del x_3D_features, lp, aes
    Bv, Tv = x.shape[0], x.shape[1]
    BT = Bv * Tv
    M = BT * N_TOK

    # ---- shared ViT embedding (identical in both paths of the reference) ----
    x_flat = x.reshape(BT, 3, IMG, IMG)
    patches = x_flat.reshape(BT, 3, GRID, PATCH, GRID, PATCH)
    patches = patches.transpose(0, 2, 4, 1, 3, 5).reshape(BT * NP, 3 * PATCH * PATCH)
    pos_rows = jnp.tile(params["pos"][1:], (BT, 1))                   # (BT*NP, D_VIT)
    tok = _pcall(embed_kernel, _sds((BT * NP, D_VIT)),
                 patches, params["conv1_w2d"], pos_rows)
    cls_row = (params["cls"] + params["pos"][0]).reshape(1, 1, D_VIT)
    x0 = jnp.concatenate(
        [jnp.broadcast_to(cls_row, (BT, 1, D_VIT)), tok.reshape(BT, NP, D_VIT)],
        axis=1).reshape(M, D_VIT)
    x_pre = _pcall(lnpre_kernel, _sds((M, D_VIT)),
                   x0, params["ln_pre_g"], params["ln_pre_b"])        # (M, D_VIT)

    # ---- distortion branch: loop-invariant, collapsed to one vector/frame ----
    dist2 = dist.reshape(BT, DIST_DIM)
    ca1 = _pcall(dist_prep_kernel, _sds((BT, D_CROSS1)), dist2,
                 *params["unify_distortion_rec_loda"], *params["down_proj"],
                 params["cross1_kv_w_v"], params["cross1_proj_w"],
                 params["cross1_proj_b"])
    ca1_rows = jnp.repeat(ca1, N_TOK, axis=0)                          # (M, D_CROSS1)

    # Additive attention masks (constants; XLA folds them).
    tok_idx = jnp.arange(M) % N_TOK
    mask_loda = jnp.where(tok_idx[:, None] == tok_idx[None, :],
                          0.0, NEG_INF).astype(jnp.float32)
    bt_idx = jnp.arange(M) % BT
    mask_clip = jnp.where(bt_idx[:, None] == bt_idx[None, :],
                          0.0, NEG_INF).astype(jnp.float32)

    # ---- loda path (block applied WITHOUT the NLD->LND permute, as in the
    #      reference: attention mixes over the flattened frame axis) ----
    x_loda = x_pre                                                     # rows: bt*N_TOK + t
    kern_loda = functools.partial(loda_layer_kernel, num_heads=HEADS_VIT)
    for i, bp in enumerate(params["blocks"]):
        scale_rows = jnp.tile(params["scale_factor"][i], (BT, 1))      # (M, D_VIT)
        x_loda = _pcall(kern_loda, _sds((M, D_VIT)),
                        x_loda, ca1_rows, scale_rows, mask_loda,
                        *params["down_proj"], *params["up_proj"], *bp)

    # ---- plain CLIP visual path (NLD -> LND permute, attention over tokens) ----
    x_clip = x_pre.reshape(BT, N_TOK, D_VIT).transpose(1, 0, 2).reshape(M, D_VIT)
    kern_clip = functools.partial(clip_layer_kernel, num_heads=HEADS_VIT)
    for bp in params["blocks"]:
        x_clip = _pcall(kern_clip, _sds((M, D_VIT)), x_clip, mask_clip, *bp)

    # ---- cls-token extraction (tiny glue slices) ----
    x_loda_cls = x_loda.reshape(BT, N_TOK, D_VIT)[:, 0, :]             # (BT, D_VIT)
    x_clip_cls = x_clip.reshape(N_TOK, BT, D_VIT)[0]                   # (BT, D_VIT)

    # ---- fused tail: ln_post+proj, videomae unify, cross_atten_2, heads ----
    vm2 = videomae.reshape(Bv * N_VM, VMAE_DIM)
    q_batch = jnp.arange(BT) // Tv
    k_batch = jnp.arange(Bv * N_VM) // N_VM
    mask_ca2 = jnp.where(q_batch[:, None] == k_batch[None, :],
                         0.0, NEG_INF).astype(jnp.float32)
    kern_tail = functools.partial(tail_kernel, num_heads=HEADS_CA)
    score = _pcall(kern_tail, _sds((BT, 1)),
                   x_loda_cls, x_clip_cls, vm2, mask_ca2,
                   params["ln_post_g"], params["ln_post_b"], params["proj"],
                   params["unify_videomae_w"], params["unify_videomae_b"],
                   params["cross2_q_w"], params["cross2_kv_w"],
                   params["cross2_proj_w"], params["cross2_proj_b"],
                   *params["linear_param"], *params["base_quality"])
    return score.reshape(Bv, Tv).mean(axis=1)                          # (B,)


# ----------------------------- parameter init --------------------------------
def init_params(key):
    keys = iter(jax.random.split(key, 128))

    def w32(shape, scale=0.02):
        return jax.random.normal(next(keys), shape, jnp.float32) * scale

    def wmx(shape, scale=0.02):          # matmul weights stored bf16 (half DMA)
        return w32(shape, scale).astype(MXU_DTYPE)

    def bias(n):
        return w32((1, n))

    def reg_p(i, m, o):                  # Linear-ReLU-Linear parameters
        return (wmx((i, m)), bias(m), wmx((m, o)), bias(o))

    def ln_p(d):
        return jnp.ones((1, d), jnp.float32), jnp.zeros((1, d), jnp.float32)

    blocks = []
    for _ in range(N_LAYERS):
        ln1g, ln1b = ln_p(D_VIT)
        ln2g, ln2b = ln_p(D_VIT)
        blocks.append((
            ln1g, ln1b,
            wmx((D_VIT, 3 * D_VIT)), bias(3 * D_VIT),     # attn in_proj
            wmx((D_VIT, D_VIT)), bias(D_VIT),             # attn out_proj
            ln2g, ln2b,
            wmx((D_VIT, MLP_VIT)), bias(MLP_VIT),         # c_fc
            wmx((MLP_VIT, D_VIT)), bias(D_VIT),           # c_proj
        ))

    ln_pre_g, ln_pre_b = ln_p(D_VIT)
    ln_post_g, ln_post_b = ln_p(D_VIT)

    # cross_atten_1: given the repeated distortion tokens its q projection
    # provably cancels out of the forward output (uniform softmax), so only
    # the value half of `kv` and the output projection are materialized.
    cross1_kv_w = w32((D_CROSS1, 2 * D_CROSS1))

    return dict(
        conv1_w2d=wmx((3 * PATCH * PATCH, D_VIT)),        # conv1 as im2col matmul
        cls=w32((D_VIT,)),
        pos=w32((N_TOK, D_VIT)),
        ln_pre_g=ln_pre_g, ln_pre_b=ln_pre_b,
        blocks=blocks,
        ln_post_g=ln_post_g, ln_post_b=ln_post_b,
        proj=wmx((D_VIT, D_EMB)),
        base_quality=reg_p(D_EMB, 64, 1),
        linear_param=reg_p(D_EMB, 256, D_EMB),
        unify_videomae_w=wmx((VMAE_DIM, D_EMB)), unify_videomae_b=bias(D_EMB),
        unify_distortion_rec_loda=reg_p(DIST_DIM, 128, D_VIT),
        cross1_kv_w_v=cross1_kv_w[:, D_CROSS1:].astype(MXU_DTYPE),
        cross1_proj_w=wmx((D_CROSS1, D_CROSS1)),
        cross1_proj_b=bias(D_CROSS1),
        cross2_q_w=wmx((D_EMB, D_EMB)),
        cross2_kv_w=wmx((D_EMB, 2 * D_EMB)),
        cross2_proj_w=wmx((D_EMB, D_EMB)),
        cross2_proj_b=bias(D_EMB),
        down_proj=reg_p(D_VIT, 64, D_CROSS1),
        up_proj=reg_p(D_CROSS1, 64, D_VIT),
        scale_factor=w32((N_LAYERS, N_TOK, D_VIT)),
    )


# ----------------------------------- main -------------------------------------
if __name__ == "__main__":
    root = jax.random.PRNGKey(0)
    k_param, k_x, k_d, k_v, k_u1, k_u2, k_u3 = jax.random.split(root, 7)

    params = init_params(k_param)

    x = jax.random.normal(k_x, (B, T, 3, IMG, IMG), jnp.float32)
    dist = jax.random.normal(k_d, (B, T, DIST_DIM), jnp.float32)
    videomae = jax.random.normal(k_v, (B, N_VM, VMAE_DIM), jnp.float32)
    # unused-by-forward auxiliary inputs (kept for signature parity)
    x_3D_features = jax.random.normal(k_u1, (B, T, 16), jnp.float32)
    lp = jax.random.normal(k_u2, (B, T, 16), jnp.float32)
    aes = jax.random.normal(k_u3, (B, T, 16), jnp.float32)

    fwd = jax.jit(forward)
    out = jax.block_until_ready(
        fwd(params, x, x_3D_features, lp, dist, aes, videomae))
    assert out.shape == (B,), out.shape
    assert bool(jnp.all(jnp.isfinite(out)))
    print("KERNEL_OK")
</pallas_src>

<mosaic_0001>
module attributes {stable_mosaic.version = 11 : i64} {
  func.func @embed_kernel(%arg0: i32, %arg1: memref<32x768xf32, #tpu.memory_space<vmem>>, %arg2: memref<768x64xbf16, #tpu.memory_space<vmem>>, %arg3: memref<32x64xf32, #tpu.memory_space<vmem>>, %arg4: memref<32x64xf32, #tpu.memory_space<vmem>>) attributes {dimension_semantics = [#tpu.dimension_semantics<arbitrary>], iteration_bounds = array<i64: 1>, scalar_prefetch = 0 : i64, scratch_operands = 0 : i64, tpu.core_type = #tpu.core_type<tc>, window_params = [{pipeline_mode = #tpu.pipeline_mode<synchronous>, transform_indices = @transform_0, window_bounds = array<i64: 32, 768>}, {pipeline_mode = #tpu.pipeline_mode<synchronous>, transform_indices = @transform_1, window_bounds = array<i64: 768, 64>}, {pipeline_mode = #tpu.pipeline_mode<synchronous>, transform_indices = @transform_2, window_bounds = array<i64: 32, 64>}, {pipeline_mode = #tpu.pipeline_mode<synchronous>, transform_indices = @transform_3, window_bounds = array<i64: 32, 64>}]} {
    %c0 = arith.constant 0 : index
    %c0_0 = arith.constant 0 : index
    %0 = vector.load %arg1[%c0, %c0_0] : memref<32x768xf32, #tpu.memory_space<vmem>>, vector<32x768xf32>
    %c0_1 = arith.constant 0 : index
    %c0_2 = arith.constant 0 : index
    %1 = vector.load %arg2[%c0_1, %c0_2] : memref<768x64xbf16, #tpu.memory_space<vmem>>, vector<768x64xbf16>
    %2 = arith.truncf %0 : vector<32x768xf32> to vector<32x768xbf16>
    %cst = arith.constant dense<0.000000e+00> : vector<32x64xf32>
    %3 = tpu.matmul %2, %1, %cst {dimension_numbers = #tpu.dot_dimension_numbers<[1], [0], [0], [1], [0, 0, 1, 1], [], []>} : vector<32x768xbf16>, vector<768x64xbf16>, vector<32x64xf32> -> vector<32x64xf32>
    %c0_3 = arith.constant 0 : index
    %c0_4 = arith.constant 0 : index
    %4 = vector.load %arg3[%c0_3, %c0_4] : memref<32x64xf32, #tpu.memory_space<vmem>>, vector<32x64xf32>
    %5 = arith.addf %3, %4 : vector<32x64xf32>
    %c0_5 = arith.constant 0 : index
    %c0_6 = arith.constant 0 : index
    %6 = vector.load %arg4[%c0_5, %c0_6] : memref<32x64xf32, #tpu.memory_space<vmem>>, vector<32x64xf32>
    tpu.vector_store %arg4[%c0_5, %c0_6], %5 {strides = array<i32>} : memref<32x64xf32, #tpu.memory_space<vmem>>, vector<32x64xf32>,
    return
  }
  func.func @transform_0(%arg0: i32) -> (i32, i32) {
    %c0_i32 = arith.constant 0 : i32
    %c0_i32_0 = arith.constant 0 : i32
    %c0_i32_1 = arith.constant 0 : i32
    return %c0_i32, %c0_i32_0 : i32, i32
  }
  func.func @transform_1(%arg0: i32) -> (i32, i32) {
    %c0_i32 = arith.constant 0 : i32
    %c0_i32_0 = arith.constant 0 : i32
    %c0_i32_1 = arith.constant 0 : i32
    return %c0_i32, %c0_i32_0 : i32, i32
  }
  func.func @transform_2(%arg0: i32) -> (i32, i32) {
    %c0_i32 = arith.constant 0 : i32
    %c0_i32_0 = arith.constant 0 : i32
    %c0_i32_1 = arith.constant 0 : i32
    return %c0_i32, %c0_i32_0 : i32, i32
  }
  func.func @transform_3(%arg0: i32) -> (i32, i32) {
    %c0_i32 = arith.constant 0 : i32
    %c0_i32_0 = arith.constant 0 : i32
    %c0_i32_1 = arith.constant 0 : i32
    return %c0_i32, %c0_i32_0 : i32, i32
  }
}

module attributes {stable_mosaic.version = 11 : i64} {
  func.func @lnpre_kernel(%arg0: i32, %arg1: memref<40x64xf32, #tpu.memory_space<vmem>>, %arg2: memref<1x64xf32, #tpu.memory_space<vmem>>, %arg3: memref<1x64xf32, #tpu.memory_space<vmem>>, %arg4: memref<40x64xf32, #tpu.memory_space<vmem>>) attributes {dimension_semantics = [#tpu.dimension_semantics<arbitrary>], iteration_bounds = array<i64: 1>, scalar_prefetch = 0 : i64, scratch_operands = 0 : i64, tpu.core_type = #tpu.core_type<tc>, window_params = [{pipeline_mode = #tpu.pipeline_mode<synchronous>, transform_indices = @transform_0, window_bounds = array<i64: 40, 64>}, {pipeline_mode = #tpu.pipeline_mode<synchronous>, transform_indices = @transform_1, window_bounds = array<i64: 1, 64>}, {pipeline_mode = #tpu.pipeline_mode<synchronous>, transform_indices = @transform_2, window_bounds = array<i64: 1, 64>}, {pipeline_mode = #tpu.pipeline_mode<synchronous>, transform_indices = @transform_3, window_bounds = array<i64: 40, 64>}]} {
    %c0 = arith.constant 0 : index
    %c0_0 = arith.constant 0 : index
    %0 = vector.load %arg1[%c0, %c0_0] : memref<40x64xf32, #tpu.memory_space<vmem>>, vector<40x64xf32>
    %c0_1 = arith.constant 0 : index
    %c0_2 = arith.constant 0 : index
    %1 = vector.load %arg2[%c0_1, %c0_2] : memref<1x64xf32, #tpu.memory_space<vmem>>, vector<1x64xf32>
    %c0_3 = arith.constant 0 : index
    %c0_4 = arith.constant 0 : index
    %2 = vector.load %arg3[%c0_3, %c0_4] : memref<1x64xf32, #tpu.memory_space<vmem>>, vector<1x64xf32>
    %cst = arith.constant dense<0.000000e+00> : vector<40xf32>
    %3 = vector.multi_reduction <add>, %0, %cst [1] : vector<40x64xf32> to vector<40xf32>
    %4 = vector.shape_cast %3 : vector<40xf32> to vector<40x1xf32>
    %cst_5 = arith.constant 6.400000e+01 : f32
    %5 = vector.broadcast %cst_5 : f32 to vector<40x1xf32>
    %6 = arith.divf %4, %5 : vector<40x1xf32>
    %7 = vector.broadcast %6 : vector<40x1xf32> to vector<40x64xf32>
    %8 = arith.subf %0, %7 : vector<40x64xf32>
    %9 = arith.mulf %8, %8 : vector<40x64xf32>
    %cst_6 = arith.constant dense<0.000000e+00> : vector<40xf32>
    %10 = vector.multi_reduction <add>, %9, %cst_6 [1] : vector<40x64xf32> to vector<40xf32>
    %11 = vector.shape_cast %10 : vector<40xf32> to vector<40x1xf32>
    %cst_7 = arith.constant 6.400000e+01 : f32
    %12 = vector.broadcast %cst_7 : f32 to vector<40x1xf32>
    %13 = arith.divf %11, %12 : vector<40x1xf32>
    %cst_8 = arith.constant 9.99999974E-6 : f32
    %14 = vector.broadcast %cst_8 : f32 to vector<40x1xf32>
    %15 = arith.addf %13, %14 : vector<40x1xf32>
    %16 = math.rsqrt %15 : vector<40x1xf32>
    %17 = vector.broadcast %16 : vector<40x1xf32> to vector<40x64xf32>
    %18 = arith.mulf %8, %17 : vector<40x64xf32>
    %19 = vector.broadcast %1 : vector<1x64xf32> to vector<40x64xf32>
    %20 = arith.mulf %18, %19 : vector<40x64xf32>
    %21 = vector.broadcast %2 : vector<1x64xf32> to vector<40x64xf32>
    %22 = arith.addf %20, %21 : vector<40x64xf32>
    %c0_9 = arith.constant 0 : index
    %c0_10 = arith.constant 0 : index
    %23 = vector.load %arg4[%c0_9, %c0_10] : memref<40x64xf32, #tpu.memory_space<vmem>>, vector<40x64xf32>
    tpu.vector_store %arg4[%c0_9, %c0_10], %22 {strides = array<i32>} : memref<40x64xf32, #tpu.memory_space<vmem>>, vector<40x64xf32>,
    return
  }
  func.func @transform_0(%arg0: i32) -> (i32, i32) {
    %c0_i32 = arith.constant 0 : i32
    %c0_i32_0 = arith.constant 0 : i32
    %c0_i32_1 = arith.constant 0 : i32
    return %c0_i32, %c0_i32_0 : i32, i32
  }
  func.func @transform_1(%arg0: i32) -> (i32, i32) {
    %c0_i32 = arith.constant 0 : i32
    %c0_i32_0 = arith.constant 0 : i32
    %c0_i32_1 = arith.constant 0 : i32
    return %c0_i32, %c0_i32_0 : i32, i32
  }
  func.func @transform_2(%arg0: i32) -> (i32, i32) {
    %c0_i32 = arith.constant 0 : i32
    %c0_i32_0 = arith.constant 0 : i32
    %c0_i32_1 = arith.constant 0 : i32
    return %c0_i32, %c0_i32_0 : i32, i32
  }
  func.func @transform_3(%arg0: i32) -> (i32, i32) {
    %c0_i32 = arith.constant 0 : i32
    %c0_i32_0 = arith.constant 0 : i32
    %c0_i32_1 = arith.constant 0 : i32
    return %c0_i32, %c0_i32_0 : i32, i32
  }
}

module attributes {stable_mosaic.version = 11 : i64} {
  func.func @dist_prep_kernel(%arg0: i32, %arg1: memref<8x256xf32, #tpu.memory_space<vmem>>, %arg2: memref<256x128xbf16, #tpu.memory_space<vmem>>, %arg3: memref<1x128xf32, #tpu.memory_space<vmem>>, %arg4: memref<128x64xbf16, #tpu.memory_space<vmem>>, %arg5: memref<1x64xf32, #tpu.memory_space<vmem>>, %arg6: memref<64x64xbf16, #tpu.memory_space<vmem>>, %arg7: memref<1x64xf32, #tpu.memory_space<vmem>>, %arg8: memref<64x32xbf16, #tpu.memory_space<vmem>>, %arg9: memref<1x32xf32, #tpu.memory_space<vmem>>, %arg10: memref<32x32xbf16, #tpu.memory_space<vmem>>, %arg11: memref<32x32xbf16, #tpu.memory_space<vmem>>, %arg12: memref<1x32xf32, #tpu.memory_space<vmem>>, %arg13: memref<8x32xf32, #tpu.memory_space<vmem>>) attributes {dimension_semantics = [#tpu.dimension_semantics<arbitrary>], iteration_bounds = array<i64: 1>, scalar_prefetch = 0 : i64, scratch_operands = 0 : i64, tpu.core_type = #tpu.core_type<tc>, window_params = [{pipeline_mode = #tpu.pipeline_mode<synchronous>, transform_indices = @transform_0, window_bounds = array<i64: 8, 256>}, {pipeline_mode = #tpu.pipeline_mode<synchronous>, transform_indices = @transform_1, window_bounds = array<i64: 256, 128>}, {pipeline_mode = #tpu.pipeline_mode<synchronous>, transform_indices = @transform_2, window_bounds = array<i64: 1, 128>}, {pipeline_mode = #tpu.pipeline_mode<synchronous>, transform_indices = @transform_3, window_bounds = array<i64: 128, 64>}, {pipeline_mode = #tpu.pipeline_mode<synchronous>, transform_indices = @transform_4, window_bounds = array<i64: 1, 64>}, {pipeline_mode = #tpu.pipeline_mode<synchronous>, transform_indices = @transform_5, window_bounds = array<i64: 64, 64>}, {pipeline_mode = #tpu.pipeline_mode<synchronous>, transform_indices = @transform_6, window_bounds = array<i64: 1, 64>}, {pipeline_mode = #tpu.pipeline_mode<synchronous>, transform_indices = @transform_7, window_bounds = array<i64: 64, 32>}, {pipeline_mode = #tpu.pipeline_mode<synchronous>, transform_indices = @transform_8, window_bounds = array<i64: 1, 32>}, {pipeline_mode = #tpu.pipeline_mode<synchronous>, transform_indices = @transform_9, window_bounds = array<i64: 32, 32>}, {pipeline_mode = #tpu.pipeline_mode<synchronous>, transform_indices = @transform_10, window_bounds = array<i64: 32, 32>}, {pipeline_mode = #tpu.pipeline_mode<synchronous>, transform_indices = @transform_11, window_bounds = array<i64: 1, 32>}, {pipeline_mode = #tpu.pipeline_mode<synchronous>, transform_indices = @transform_12, window_bounds = array<i64: 8, 32>}]} {
    %c0 = arith.constant 0 : index
    %c0_0 = arith.constant 0 : index
    %0 = vector.load %arg1[%c0, %c0_0] : memref<8x256xf32, #tpu.memory_space<vmem>>, vector<8x256xf32>
    %c0_1 = arith.constant 0 : index
    %c0_2 = arith.constant 0 : index
    %1 = vector.load %arg2[%c0_1, %c0_2] : memref<256x128xbf16, #tpu.memory_space<vmem>>, vector<256x128xbf16>
    %c0_3 = arith.constant 0 : index
    %c0_4 = arith.constant 0 : index
    %2 = vector.load %arg3[%c0_3, %c0_4] : memref<1x128xf32, #tpu.memory_space<vmem>>, vector<1x128xf32>
    %c0_5 = arith.constant 0 : index
    %c0_6 = arith.constant 0 : index
    %3 = vector.load %arg4[%c0_5, %c0_6] : memref<128x64xbf16, #tpu.memory_space<vmem>>, vector<128x64xbf16>
    %c0_7 = arith.constant 0 : index
    %c0_8 = arith.constant 0 : index
    %4 = vector.load %arg5[%c0_7, %c0_8] : memref<1x64xf32, #tpu.memory_space<vmem>>, vector<1x64xf32>
    %5 = arith.truncf %0 : vector<8x256xf32> to vector<8x256xbf16>
    %cst = arith.constant dense<0.000000e+00> : vector<8x128xf32>
    %6 = tpu.matmul %5, %1, %cst {dimension_numbers = #tpu.dot_dimension_numbers<[1], [0], [0], [1], [0, 0, 1, 1], [], []>} : vector<8x256xbf16>, vector<256x128xbf16>, vector<8x128xf32> -> vector<8x128xf32>
    %7 = vector.broadcast %2 : vector<1x128xf32> to vector<8x128xf32>
    %8 = arith.addf %6, %7 : vector<8x128xf32>
    %cst_9 = arith.constant 0.000000e+00 : f32
    %9 = vector.broadcast %cst_9 : f32 to vector<8x128xf32>
    %10 = arith.maximumf %8, %9 : vector<8x128xf32>
    %11 = arith.truncf %10 : vector<8x128xf32> to vector<8x128xbf16>
    %cst_10 = arith.constant dense<0.000000e+00> : vector<8x64xf32>
    %12 = tpu.matmul %11, %3, %cst_10 {dimension_numbers = #tpu.dot_dimension_numbers<[1], [0], [0], [1], [0, 0, 1, 1], [], []>} : vector<8x128xbf16>, vector<128x64xbf16>, vector<8x64xf32> -> vector<8x64xf32>
    %13 = vector.broadcast %4 : vector<1x64xf32> to vector<8x64xf32>
    %14 = arith.addf %12, %13 : vector<8x64xf32>
    %c0_11 = arith.constant 0 : index
    %c0_12 = arith.constant 0 : index
    %15 = vector.load %arg6[%c0_11, %c0_12] : memref<64x64xbf16, #tpu.memory_space<vmem>>, vector<64x64xbf16>
    %c0_13 = arith.constant 0 : index
    %c0_14 = arith.constant 0 : index
    %16 = vector.load %arg7[%c0_13, %c0_14] : memref<1x64xf32, #tpu.memory_space<vmem>>, vector<1x64xf32>
    %c0_15 = arith.constant 0 : index
    %c0_16 = arith.constant 0 : index
    %17 = vector.load %arg8[%c0_15, %c0_16] : memref<64x32xbf16, #tpu.memory_space<vmem>>, vector<64x32xbf16>
    %c0_17 = arith.constant 0 : index
    %c0_18 = arith.constant 0 : index
    %18 = vector.load %arg9[%c0_17, %c0_18] : memref<1x32xf32, #tpu.memory_space<vmem>>, vector<1x32xf32>
    %19 = arith.truncf %14 : vector<8x64xf32> to vector<8x64xbf16>
    %cst_19 = arith.constant dense<0.000000e+00> : vector<8x64xf32>
    %20 = tpu.matmul %19, %15, %cst_19 {dimension_numbers = #tpu.dot_dimension_numbers<[1], [0], [0], [1], [0, 0, 1, 1], [], []>} : vector<8x64xbf16>, vector<64x64xbf16>, vector<8x64xf32> -> vector<8x64xf32>
    %21 = vector.broadcast %16 : vector<1x64xf32> to vector<8x64xf32>
    %22 = arith.addf %20, %21 : vector<8x64xf32>
    %cst_20 = arith.constant 0.000000e+00 : f32
    %23 = vector.broadcast %cst_20 : f32 to vector<8x64xf32>
    %24 = arith.maximumf %22, %23 : vector<8x64xf32>
    %25 = arith.truncf %24 : vector<8x64xf32> to vector<8x64xbf16>
    %cst_21 = arith.constant dense<0.000000e+00> : vector<8x32xf32>
    %26 = tpu.matmul %25, %17, %cst_21 {dimension_numbers = #tpu.dot_dimension_numbers<[1], [0], [0], [1], [0, 0, 1, 1], [], []>} : vector<8x64xbf16>, vector<64x32xbf16>, vector<8x32xf32> -> vector<8x32xf32>
    %27 = vector.broadcast %18 : vector<1x32xf32> to vector<8x32xf32>
    %28 = arith.addf %26, %27 : vector<8x32xf32>
    %c0_22 = arith.constant 0 : index
    %c0_23 = arith.constant 0 : index
    %29 = vector.load %arg10[%c0_22, %c0_23] : memref<32x32xbf16, #tpu.memory_space<vmem>>, vector<32x32xbf16>
    %30 = arith.truncf %28 : vector<8x32xf32> to vector<8x32xbf16>
    %cst_24 = arith.constant dense<0.000000e+00> : vector<8x32xf32>
    %31 = tpu.matmul %30, %29, %cst_24 {dimension_numbers = #tpu.dot_dimension_numbers<[1], [0], [0], [1], [0, 0, 1, 1], [], []>} : vector<8x32xbf16>, vector<32x32xbf16>, vector<8x32xf32> -> vector<8x32xf32>
    %c0_25 = arith.constant 0 : index
    %c0_26 = arith.constant 0 : index
    %32 = vector.load %arg11[%c0_25, %c0_26] : memref<32x32xbf16, #tpu.memory_space<vmem>>, vector<32x32xbf16>
    %33 = arith.truncf %31 : vector<8x32xf32> to vector<8x32xbf16>
    %cst_27 = arith.constant dense<0.000000e+00> : vector<8x32xf32>
    %34 = tpu.matmul %33, %32, %cst_27 {dimension_numbers = #tpu.dot_dimension_numbers<[1], [0], [0], [1], [0, 0, 1, 1], [], []>} : vector<8x32xbf16>, vector<32x32xbf16>, vector<8x32xf32> -> vector<8x32xf32>
    %c0_28 = arith.constant 0 : index
    %c0_29 = arith.constant 0 : index
    %35 = vector.load %arg12[%c0_28, %c0_29] : memref<1x32xf32, #tpu.memory_space<vmem>>, vector<1x32xf32>
    %36 = vector.broadcast %35 : vector<1x32xf32> to vector<8x32xf32>
    %37 = arith.addf %34, %36 : vector<8x32xf32>
    %c0_30 = arith.constant 0 : index
    %c0_31 = arith.constant 0 : index
    %38 = vector.load %arg13[%c0_30, %c0_31] : memref<8x32xf32, #tpu.memory_space<vmem>>, vector<8x32xf32>
    tpu.vector_store %arg13[%c0_30, %c0_31], %37 {strides = array<i32>} : memref<8x32xf32, #tpu.memory_space<vmem>>, vector<8x32xf32>,
    return
  }
  func.func @transform_0(%arg0: i32) -> (i32, i32) {
    %c0_i32 = arith.constant 0 : i32
    %c0_i32_0 = arith.constant 0 : i32
    %c0_i32_1 = arith.constant 0 : i32
    return %c0_i32, %c0_i32_0 : i32, i32
  }
  func.func @transform_1(%arg0: i32) -> (i32, i32) {
    %c0_i32 = arith.constant 0 : i32
    %c0_i32_0 = arith.constant 0 : i32
    %c0_i32_1 = arith.constant 0 : i32
    return %c0_i32, %c0_i32_0 : i32, i32
  }
  func.func @transform_2(%arg0: i32) -> (i32, i32) {
    %c0_i32 = arith.constant 0 : i32
    %c0_i32_0 = arith.constant 0 : i32
    %c0_i32_1 = arith.constant 0 : i32
    return %c0_i32, %c0_i32_0 : i32, i32
  }
  func.func @transform_3(%arg0: i32) -> (i32, i32) {
    %c0_i32 = arith.constant 0 : i32
    %c0_i32_0 = arith.constant 0 : i32
    %c0_i32_1 = arith.constant 0 : i32
    return %c0_i32, %c0_i32_0 : i32, i32
  }
  func.func @transform_4(%arg0: i32) -> (i32, i32) {
    %c0_i32 = arith.constant 0 : i32
    %c0_i32_0 = arith.constant 0 : i32
    %c0_i32_1 = arith.constant 0 : i32
    return %c0_i32, %c0_i32_0 : i32, i32
  }
  func.func @transform_5(%arg0: i32) -> (i32, i32) {
    %c0_i32 = arith.constant 0 : i32
    %c0_i32_0 = arith.constant 0 : i32
    %c0_i32_1 = arith.constant 0 : i32
    return %c0_i32, %c0_i32_0 : i32, i32
  }
  func.func @transform_6(%arg0: i32) -> (i32, i32) {
    %c0_i32 = arith.constant 0 : i32
    %c0_i32_0 = arith.constant 0 : i32
    %c0_i32_1 = arith.constant 0 : i32
    return %c0_i32, %c0_i32_0 : i32, i32
  }
  func.func @transform_7(%arg0: i32) -> (i32, i32) {
    %c0_i32 = arith.constant 0 : i32
    %c0_i32_0 = arith.constant 0 : i32
    %c0_i32_1 = arith.constant 0 : i32
    return %c0_i32, %c0_i32_0 : i32, i32
  }
  func.func @transform_8(%arg0: i32) -> (i32, i32) {
    %c0_i32 = arith.constant 0 : i32
    %c0_i32_0 = arith.constant 0 : i32
    %c0_i32_1 = arith.constant 0 : i32
    return %c0_i32, %c0_i32_0 : i32, i32
  }
  func.func @transform_9(%arg0: i32) -> (i32, i32) {
    %c0_i32 = arith.constant 0 : i32
    %c0_i32_0 = arith.constant 0 : i32
    %c0_i32_1 = arith.constant 0 : i32
    return %c0_i32, %c0_i32_0 : i32, i32
  }
  func.func @transform_10(%arg0: i32) -> (i32, i32) {
    %c0_i32 = arith.constant 0 : i32
    %c0_i32_0 = arith.constant 0 : i32
    %c0_i32_1 = arith.constant 0 : i32
    return %c0_i32, %c0_i32_0 : i32, i32
  }
  func.func @transform_11(%arg0: i32) -> (i32, i32) {
    %c0_i32 = arith.constant 0 : i32
    %c0_i32_0 = arith.constant 0 : i32
    %c0_i32_1 = arith.constant 0 : i32
    return %c0_i32, %c0_i32_0 : i32, i32
  }
  func.func @transform_12(%arg0: i32) -> (i32, i32) {
    %c0_i32 = arith.constant 0 : i32
    %c0_i32_0 = arith.constant 0 : i32
    %c0_i32_1 = arith.constant 0 : i32
    return %c0_i32, %c0_i32_0 : i32, i32
  }
}

module attributes {stable_mosaic.version = 11 : i64} {
  func.func @loda_layer_kernel(%arg0: i32, %arg1: memref<40x64xf32, #tpu.memory_space<vmem>>, %arg2: memref<40x32xf32, #tpu.memory_space<vmem>>, %arg3: memref<40x64xf32, #tpu.memory_space<vmem>>, %arg4: memref<40x40xf32, #tpu.memory_space<vmem>>, %arg5: memref<64x64xbf16, #tpu.memory_space<vmem>>, %arg6: memref<1x64xf32, #tpu.memory_space<vmem>>, %arg7: memref<64x32xbf16, #tpu.memory_space<vmem>>, %arg8: memref<1x32xf32, #tpu.memory_space<vmem>>, %arg9: memref<32x64xbf16, #tpu.memory_space<vmem>>, %arg10: memref<1x64xf32, #tpu.memory_space<vmem>>, %arg11: memref<64x64xbf16, #tpu.memory_space<vmem>>, %arg12: memref<1x64xf32, #tpu.memory_space<vmem>>, %arg13: memref<1x64xf32, #tpu.memory_space<vmem>>, %arg14: memref<1x64xf32, #tpu.memory_space<vmem>>, %arg15: memref<64x192xbf16, #tpu.memory_space<vmem>>, %arg16: memref<1x192xf32, #tpu.memory_space<vmem>>, %arg17: memref<64x64xbf16, #tpu.memory_space<vmem>>, %arg18: memref<1x64xf32, #tpu.memory_space<vmem>>, %arg19: memref<1x64xf32, #tpu.memory_space<vmem>>, %arg20: memref<1x64xf32, #tpu.memory_space<vmem>>, %arg21: memref<64x256xbf16, #tpu.memory_space<vmem>>, %arg22: memref<1x256xf32, #tpu.memory_space<vmem>>, %arg23: memref<256x64xbf16, #tpu.memory_space<vmem>>, %arg24: memref<1x64xf32, #tpu.memory_space<vmem>>, %arg25: memref<40x64xf32, #tpu.memory_space<vmem>>) attributes {dimension_semantics = [#tpu.dimension_semantics<arbitrary>], iteration_bounds = array<i64: 1>, scalar_prefetch = 0 : i64, scratch_operands = 0 : i64, tpu.core_type = #tpu.core_type<tc>, window_params = [{pipeline_mode = #tpu.pipeline_mode<synchronous>, transform_indices = @transform_0, window_bounds = array<i64: 40, 64>}, {pipeline_mode = #tpu.pipeline_mode<synchronous>, transform_indices = @transform_1, window_bounds = array<i64: 40, 32>}, {pipeline_mode = #tpu.pipeline_mode<synchronous>, transform_indices = @transform_2, window_bounds = array<i64: 40, 64>}, {pipeline_mode = #tpu.pipeline_mode<synchronous>, transform_indices = @transform_3, window_bounds = array<i64: 40, 40>}, {pipeline_mode = #tpu.pipeline_mode<synchronous>, transform_indices = @transform_4, window_bounds = array<i64: 64, 64>}, {pipeline_mode = #tpu.pipeline_mode<synchronous>, transform_indices = @transform_5, window_bounds = array<i64: 1, 64>}, {pipeline_mode = #tpu.pipeline_mode<synchronous>, transform_indices = @transform_6, window_bounds = array<i64: 64, 32>}, {pipeline_mode = #tpu.pipeline_mode<synchronous>, transform_indices = @transform_7, window_bounds = array<i64: 1, 32>}, {pipeline_mode = #tpu.pipeline_mode<synchronous>, transform_indices = @transform_8, window_bounds = array<i64: 32, 64>}, {pipeline_mode = #tpu.pipeline_mode<synchronous>, transform_indices = @transform_9, window_bounds = array<i64: 1, 64>}, {pipeline_mode = #tpu.pipeline_mode<synchronous>, transform_indices = @transform_10, window_bounds = array<i64: 64, 64>}, {pipeline_mode = #tpu.pipeline_mode<synchronous>, transform_indices = @transform_11, window_bounds = array<i64: 1, 64>}, {pipeline_mode = #tpu.pipeline_mode<synchronous>, transform_indices = @transform_12, window_bounds = array<i64: 1, 64>}, {pipeline_mode = #tpu.pipeline_mode<synchronous>, transform_indices = @transform_13, window_bounds = array<i64: 1, 64>}, {pipeline_mode = #tpu.pipeline_mode<synchronous>, transform_indices = @transform_14, window_bounds = array<i64: 64, 192>}, {pipeline_mode = #tpu.pipeline_mode<synchronous>, transform_indices = @transform_15, window_bounds = array<i64: 1, 192>}, {pipeline_mode = #tpu.pipeline_mode<synchronous>, transform_indices = @transform_16, window_bounds = array<i64: 64, 64>}, {pipeline_mode = #tpu.pipeline_mode<synchronous>, transform_indices = @transform_17, window_bounds = array<i64: 1, 64>}, {pipeline_mode = #tpu.pipeline_mode<synchronous>, transform_indices = @transform_18, window_bounds = array<i64: 1, 64>}, {pipeline_mode = #tpu.pipeline_mode<synchronous>, transform_indices = @transform_19, window_bounds = array<i64: 1, 64>}, {pipeline_mode = #tpu.pipeline_mode<synchronous>, transform_indices = @transform_20, window_bounds = array<i64: 64, 256>}, {pipeline_mode = #tpu.pipeline_mode<synchronous>, transform_indices = @transform_21, window_bounds = array<i64: 1, 256>}, {pipeline_mode = #tpu.pipeline_mode<synchronous>, transform_indices = @transform_22, window_bounds = array<i64: 256, 64>}, {pipeline_mode = #tpu.pipeline_mode<synchronous>, transform_indices = @transform_23, window_bounds = array<i64: 1, 64>}, {pipeline_mode = #tpu.pipeline_mode<synchronous>, transform_indices = @transform_24, window_bounds = array<i64: 40, 64>}]} {
    %c0 = arith.constant 0 : index
    %c0_0 = arith.constant 0 : index
    %0 = vector.load %arg1[%c0, %c0_0] : memref<40x64xf32, #tpu.memory_space<vmem>>, vector<40x64xf32>
    %c0_1 = arith.constant 0 : index
    %c0_2 = arith.constant 0 : index
    %1 = vector.load %arg5[%c0_1, %c0_2] : memref<64x64xbf16, #tpu.memory_space<vmem>>, vector<64x64xbf16>
    %c0_3 = arith.constant 0 : index
    %c0_4 = arith.constant 0 : index
    %2 = vector.load %arg6[%c0_3, %c0_4] : memref<1x64xf32, #tpu.memory_space<vmem>>, vector<1x64xf32>
    %c0_5 = arith.constant 0 : index
    %c0_6 = arith.constant 0 : index
    %3 = vector.load %arg7[%c0_5, %c0_6] : memref<64x32xbf16, #tpu.memory_space<vmem>>, vector<64x32xbf16>
    %c0_7 = arith.constant 0 : index
    %c0_8 = arith.constant 0 : index
    %4 = vector.load %arg8[%c0_7, %c0_8] : memref<1x32xf32, #tpu.memory_space<vmem>>, vector<1x32xf32>
    %5 = arith.truncf %0 : vector<40x64xf32> to vector<40x64xbf16>
    %cst = arith.constant dense<0.000000e+00> : vector<40x64xf32>
    %6 = tpu.matmul %5, %1, %cst {dimension_numbers = #tpu.dot_dimension_numbers<[1], [0], [0], [1], [0, 0, 1, 1], [], []>} : vector<40x64xbf16>, vector<64x64xbf16>, vector<40x64xf32> -> vector<40x64xf32>
    %7 = vector.broadcast %2 : vector<1x64xf32> to vector<40x64xf32>
    %8 = arith.addf %6, %7 : vector<40x64xf32>
    %cst_9 = arith.constant 0.000000e+00 : f32
    %9 = vector.broadcast %cst_9 : f32 to vector<40x64xf32>
    %10 = arith.maximumf %8, %9 : vector<40x64xf32>
    %11 = arith.truncf %10 : vector<40x64xf32> to vector<40x64xbf16>
    %cst_10 = arith.constant dense<0.000000e+00> : vector<40x32xf32>
    %12 = tpu.matmul %11, %3, %cst_10 {dimension_numbers = #tpu.dot_dimension_numbers<[1], [0], [0], [1], [0, 0, 1, 1], [], []>} : vector<40x64xbf16>, vector<64x32xbf16>, vector<40x32xf32> -> vector<40x32xf32>
    %13 = vector.broadcast %4 : vector<1x32xf32> to vector<40x32xf32>
    %14 = arith.addf %12, %13 : vector<40x32xf32>
    %c0_11 = arith.constant 0 : index
    %c0_12 = arith.constant 0 : index
    %15 = vector.load %arg2[%c0_11, %c0_12] : memref<40x32xf32, #tpu.memory_space<vmem>>, vector<40x32xf32>
    %16 = arith.addf %14, %15 : vector<40x32xf32>
    %c0_13 = arith.constant 0 : index
    %c0_14 = arith.constant 0 : index
    %17 = vector.load %arg9[%c0_13, %c0_14] : memref<32x64xbf16, #tpu.memory_space<vmem>>, vector<32x64xbf16>
    %c0_15 = arith.constant 0 : index
    %c0_16 = arith.constant 0 : index
    %18 = vector.load %arg10[%c0_15, %c0_16] : memref<1x64xf32, #tpu.memory_space<vmem>>, vector<1x64xf32>
    %c0_17 = arith.constant 0 : index
    %c0_18 = arith.constant 0 : index
    %19 = vector.load %arg11[%c0_17, %c0_18] : memref<64x64xbf16, #tpu.memory_space<vmem>>, vector<64x64xbf16>
    %c0_19 = arith.constant 0 : index
    %c0_20 = arith.constant 0 : index
    %20 = vector.load %arg12[%c0_19, %c0_20] : memref<1x64xf32, #tpu.memory_space<vmem>>, vector<1x64xf32>
    %21 = arith.truncf %16 : vector<40x32xf32> to vector<40x32xbf16>
    %cst_21 = arith.constant dense<0.000000e+00> : vector<40x64xf32>
    %22 = tpu.matmul %21, %17, %cst_21 {dimension_numbers = #tpu.dot_dimension_numbers<[1], [0], [0], [1], [0, 0, 1, 1], [], []>} : vector<40x32xbf16>, vector<32x64xbf16>, vector<40x64xf32> -> vector<40x64xf32>
    %23 = vector.broadcast %18 : vector<1x64xf32> to vector<40x64xf32>
    %24 = arith.addf %22, %23 : vector<40x64xf32>
    %cst_22 = arith.constant 0.000000e+00 : f32
    %25 = vector.broadcast %cst_22 : f32 to vector<40x64xf32>
    %26 = arith.maximumf %24, %25 : vector<40x64xf32>
    %27 = arith.truncf %26 : vector<40x64xf32> to vector<40x64xbf16>
    %cst_23 = arith.constant dense<0.000000e+00> : vector<40x64xf32>
    %28 = tpu.matmul %27, %19, %cst_23 {dimension_numbers = #tpu.dot_dimension_numbers<[1], [0], [0], [1], [0, 0, 1, 1], [], []>} : vector<40x64xbf16>, vector<64x64xbf16>, vector<40x64xf32> -> vector<40x64xf32>
    %29 = vector.broadcast %20 : vector<1x64xf32> to vector<40x64xf32>
    %30 = arith.addf %28, %29 : vector<40x64xf32>
    %c0_24 = arith.constant 0 : index
    %c0_25 = arith.constant 0 : index
    %31 = vector.load %arg3[%c0_24, %c0_25] : memref<40x64xf32, #tpu.memory_space<vmem>>, vector<40x64xf32>
    %32 = arith.mulf %30, %31 : vector<40x64xf32>
    %33 = arith.addf %0, %32 : vector<40x64xf32>
    %c0_26 = arith.constant 0 : index
    %c0_27 = arith.constant 0 : index
    %34 = vector.load %arg13[%c0_26, %c0_27] : memref<1x64xf32, #tpu.memory_space<vmem>>, vector<1x64xf32>
    %c0_28 = arith.constant 0 : index
    %c0_29 = arith.constant 0 : index
    %35 = vector.load %arg14[%c0_28, %c0_29] : memref<1x64xf32, #tpu.memory_space<vmem>>, vector<1x64xf32>
    %c0_30 = arith.constant 0 : index
    %c0_31 = arith.constant 0 : index
    %36 = vector.load %arg15[%c0_30, %c0_31] : memref<64x192xbf16, #tpu.memory_space<vmem>>, vector<64x192xbf16>
    %c0_32 = arith.constant 0 : index
    %c0_33 = arith.constant 0 : index
    %37 = vector.load %arg16[%c0_32, %c0_33] : memref<1x192xf32, #tpu.memory_space<vmem>>, vector<1x192xf32>
    %c0_34 = arith.constant 0 : index
    %c0_35 = arith.constant 0 : index
    %38 = vector.load %arg17[%c0_34, %c0_35] : memref<64x64xbf16, #tpu.memory_space<vmem>>, vector<64x64xbf16>
    %c0_36 = arith.constant 0 : index
    %c0_37 = arith.constant 0 : index
    %39 = vector.load %arg18[%c0_36, %c0_37] : memref<1x64xf32, #tpu.memory_space<vmem>>, vector<1x64xf32>
    %c0_38 = arith.constant 0 : index
    %c0_39 = arith.constant 0 : index
    %40 = vector.load %arg19[%c0_38, %c0_39] : memref<1x64xf32, #tpu.memory_space<vmem>>, vector<1x64xf32>
    %c0_40 = arith.constant 0 : index
    %c0_41 = arith.constant 0 : index
    %41 = vector.load %arg20[%c0_40, %c0_41] : memref<1x64xf32, #tpu.memory_space<vmem>>, vector<1x64xf32>
    %c0_42 = arith.constant 0 : index
    %c0_43 = arith.constant 0 : index
    %42 = vector.load %arg21[%c0_42, %c0_43] : memref<64x256xbf16, #tpu.memory_space<vmem>>, vector<64x256xbf16>
    %c0_44 = arith.constant 0 : index
    %c0_45 = arith.constant 0 : index
    %43 = vector.load %arg22[%c0_44, %c0_45] : memref<1x256xf32, #tpu.memory_space<vmem>>, vector<1x256xf32>
    %c0_46 = arith.constant 0 : index
    %c0_47 = arith.constant 0 : index
    %44 = vector.load %arg23[%c0_46, %c0_47] : memref<256x64xbf16, #tpu.memory_space<vmem>>, vector<256x64xbf16>
    %c0_48 = arith.constant 0 : index
    %c0_49 = arith.constant 0 : index
    %45 = vector.load %arg24[%c0_48, %c0_49] : memref<1x64xf32, #tpu.memory_space<vmem>>, vector<1x64xf32>
    %c0_50 = arith.constant 0 : index
    %c0_51 = arith.constant 0 : index
    %46 = vector.load %arg4[%c0_50, %c0_51] : memref<40x40xf32, #tpu.memory_space<vmem>>, vector<40x40xf32>
    %cst_52 = arith.constant dense<0.000000e+00> : vector<40xf32>
    %47 = vector.multi_reduction <add>, %33, %cst_52 [1] : vector<40x64xf32> to vector<40xf32>
    %48 = vector.shape_cast %47 : vector<40xf32> to vector<40x1xf32>
    %cst_53 = arith.constant 6.400000e+01 : f32
    %49 = vector.broadcast %cst_53 : f32 to vector<40x1xf32>
    %50 = arith.divf %48, %49 : vector<40x1xf32>
    %51 = vector.broadcast %50 : vector<40x1xf32> to vector<40x64xf32>
    %52 = arith.subf %33, %51 : vector<40x64xf32>
    %53 = arith.mulf %52, %52 : vector<40x64xf32>
    %cst_54 = arith.constant dense<0.000000e+00> : vector<40xf32>
    %54 = vector.multi_reduction <add>, %53, %cst_54 [1] : vector<40x64xf32> to vector<40xf32>
    %55 = vector.shape_cast %54 : vector<40xf32> to vector<40x1xf32>
    %cst_55 = arith.constant 6.400000e+01 : f32
    %56 = vector.broadcast %cst_55 : f32 to vector<40x1xf32>
    %57 = arith.divf %55, %56 : vector<40x1xf32>
    %cst_56 = arith.constant 9.99999974E-6 : f32
    %58 = vector.broadcast %cst_56 : f32 to vector<40x1xf32>
    %59 = arith.addf %57, %58 : vector<40x1xf32>
    %60 = math.rsqrt %59 : vector<40x1xf32>
    %61 = vector.broadcast %60 : vector<40x1xf32> to vector<40x64xf32>
    %62 = arith.mulf %52, %61 : vector<40x64xf32>
    %63 = vector.broadcast %34 : vector<1x64xf32> to vector<40x64xf32>
    %64 = arith.mulf %62, %63 : vector<40x64xf32>
    %65 = vector.broadcast %35 : vector<1x64xf32> to vector<40x64xf32>
    %66 = arith.addf %64, %65 : vector<40x64xf32>
    %67 = arith.truncf %66 : vector<40x64xf32> to vector<40x64xbf16>
    %cst_57 = arith.constant dense<0.000000e+00> : vector<40x192xf32>
    %68 = tpu.matmul %67, %36, %cst_57 {dimension_numbers = #tpu.dot_dimension_numbers<[1], [0], [0], [1], [0, 0, 1, 1], [], []>} : vector<40x64xbf16>, vector<64x192xbf16>, vector<40x192xf32> -> vector<40x192xf32>
    %69 = vector.broadcast %37 : vector<1x192xf32> to vector<40x192xf32>
    %70 = arith.addf %68, %69 : vector<40x192xf32>
    %71 = vector.extract_strided_slice %70 {offsets = [0, 0], sizes = [40, 64], strides = [1, 1]} : vector<40x192xf32> to vector<40x64xf32>
    %72 = vector.extract_strided_slice %70 {offsets = [0, 64], sizes = [40, 64], strides = [1, 1]} : vector<40x192xf32> to vector<40x64xf32>
    %73 = vector.extract_strided_slice %70 {offsets = [0, 128], sizes = [40, 64], strides = [1, 1]} : vector<40x192xf32> to vector<40x64xf32>
    %cst_58 = arith.constant 2.500000e-01 : f32
    %74 = vector.broadcast %cst_58 : f32 to vector<40x64xf32>
    %75 = arith.mulf %71, %74 : vector<40x64xf32>
    %76 = vector.extract_strided_slice %75 {offsets = [0, 0], sizes = [40, 16], strides = [1, 1]} : vector<40x64xf32> to vector<40x16xf32>
    %77 = arith.truncf %76 : vector<40x16xf32> to vector<40x16xbf16>
    %78 = vector.extract_strided_slice %72 {offsets = [0, 0], sizes = [40, 16], strides = [1, 1]} : vector<40x64xf32> to vector<40x16xf32>
    %79 = arith.truncf %78 : vector<40x16xf32> to vector<40x16xbf16>
    "tpu.trace_start"() <{level = 10 : i32, message = "md,nd->mn"}> : () -> ()
    %cst_59 = arith.constant dense<0.000000e+00> : vector<40x40xf32>
    %80 = tpu.matmul %77, %79, %cst_59 {dimension_numbers = #tpu.dot_dimension_numbers<[1], [1], [0], [0], [0, 0, 1, 0], [], []>} : vector<40x16xbf16>, vector<40x16xbf16>, vector<40x40xf32> -> vector<40x40xf32>
    "tpu.trace_stop"() : () -> ()
    %81 = arith.addf %80, %46 : vector<40x40xf32>
    %cst_60 = arith.constant dense<0xFF800000> : vector<40xf32>
    %82 = vector.multi_reduction <maximumf>, %81, %cst_60 [1] : vector<40x40xf32> to vector<40xf32>
    %83 = vector.shape_cast %82 : vector<40xf32> to vector<40x1xf32>
    %84 = vector.broadcast %83 : vector<40x1xf32> to vector<40x40xf32>
    %85 = arith.subf %81, %84 : vector<40x40xf32>
    %86 = math.exp %85 : vector<40x40xf32>
    %cst_61 = arith.constant dense<0.000000e+00> : vector<40xf32>
    %87 = vector.multi_reduction <add>, %86, %cst_61 [1] : vector<40x40xf32> to vector<40xf32>
    %88 = vector.shape_cast %87 : vector<40xf32> to vector<40x1xf32>
    %89 = tpu.reciprocal %88 {approx = true} : vector<40x1xf32> -> vector<40x1xf32>
    %90 = vector.broadcast %89 : vector<40x1xf32> to vector<40x40xf32>
    %91 = arith.mulf %86, %90 : vector<40x40xf32>
    %92 = arith.truncf %91 : vector<40x40xf32> to vector<40x40xbf16>
    %93 = vector.extract_strided_slice %73 {offsets = [0, 0], sizes = [40, 16], strides = [1, 1]} : vector<40x64xf32> to vector<40x16xf32>
    %94 = arith.truncf %93 : vector<40x16xf32> to vector<40x16xbf16>
    %cst_62 = arith.constant dense<0.000000e+00> : vector<40x16xf32>
    %95 = tpu.matmul %92, %94, %cst_62 {dimension_numbers = #tpu.dot_dimension_numbers<[1], [0], [0], [1], [0, 0, 1, 1], [], []>} : vector<40x40xbf16>, vector<40x16xbf16>, vector<40x16xf32> -> vector<40x16xf32>
    %96 = vector.extract_strided_slice %75 {offsets = [0, 16], sizes = [40, 16], strides = [1, 1]} : vector<40x64xf32> to vector<40x16xf32>
    %97 = arith.truncf %96 : vector<40x16xf32> to vector<40x16xbf16>
    %98 = vector.extract_strided_slice %72 {offsets = [0, 16], sizes = [40, 16], strides = [1, 1]} : vector<40x64xf32> to vector<40x16xf32>
    %99 = arith.truncf %98 : vector<40x16xf32> to vector<40x16xbf16>
    "tpu.trace_start"() <{level = 10 : i32, message = "md,nd->mn"}> : () -> ()
    %cst_63 = arith.constant dense<0.000000e+00> : vector<40x40xf32>
    %100 = tpu.matmul %97, %99, %cst_63 {dimension_numbers = #tpu.dot_dimension_numbers<[1], [1], [0], [0], [0, 0, 1, 0], [], []>} : vector<40x16xbf16>, vector<40x16xbf16>, vector<40x40xf32> -> vector<40x40xf32>
    "tpu.trace_stop"() : () -> ()
    %101 = arith.addf %100, %46 : vector<40x40xf32>
    %cst_64 = arith.constant dense<0xFF800000> : vector<40xf32>
    %102 = vector.multi_reduction <maximumf>, %101, %cst_64 [1] : vector<40x40xf32> to vector<40xf32>
    %103 = vector.shape_cast %102 : vector<40xf32> to vector<40x1xf32>
    %104 = vector.broadcast %103 : vector<40x1xf32> to vector<40x40xf32>
    %105 = arith.subf %101, %104 : vector<40x40xf32>
    %106 = math.exp %105 : vector<40x40xf32>
    %cst_65 = arith.constant dense<0.000000e+00> : vector<40xf32>
    %107 = vector.multi_reduction <add>, %106, %cst_65 [1] : vector<40x40xf32> to vector<40xf32>
    %108 = vector.shape_cast %107 : vector<40xf32> to vector<40x1xf32>
    %109 = tpu.reciprocal %108 {approx = true} : vector<40x1xf32> -> vector<40x1xf32>
    %110 = vector.broadcast %109 : vector<40x1xf32> to vector<40x40xf32>
    %111 = arith.mulf %106, %110 : vector<40x40xf32>
    %112 = arith.truncf %111 : vector<40x40xf32> to vector<40x40xbf16>
    %113 = vector.extract_strided_slice %73 {offsets = [0, 16], sizes = [40, 16], strides = [1, 1]} : vector<40x64xf32> to vector<40x16xf32>
    %114 = arith.truncf %113 : vector<40x16xf32> to vector<40x16xbf16>
    %cst_66 = arith.constant dense<0.000000e+00> : vector<40x16xf32>
    %115 = tpu.matmul %112, %114, %cst_66 {dimension_numbers = #tpu.dot_dimension_numbers<[1], [0], [0], [1], [0, 0, 1, 1], [], []>} : vector<40x40xbf16>, vector<40x16xbf16>, vector<40x16xf32> -> vector<40x16xf32>
    %116 = vector.extract_strided_slice %75 {offsets = [0, 32], sizes = [40, 16], strides = [1, 1]} : vector<40x64xf32> to vector<40x16xf32>
    %117 = arith.truncf %116 : vector<40x16xf32> to vector<40x16xbf16>
    %118 = vector.extract_strided_slice %72 {offsets = [0, 32], sizes = [40, 16], strides = [1, 1]} : vector<40x64xf32> to vector<40x16xf32>
    %119 = arith.truncf %118 : vector<40x16xf32> to vector<40x16xbf16>
    "tpu.trace_start"() <{level = 10 : i32, message = "md,nd->mn"}> : () -> ()
    %cst_67 = arith.constant dense<0.000000e+00> : vector<40x40xf32>
    %120 = tpu.matmul %117, %119, %cst_67 {dimension_numbers = #tpu.dot_dimension_numbers<[1], [1], [0], [0], [0, 0, 1, 0], [], []>} : vector<40x16xbf16>, vector<40x16xbf16>, vector<40x40xf32> -> vector<40x40xf32>
    "tpu.trace_stop"() : () -> ()
    %121 = arith.addf %120, %46 : vector<40x40xf32>
    %cst_68 = arith.constant dense<0xFF800000> : vector<40xf32>
    %122 = vector.multi_reduction <maximumf>, %121, %cst_68 [1] : vector<40x40xf32> to vector<40xf32>
    %123 = vector.shape_cast %122 : vector<40xf32> to vector<40x1xf32>
    %124 = vector.broadcast %123 : vector<40x1xf32> to vector<40x40xf32>
    %125 = arith.subf %121, %124 : vector<40x40xf32>
    %126 = math.exp %125 : vector<40x40xf32>
    %cst_69 = arith.constant dense<0.000000e+00> : vector<40xf32>
    %127 = vector.multi_reduction <add>, %126, %cst_69 [1] : vector<40x40xf32> to vector<40xf32>
    %128 = vector.shape_cast %127 : vector<40xf32> to vector<40x1xf32>
    %129 = tpu.reciprocal %128 {approx = true} : vector<40x1xf32> -> vector<40x1xf32>
    %130 = vector.broadcast %129 : vector<40x1xf32> to vector<40x40xf32>
    %131 = arith.mulf %126, %130 : vector<40x40xf32>
    %132 = arith.truncf %131 : vector<40x40xf32> to vector<40x40xbf16>
    %133 = vector.extract_strided_slice %73 {offsets = [0, 32], sizes = [40, 16], strides = [1, 1]} : vector<40x64xf32> to vector<40x16xf32>
    %134 = arith.truncf %133 : vector<40x16xf32> to vector<40x16xbf16>
    %cst_70 = arith.constant dense<0.000000e+00> : vector<40x16xf32>
    %135 = tpu.matmul %132, %134, %cst_70 {dimension_numbers = #tpu.dot_dimension_numbers<[1], [0], [0], [1], [0, 0, 1, 1], [], []>} : vector<40x40xbf16>, vector<40x16xbf16>, vector<40x16xf32> -> vector<40x16xf32>
    %136 = vector.extract_strided_slice %75 {offsets = [0, 48], sizes = [40, 16], strides = [1, 1]} : vector<40x64xf32> to vector<40x16xf32>
    %137 = arith.truncf %136 : vector<40x16xf32> to vector<40x16xbf16>
    %138 = vector.extract_strided_slice %72 {offsets = [0, 48], sizes = [40, 16], strides = [1, 1]} : vector<40x64xf32> to vector<40x16xf32>
    %139 = arith.truncf %138 : vector<40x16xf32> to vector<40x16xbf16>
    "tpu.trace_start"() <{level = 10 : i32, message = "md,nd->mn"}> : () -> ()
    %cst_71 = arith.constant dense<0.000000e+00> : vector<40x40xf32>
    %140 = tpu.matmul %137, %139, %cst_71 {dimension_numbers = #tpu.dot_dimension_numbers<[1], [1], [0], [0], [0, 0, 1, 0], [], []>} : vector<40x16xbf16>, vector<40x16xbf16>, vector<40x40xf32> -> vector<40x40xf32>
    "tpu.trace_stop"() : () -> ()
    %141 = arith.addf %140, %46 : vector<40x40xf32>
    %cst_72 = arith.constant dense<0xFF800000> : vector<40xf32>
    %142 = vector.multi_reduction <maximumf>, %141, %cst_72 [1] : vector<40x40xf32> to vector<40xf32>
    %143 = vector.shape_cast %142 : vector<40xf32> to vector<40x1xf32>
    %144 = vector.broadcast %143 : vector<40x1xf32> to vector<40x40xf32>
    %145 = arith.subf %141, %144 : vector<40x40xf32>
    %146 = math.exp %145 : vector<40x40xf32>
    %cst_73 = arith.constant dense<0.000000e+00> : vector<40xf32>
    %147 = vector.multi_reduction <add>, %146, %cst_73 [1] : vector<40x40xf32> to vector<40xf32>
    %148 = vector.shape_cast %147 : vector<40xf32> to vector<40x1xf32>
    %149 = tpu.reciprocal %148 {approx = true} : vector<40x1xf32> -> vector<40x1xf32>
    %150 = vector.broadcast %149 : vector<40x1xf32> to vector<40x40xf32>
    %151 = arith.mulf %146, %150 : vector<40x40xf32>
    %152 = arith.truncf %151 : vector<40x40xf32> to vector<40x40xbf16>
    %153 = vector.extract_strided_slice %73 {offsets = [0, 48], sizes = [40, 16], strides = [1, 1]} : vector<40x64xf32> to vector<40x16xf32>
    %154 = arith.truncf %153 : vector<40x16xf32> to vector<40x16xbf16>
    %cst_74 = arith.constant dense<0.000000e+00> : vector<40x16xf32>
    %155 = tpu.matmul %152, %154, %cst_74 {dimension_numbers = #tpu.dot_dimension_numbers<[1], [0], [0], [1], [0, 0, 1, 1], [], []>} : vector<40x40xbf16>, vector<40x16xbf16>, vector<40x16xf32> -> vector<40x16xf32>
    %156 = tpu.concatenate %95, %115, %135, %155 in 1 : vector<40x16xf32>, vector<40x16xf32>, vector<40x16xf32>, vector<40x16xf32> -> vector<40x64xf32>
    %157 = arith.truncf %156 : vector<40x64xf32> to vector<40x64xbf16>
    %cst_75 = arith.constant dense<0.000000e+00> : vector<40x64xf32>
    %158 = tpu.matmul %157, %38, %cst_75 {dimension_numbers = #tpu.dot_dimension_numbers<[1], [0], [0], [1], [0, 0, 1, 1], [], []>} : vector<40x64xbf16>, vector<64x64xbf16>, vector<40x64xf32> -> vector<40x64xf32>
    %159 = vector.broadcast %39 : vector<1x64xf32> to vector<40x64xf32>
    %160 = arith.addf %158, %159 : vector<40x64xf32>
    %161 = arith.addf %33, %160 : vector<40x64xf32>
    %cst_76 = arith.constant dense<0.000000e+00> : vector<40xf32>
    %162 = vector.multi_reduction <add>, %161, %cst_76 [1] : vector<40x64xf32> to vector<40xf32>
    %163 = vector.shape_cast %162 : vector<40xf32> to vector<40x1xf32>
    %cst_77 = arith.constant 6.400000e+01 : f32
    %164 = vector.broadcast %cst_77 : f32 to vector<40x1xf32>
    %165 = arith.divf %163, %164 : vector<40x1xf32>
    %166 = vector.broadcast %165 : vector<40x1xf32> to vector<40x64xf32>
    %167 = arith.subf %161, %166 : vector<40x64xf32>
    %168 = arith.mulf %167, %167 : vector<40x64xf32>
    %cst_78 = arith.constant dense<0.000000e+00> : vector<40xf32>
    %169 = vector.multi_reduction <add>, %168, %cst_78 [1] : vector<40x64xf32> to vector<40xf32>
    %170 = vector.shape_cast %169 : vector<40xf32> to vector<40x1xf32>
    %cst_79 = arith.constant 6.400000e+01 : f32
    %171 = vector.broadcast %cst_79 : f32 to vector<40x1xf32>
    %172 = arith.divf %170, %171 : vector<40x1xf32>
    %cst_80 = arith.constant 9.99999974E-6 : f32
    %173 = vector.broadcast %cst_80 : f32 to vector<40x1xf32>
    %174 = arith.addf %172, %173 : vector<40x1xf32>
    %175 = math.rsqrt %174 : vector<40x1xf32>
    %176 = vector.broadcast %175 : vector<40x1xf32> to vector<40x64xf32>
    %177 = arith.mulf %167, %176 : vector<40x64xf32>
    %178 = vector.broadcast %40 : vector<1x64xf32> to vector<40x64xf32>
    %179 = arith.mulf %177, %178 : vector<40x64xf32>
    %180 = vector.broadcast %41 : vector<1x64xf32> to vector<40x64xf32>
    %181 = arith.addf %179, %180 : vector<40x64xf32>
    %182 = arith.truncf %181 : vector<40x64xf32> to vector<40x64xbf16>
    %cst_81 = arith.constant dense<0.000000e+00> : vector<40x256xf32>
    %183 = tpu.matmul %182, %42, %cst_81 {dimension_numbers = #tpu.dot_dimension_numbers<[1], [0], [0], [1], [0, 0, 1, 1], [], []>} : vector<40x64xbf16>, vector<64x256xbf16>, vector<40x256xf32> -> vector<40x256xf32>
    %184 = vector.broadcast %43 : vector<1x256xf32> to vector<40x256xf32>
    %185 = arith.addf %183, %184 : vector<40x256xf32>
    %cst_82 = arith.constant 1.702000e+00 : f32
    %186 = vector.broadcast %cst_82 : f32 to vector<40x256xf32>
    %187 = arith.mulf %186, %185 : vector<40x256xf32>
    %188 = arith.negf %187 : vector<40x256xf32>
    %189 = math.exp %188 : vector<40x256xf32>
    %cst_83 = arith.constant 1.000000e+00 : f32
    %190 = vector.broadcast %cst_83 : f32 to vector<40x256xf32>
    %191 = arith.addf %190, %189 : vector<40x256xf32>
    %192 = arith.divf %190, %191 : vector<40x256xf32>
    %193 = arith.mulf %185, %192 : vector<40x256xf32>
    %194 = arith.truncf %193 : vector<40x256xf32> to vector<40x256xbf16>
    %cst_84 = arith.constant dense<0.000000e+00> : vector<40x64xf32>
    %195 = tpu.matmul %194, %44, %cst_84 {dimension_numbers = #tpu.dot_dimension_numbers<[1], [0], [0], [1], [0, 0, 1, 1], [], []>} : vector<40x256xbf16>, vector<256x64xbf16>, vector<40x64xf32> -> vector<40x64xf32>
    %196 = vector.broadcast %45 : vector<1x64xf32> to vector<40x64xf32>
    %197 = arith.addf %195, %196 : vector<40x64xf32>
    %198 = arith.addf %161, %197 : vector<40x64xf32>
    %c0_85 = arith.constant 0 : index
    %c0_86 = arith.constant 0 : index
    %199 = vector.load %arg25[%c0_85, %c0_86] : memref<40x64xf32, #tpu.memory_space<vmem>>, vector<40x64xf32>
    tpu.vector_store %arg25[%c0_85, %c0_86], %198 {strides = array<i32>} : memref<40x64xf32, #tpu.memory_space<vmem>>, vector<40x64xf32>,
    return
  }
  func.func @transform_0(%arg0: i32) -> (i32, i32) {
    %c0_i32 = arith.constant 0 : i32
    %c0_i32_0 = arith.constant 0 : i32
    %c0_i32_1 = arith.constant 0 : i32
    return %c0_i32, %c0_i32_0 : i32, i32
  }
  func.func @transform_1(%arg0: i32) -> (i32, i32) {
    %c0_i32 = arith.constant 0 : i32
    %c0_i32_0 = arith.constant 0 : i32
    %c0_i32_1 = arith.constant 0 : i32
    return %c0_i32, %c0_i32_0 : i32, i32
  }
  func.func @transform_2(%arg0: i32) -> (i32, i32) {
    %c0_i32 = arith.constant 0 : i32
    %c0_i32_0 = arith.constant 0 : i32
    %c0_i32_1 = arith.constant 0 : i32
    return %c0_i32, %c0_i32_0 : i32, i32
  }
  func.func @transform_3(%arg0: i32) -> (i32, i32) {
    %c0_i32 = arith.constant 0 : i32
    %c0_i32_0 = arith.constant 0 : i32
    %c0_i32_1 = arith.constant 0 : i32
    return %c0_i32, %c0_i32_0 : i32, i32
  }
  func.func @transform_4(%arg0: i32) -> (i32, i32) {
    %c0_i32 = arith.constant 0 : i32
    %c0_i32_0 = arith.constant 0 : i32
    %c0_i32_1 = arith.constant 0 : i32
    return %c0_i32, %c0_i32_0 : i32, i32
  }
  func.func @transform_5(%arg0: i32) -> (i32, i32) {
    %c0_i32 = arith.constant 0 : i32
    %c0_i32_0 = arith.constant 0 : i32
    %c0_i32_1 = arith.constant 0 : i32
    return %c0_i32, %c0_i32_0 : i32, i32
  }
  func.func @transform_6(%arg0: i32) -> (i32, i32) {
    %c0_i32 = arith.constant 0 : i32
    %c0_i32_0 = arith.constant 0 : i32
    %c0_i32_1 = arith.constant 0 : i32
    return %c0_i32, %c0_i32_0 : i32, i32
  }
  func.func @transform_7(%arg0: i32) -> (i32, i32) {
    %c0_i32 = arith.constant 0 : i32
    %c0_i32_0 = arith.constant 0 : i32
    %c0_i32_1 = arith.constant 0 : i32
    return %c0_i32, %c0_i32_0 : i32, i32
  }
  func.func @transform_8(%arg0: i32) -> (i32, i32) {
    %c0_i32 = arith.constant 0 : i32
    %c0_i32_0 = arith.constant 0 : i32
    %c0_i32_1 = arith.constant 0 : i32
    return %c0_i32, %c0_i32_0 : i32, i32
  }
  func.func @transform_9(%arg0: i32) -> (i32, i32) {
    %c0_i32 = arith.constant 0 : i32
    %c0_i32_0 = arith.constant 0 : i32
    %c0_i32_1 = arith.constant 0 : i32
    return %c0_i32, %c0_i32_0 : i32, i32
  }
  func.func @transform_10(%arg0: i32) -> (i32, i32) {
    %c0_i32 = arith.constant 0 : i32
    %c0_i32_0 = arith.constant 0 : i32
    %c0_i32_1 = arith.constant 0 : i32
    return %c0_i32, %c0_i32_0 : i32, i32
  }
  func.func @transform_11(%arg0: i32) -> (i32, i32) {
    %c0_i32 = arith.constant 0 : i32
    %c0_i32_0 = arith.constant 0 : i32
    %c0_i32_1 = arith.constant 0 : i32
    return %c0_i32, %c0_i32_0 : i32, i32
  }
  func.func @transform_12(%arg0: i32) -> (i32, i32) {
    %c0_i32 = arith.constant 0 : i32
    %c0_i32_0 = arith.constant 0 : i32
    %c0_i32_1 = arith.constant 0 : i32
    return %c0_i32, %c0_i32_0 : i32, i32
  }
  func.func @transform_13(%arg0: i32) -> (i32, i32) {
    %c0_i32 = arith.constant 0 : i32
    %c0_i32_0 = arith.constant 0 : i32
    %c0_i32_1 = arith.constant 0 : i32
    return %c0_i32, %c0_i32_0 : i32, i32
  }
  func.func @transform_14(%arg0: i32) -> (i32, i32) {
    %c0_i32 = arith.constant 0 : i32
    %c0_i32_0 = arith.constant 0 : i32
    %c0_i32_1 = arith.constant 0 : i32
    return %c0_i32, %c0_i32_0 : i32, i32
  }
  func.func @transform_15(%arg0: i32) -> (i32, i32) {
    %c0_i32 = arith.constant 0 : i32
    %c0_i32_0 = arith.constant 0 : i32
    %c0_i32_1 = arith.constant 0 : i32
    return %c0_i32, %c0_i32_0 : i32, i32
  }
  func.func @transform_16(%arg0: i32) -> (i32, i32) {
    %c0_i32 = arith.constant 0 : i32
    %c0_i32_0 = arith.constant 0 : i32
    %c0_i32_1 = arith.constant 0 : i32
    return %c0_i32, %c0_i32_0 : i32, i32
  }
  func.func @transform_17(%arg0: i32) -> (i32, i32) {
    %c0_i32 = arith.constant 0 : i32
    %c0_i32_0 = arith.constant 0 : i32
    %c0_i32_1 = arith.constant 0 : i32
    return %c0_i32, %c0_i32_0 : i32, i32
  }
  func.func @transform_18(%arg0: i32) -> (i32, i32) {
    %c0_i32 = arith.constant 0 : i32
    %c0_i32_0 = arith.constant 0 : i32
    %c0_i32_1 = arith.constant 0 : i32
    return %c0_i32, %c0_i32_0 : i32, i32
  }
  func.func @transform_19(%arg0: i32) -> (i32, i32) {
    %c0_i32 = arith.constant 0 : i32
    %c0_i32_0 = arith.constant 0 : i32
    %c0_i32_1 = arith.constant 0 : i32
    return %c0_i32, %c0_i32_0 : i32, i32
  }
  func.func @transform_20(%arg0: i32) -> (i32, i32) {
    %c0_i32 = arith.constant 0 : i32
    %c0_i32_0 = arith.constant 0 : i32
    %c0_i32_1 = arith.constant 0 : i32
    return %c0_i32, %c0_i32_0 : i32, i32
  }
  func.func @transform_21(%arg0: i32) -> (i32, i32) {
    %c0_i32 = arith.constant 0 : i32
    %c0_i32_0 = arith.constant 0 : i32
    %c0_i32_1 = arith.constant 0 : i32
    return %c0_i32, %c0_i32_0 : i32, i32
  }
  func.func @transform_22(%arg0: i32) -> (i32, i32) {
    %c0_i32 = arith.constant 0 : i32
    %c0_i32_0 = arith.constant 0 : i32
    %c0_i32_1 = arith.constant 0 : i32
    return %c0_i32, %c0_i32_0 : i32, i32
  }
  func.func @transform_23(%arg0: i32) -> (i32, i32) {
    %c0_i32 = arith.constant 0 : i32
    %c0_i32_0 = arith.constant 0 : i32
    %c0_i32_1 = arith.constant 0 : i32
    return %c0_i32, %c0_i32_0 : i32, i32
  }
  func.func @transform_24(%arg0: i32) -> (i32, i32) {
    %c0_i32 = arith.constant 0 : i32
    %c0_i32_0 = arith.constant 0 : i32
    %c0_i32_1 = arith.constant 0 : i32
    return %c0_i32, %c0_i32_0 : i32, i32
  }
}

module attributes {stable_mosaic.version = 11 : i64} {
  func.func @clip_layer_kernel(%arg0: i32, %arg1: memref<40x64xf32, #tpu.memory_space<vmem>>, %arg2: memref<40x40xf32, #tpu.memory_space<vmem>>, %arg3: memref<1x64xf32, #tpu.memory_space<vmem>>, %arg4: memref<1x64xf32, #tpu.memory_space<vmem>>, %arg5: memref<64x192xbf16, #tpu.memory_space<vmem>>, %arg6: memref<1x192xf32, #tpu.memory_space<vmem>>, %arg7: memref<64x64xbf16, #tpu.memory_space<vmem>>, %arg8: memref<1x64xf32, #tpu.memory_space<vmem>>, %arg9: memref<1x64xf32, #tpu.memory_space<vmem>>, %arg10: memref<1x64xf32, #tpu.memory_space<vmem>>, %arg11: memref<64x256xbf16, #tpu.memory_space<vmem>>, %arg12: memref<1x256xf32, #tpu.memory_space<vmem>>, %arg13: memref<256x64xbf16, #tpu.memory_space<vmem>>, %arg14: memref<1x64xf32, #tpu.memory_space<vmem>>, %arg15: memref<40x64xf32, #tpu.memory_space<vmem>>) attributes {dimension_semantics = [#tpu.dimension_semantics<arbitrary>], iteration_bounds = array<i64: 1>, scalar_prefetch = 0 : i64, scratch_operands = 0 : i64, tpu.core_type = #tpu.core_type<tc>, window_params = [{pipeline_mode = #tpu.pipeline_mode<synchronous>, transform_indices = @transform_0, window_bounds = array<i64: 40, 64>}, {pipeline_mode = #tpu.pipeline_mode<synchronous>, transform_indices = @transform_1, window_bounds = array<i64: 40, 40>}, {pipeline_mode = #tpu.pipeline_mode<synchronous>, transform_indices = @transform_2, window_bounds = array<i64: 1, 64>}, {pipeline_mode = #tpu.pipeline_mode<synchronous>, transform_indices = @transform_3, window_bounds = array<i64: 1, 64>}, {pipeline_mode = #tpu.pipeline_mode<synchronous>, transform_indices = @transform_4, window_bounds = array<i64: 64, 192>}, {pipeline_mode = #tpu.pipeline_mode<synchronous>, transform_indices = @transform_5, window_bounds = array<i64: 1, 192>}, {pipeline_mode = #tpu.pipeline_mode<synchronous>, transform_indices = @transform_6, window_bounds = array<i64: 64, 64>}, {pipeline_mode = #tpu.pipeline_mode<synchronous>, transform_indices = @transform_7, window_bounds = array<i64: 1, 64>}, {pipeline_mode = #tpu.pipeline_mode<synchronous>, transform_indices = @transform_8, window_bounds = array<i64: 1, 64>}, {pipeline_mode = #tpu.pipeline_mode<synchronous>, transform_indices = @transform_9, window_bounds = array<i64: 1, 64>}, {pipeline_mode = #tpu.pipeline_mode<synchronous>, transform_indices = @transform_10, window_bounds = array<i64: 64, 256>}, {pipeline_mode = #tpu.pipeline_mode<synchronous>, transform_indices = @transform_11, window_bounds = array<i64: 1, 256>}, {pipeline_mode = #tpu.pipeline_mode<synchronous>, transform_indices = @transform_12, window_bounds = array<i64: 256, 64>}, {pipeline_mode = #tpu.pipeline_mode<synchronous>, transform_indices = @transform_13, window_bounds = array<i64: 1, 64>}, {pipeline_mode = #tpu.pipeline_mode<synchronous>, transform_indices = @transform_14, window_bounds = array<i64: 40, 64>}]} {
    %c0 = arith.constant 0 : index
    %c0_0 = arith.constant 0 : index
    %0 = vector.load %arg1[%c0, %c0_0] : memref<40x64xf32, #tpu.memory_space<vmem>>, vector<40x64xf32>
    %c0_1 = arith.constant 0 : index
    %c0_2 = arith.constant 0 : index
    %1 = vector.load %arg3[%c0_1, %c0_2] : memref<1x64xf32, #tpu.memory_space<vmem>>, vector<1x64xf32>
    %c0_3 = arith.constant 0 : index
    %c0_4 = arith.constant 0 : index
    %2 = vector.load %arg4[%c0_3, %c0_4] : memref<1x64xf32, #tpu.memory_space<vmem>>, vector<1x64xf32>
    %c0_5 = arith.constant 0 : index
    %c0_6 = arith.constant 0 : index
    %3 = vector.load %arg5[%c0_5, %c0_6] : memref<64x192xbf16, #tpu.memory_space<vmem>>, vector<64x192xbf16>
    %c0_7 = arith.constant 0 : index
    %c0_8 = arith.constant 0 : index
    %4 = vector.load %arg6[%c0_7, %c0_8] : memref<1x192xf32, #tpu.memory_space<vmem>>, vector<1x192xf32>
    %c0_9 = arith.constant 0 : index
    %c0_10 = arith.constant 0 : index
    %5 = vector.load %arg7[%c0_9, %c0_10] : memref<64x64xbf16, #tpu.memory_space<vmem>>, vector<64x64xbf16>
    %c0_11 = arith.constant 0 : index
    %c0_12 = arith.constant 0 : index
    %6 = vector.load %arg8[%c0_11, %c0_12] : memref<1x64xf32, #tpu.memory_space<vmem>>, vector<1x64xf32>
    %c0_13 = arith.constant 0 : index
    %c0_14 = arith.constant 0 : index
    %7 = vector.load %arg9[%c0_13, %c0_14] : memref<1x64xf32, #tpu.memory_space<vmem>>, vector<1x64xf32>
    %c0_15 = arith.constant 0 : index
    %c0_16 = arith.constant 0 : index
    %8 = vector.load %arg10[%c0_15, %c0_16] : memref<1x64xf32, #tpu.memory_space<vmem>>, vector<1x64xf32>
    %c0_17 = arith.constant 0 : index
    %c0_18 = arith.constant 0 : index
    %9 = vector.load %arg11[%c0_17, %c0_18] : memref<64x256xbf16, #tpu.memory_space<vmem>>, vector<64x256xbf16>
    %c0_19 = arith.constant 0 : index
    %c0_20 = arith.constant 0 : index
    %10 = vector.load %arg12[%c0_19, %c0_20] : memref<1x256xf32, #tpu.memory_space<vmem>>, vector<1x256xf32>
    %c0_21 = arith.constant 0 : index
    %c0_22 = arith.constant 0 : index
    %11 = vector.load %arg13[%c0_21, %c0_22] : memref<256x64xbf16, #tpu.memory_space<vmem>>, vector<256x64xbf16>
    %c0_23 = arith.constant 0 : index
    %c0_24 = arith.constant 0 : index
    %12 = vector.load %arg14[%c0_23, %c0_24] : memref<1x64xf32, #tpu.memory_space<vmem>>, vector<1x64xf32>
    %c0_25 = arith.constant 0 : index
    %c0_26 = arith.constant 0 : index
    %13 = vector.load %arg2[%c0_25, %c0_26] : memref<40x40xf32, #tpu.memory_space<vmem>>, vector<40x40xf32>
    %cst = arith.constant dense<0.000000e+00> : vector<40xf32>
    %14 = vector.multi_reduction <add>, %0, %cst [1] : vector<40x64xf32> to vector<40xf32>
    %15 = vector.shape_cast %14 : vector<40xf32> to vector<40x1xf32>
    %cst_27 = arith.constant 6.400000e+01 : f32
    %16 = vector.broadcast %cst_27 : f32 to vector<40x1xf32>
    %17 = arith.divf %15, %16 : vector<40x1xf32>
    %18 = vector.broadcast %17 : vector<40x1xf32> to vector<40x64xf32>
    %19 = arith.subf %0, %18 : vector<40x64xf32>
    %20 = arith.mulf %19, %19 : vector<40x64xf32>
    %cst_28 = arith.constant dense<0.000000e+00> : vector<40xf32>
    %21 = vector.multi_reduction <add>, %20, %cst_28 [1] : vector<40x64xf32> to vector<40xf32>
    %22 = vector.shape_cast %21 : vector<40xf32> to vector<40x1xf32>
    %cst_29 = arith.constant 6.400000e+01 : f32
    %23 = vector.broadcast %cst_29 : f32 to vector<40x1xf32>
    %24 = arith.divf %22, %23 : vector<40x1xf32>
    %cst_30 = arith.constant 9.99999974E-6 : f32
    %25 = vector.broadcast %cst_30 : f32 to vector<40x1xf32>
    %26 = arith.addf %24, %25 : vector<40x1xf32>
    %27 = math.rsqrt %26 : vector<40x1xf32>
    %28 = vector.broadcast %27 : vector<40x1xf32> to vector<40x64xf32>
    %29 = arith.mulf %19, %28 : vector<40x64xf32>
    %30 = vector.broadcast %1 : vector<1x64xf32> to vector<40x64xf32>
    %31 = arith.mulf %29, %30 : vector<40x64xf32>
    %32 = vector.broadcast %2 : vector<1x64xf32> to vector<40x64xf32>
    %33 = arith.addf %31, %32 : vector<40x64xf32>
    %34 = arith.truncf %33 : vector<40x64xf32> to vector<40x64xbf16>
    %cst_31 = arith.constant dense<0.000000e+00> : vector<40x192xf32>
    %35 = tpu.matmul %34, %3, %cst_31 {dimension_numbers = #tpu.dot_dimension_numbers<[1], [0], [0], [1], [0, 0, 1, 1], [], []>} : vector<40x64xbf16>, vector<64x192xbf16>, vector<40x192xf32> -> vector<40x192xf32>
    %36 = vector.broadcast %4 : vector<1x192xf32> to vector<40x192xf32>
    %37 = arith.addf %35, %36 : vector<40x192xf32>
    %38 = vector.extract_strided_slice %37 {offsets = [0, 0], sizes = [40, 64], strides = [1, 1]} : vector<40x192xf32> to vector<40x64xf32>
    %39 = vector.extract_strided_slice %37 {offsets = [0, 64], sizes = [40, 64], strides = [1, 1]} : vector<40x192xf32> to vector<40x64xf32>
    %40 = vector.extract_strided_slice %37 {offsets = [0, 128], sizes = [40, 64], strides = [1, 1]} : vector<40x192xf32> to vector<40x64xf32>
    %cst_32 = arith.constant 2.500000e-01 : f32
    %41 = vector.broadcast %cst_32 : f32 to vector<40x64xf32>
    %42 = arith.mulf %38, %41 : vector<40x64xf32>
    %43 = vector.extract_strided_slice %42 {offsets = [0, 0], sizes = [40, 16], strides = [1, 1]} : vector<40x64xf32> to vector<40x16xf32>
    %44 = arith.truncf %43 : vector<40x16xf32> to vector<40x16xbf16>
    %45 = vector.extract_strided_slice %39 {offsets = [0, 0], sizes = [40, 16], strides = [1, 1]} : vector<40x64xf32> to vector<40x16xf32>
    %46 = arith.truncf %45 : vector<40x16xf32> to vector<40x16xbf16>
    "tpu.trace_start"() <{level = 10 : i32, message = "md,nd->mn"}> : () -> ()
    %cst_33 = arith.constant dense<0.000000e+00> : vector<40x40xf32>
    %47 = tpu.matmul %44, %46, %cst_33 {dimension_numbers = #tpu.dot_dimension_numbers<[1], [1], [0], [0], [0, 0, 1, 0], [], []>} : vector<40x16xbf16>, vector<40x16xbf16>, vector<40x40xf32> -> vector<40x40xf32>
    "tpu.trace_stop"() : () -> ()
    %48 = arith.addf %47, %13 : vector<40x40xf32>
    %cst_34 = arith.constant dense<0xFF800000> : vector<40xf32>
    %49 = vector.multi_reduction <maximumf>, %48, %cst_34 [1] : vector<40x40xf32> to vector<40xf32>
    %50 = vector.shape_cast %49 : vector<40xf32> to vector<40x1xf32>
    %51 = vector.broadcast %50 : vector<40x1xf32> to vector<40x40xf32>
    %52 = arith.subf %48, %51 : vector<40x40xf32>
    %53 = math.exp %52 : vector<40x40xf32>
    %cst_35 = arith.constant dense<0.000000e+00> : vector<40xf32>
    %54 = vector.multi_reduction <add>, %53, %cst_35 [1] : vector<40x40xf32> to vector<40xf32>
    %55 = vector.shape_cast %54 : vector<40xf32> to vector<40x1xf32>
    %56 = tpu.reciprocal %55 {approx = true} : vector<40x1xf32> -> vector<40x1xf32>
    %57 = vector.broadcast %56 : vector<40x1xf32> to vector<40x40xf32>
    %58 = arith.mulf %53, %57 : vector<40x40xf32>
    %59 = arith.truncf %58 : vector<40x40xf32> to vector<40x40xbf16>
    %60 = vector.extract_strided_slice %40 {offsets = [0, 0], sizes = [40, 16], strides = [1, 1]} : vector<40x64xf32> to vector<40x16xf32>
    %61 = arith.truncf %60 : vector<40x16xf32> to vector<40x16xbf16>
    %cst_36 = arith.constant dense<0.000000e+00> : vector<40x16xf32>
    %62 = tpu.matmul %59, %61, %cst_36 {dimension_numbers = #tpu.dot_dimension_numbers<[1], [0], [0], [1], [0, 0, 1, 1], [], []>} : vector<40x40xbf16>, vector<40x16xbf16>, vector<40x16xf32> -> vector<40x16xf32>
    %63 = vector.extract_strided_slice %42 {offsets = [0, 16], sizes = [40, 16], strides = [1, 1]} : vector<40x64xf32> to vector<40x16xf32>
    %64 = arith.truncf %63 : vector<40x16xf32> to vector<40x16xbf16>
    %65 = vector.extract_strided_slice %39 {offsets = [0, 16], sizes = [40, 16], strides = [1, 1]} : vector<40x64xf32> to vector<40x16xf32>
    %66 = arith.truncf %65 : vector<40x16xf32> to vector<40x16xbf16>
    "tpu.trace_start"() <{level = 10 : i32, message = "md,nd->mn"}> : () -> ()
    %cst_37 = arith.constant dense<0.000000e+00> : vector<40x40xf32>
    %67 = tpu.matmul %64, %66, %cst_37 {dimension_numbers = #tpu.dot_dimension_numbers<[1], [1], [0], [0], [0, 0, 1, 0], [], []>} : vector<40x16xbf16>, vector<40x16xbf16>, vector<40x40xf32> -> vector<40x40xf32>
    "tpu.trace_stop"() : () -> ()
    %68 = arith.addf %67, %13 : vector<40x40xf32>
    %cst_38 = arith.constant dense<0xFF800000> : vector<40xf32>
    %69 = vector.multi_reduction <maximumf>, %68, %cst_38 [1] : vector<40x40xf32> to vector<40xf32>
    %70 = vector.shape_cast %69 : vector<40xf32> to vector<40x1xf32>
    %71 = vector.broadcast %70 : vector<40x1xf32> to vector<40x40xf32>
    %72 = arith.subf %68, %71 : vector<40x40xf32>
    %73 = math.exp %72 : vector<40x40xf32>
    %cst_39 = arith.constant dense<0.000000e+00> : vector<40xf32>
    %74 = vector.multi_reduction <add>, %73, %cst_39 [1] : vector<40x40xf32> to vector<40xf32>
    %75 = vector.shape_cast %74 : vector<40xf32> to vector<40x1xf32>
    %76 = tpu.reciprocal %75 {approx = true} : vector<40x1xf32> -> vector<40x1xf32>
    %77 = vector.broadcast %76 : vector<40x1xf32> to vector<40x40xf32>
    %78 = arith.mulf %73, %77 : vector<40x40xf32>
    %79 = arith.truncf %78 : vector<40x40xf32> to vector<40x40xbf16>
    %80 = vector.extract_strided_slice %40 {offsets = [0, 16], sizes = [40, 16], strides = [1, 1]} : vector<40x64xf32> to vector<40x16xf32>
    %81 = arith.truncf %80 : vector<40x16xf32> to vector<40x16xbf16>
    %cst_40 = arith.constant dense<0.000000e+00> : vector<40x16xf32>
    %82 = tpu.matmul %79, %81, %cst_40 {dimension_numbers = #tpu.dot_dimension_numbers<[1], [0], [0], [1], [0, 0, 1, 1], [], []>} : vector<40x40xbf16>, vector<40x16xbf16>, vector<40x16xf32> -> vector<40x16xf32>
    %83 = vector.extract_strided_slice %42 {offsets = [0, 32], sizes = [40, 16], strides = [1, 1]} : vector<40x64xf32> to vector<40x16xf32>
    %84 = arith.truncf %83 : vector<40x16xf32> to vector<40x16xbf16>
    %85 = vector.extract_strided_slice %39 {offsets = [0, 32], sizes = [40, 16], strides = [1, 1]} : vector<40x64xf32> to vector<40x16xf32>
    %86 = arith.truncf %85 : vector<40x16xf32> to vector<40x16xbf16>
    "tpu.trace_start"() <{level = 10 : i32, message = "md,nd->mn"}> : () -> ()
    %cst_41 = arith.constant dense<0.000000e+00> : vector<40x40xf32>
    %87 = tpu.matmul %84, %86, %cst_41 {dimension_numbers = #tpu.dot_dimension_numbers<[1], [1], [0], [0], [0, 0, 1, 0], [], []>} : vector<40x16xbf16>, vector<40x16xbf16>, vector<40x40xf32> -> vector<40x40xf32>
    "tpu.trace_stop"() : () -> ()
    %88 = arith.addf %87, %13 : vector<40x40xf32>
    %cst_42 = arith.constant dense<0xFF800000> : vector<40xf32>
    %89 = vector.multi_reduction <maximumf>, %88, %cst_42 [1] : vector<40x40xf32> to vector<40xf32>
    %90 = vector.shape_cast %89 : vector<40xf32> to vector<40x1xf32>
    %91 = vector.broadcast %90 : vector<40x1xf32> to vector<40x40xf32>
    %92 = arith.subf %88, %91 : vector<40x40xf32>
    %93 = math.exp %92 : vector<40x40xf32>
    %cst_43 = arith.constant dense<0.000000e+00> : vector<40xf32>
    %94 = vector.multi_reduction <add>, %93, %cst_43 [1] : vector<40x40xf32> to vector<40xf32>
    %95 = vector.shape_cast %94 : vector<40xf32> to vector<40x1xf32>
    %96 = tpu.reciprocal %95 {approx = true} : vector<40x1xf32> -> vector<40x1xf32>
    %97 = vector.broadcast %96 : vector<40x1xf32> to vector<40x40xf32>
    %98 = arith.mulf %93, %97 : vector<40x40xf32>
    %99 = arith.truncf %98 : vector<40x40xf32> to vector<40x40xbf16>
    %100 = vector.extract_strided_slice %40 {offsets = [0, 32], sizes = [40, 16], strides = [1, 1]} : vector<40x64xf32> to vector<40x16xf32>
    %101 = arith.truncf %100 : vector<40x16xf32> to vector<40x16xbf16>
    %cst_44 = arith.constant dense<0.000000e+00> : vector<40x16xf32>
    %102 = tpu.matmul %99, %101, %cst_44 {dimension_numbers = #tpu.dot_dimension_numbers<[1], [0], [0], [1], [0, 0, 1, 1], [], []>} : vector<40x40xbf16>, vector<40x16xbf16>, vector<40x16xf32> -> vector<40x16xf32>
    %103 = vector.extract_strided_slice %42 {offsets = [0, 48], sizes = [40, 16], strides = [1, 1]} : vector<40x64xf32> to vector<40x16xf32>
    %104 = arith.truncf %103 : vector<40x16xf32> to vector<40x16xbf16>
    %105 = vector.extract_strided_slice %39 {offsets = [0, 48], sizes = [40, 16], strides = [1, 1]} : vector<40x64xf32> to vector<40x16xf32>
    %106 = arith.truncf %105 : vector<40x16xf32> to vector<40x16xbf16>
    "tpu.trace_start"() <{level = 10 : i32, message = "md,nd->mn"}> : () -> ()
    %cst_45 = arith.constant dense<0.000000e+00> : vector<40x40xf32>
    %107 = tpu.matmul %104, %106, %cst_45 {dimension_numbers = #tpu.dot_dimension_numbers<[1], [1], [0], [0], [0, 0, 1, 0], [], []>} : vector<40x16xbf16>, vector<40x16xbf16>, vector<40x40xf32> -> vector<40x40xf32>
    "tpu.trace_stop"() : () -> ()
    %108 = arith.addf %107, %13 : vector<40x40xf32>
    %cst_46 = arith.constant dense<0xFF800000> : vector<40xf32>
    %109 = vector.multi_reduction <maximumf>, %108, %cst_46 [1] : vector<40x40xf32> to vector<40xf32>
    %110 = vector.shape_cast %109 : vector<40xf32> to vector<40x1xf32>
    %111 = vector.broadcast %110 : vector<40x1xf32> to vector<40x40xf32>
    %112 = arith.subf %108, %111 : vector<40x40xf32>
    %113 = math.exp %112 : vector<40x40xf32>
    %cst_47 = arith.constant dense<0.000000e+00> : vector<40xf32>
    %114 = vector.multi_reduction <add>, %113, %cst_47 [1] : vector<40x40xf32> to vector<40xf32>
    %115 = vector.shape_cast %114 : vector<40xf32> to vector<40x1xf32>
    %116 = tpu.reciprocal %115 {approx = true} : vector<40x1xf32> -> vector<40x1xf32>
    %117 = vector.broadcast %116 : vector<40x1xf32> to vector<40x40xf32>
    %118 = arith.mulf %113, %117 : vector<40x40xf32>
    %119 = arith.truncf %118 : vector<40x40xf32> to vector<40x40xbf16>
    %120 = vector.extract_strided_slice %40 {offsets = [0, 48], sizes = [40, 16], strides = [1, 1]} : vector<40x64xf32> to vector<40x16xf32>
    %121 = arith.truncf %120 : vector<40x16xf32> to vector<40x16xbf16>
    %cst_48 = arith.constant dense<0.000000e+00> : vector<40x16xf32>
    %122 = tpu.matmul %119, %121, %cst_48 {dimension_numbers = #tpu.dot_dimension_numbers<[1], [0], [0], [1], [0, 0, 1, 1], [], []>} : vector<40x40xbf16>, vector<40x16xbf16>, vector<40x16xf32> -> vector<40x16xf32>
    %123 = tpu.concatenate %62, %82, %102, %122 in 1 : vector<40x16xf32>, vector<40x16xf32>, vector<40x16xf32>, vector<40x16xf32> -> vector<40x64xf32>
    %124 = arith.truncf %123 : vector<40x64xf32> to vector<40x64xbf16>
    %cst_49 = arith.constant dense<0.000000e+00> : vector<40x64xf32>
    %125 = tpu.matmul %124, %5, %cst_49 {dimension_numbers = #tpu.dot_dimension_numbers<[1], [0], [0], [1], [0, 0, 1, 1], [], []>} : vector<40x64xbf16>, vector<64x64xbf16>, vector<40x64xf32> -> vector<40x64xf32>
    %126 = vector.broadcast %6 : vector<1x64xf32> to vector<40x64xf32>
    %127 = arith.addf %125, %126 : vector<40x64xf32>
    %128 = arith.addf %0, %127 : vector<40x64xf32>
    %cst_50 = arith.constant dense<0.000000e+00> : vector<40xf32>
    %129 = vector.multi_reduction <add>, %128, %cst_50 [1] : vector<40x64xf32> to vector<40xf32>
    %130 = vector.shape_cast %129 : vector<40xf32> to vector<40x1xf32>
    %cst_51 = arith.constant 6.400000e+01 : f32
    %131 = vector.broadcast %cst_51 : f32 to vector<40x1xf32>
    %132 = arith.divf %130, %131 : vector<40x1xf32>
    %133 = vector.broadcast %132 : vector<40x1xf32> to vector<40x64xf32>
    %134 = arith.subf %128, %133 : vector<40x64xf32>
    %135 = arith.mulf %134, %134 : vector<40x64xf32>
    %cst_52 = arith.constant dense<0.000000e+00> : vector<40xf32>
    %136 = vector.multi_reduction <add>, %135, %cst_52 [1] : vector<40x64xf32> to vector<40xf32>
    %137 = vector.shape_cast %136 : vector<40xf32> to vector<40x1xf32>
    %cst_53 = arith.constant 6.400000e+01 : f32
    %138 = vector.broadcast %cst_53 : f32 to vector<40x1xf32>
    %139 = arith.divf %137, %138 : vector<40x1xf32>
    %cst_54 = arith.constant 9.99999974E-6 : f32
    %140 = vector.broadcast %cst_54 : f32 to vector<40x1xf32>
    %141 = arith.addf %139, %140 : vector<40x1xf32>
    %142 = math.rsqrt %141 : vector<40x1xf32>
    %143 = vector.broadcast %142 : vector<40x1xf32> to vector<40x64xf32>
    %144 = arith.mulf %134, %143 : vector<40x64xf32>
    %145 = vector.broadcast %7 : vector<1x64xf32> to vector<40x64xf32>
    %146 = arith.mulf %144, %145 : vector<40x64xf32>
    %147 = vector.broadcast %8 : vector<1x64xf32> to vector<40x64xf32>
    %148 = arith.addf %146, %147 : vector<40x64xf32>
    %149 = arith.truncf %148 : vector<40x64xf32> to vector<40x64xbf16>
    %cst_55 = arith.constant dense<0.000000e+00> : vector<40x256xf32>
    %150 = tpu.matmul %149, %9, %cst_55 {dimension_numbers = #tpu.dot_dimension_numbers<[1], [0], [0], [1], [0, 0, 1, 1], [], []>} : vector<40x64xbf16>, vector<64x256xbf16>, vector<40x256xf32> -> vector<40x256xf32>
    %151 = vector.broadcast %10 : vector<1x256xf32> to vector<40x256xf32>
    %152 = arith.addf %150, %151 : vector<40x256xf32>
    %cst_56 = arith.constant 1.702000e+00 : f32
    %153 = vector.broadcast %cst_56 : f32 to vector<40x256xf32>
    %154 = arith.mulf %153, %152 : vector<40x256xf32>
    %155 = arith.negf %154 : vector<40x256xf32>
    %156 = math.exp %155 : vector<40x256xf32>
    %cst_57 = arith.constant 1.000000e+00 : f32
    %157 = vector.broadcast %cst_57 : f32 to vector<40x256xf32>
    %158 = arith.addf %157, %156 : vector<40x256xf32>
    %159 = arith.divf %157, %158 : vector<40x256xf32>
    %160 = arith.mulf %152, %159 : vector<40x256xf32>
    %161 = arith.truncf %160 : vector<40x256xf32> to vector<40x256xbf16>
    %cst_58 = arith.constant dense<0.000000e+00> : vector<40x64xf32>
    %162 = tpu.matmul %161, %11, %cst_58 {dimension_numbers = #tpu.dot_dimension_numbers<[1], [0], [0], [1], [0, 0, 1, 1], [], []>} : vector<40x256xbf16>, vector<256x64xbf16>, vector<40x64xf32> -> vector<40x64xf32>
    %163 = vector.broadcast %12 : vector<1x64xf32> to vector<40x64xf32>
    %164 = arith.addf %162, %163 : vector<40x64xf32>
    %165 = arith.addf %128, %164 : vector<40x64xf32>
    %c0_59 = arith.constant 0 : index
    %c0_60 = arith.constant 0 : index
    %166 = vector.load %arg15[%c0_59, %c0_60] : memref<40x64xf32, #tpu.memory_space<vmem>>, vector<40x64xf32>
    tpu.vector_store %arg15[%c0_59, %c0_60], %165 {strides = array<i32>} : memref<40x64xf32, #tpu.memory_space<vmem>>, vector<40x64xf32>,
    return
  }
  func.func @transform_0(%arg0: i32) -> (i32, i32) {
    %c0_i32 = arith.constant 0 : i32
    %c0_i32_0 = arith.constant 0 : i32
    %c0_i32_1 = arith.constant 0 : i32
    return %c0_i32, %c0_i32_0 : i32, i32
  }
  func.func @transform_1(%arg0: i32) -> (i32, i32) {
    %c0_i32 = arith.constant 0 : i32
    %c0_i32_0 = arith.constant 0 : i32
    %c0_i32_1 = arith.constant 0 : i32
    return %c0_i32, %c0_i32_0 : i32, i32
  }
  func.func @transform_2(%arg0: i32) -> (i32, i32) {
    %c0_i32 = arith.constant 0 : i32
    %c0_i32_0 = arith.constant 0 : i32
    %c0_i32_1 = arith.constant 0 : i32
    return %c0_i32, %c0_i32_0 : i32, i32
  }
  func.func @transform_3(%arg0: i32) -> (i32, i32) {
    %c0_i32 = arith.constant 0 : i32
    %c0_i32_0 = arith.constant 0 : i32
    %c0_i32_1 = arith.constant 0 : i32
    return %c0_i32, %c0_i32_0 : i32, i32
  }
  func.func @transform_4(%arg0: i32) -> (i32, i32) {
    %c0_i32 = arith.constant 0 : i32
    %c0_i32_0 = arith.constant 0 : i32
    %c0_i32_1 = arith.constant 0 : i32
    return %c0_i32, %c0_i32_0 : i32, i32
  }
  func.func @transform_5(%arg0: i32) -> (i32, i32) {
    %c0_i32 = arith.constant 0 : i32
    %c0_i32_0 = arith.constant 0 : i32
    %c0_i32_1 = arith.constant 0 : i32
    return %c0_i32, %c0_i32_0 : i32, i32
  }
  func.func @transform_6(%arg0: i32) -> (i32, i32) {
    %c0_i32 = arith.constant 0 : i32
    %c0_i32_0 = arith.constant 0 : i32
    %c0_i32_1 = arith.constant 0 : i32
    return %c0_i32, %c0_i32_0 : i32, i32
  }
  func.func @transform_7(%arg0: i32) -> (i32, i32) {
    %c0_i32 = arith.constant 0 : i32
    %c0_i32_0 = arith.constant 0 : i32
    %c0_i32_1 = arith.constant 0 : i32
    return %c0_i32, %c0_i32_0 : i32, i32
  }
  func.func @transform_8(%arg0: i32) -> (i32, i32) {
    %c0_i32 = arith.constant 0 : i32
    %c0_i32_0 = arith.constant 0 : i32
    %c0_i32_1 = arith.constant 0 : i32
    return %c0_i32, %c0_i32_0 : i32, i32
  }
  func.func @transform_9(%arg0: i32) -> (i32, i32) {
    %c0_i32 = arith.constant 0 : i32
    %c0_i32_0 = arith.constant 0 : i32
    %c0_i32_1 = arith.constant 0 : i32
    return %c0_i32, %c0_i32_0 : i32, i32
  }
  func.func @transform_10(%arg0: i32) -> (i32, i32) {
    %c0_i32 = arith.constant 0 : i32
    %c0_i32_0 = arith.constant 0 : i32
    %c0_i32_1 = arith.constant 0 : i32
    return %c0_i32, %c0_i32_0 : i32, i32
  }
  func.func @transform_11(%arg0: i32) -> (i32, i32) {
    %c0_i32 = arith.constant 0 : i32
    %c0_i32_0 = arith.constant 0 : i32
    %c0_i32_1 = arith.constant 0 : i32
    return %c0_i32, %c0_i32_0 : i32, i32
  }
  func.func @transform_12(%arg0: i32) -> (i32, i32) {
    %c0_i32 = arith.constant 0 : i32
    %c0_i32_0 = arith.constant 0 : i32
    %c0_i32_1 = arith.constant 0 : i32
    return %c0_i32, %c0_i32_0 : i32, i32
  }
  func.func @transform_13(%arg0: i32) -> (i32, i32) {
    %c0_i32 = arith.constant 0 : i32
    %c0_i32_0 = arith.constant 0 : i32
    %c0_i32_1 = arith.constant 0 : i32
    return %c0_i32, %c0_i32_0 : i32, i32
  }
  func.func @transform_14(%arg0: i32) -> (i32, i32) {
    %c0_i32 = arith.constant 0 : i32
    %c0_i32_0 = arith.constant 0 : i32
    %c0_i32_1 = arith.constant 0 : i32
    return %c0_i32, %c0_i32_0 : i32, i32
  }
}

module attributes {stable_mosaic.version = 11 : i64} {
  func.func @tail_kernel(%arg0: i32, %arg1: memref<8x64xf32, #tpu.memory_space<vmem>>, %arg2: memref<8x64xf32, #tpu.memory_space<vmem>>, %arg3: memref<16x96xf32, #tpu.memory_space<vmem>>, %arg4: memref<8x16xf32, #tpu.memory_space<vmem>>, %arg5: memref<1x64xf32, #tpu.memory_space<vmem>>, %arg6: memref<1x64xf32, #tpu.memory_space<vmem>>, %arg7: memref<64x128xbf16, #tpu.memory_space<vmem>>, %arg8: memref<96x128xbf16, #tpu.memory_space<vmem>>, %arg9: memref<1x128xf32, #tpu.memory_space<vmem>>, %arg10: memref<128x128xbf16, #tpu.memory_space<vmem>>, %arg11: memref<128x256xbf16, #tpu.memory_space<vmem>>, %arg12: memref<128x128xbf16, #tpu.memory_space<vmem>>, %arg13: memref<1x128xf32, #tpu.memory_space<vmem>>, %arg14: memref<128x256xbf16, #tpu.memory_space<vmem>>, %arg15: memref<1x256xf32, #tpu.memory_space<vmem>>, %arg16: memref<256x128xbf16, #tpu.memory_space<vmem>>, %arg17: memref<1x128xf32, #tpu.memory_space<vmem>>, %arg18: memref<128x64xbf16, #tpu.memory_space<vmem>>, %arg19: memref<1x64xf32, #tpu.memory_space<vmem>>, %arg20: memref<64x1xbf16, #tpu.memory_space<vmem>>, %arg21: memref<1x1xf32, #tpu.memory_space<vmem>>, %arg22: memref<8x1xf32, #tpu.memory_space<vmem>>) attributes {dimension_semantics = [#tpu.dimension_semantics<arbitrary>], iteration_bounds = array<i64: 1>, scalar_prefetch = 0 : i64, scratch_operands = 0 : i64, tpu.core_type = #tpu.core_type<tc>, window_params = [{pipeline_mode = #tpu.pipeline_mode<synchronous>, transform_indices = @transform_0, window_bounds = array<i64: 8, 64>}, {pipeline_mode = #tpu.pipeline_mode<synchronous>, transform_indices = @transform_1, window_bounds = array<i64: 8, 64>}, {pipeline_mode = #tpu.pipeline_mode<synchronous>, transform_indices = @transform_2, window_bounds = array<i64: 16, 96>}, {pipeline_mode = #tpu.pipeline_mode<synchronous>, transform_indices = @transform_3, window_bounds = array<i64: 8, 16>}, {pipeline_mode = #tpu.pipeline_mode<synchronous>, transform_indices = @transform_4, window_bounds = array<i64: 1, 64>}, {pipeline_mode = #tpu.pipeline_mode<synchronous>, transform_indices = @transform_5, window_bounds = array<i64: 1, 64>}, {pipeline_mode = #tpu.pipeline_mode<synchronous>, transform_indices = @transform_6, window_bounds = array<i64: 64, 128>}, {pipeline_mode = #tpu.pipeline_mode<synchronous>, transform_indices = @transform_7, window_bounds = array<i64: 96, 128>}, {pipeline_mode = #tpu.pipeline_mode<synchronous>, transform_indices = @transform_8, window_bounds = array<i64: 1, 128>}, {pipeline_mode = #tpu.pipeline_mode<synchronous>, transform_indices = @transform_9, window_bounds = array<i64: 128, 128>}, {pipeline_mode = #tpu.pipeline_mode<synchronous>, transform_indices = @transform_10, window_bounds = array<i64: 128, 256>}, {pipeline_mode = #tpu.pipeline_mode<synchronous>, transform_indices = @transform_11, window_bounds = array<i64: 128, 128>}, {pipeline_mode = #tpu.pipeline_mode<synchronous>, transform_indices = @transform_12, window_bounds = array<i64: 1, 128>}, {pipeline_mode = #tpu.pipeline_mode<synchronous>, transform_indices = @transform_13, window_bounds = array<i64: 128, 256>}, {pipeline_mode = #tpu.pipeline_mode<synchronous>, transform_indices = @transform_14, window_bounds = array<i64: 1, 256>}, {pipeline_mode = #tpu.pipeline_mode<synchronous>, transform_indices = @transform_15, window_bounds = array<i64: 256, 128>}, {pipeline_mode = #tpu.pipeline_mode<synchronous>, transform_indices = @transform_16, window_bounds = array<i64: 1, 128>}, {pipeline_mode = #tpu.pipeline_mode<synchronous>, transform_indices = @transform_17, window_bounds = array<i64: 128, 64>}, {pipeline_mode = #tpu.pipeline_mode<synchronous>, transform_indices = @transform_18, window_bounds = array<i64: 1, 64>}, {pipeline_mode = #tpu.pipeline_mode<synchronous>, transform_indices = @transform_19, window_bounds = array<i64: 64, 1>}, {pipeline_mode = #tpu.pipeline_mode<synchronous>, transform_indices = @transform_20, window_bounds = array<i64: 1, 1>}, {pipeline_mode = #tpu.pipeline_mode<synchronous>, transform_indices = @transform_21, window_bounds = array<i64: 8, 1>}]} {
    %c0 = arith.constant 0 : index
    %c0_0 = arith.constant 0 : index
    %0 = vector.load %arg1[%c0, %c0_0] : memref<8x64xf32, #tpu.memory_space<vmem>>, vector<8x64xf32>
    %c0_1 = arith.constant 0 : index
    %c0_2 = arith.constant 0 : index
    %1 = vector.load %arg5[%c0_1, %c0_2] : memref<1x64xf32, #tpu.memory_space<vmem>>, vector<1x64xf32>
    %c0_3 = arith.constant 0 : index
    %c0_4 = arith.constant 0 : index
    %2 = vector.load %arg6[%c0_3, %c0_4] : memref<1x64xf32, #tpu.memory_space<vmem>>, vector<1x64xf32>
    %cst = arith.constant dense<0.000000e+00> : vector<8xf32>
    %3 = vector.multi_reduction <add>, %0, %cst [1] : vector<8x64xf32> to vector<8xf32>
    %4 = vector.shape_cast %3 : vector<8xf32> to vector<8x1xf32>
    %cst_5 = arith.constant 6.400000e+01 : f32
    %5 = vector.broadcast %cst_5 : f32 to vector<8x1xf32>
    %6 = arith.divf %4, %5 : vector<8x1xf32>
    %7 = vector.broadcast %6 : vector<8x1xf32> to vector<8x64xf32>
    %8 = arith.subf %0, %7 : vector<8x64xf32>
    %9 = arith.mulf %8, %8 : vector<8x64xf32>
    %cst_6 = arith.constant dense<0.000000e+00> : vector<8xf32>
    %10 = vector.multi_reduction <add>, %9, %cst_6 [1] : vector<8x64xf32> to vector<8xf32>
    %11 = vector.shape_cast %10 : vector<8xf32> to vector<8x1xf32>
    %cst_7 = arith.constant 6.400000e+01 : f32
    %12 = vector.broadcast %cst_7 : f32 to vector<8x1xf32>
    %13 = arith.divf %11, %12 : vector<8x1xf32>
    %cst_8 = arith.constant 9.99999974E-6 : f32
    %14 = vector.broadcast %cst_8 : f32 to vector<8x1xf32>
    %15 = arith.addf %13, %14 : vector<8x1xf32>
    %16 = math.rsqrt %15 : vector<8x1xf32>
    %17 = vector.broadcast %16 : vector<8x1xf32> to vector<8x64xf32>
    %18 = arith.mulf %8, %17 : vector<8x64xf32>
    %19 = vector.broadcast %1 : vector<1x64xf32> to vector<8x64xf32>
    %20 = arith.mulf %18, %19 : vector<8x64xf32>
    %21 = vector.broadcast %2 : vector<1x64xf32> to vector<8x64xf32>
    %22 = arith.addf %20, %21 : vector<8x64xf32>
    %c0_9 = arith.constant 0 : index
    %c0_10 = arith.constant 0 : index
    %23 = vector.load %arg7[%c0_9, %c0_10] : memref<64x128xbf16, #tpu.memory_space<vmem>>, vector<64x128xbf16>
    %24 = arith.truncf %22 : vector<8x64xf32> to vector<8x64xbf16>
    %cst_11 = arith.constant dense<0.000000e+00> : vector<8x128xf32>
    %25 = tpu.matmul %24, %23, %cst_11 {dimension_numbers = #tpu.dot_dimension_numbers<[1], [0], [0], [1], [0, 0, 1, 1], [], []>} : vector<8x64xbf16>, vector<64x128xbf16>, vector<8x128xf32> -> vector<8x128xf32>
    %c0_12 = arith.constant 0 : index
    %c0_13 = arith.constant 0 : index
    %26 = vector.load %arg2[%c0_12, %c0_13] : memref<8x64xf32, #tpu.memory_space<vmem>>, vector<8x64xf32>
    %c0_14 = arith.constant 0 : index
    %c0_15 = arith.constant 0 : index
    %27 = vector.load %arg5[%c0_14, %c0_15] : memref<1x64xf32, #tpu.memory_space<vmem>>, vector<1x64xf32>
    %c0_16 = arith.constant 0 : index
    %c0_17 = arith.constant 0 : index
    %28 = vector.load %arg6[%c0_16, %c0_17] : memref<1x64xf32, #tpu.memory_space<vmem>>, vector<1x64xf32>
    %cst_18 = arith.constant dense<0.000000e+00> : vector<8xf32>
    %29 = vector.multi_reduction <add>, %26, %cst_18 [1] : vector<8x64xf32> to vector<8xf32>
    %30 = vector.shape_cast %29 : vector<8xf32> to vector<8x1xf32>
    %cst_19 = arith.constant 6.400000e+01 : f32
    %31 = vector.broadcast %cst_19 : f32 to vector<8x1xf32>
    %32 = arith.divf %30, %31 : vector<8x1xf32>
    %33 = vector.broadcast %32 : vector<8x1xf32> to vector<8x64xf32>
    %34 = arith.subf %26, %33 : vector<8x64xf32>
    %35 = arith.mulf %34, %34 : vector<8x64xf32>
    %cst_20 = arith.constant dense<0.000000e+00> : vector<8xf32>
    %36 = vector.multi_reduction <add>, %35, %cst_20 [1] : vector<8x64xf32> to vector<8xf32>
    %37 = vector.shape_cast %36 : vector<8xf32> to vector<8x1xf32>
    %cst_21 = arith.constant 6.400000e+01 : f32
    %38 = vector.broadcast %cst_21 : f32 to vector<8x1xf32>
    %39 = arith.divf %37, %38 : vector<8x1xf32>
    %cst_22 = arith.constant 9.99999974E-6 : f32
    %40 = vector.broadcast %cst_22 : f32 to vector<8x1xf32>
    %41 = arith.addf %39, %40 : vector<8x1xf32>
    %42 = math.rsqrt %41 : vector<8x1xf32>
    %43 = vector.broadcast %42 : vector<8x1xf32> to vector<8x64xf32>
    %44 = arith.mulf %34, %43 : vector<8x64xf32>
    %45 = vector.broadcast %27 : vector<1x64xf32> to vector<8x64xf32>
    %46 = arith.mulf %44, %45 : vector<8x64xf32>
    %47 = vector.broadcast %28 : vector<1x64xf32> to vector<8x64xf32>
    %48 = arith.addf %46, %47 : vector<8x64xf32>
    %c0_23 = arith.constant 0 : index
    %c0_24 = arith.constant 0 : index
    %49 = vector.load %arg7[%c0_23, %c0_24] : memref<64x128xbf16, #tpu.memory_space<vmem>>, vector<64x128xbf16>
    %50 = arith.truncf %48 : vector<8x64xf32> to vector<8x64xbf16>
    %cst_25 = arith.constant dense<0.000000e+00> : vector<8x128xf32>
    %51 = tpu.matmul %50, %49, %cst_25 {dimension_numbers = #tpu.dot_dimension_numbers<[1], [0], [0], [1], [0, 0, 1, 1], [], []>} : vector<8x64xbf16>, vector<64x128xbf16>, vector<8x128xf32> -> vector<8x128xf32>
    %c0_26 = arith.constant 0 : index
    %c0_27 = arith.constant 0 : index
    %52 = vector.load %arg3[%c0_26, %c0_27] : memref<16x96xf32, #tpu.memory_space<vmem>>, vector<16x96xf32>
    %c0_28 = arith.constant 0 : index
    %c0_29 = arith.constant 0 : index
    %53 = vector.load %arg8[%c0_28, %c0_29] : memref<96x128xbf16, #tpu.memory_space<vmem>>, vector<96x128xbf16>
    %54 = arith.truncf %52 : vector<16x96xf32> to vector<16x96xbf16>
    %cst_30 = arith.constant dense<0.000000e+00> : vector<16x128xf32>
    %55 = tpu.matmul %54, %53, %cst_30 {dimension_numbers = #tpu.dot_dimension_numbers<[1], [0], [0], [1], [0, 0, 1, 1], [], []>} : vector<16x96xbf16>, vector<96x128xbf16>, vector<16x128xf32> -> vector<16x128xf32>
    %c0_31 = arith.constant 0 : index
    %c0_32 = arith.constant 0 : index
    %56 = vector.load %arg9[%c0_31, %c0_32] : memref<1x128xf32, #tpu.memory_space<vmem>>, vector<1x128xf32>
    %57 = vector.broadcast %56 : vector<1x128xf32> to vector<16x128xf32>
    %58 = arith.addf %55, %57 : vector<16x128xf32>
    %c0_33 = arith.constant 0 : index
    %c0_34 = arith.constant 0 : index
    %59 = vector.load %arg10[%c0_33, %c0_34] : memref<128x128xbf16, #tpu.memory_space<vmem>>, vector<128x128xbf16>
    %60 = arith.truncf %25 : vector<8x128xf32> to vector<8x128xbf16>
    %cst_35 = arith.constant dense<0.000000e+00> : vector<8x128xf32>
    %61 = tpu.matmul %60, %59, %cst_35 {dimension_numbers = #tpu.dot_dimension_numbers<[1], [0], [0], [1], [0, 0, 1, 1], [], []>} : vector<8x128xbf16>, vector<128x128xbf16>, vector<8x128xf32> -> vector<8x128xf32>
    %c0_36 = arith.constant 0 : index
    %c0_37 = arith.constant 0 : index
    %62 = vector.load %arg11[%c0_36, %c0_37] : memref<128x256xbf16, #tpu.memory_space<vmem>>, vector<128x256xbf16>
    %63 = arith.truncf %58 : vector<16x128xf32> to vector<16x128xbf16>
    %cst_38 = arith.constant dense<0.000000e+00> : vector<16x256xf32>
    %64 = tpu.matmul %63, %62, %cst_38 {dimension_numbers = #tpu.dot_dimension_numbers<[1], [0], [0], [1], [0, 0, 1, 1], [], []>} : vector<16x128xbf16>, vector<128x256xbf16>, vector<16x256xf32> -> vector<16x256xf32>
    %65 = vector.extract_strided_slice %64 {offsets = [0, 0], sizes = [16, 128], strides = [1, 1]} : vector<16x256xf32> to vector<16x128xf32>
    %66 = vector.extract_strided_slice %64 {offsets = [0, 128], sizes = [16, 128], strides = [1, 1]} : vector<16x256xf32> to vector<16x128xf32>
    %c0_39 = arith.constant 0 : index
    %c0_40 = arith.constant 0 : index
    %67 = vector.load %arg4[%c0_39, %c0_40] : memref<8x16xf32, #tpu.memory_space<vmem>>, vector<8x16xf32>
    %cst_41 = arith.constant 2.500000e-01 : f32
    %68 = vector.broadcast %cst_41 : f32 to vector<8x128xf32>
    %69 = arith.mulf %61, %68 : vector<8x128xf32>
    %70 = vector.extract_strided_slice %69 {offsets = [0, 0], sizes = [8, 16], strides = [1, 1]} : vector<8x128xf32> to vector<8x16xf32>
    %71 = arith.truncf %70 : vector<8x16xf32> to vector<8x16xbf16>
    %72 = vector.extract_strided_slice %65 {offsets = [0, 0], sizes = [16, 16], strides = [1, 1]} : vector<16x128xf32> to vector<16x16xf32>
    %73 = arith.truncf %72 : vector<16x16xf32> to vector<16x16xbf16>
    "tpu.trace_start"() <{level = 10 : i32, message = "md,nd->mn"}> : () -> ()
    %cst_42 = arith.constant dense<0.000000e+00> : vector<8x16xf32>
    %74 = tpu.matmul %71, %73, %cst_42 {dimension_numbers = #tpu.dot_dimension_numbers<[1], [1], [0], [0], [0, 0, 1, 0], [], []>} : vector<8x16xbf16>, vector<16x16xbf16>, vector<8x16xf32> -> vector<8x16xf32>
    "tpu.trace_stop"() : () -> ()
    %75 = arith.addf %74, %67 : vector<8x16xf32>
    %cst_43 = arith.constant dense<0xFF800000> : vector<8xf32>
    %76 = vector.multi_reduction <maximumf>, %75, %cst_43 [1] : vector<8x16xf32> to vector<8xf32>
    %77 = vector.shape_cast %76 : vector<8xf32> to vector<8x1xf32>
    %78 = vector.broadcast %77 : vector<8x1xf32> to vector<8x16xf32>
    %79 = arith.subf %75, %78 : vector<8x16xf32>
    %80 = math.exp %79 : vector<8x16xf32>
    %cst_44 = arith.constant dense<0.000000e+00> : vector<8xf32>
    %81 = vector.multi_reduction <add>, %80, %cst_44 [1] : vector<8x16xf32> to vector<8xf32>
    %82 = vector.shape_cast %81 : vector<8xf32> to vector<8x1xf32>
    %83 = tpu.reciprocal %82 {approx = true} : vector<8x1xf32> -> vector<8x1xf32>
    %84 = vector.broadcast %83 : vector<8x1xf32> to vector<8x16xf32>
    %85 = arith.mulf %80, %84 : vector<8x16xf32>
    %86 = arith.truncf %85 : vector<8x16xf32> to vector<8x16xbf16>
    %87 = vector.extract_strided_slice %66 {offsets = [0, 0], sizes = [16, 16], strides = [1, 1]} : vector<16x128xf32> to vector<16x16xf32>
    %88 = arith.truncf %87 : vector<16x16xf32> to vector<16x16xbf16>
    %cst_45 = arith.constant dense<0.000000e+00> : vector<8x16xf32>
    %89 = tpu.matmul %86, %88, %cst_45 {dimension_numbers = #tpu.dot_dimension_numbers<[1], [0], [0], [1], [0, 0, 1, 1], [], []>} : vector<8x16xbf16>, vector<16x16xbf16>, vector<8x16xf32> -> vector<8x16xf32>
    %90 = vector.extract_strided_slice %69 {offsets = [0, 16], sizes = [8, 16], strides = [1, 1]} : vector<8x128xf32> to vector<8x16xf32>
    %91 = arith.truncf %90 : vector<8x16xf32> to vector<8x16xbf16>
    %92 = vector.extract_strided_slice %65 {offsets = [0, 16], sizes = [16, 16], strides = [1, 1]} : vector<16x128xf32> to vector<16x16xf32>
    %93 = arith.truncf %92 : vector<16x16xf32> to vector<16x16xbf16>
    "tpu.trace_start"() <{level = 10 : i32, message = "md,nd->mn"}> : () -> ()
    %cst_46 = arith.constant dense<0.000000e+00> : vector<8x16xf32>
    %94 = tpu.matmul %91, %93, %cst_46 {dimension_numbers = #tpu.dot_dimension_numbers<[1], [1], [0], [0], [0, 0, 1, 0], [], []>} : vector<8x16xbf16>, vector<16x16xbf16>, vector<8x16xf32> -> vector<8x16xf32>
    "tpu.trace_stop"() : () -> ()
    %95 = arith.addf %94, %67 : vector<8x16xf32>
    %cst_47 = arith.constant dense<0xFF800000> : vector<8xf32>
    %96 = vector.multi_reduction <maximumf>, %95, %cst_47 [1] : vector<8x16xf32> to vector<8xf32>
    %97 = vector.shape_cast %96 : vector<8xf32> to vector<8x1xf32>
    %98 = vector.broadcast %97 : vector<8x1xf32> to vector<8x16xf32>
    %99 = arith.subf %95, %98 : vector<8x16xf32>
    %100 = math.exp %99 : vector<8x16xf32>
    %cst_48 = arith.constant dense<0.000000e+00> : vector<8xf32>
    %101 = vector.multi_reduction <add>, %100, %cst_48 [1] : vector<8x16xf32> to vector<8xf32>
    %102 = vector.shape_cast %101 : vector<8xf32> to vector<8x1xf32>
    %103 = tpu.reciprocal %102 {approx = true} : vector<8x1xf32> -> vector<8x1xf32>
    %104 = vector.broadcast %103 : vector<8x1xf32> to vector<8x16xf32>
    %105 = arith.mulf %100, %104 : vector<8x16xf32>
    %106 = arith.truncf %105 : vector<8x16xf32> to vector<8x16xbf16>
    %107 = vector.extract_strided_slice %66 {offsets = [0, 16], sizes = [16, 16], strides = [1, 1]} : vector<16x128xf32> to vector<16x16xf32>
    %108 = arith.truncf %107 : vector<16x16xf32> to vector<16x16xbf16>
    %cst_49 = arith.constant dense<0.000000e+00> : vector<8x16xf32>
    %109 = tpu.matmul %106, %108, %cst_49 {dimension_numbers = #tpu.dot_dimension_numbers<[1], [0], [0], [1], [0, 0, 1, 1], [], []>} : vector<8x16xbf16>, vector<16x16xbf16>, vector<8x16xf32> -> vector<8x16xf32>
    %110 = vector.extract_strided_slice %69 {offsets = [0, 32], sizes = [8, 16], strides = [1, 1]} : vector<8x128xf32> to vector<8x16xf32>
    %111 = arith.truncf %110 : vector<8x16xf32> to vector<8x16xbf16>
    %112 = vector.extract_strided_slice %65 {offsets = [0, 32], sizes = [16, 16], strides = [1, 1]} : vector<16x128xf32> to vector<16x16xf32>
    %113 = arith.truncf %112 : vector<16x16xf32> to vector<16x16xbf16>
    "tpu.trace_start"() <{level = 10 : i32, message = "md,nd->mn"}> : () -> ()
    %cst_50 = arith.constant dense<0.000000e+00> : vector<8x16xf32>
    %114 = tpu.matmul %111, %113, %cst_50 {dimension_numbers = #tpu.dot_dimension_numbers<[1], [1], [0], [0], [0, 0, 1, 0], [], []>} : vector<8x16xbf16>, vector<16x16xbf16>, vector<8x16xf32> -> vector<8x16xf32>
    "tpu.trace_stop"() : () -> ()
    %115 = arith.addf %114, %67 : vector<8x16xf32>
    %cst_51 = arith.constant dense<0xFF800000> : vector<8xf32>
    %116 = vector.multi_reduction <maximumf>, %115, %cst_51 [1] : vector<8x16xf32> to vector<8xf32>
    %117 = vector.shape_cast %116 : vector<8xf32> to vector<8x1xf32>
    %118 = vector.broadcast %117 : vector<8x1xf32> to vector<8x16xf32>
    %119 = arith.subf %115, %118 : vector<8x16xf32>
    %120 = math.exp %119 : vector<8x16xf32>
    %cst_52 = arith.constant dense<0.000000e+00> : vector<8xf32>
    %121 = vector.multi_reduction <add>, %120, %cst_52 [1] : vector<8x16xf32> to vector<8xf32>
    %122 = vector.shape_cast %121 : vector<8xf32> to vector<8x1xf32>
    %123 = tpu.reciprocal %122 {approx = true} : vector<8x1xf32> -> vector<8x1xf32>
    %124 = vector.broadcast %123 : vector<8x1xf32> to vector<8x16xf32>
    %125 = arith.mulf %120, %124 : vector<8x16xf32>
    %126 = arith.truncf %125 : vector<8x16xf32> to vector<8x16xbf16>
    %127 = vector.extract_strided_slice %66 {offsets = [0, 32], sizes = [16, 16], strides = [1, 1]} : vector<16x128xf32> to vector<16x16xf32>
    %128 = arith.truncf %127 : vector<16x16xf32> to vector<16x16xbf16>
    %cst_53 = arith.constant dense<0.000000e+00> : vector<8x16xf32>
    %129 = tpu.matmul %126, %128, %cst_53 {dimension_numbers = #tpu.dot_dimension_numbers<[1], [0], [0], [1], [0, 0, 1, 1], [], []>} : vector<8x16xbf16>, vector<16x16xbf16>, vector<8x16xf32> -> vector<8x16xf32>
    %130 = vector.extract_strided_slice %69 {offsets = [0, 48], sizes = [8, 16], strides = [1, 1]} : vector<8x128xf32> to vector<8x16xf32>
    %131 = arith.truncf %130 : vector<8x16xf32> to vector<8x16xbf16>
    %132 = vector.extract_strided_slice %65 {offsets = [0, 48], sizes = [16, 16], strides = [1, 1]} : vector<16x128xf32> to vector<16x16xf32>
    %133 = arith.truncf %132 : vector<16x16xf32> to vector<16x16xbf16>
    "tpu.trace_start"() <{level = 10 : i32, message = "md,nd->mn"}> : () -> ()
    %cst_54 = arith.constant dense<0.000000e+00> : vector<8x16xf32>
    %134 = tpu.matmul %131, %133, %cst_54 {dimension_numbers = #tpu.dot_dimension_numbers<[1], [1], [0], [0], [0, 0, 1, 0], [], []>} : vector<8x16xbf16>, vector<16x16xbf16>, vector<8x16xf32> -> vector<8x16xf32>
    "tpu.trace_stop"() : () -> ()
    %135 = arith.addf %134, %67 : vector<8x16xf32>
    %cst_55 = arith.constant dense<0xFF800000> : vector<8xf32>
    %136 = vector.multi_reduction <maximumf>, %135, %cst_55 [1] : vector<8x16xf32> to vector<8xf32>
    %137 = vector.shape_cast %136 : vector<8xf32> to vector<8x1xf32>
    %138 = vector.broadcast %137 : vector<8x1xf32> to vector<8x16xf32>
    %139 = arith.subf %135, %138 : vector<8x16xf32>
    %140 = math.exp %139 : vector<8x16xf32>
    %cst_56 = arith.constant dense<0.000000e+00> : vector<8xf32>
    %141 = vector.multi_reduction <add>, %140, %cst_56 [1] : vector<8x16xf32> to vector<8xf32>
    %142 = vector.shape_cast %141 : vector<8xf32> to vector<8x1xf32>
    %143 = tpu.reciprocal %142 {approx = true} : vector<8x1xf32> -> vector<8x1xf32>
    %144 = vector.broadcast %143 : vector<8x1xf32> to vector<8x16xf32>
    %145 = arith.mulf %140, %144 : vector<8x16xf32>
    %146 = arith.truncf %145 : vector<8x16xf32> to vector<8x16xbf16>
    %147 = vector.extract_strided_slice %66 {offsets = [0, 48], sizes = [16, 16], strides = [1, 1]} : vector<16x128xf32> to vector<16x16xf32>
    %148 = arith.truncf %147 : vector<16x16xf32> to vector<16x16xbf16>
    %cst_57 = arith.constant dense<0.000000e+00> : vector<8x16xf32>
    %149 = tpu.matmul %146, %148, %cst_57 {dimension_numbers = #tpu.dot_dimension_numbers<[1], [0], [0], [1], [0, 0, 1, 1], [], []>} : vector<8x16xbf16>, vector<16x16xbf16>, vector<8x16xf32> -> vector<8x16xf32>
    %150 = vector.extract_strided_slice %69 {offsets = [0, 64], sizes = [8, 16], strides = [1, 1]} : vector<8x128xf32> to vector<8x16xf32>
    %151 = arith.truncf %150 : vector<8x16xf32> to vector<8x16xbf16>
    %152 = vector.extract_strided_slice %65 {offsets = [0, 64], sizes = [16, 16], strides = [1, 1]} : vector<16x128xf32> to vector<16x16xf32>
    %153 = arith.truncf %152 : vector<16x16xf32> to vector<16x16xbf16>
    "tpu.trace_start"() <{level = 10 : i32, message = "md,nd->mn"}> : () -> ()
    %cst_58 = arith.constant dense<0.000000e+00> : vector<8x16xf32>
    %154 = tpu.matmul %151, %153, %cst_58 {dimension_numbers = #tpu.dot_dimension_numbers<[1], [1], [0], [0], [0, 0, 1, 0], [], []>} : vector<8x16xbf16>, vector<16x16xbf16>, vector<8x16xf32> -> vector<8x16xf32>
    "tpu.trace_stop"() : () -> ()
    %155 = arith.addf %154, %67 : vector<8x16xf32>
    %cst_59 = arith.constant dense<0xFF800000> : vector<8xf32>
    %156 = vector.multi_reduction <maximumf>, %155, %cst_59 [1] : vector<8x16xf32> to vector<8xf32>
    %157 = vector.shape_cast %156 : vector<8xf32> to vector<8x1xf32>
    %158 = vector.broadcast %157 : vector<8x1xf32> to vector<8x16xf32>
    %159 = arith.subf %155, %158 : vector<8x16xf32>
    %160 = math.exp %159 : vector<8x16xf32>
    %cst_60 = arith.constant dense<0.000000e+00> : vector<8xf32>
    %161 = vector.multi_reduction <add>, %160, %cst_60 [1] : vector<8x16xf32> to vector<8xf32>
    %162 = vector.shape_cast %161 : vector<8xf32> to vector<8x1xf32>
    %163 = tpu.reciprocal %162 {approx = true} : vector<8x1xf32> -> vector<8x1xf32>
    %164 = vector.broadcast %163 : vector<8x1xf32> to vector<8x16xf32>
    %165 = arith.mulf %160, %164 : vector<8x16xf32>
    %166 = arith.truncf %165 : vector<8x16xf32> to vector<8x16xbf16>
    %167 = vector.extract_strided_slice %66 {offsets = [0, 64], sizes = [16, 16], strides = [1, 1]} : vector<16x128xf32> to vector<16x16xf32>
    %168 = arith.truncf %167 : vector<16x16xf32> to vector<16x16xbf16>
    %cst_61 = arith.constant dense<0.000000e+00> : vector<8x16xf32>
    %169 = tpu.matmul %166, %168, %cst_61 {dimension_numbers = #tpu.dot_dimension_numbers<[1], [0], [0], [1], [0, 0, 1, 1], [], []>} : vector<8x16xbf16>, vector<16x16xbf16>, vector<8x16xf32> -> vector<8x16xf32>
    %170 = vector.extract_strided_slice %69 {offsets = [0, 80], sizes = [8, 16], strides = [1, 1]} : vector<8x128xf32> to vector<8x16xf32>
    %171 = arith.truncf %170 : vector<8x16xf32> to vector<8x16xbf16>
    %172 = vector.extract_strided_slice %65 {offsets = [0, 80], sizes = [16, 16], strides = [1, 1]} : vector<16x128xf32> to vector<16x16xf32>
    %173 = arith.truncf %172 : vector<16x16xf32> to vector<16x16xbf16>
    "tpu.trace_start"() <{level = 10 : i32, message = "md,nd->mn"}> : () -> ()
    %cst_62 = arith.constant dense<0.000000e+00> : vector<8x16xf32>
    %174 = tpu.matmul %171, %173, %cst_62 {dimension_numbers = #tpu.dot_dimension_numbers<[1], [1], [0], [0], [0, 0, 1, 0], [], []>} : vector<8x16xbf16>, vector<16x16xbf16>, vector<8x16xf32> -> vector<8x16xf32>
    "tpu.trace_stop"() : () -> ()
    %175 = arith.addf %174, %67 : vector<8x16xf32>
    %cst_63 = arith.constant dense<0xFF800000> : vector<8xf32>
    %176 = vector.multi_reduction <maximumf>, %175, %cst_63 [1] : vector<8x16xf32> to vector<8xf32>
    %177 = vector.shape_cast %176 : vector<8xf32> to vector<8x1xf32>
    %178 = vector.broadcast %177 : vector<8x1xf32> to vector<8x16xf32>
    %179 = arith.subf %175, %178 : vector<8x16xf32>
    %180 = math.exp %179 : vector<8x16xf32>
    %cst_64 = arith.constant dense<0.000000e+00> : vector<8xf32>
    %181 = vector.multi_reduction <add>, %180, %cst_64 [1] : vector<8x16xf32> to vector<8xf32>
    %182 = vector.shape_cast %181 : vector<8xf32> to vector<8x1xf32>
    %183 = tpu.reciprocal %182 {approx = true} : vector<8x1xf32> -> vector<8x1xf32>
    %184 = vector.broadcast %183 : vector<8x1xf32> to vector<8x16xf32>
    %185 = arith.mulf %180, %184 : vector<8x16xf32>
    %186 = arith.truncf %185 : vector<8x16xf32> to vector<8x16xbf16>
    %187 = vector.extract_strided_slice %66 {offsets = [0, 80], sizes = [16, 16], strides = [1, 1]} : vector<16x128xf32> to vector<16x16xf32>
    %188 = arith.truncf %187 : vector<16x16xf32> to vector<16x16xbf16>
    %cst_65 = arith.constant dense<0.000000e+00> : vector<8x16xf32>
    %189 = tpu.matmul %186, %188, %cst_65 {dimension_numbers = #tpu.dot_dimension_numbers<[1], [0], [0], [1], [0, 0, 1, 1], [], []>} : vector<8x16xbf16>, vector<16x16xbf16>, vector<8x16xf32> -> vector<8x16xf32>
    %190 = vector.extract_strided_slice %69 {offsets = [0, 96], sizes = [8, 16], strides = [1, 1]} : vector<8x128xf32> to vector<8x16xf32>
    %191 = arith.truncf %190 : vector<8x16xf32> to vector<8x16xbf16>
    %192 = vector.extract_strided_slice %65 {offsets = [0, 96], sizes = [16, 16], strides = [1, 1]} : vector<16x128xf32> to vector<16x16xf32>
    %193 = arith.truncf %192 : vector<16x16xf32> to vector<16x16xbf16>
    "tpu.trace_start"() <{level = 10 : i32, message = "md,nd->mn"}> : () -> ()
    %cst_66 = arith.constant dense<0.000000e+00> : vector<8x16xf32>
    %194 = tpu.matmul %191, %193, %cst_66 {dimension_numbers = #tpu.dot_dimension_numbers<[1], [1], [0], [0], [0, 0, 1, 0], [], []>} : vector<8x16xbf16>, vector<16x16xbf16>, vector<8x16xf32> -> vector<8x16xf32>
    "tpu.trace_stop"() : () -> ()
    %195 = arith.addf %194, %67 : vector<8x16xf32>
    %cst_67 = arith.constant dense<0xFF800000> : vector<8xf32>
    %196 = vector.multi_reduction <maximumf>, %195, %cst_67 [1] : vector<8x16xf32> to vector<8xf32>
    %197 = vector.shape_cast %196 : vector<8xf32> to vector<8x1xf32>
    %198 = vector.broadcast %197 : vector<8x1xf32> to vector<8x16xf32>
    %199 = arith.subf %195, %198 : vector<8x16xf32>
    %200 = math.exp %199 : vector<8x16xf32>
    %cst_68 = arith.constant dense<0.000000e+00> : vector<8xf32>
    %201 = vector.multi_reduction <add>, %200, %cst_68 [1] : vector<8x16xf32> to vector<8xf32>
    %202 = vector.shape_cast %201 : vector<8xf32> to vector<8x1xf32>
    %203 = tpu.reciprocal %202 {approx = true} : vector<8x1xf32> -> vector<8x1xf32>
    %204 = vector.broadcast %203 : vector<8x1xf32> to vector<8x16xf32>
    %205 = arith.mulf %200, %204 : vector<8x16xf32>
    %206 = arith.truncf %205 : vector<8x16xf32> to vector<8x16xbf16>
    %207 = vector.extract_strided_slice %66 {offsets = [0, 96], sizes = [16, 16], strides = [1, 1]} : vector<16x128xf32> to vector<16x16xf32>
    %208 = arith.truncf %207 : vector<16x16xf32> to vector<16x16xbf16>
    %cst_69 = arith.constant dense<0.000000e+00> : vector<8x16xf32>
    %209 = tpu.matmul %206, %208, %cst_69 {dimension_numbers = #tpu.dot_dimension_numbers<[1], [0], [0], [1], [0, 0, 1, 1], [], []>} : vector<8x16xbf16>, vector<16x16xbf16>, vector<8x16xf32> -> vector<8x16xf32>
    %210 = vector.extract_strided_slice %69 {offsets = [0, 112], sizes = [8, 16], strides = [1, 1]} : vector<8x128xf32> to vector<8x16xf32>
    %211 = arith.truncf %210 : vector<8x16xf32> to vector<8x16xbf16>
    %212 = vector.extract_strided_slice %65 {offsets = [0, 112], sizes = [16, 16], strides = [1, 1]} : vector<16x128xf32> to vector<16x16xf32>
    %213 = arith.truncf %212 : vector<16x16xf32> to vector<16x16xbf16>
    "tpu.trace_start"() <{level = 10 : i32, message = "md,nd->mn"}> : () -> ()
    %cst_70 = arith.constant dense<0.000000e+00> : vector<8x16xf32>
    %214 = tpu.matmul %211, %213, %cst_70 {dimension_numbers = #tpu.dot_dimension_numbers<[1], [1], [0], [0], [0, 0, 1, 0], [], []>} : vector<8x16xbf16>, vector<16x16xbf16>, vector<8x16xf32> -> vector<8x16xf32>
    "tpu.trace_stop"() : () -> ()
    %215 = arith.addf %214, %67 : vector<8x16xf32>
    %cst_71 = arith.constant dense<0xFF800000> : vector<8xf32>
    %216 = vector.multi_reduction <maximumf>, %215, %cst_71 [1] : vector<8x16xf32> to vector<8xf32>
    %217 = vector.shape_cast %216 : vector<8xf32> to vector<8x1xf32>
    %218 = vector.broadcast %217 : vector<8x1xf32> to vector<8x16xf32>
    %219 = arith.subf %215, %218 : vector<8x16xf32>
    %220 = math.exp %219 : vector<8x16xf32>
    %cst_72 = arith.constant dense<0.000000e+00> : vector<8xf32>
    %221 = vector.multi_reduction <add>, %220, %cst_72 [1] : vector<8x16xf32> to vector<8xf32>
    %222 = vector.shape_cast %221 : vector<8xf32> to vector<8x1xf32>
    %223 = tpu.reciprocal %222 {approx = true} : vector<8x1xf32> -> vector<8x1xf32>
    %224 = vector.broadcast %223 : vector<8x1xf32> to vector<8x16xf32>
    %225 = arith.mulf %220, %224 : vector<8x16xf32>
    %226 = arith.truncf %225 : vector<8x16xf32> to vector<8x16xbf16>
    %227 = vector.extract_strided_slice %66 {offsets = [0, 112], sizes = [16, 16], strides = [1, 1]} : vector<16x128xf32> to vector<16x16xf32>
    %228 = arith.truncf %227 : vector<16x16xf32> to vector<16x16xbf16>
    %cst_73 = arith.constant dense<0.000000e+00> : vector<8x16xf32>
    %229 = tpu.matmul %226, %228, %cst_73 {dimension_numbers = #tpu.dot_dimension_numbers<[1], [0], [0], [1], [0, 0, 1, 1], [], []>} : vector<8x16xbf16>, vector<16x16xbf16>, vector<8x16xf32> -> vector<8x16xf32>
    %230 = tpu.concatenate %89, %109, %129, %149, %169, %189, %209, %229 in 1 : vector<8x16xf32>, vector<8x16xf32>, vector<8x16xf32>, vector<8x16xf32>, vector<8x16xf32>, vector<8x16xf32>, vector<8x16xf32>, vector<8x16xf32> -> vector<8x128xf32>
    %c0_74 = arith.constant 0 : index
    %c0_75 = arith.constant 0 : index
    %231 = vector.load %arg12[%c0_74, %c0_75] : memref<128x128xbf16, #tpu.memory_space<vmem>>, vector<128x128xbf16>
    %232 = arith.truncf %230 : vector<8x128xf32> to vector<8x128xbf16>
    %cst_76 = arith.constant dense<0.000000e+00> : vector<8x128xf32>
    %233 = tpu.matmul %232, %231, %cst_76 {dimension_numbers = #tpu.dot_dimension_numbers<[1], [0], [0], [1], [0, 0, 1, 1], [], []>} : vector<8x128xbf16>, vector<128x128xbf16>, vector<8x128xf32> -> vector<8x128xf32>
    %c0_77 = arith.constant 0 : index
    %c0_78 = arith.constant 0 : index
    %234 = vector.load %arg13[%c0_77, %c0_78] : memref<1x128xf32, #tpu.memory_space<vmem>>, vector<1x128xf32>
    %235 = vector.broadcast %234 : vector<1x128xf32> to vector<8x128xf32>
    %236 = arith.addf %233, %235 : vector<8x128xf32>
    %237 = arith.addf %51, %236 : vector<8x128xf32>
    %c0_79 = arith.constant 0 : index
    %c0_80 = arith.constant 0 : index
    %238 = vector.load %arg14[%c0_79, %c0_80] : memref<128x256xbf16, #tpu.memory_space<vmem>>, vector<128x256xbf16>
    %c0_81 = arith.constant 0 : index
    %c0_82 = arith.constant 0 : index
    %239 = vector.load %arg15[%c0_81, %c0_82] : memref<1x256xf32, #tpu.memory_space<vmem>>, vector<1x256xf32>
    %c0_83 = arith.constant 0 : index
    %c0_84 = arith.constant 0 : index
    %240 = vector.load %arg16[%c0_83, %c0_84] : memref<256x128xbf16, #tpu.memory_space<vmem>>, vector<256x128xbf16>
    %c0_85 = arith.constant 0 : index
    %c0_86 = arith.constant 0 : index
    %241 = vector.load %arg17[%c0_85, %c0_86] : memref<1x128xf32, #tpu.memory_space<vmem>>, vector<1x128xf32>
    %242 = arith.truncf %237 : vector<8x128xf32> to vector<8x128xbf16>
    %cst_87 = arith.constant dense<0.000000e+00> : vector<8x256xf32>
    %243 = tpu.matmul %242, %238, %cst_87 {dimension_numbers = #tpu.dot_dimension_numbers<[1], [0], [0], [1], [0, 0, 1, 1], [], []>} : vector<8x128xbf16>, vector<128x256xbf16>, vector<8x256xf32> -> vector<8x256xf32>
    %244 = vector.broadcast %239 : vector<1x256xf32> to vector<8x256xf32>
    %245 = arith.addf %243, %244 : vector<8x256xf32>
    %cst_88 = arith.constant 0.000000e+00 : f32
    %246 = vector.broadcast %cst_88 : f32 to vector<8x256xf32>
    %247 = arith.maximumf %245, %246 : vector<8x256xf32>
    %248 = arith.truncf %247 : vector<8x256xf32> to vector<8x256xbf16>
    %cst_89 = arith.constant dense<0.000000e+00> : vector<8x128xf32>
    %249 = tpu.matmul %248, %240, %cst_89 {dimension_numbers = #tpu.dot_dimension_numbers<[1], [0], [0], [1], [0, 0, 1, 1], [], []>} : vector<8x256xbf16>, vector<256x128xbf16>, vector<8x128xf32> -> vector<8x128xf32>
    %250 = vector.broadcast %241 : vector<1x128xf32> to vector<8x128xf32>
    %251 = arith.addf %249, %250 : vector<8x128xf32>
    %c0_90 = arith.constant 0 : index
    %c0_91 = arith.constant 0 : index
    %252 = vector.load %arg18[%c0_90, %c0_91] : memref<128x64xbf16, #tpu.memory_space<vmem>>, vector<128x64xbf16>
    %c0_92 = arith.constant 0 : index
    %c0_93 = arith.constant 0 : index
    %253 = vector.load %arg19[%c0_92, %c0_93] : memref<1x64xf32, #tpu.memory_space<vmem>>, vector<1x64xf32>
    %c0_94 = arith.constant 0 : index
    %c0_95 = arith.constant 0 : index
    %254 = vector.load %arg20[%c0_94, %c0_95] : memref<64x1xbf16, #tpu.memory_space<vmem>>, vector<64x1xbf16>
    %c0_96 = arith.constant 0 : index
    %c0_97 = arith.constant 0 : index
    %255 = vector.load %arg21[%c0_96, %c0_97] : memref<1x1xf32, #tpu.memory_space<vmem>>, vector<1x1xf32>
    %256 = arith.truncf %251 : vector<8x128xf32> to vector<8x128xbf16>
    %cst_98 = arith.constant dense<0.000000e+00> : vector<8x64xf32>
    %257 = tpu.matmul %256, %252, %cst_98 {dimension_numbers = #tpu.dot_dimension_numbers<[1], [0], [0], [1], [0, 0, 1, 1], [], []>} : vector<8x128xbf16>, vector<128x64xbf16>, vector<8x64xf32> -> vector<8x64xf32>
    %258 = vector.broadcast %253 : vector<1x64xf32> to vector<8x64xf32>
    %259 = arith.addf %257, %258 : vector<8x64xf32>
    %cst_99 = arith.constant 0.000000e+00 : f32
    %260 = vector.broadcast %cst_99 : f32 to vector<8x64xf32>
    %261 = arith.maximumf %259, %260 : vector<8x64xf32>
    %262 = arith.truncf %261 : vector<8x64xf32> to vector<8x64xbf16>
    %cst_100 = arith.constant dense<0.000000e+00> : vector<8x1xf32>
    %263 = tpu.matmul %262, %254, %cst_100 {dimension_numbers = #tpu.dot_dimension_numbers<[1], [0], [0], [1], [0, 0, 1, 1], [], []>} : vector<8x64xbf16>, vector<64x1xbf16>, vector<8x1xf32> -> vector<8x1xf32>
    %264 = vector.broadcast %255 : vector<1x1xf32> to vector<8x1xf32>
    %265 = arith.addf %263, %264 : vector<8x1xf32>
    %c0_101 = arith.constant 0 : index
    %c0_102 = arith.constant 0 : index
    %266 = vector.load %arg22[%c0_101, %c0_102] : memref<8x1xf32, #tpu.memory_space<vmem>>, vector<8x1xf32>
    tpu.vector_store %arg22[%c0_101, %c0_102], %265 {strides = array<i32>} : memref<8x1xf32, #tpu.memory_space<vmem>>, vector<8x1xf32>,
    return
  }
  func.func @transform_0(%arg0: i32) -> (i32, i32) {
    %c0_i32 = arith.constant 0 : i32
    %c0_i32_0 = arith.constant 0 : i32
    %c0_i32_1 = arith.constant 0 : i32
    return %c0_i32, %c0_i32_0 : i32, i32
  }
  func.func @transform_1(%arg0: i32) -> (i32, i32) {
    %c0_i32 = arith.constant 0 : i32
    %c0_i32_0 = arith.constant 0 : i32
    %c0_i32_1 = arith.constant 0 : i32
    return %c0_i32, %c0_i32_0 : i32, i32
  }
  func.func @transform_2(%arg0: i32) -> (i32, i32) {
    %c0_i32 = arith.constant 0 : i32
    %c0_i32_0 = arith.constant 0 : i32
    %c0_i32_1 = arith.constant 0 : i32
    return %c0_i32, %c0_i32_0 : i32, i32
  }
  func.func @transform_3(%arg0: i32) -> (i32, i32) {
    %c0_i32 = arith.constant 0 : i32
    %c0_i32_0 = arith.constant 0 : i32
    %c0_i32_1 = arith.constant 0 : i32
    return %c0_i32, %c0_i32_0 : i32, i32
  }
  func.func @transform_4(%arg0: i32) -> (i32, i32) {
    %c0_i32 = arith.constant 0 : i32
    %c0_i32_0 = arith.constant 0 : i32
    %c0_i32_1 = arith.constant 0 : i32
    return %c0_i32, %c0_i32_0 : i32, i32
  }
  func.func @transform_5(%arg0: i32) -> (i32, i32) {
    %c0_i32 = arith.constant 0 : i32
    %c0_i32_0 = arith.constant 0 : i32
    %c0_i32_1 = arith.constant 0 : i32
    return %c0_i32, %c0_i32_0 : i32, i32
  }
  func.func @transform_6(%arg0: i32) -> (i32, i32) {
    %c0_i32 = arith.constant 0 : i32
    %c0_i32_0 = arith.constant 0 : i32
    %c0_i32_1 = arith.constant 0 : i32
    return %c0_i32, %c0_i32_0 : i32, i32
  }
  func.func @transform_7(%arg0: i32) -> (i32, i32) {
    %c0_i32 = arith.constant 0 : i32
    %c0_i32_0 = arith.constant 0 : i32
    %c0_i32_1 = arith.constant 0 : i32
    return %c0_i32, %c0_i32_0 : i32, i32
  }
  func.func @transform_8(%arg0: i32) -> (i32, i32) {
    %c0_i32 = arith.constant 0 : i32
    %c0_i32_0 = arith.constant 0 : i32
    %c0_i32_1 = arith.constant 0 : i32
    return %c0_i32, %c0_i32_0 : i32, i32
  }
  func.func @transform_9(%arg0: i32) -> (i32, i32) {
    %c0_i32 = arith.constant 0 : i32
    %c0_i32_0 = arith.constant 0 : i32
    %c0_i32_1 = arith.constant 0 : i32
    return %c0_i32, %c0_i32_0 : i32, i32
  }
  func.func @transform_10(%arg0: i32) -> (i32, i32) {
    %c0_i32 = arith.constant 0 : i32
    %c0_i32_0 = arith.constant 0 : i32
    %c0_i32_1 = arith.constant 0 : i32
    return %c0_i32, %c0_i32_0 : i32, i32
  }
  func.func @transform_11(%arg0: i32) -> (i32, i32) {
    %c0_i32 = arith.constant 0 : i32
    %c0_i32_0 = arith.constant 0 : i32
    %c0_i32_1 = arith.constant 0 : i32
    return %c0_i32, %c0_i32_0 : i32, i32
  }
  func.func @transform_12(%arg0: i32) -> (i32, i32) {
    %c0_i32 = arith.constant 0 : i32
    %c0_i32_0 = arith.constant 0 : i32
    %c0_i32_1 = arith.constant 0 : i32
    return %c0_i32, %c0_i32_0 : i32, i32
  }
  func.func @transform_13(%arg0: i32) -> (i32, i32) {
    %c0_i32 = arith.constant 0 : i32
    %c0_i32_0 = arith.constant 0 : i32
    %c0_i32_1 = arith.constant 0 : i32
    return %c0_i32, %c0_i32_0 : i32, i32
  }
  func.func @transform_14(%arg0: i32) -> (i32, i32) {
    %c0_i32 = arith.constant 0 : i32
    %c0_i32_0 = arith.constant 0 : i32
    %c0_i32_1 = arith.constant 0 : i32
    return %c0_i32, %c0_i32_0 : i32, i32
  }
  func.func @transform_15(%arg0: i32) -> (i32, i32) {
    %c0_i32 = arith.constant 0 : i32
    %c0_i32_0 = arith.constant 0 : i32
    %c0_i32_1 = arith.constant 0 : i32
    return %c0_i32, %c0_i32_0 : i32, i32
  }
  func.func @transform_16(%arg0: i32) -> (i32, i32) {
    %c0_i32 = arith.constant 0 : i32
    %c0_i32_0 = arith.constant 0 : i32
    %c0_i32_1 = arith.constant 0 : i32
    return %c0_i32, %c0_i32_0 : i32, i32
  }
  func.func @transform_17(%arg0: i32) -> (i32, i32) {
    %c0_i32 = arith.constant 0 : i32
    %c0_i32_0 = arith.constant 0 : i32
    %c0_i32_1 = arith.constant 0 : i32
    return %c0_i32, %c0_i32_0 : i32, i32
  }
  func.func @transform_18(%arg0: i32) -> (i32, i32) {
    %c0_i32 = arith.constant 0 : i32
    %c0_i32_0 = arith.constant 0 : i32
    %c0_i32_1 = arith.constant 0 : i32
    return %c0_i32, %c0_i32_0 : i32, i32
  }
  func.func @transform_19(%arg0: i32) -> (i32, i32) {
    %c0_i32 = arith.constant 0 : i32
    %c0_i32_0 = arith.constant 0 : i32
    %c0_i32_1 = arith.constant 0 : i32
    return %c0_i32, %c0_i32_0 : i32, i32
  }
  func.func @transform_20(%arg0: i32) -> (i32, i32) {
    %c0_i32 = arith.constant 0 : i32
    %c0_i32_0 = arith.constant 0 : i32
    %c0_i32_1 = arith.constant 0 : i32
    return %c0_i32, %c0_i32_0 : i32, i32
  }
  func.func @transform_21(%arg0: i32) -> (i32, i32) {
    %c0_i32 = arith.constant 0 : i32
    %c0_i32_0 = arith.constant 0 : i32
    %c0_i32_1 = arith.constant 0 : i32
    return %c0_i32, %c0_i32_0 : i32, i32
  }
}

</mosaic_0001>

<llo_original>
// kernel: forward.9
$region0: #{forward.9}
  #allocation0 [shape = 'u32[]', space=smem, size = 0x4, offset = 0x4, fixed_abs, tag = 'smem constant byte address 0x4 - core index']
  #allocation1 [shape = 'u32[144,128]{1,0:T(1,128)}', space=vmem, size = 0x12000, scoped, tag = 'internal scratch']
  %s0 = inlined_call_operand.vmem [shape: f32[40,64], index: 0, kind: input, shape index: {}]
  %s1 = inlined_call_operand.vmem [shape: f32[1,64], index: 1, kind: input, shape index: {}]
  %s2 = inlined_call_operand.vmem [shape: f32[1,64], index: 2, kind: input, shape index: {}]
  %s3 = inlined_call_operand.vmem [shape: f32[40,64], index: 3, kind: output, shape index: {}]
  %s4 = sld [smem:[#allocation0]]
  $region22: #{forward.9} parent=0
    _
  %s6 = ssub.s32 1, %s4
  %s7 = scalar_select 0, %s6, %s4
  // Predicated region
  $region2: #{forward.9} parent=0 // pred_check
    _
  $region3: #{forward.9} parent=0 // pred_check_branch
    %9 = sbr.rel (0) target = $region5
  $region4: #{forward.9} parent=0 // pred_region
    _
  $region5: #{forward.9} parent=0 // pred_fallthru
    _
  // Predicated region
  $region6: #{forward.9} parent=0 // pred_check
    _
  $region7: #{forward.9} parent=0 // pred_check_branch
    %11 = sbr.rel (0) target = $region9
  $region8: #{forward.9} parent=0 // pred_region
    _
  $region9: #{forward.9} parent=0 // pred_fallthru
    _
  // Predicated region
  $region10: #{forward.9} parent=0 // pred_check
    _
  $region11: #{forward.9} parent=0 // pred_check_branch
    %13 = sbr.rel (0) target = $region13
  $region12: #{forward.9} parent=0 // pred_region
    _
  $region13: #{forward.9} parent=0 // pred_fallthru
    _
  %v14 = vld [vmem:[%s0] sm:$0xff]
  %v15 = vld [vmem:[%s0 + $0x8] sm:$0xff]
  %v16 = vld [vmem:[%s0 + $0x10] sm:$0xff]
  %v17 = vld [vmem:[%s0 + $0x18] sm:$0xff]
  %v18 = vld [vmem:[%s0 + $0x20] sm:$0xff]
  %v19 = vld [vmem:[%s1] sm:$0x1]
  %v20 = vld [vmem:[%s2] sm:$0x1]
  %vm21 = vcmask 523264
  %v22 = vsel %vm21, %v14, 0.0
  %23 = vadd.xlane.f32.xlu0 %v22
  %v24 = vpop.xlane.xlu0 %23
  %v25 = vsel %vm21, %v15, 0.0
  %26 = vadd.xlane.f32.xlu0 %v25
  %v27 = vpop.xlane.xlu0 %26
  %v28 = vsel %vm21, %v16, 0.0
  %29 = vadd.xlane.f32.xlu0 %v28
  %v30 = vpop.xlane.xlu0 %29
  %v31 = vsel %vm21, %v17, 0.0
  %32 = vadd.xlane.f32.xlu0 %v31
  %v33 = vpop.xlane.xlu0 %32
  %v34 = vsel %vm21, %v18, 0.0
  %35 = vadd.xlane.f32.xlu0 %v34
  %v36 = vpop.xlane.xlu0 %35
  %v37 = vrcp.pop 64.0
  %v38 = vmul.f32 %v24, %v37
  %v39 = vmul.f32 %v27, %v37
  %v40 = vmul.f32 %v30, %v37
  %v41 = vmul.f32 %v33, %v37
  %v42 = vmul.f32 %v36, %v37
  %v43 = vsub.f32 %v14, %v38
  %v44 = vsub.f32 %v15, %v39
  %v45 = vsub.f32 %v16, %v40
  %v46 = vsub.f32 %v17, %v41
  %v47 = vsub.f32 %v18, %v42
  %v48 = vmul.f32 %v43, %v43
  %v49 = vmul.f32 %v44, %v44
  %v50 = vmul.f32 %v45, %v45
  %v51 = vmul.f32 %v46, %v46
  %v52 = vmul.f32 %v47, %v47
  %v53 = vsel %vm21, %v48, 0.0
  %54 = vadd.xlane.f32.xlu0 %v53
  %v55 = vpop.xlane.xlu0 %54
  %v56 = vsel %vm21, %v49, 0.0
  %57 = vadd.xlane.f32.xlu0 %v56
  %v58 = vpop.xlane.xlu0 %57
  %v59 = vsel %vm21, %v50, 0.0
  %60 = vadd.xlane.f32.xlu0 %v59
  %v61 = vpop.xlane.xlu0 %60
  %v62 = vsel %vm21, %v51, 0.0
  %63 = vadd.xlane.f32.xlu0 %v62
  %v64 = vpop.xlane.xlu0 %63
  %v65 = vsel %vm21, %v52, 0.0
  %66 = vadd.xlane.f32.xlu0 %v65
  %v67 = vpop.xlane.xlu0 %66
  %v68 = vmul.f32 %v55, %v37
  %v69 = vmul.f32 %v58, %v37
  %v70 = vmul.f32 %v61, %v37
  %v71 = vmul.f32 %v64, %v37
  %v72 = vmul.f32 %v67, %v37
  %v73 = vadd.f32 %v68, 1e-05
  %v74 = vadd.f32 %v69, 1e-05
  %v75 = vadd.f32 %v70, 1e-05
  %v76 = vadd.f32 %v71, 1e-05
  %v77 = vadd.f32 %v72, 1e-05
  %v78 = vrsqrt.pop %v73
  %v79 = vrsqrt.pop %v74
  %v80 = vrsqrt.pop %v75
  %v81 = vrsqrt.pop %v76
  %v82 = vrsqrt.pop %v77
  %v83 = vmul.f32 %v43, %v78
  %v84 = vmul.f32 %v44, %v79
  %v85 = vmul.f32 %v45, %v80
  %v86 = vmul.f32 %v46, %v81
  %v87 = vmul.f32 %v47, %v82
  %v89 = vlaneseq
  %v90 = vshrl.u32 %v89, 7
  %v91 = vsub.s32 0, %v90
  %v92 = vrot.slane %v19, %v91
  %v94 = vmul.f32 %v83, %v92
  %v95 = vmul.f32 %v84, %v92
  %v96 = vmul.f32 %v85, %v92
  %v97 = vmul.f32 %v86, %v92
  %v98 = vmul.f32 %v87, %v92
  %v100 = vlaneseq
  %v101 = vshrl.u32 %v100, 7
  %v102 = vsub.s32 0, %v101
  %v103 = vrot.slane %v20, %v102
  %v105 = vadd.f32 %v94, %v103
  %v106 = vadd.f32 %v95, %v103
  %v107 = vadd.f32 %v96, %v103
  %v108 = vadd.f32 %v97, %v103
  %v109 = vadd.f32 %v98, %v103
  %110 = vst.msk [vmem:[%s3] sm:$0xff] %vm21, %v105
  %111 = vst.msk [vmem:[%s3 + $0x8] sm:$0xff] %vm21, %v106
  %112 = vst.msk [vmem:[%s3 + $0x10] sm:$0xff] %vm21, %v107
  %113 = vst.msk [vmem:[%s3 + $0x18] sm:$0xff] %vm21, %v108
  %114 = vst.msk [vmem:[%s3 + $0x20] sm:$0xff] %vm21, %v109
  // Predicated region
  $region14: #{forward.9} parent=0 // pred_check
    _
  $region15: #{forward.9} parent=0 // pred_check_branch
    %116 = sbr.rel (0) target = $region17
  $region16: #{forward.9} parent=0 // pred_region
    _
  $region17: #{forward.9} parent=0 // pred_fallthru
    _
  // Predicated region
  $region18: #{forward.9} parent=0 // pred_check
    _
  $region19: #{forward.9} parent=0 // pred_check_branch
    %118 = sbr.rel (0) target = $region21
  $region20: #{forward.9} parent=0 // pred_region
    _
  $region21: #{forward.9} parent=0 // pred_fallthru
    _

// kernel: forward.8
$region0: #{forward.8}
  #allocation0 [shape = 'u32[]', space=smem, size = 0x4, offset = 0x4, fixed_abs, tag = 'smem constant byte address 0x4 - core index']
  #allocation1 [shape = 'u32[144,128]{1,0:T(1,128)}', space=vmem, size = 0x12000, scoped, tag = 'internal scratch']
  %s0 = inlined_call_operand.vmem [shape: f32[32,768], index: 0, kind: input, shape index: {}]
  %s1 = inlined_call_operand.vmem [shape: bf16[768,64], index: 1, kind: input, shape index: {}]
  %s2 = inlined_call_operand.vmem [shape: f32[32,64], index: 2, kind: input, shape index: {}]
  %s3 = inlined_call_operand.vmem [shape: f32[32,64], index: 3, kind: output, shape index: {}]
  %s4 = sld [smem:[#allocation0]]
  $region22: #{forward.8} parent=0
    _
  %s6 = ssub.s32 1, %s4
  %s7 = scalar_select 0, %s6, %s4
  // Predicated region
  $region2: #{forward.8} parent=0 // pred_check
    _
  $region3: #{forward.8} parent=0 // pred_check_branch
    %9 = sbr.rel (0) target = $region5
  $region4: #{forward.8} parent=0 // pred_region
    _
  $region5: #{forward.8} parent=0 // pred_fallthru
    _
  // Predicated region
  $region6: #{forward.8} parent=0 // pred_check
    _
  $region7: #{forward.8} parent=0 // pred_check_branch
    %11 = sbr.rel (0) target = $region9
  $region8: #{forward.8} parent=0 // pred_region
    _
  $region9: #{forward.8} parent=0 // pred_fallthru
    _
  // Predicated region
  $region10: #{forward.8} parent=0 // pred_check
    _
  $region11: #{forward.8} parent=0 // pred_check_branch
    %13 = sbr.rel (0) target = $region13
  $region12: #{forward.8} parent=0 // pred_region
    _
  $region13: #{forward.8} parent=0 // pred_fallthru
    _
  %v15 = vld [vmem:[%s0] sm:$0xff]
  %v16 = vld [vmem:[%s0 + $0x8] sm:$0xff]
  %v17 = vld [vmem:[%s0 + $0x10] sm:$0xff]
  %v18 = vld [vmem:[%s0 + $0x18] sm:$0xff]
  %v19 = vld [vmem:[%s0 + $0x20] sm:$0xff]
  %v20 = vld [vmem:[%s0 + $0x28] sm:$0xff]
  %v21 = vld [vmem:[%s0 + $0x30] sm:$0xff]
  %v22 = vld [vmem:[%s0 + $0x38] sm:$0xff]
  %v23 = vld [vmem:[%s0 + $0x40] sm:$0xff]
  %v24 = vld [vmem:[%s0 + $0x48] sm:$0xff]
  %v25 = vld [vmem:[%s0 + $0x50] sm:$0xff]
  %v26 = vld [vmem:[%s0 + $0x58] sm:$0xff]
  %v27 = vld [vmem:[%s0 + $0x60] sm:$0xff]
  %v28 = vld [vmem:[%s0 + $0x68] sm:$0xff]
  %v29 = vld [vmem:[%s0 + $0x70] sm:$0xff]
  %v30 = vld [vmem:[%s0 + $0x78] sm:$0xff]
  %v31 = vld [vmem:[%s0 + $0x80] sm:$0xff]
  %v32 = vld [vmem:[%s0 + $0x88] sm:$0xff]
  %v33 = vld [vmem:[%s0 + $0x90] sm:$0xff]
  %v34 = vld [vmem:[%s0 + $0x98] sm:$0xff]
  %v35 = vld [vmem:[%s0 + $0xa0] sm:$0xff]
  %v36 = vld [vmem:[%s0 + $0xa8] sm:$0xff]
  %v37 = vld [vmem:[%s0 + $0xb0] sm:$0xff]
  %v38 = vld [vmem:[%s0 + $0xb8] sm:$0xff]
  %v39 = vld [vmem:[%s1] sm:$0xf]
  %v40 = vld [vmem:[%s1 + $0x4] sm:$0xf]
  %v41 = vld [vmem:[%s1 + $0x8] sm:$0xf]
  %v42 = vld [vmem:[%s1 + $0xc] sm:$0xf]
  %v43 = vld [vmem:[%s1 + $0x10] sm:$0xf]
  %v44 = vld [vmem:[%s1 + $0x14] sm:$0xf]
  %v45 = vld [vmem:[%s1 + $0x18] sm:$0xf]
  %v46 = vld [vmem:[%s1 + $0x1c] sm:$0xf]
  %v47 = vld [vmem:[%s1 + $0x20] sm:$0xf]
  %v48 = vld [vmem:[%s1 + $0x24] sm:$0xf]
  %v49 = vld [vmem:[%s1 + $0x28] sm:$0xf]
  %v50 = vld [vmem:[%s1 + $0x2c] sm:$0xf]
  %v51 = vld [vmem:[%s1 + $0x30] sm:$0xf]
  %v52 = vld [vmem:[%s1 + $0x34] sm:$0xf]
  %v53 = vld [vmem:[%s1 + $0x38] sm:$0xf]
  %v54 = vld [vmem:[%s1 + $0x3c] sm:$0xf]
  %v55 = vld [vmem:[%s1 + $0x40] sm:$0xf]
  %v56 = vld [vmem:[%s1 + $0x44] sm:$0xf]
  %v57 = vld [vmem:[%s1 + $0x48] sm:$0xf]
  %v58 = vld [vmem:[%s1 + $0x4c] sm:$0xf]
  %v59 = vld [vmem:[%s1 + $0x50] sm:$0xf]
  %v60 = vld [vmem:[%s1 + $0x54] sm:$0xf]
  %v61 = vld [vmem:[%s1 + $0x58] sm:$0xf]
  %v62 = vld [vmem:[%s1 + $0x5c] sm:$0xf]
  %v63 = vld [vmem:[%s1 + $0x60] sm:$0xf]
  %v64 = vld [vmem:[%s1 + $0x64] sm:$0xf]
  %v65 = vld [vmem:[%s1 + $0x68] sm:$0xf]
  %v66 = vld [vmem:[%s1 + $0x6c] sm:$0xf]
  %v67 = vld [vmem:[%s1 + $0x70] sm:$0xf]
  %v68 = vld [vmem:[%s1 + $0x74] sm:$0xf]
  %v69 = vld [vmem:[%s1 + $0x78] sm:$0xf]
  %v70 = vld [vmem:[%s1 + $0x7c] sm:$0xf]
  %v71 = vld [vmem:[%s1 + $0x80] sm:$0xf]
  %v72 = vld [vmem:[%s1 + $0x84] sm:$0xf]
  %v73 = vld [vmem:[%s1 + $0x88] sm:$0xf]
  %v74 = vld [vmem:[%s1 + $0x8c] sm:$0xf]
  %v75 = vld [vmem:[%s1 + $0x90] sm:$0xf]
  %v76 = vld [vmem:[%s1 + $0x94] sm:$0xf]
  %v77 = vld [vmem:[%s1 + $0x98] sm:$0xf]
  %v78 = vld [vmem:[%s1 + $0x9c] sm:$0xf]
  %v79 = vld [vmem:[%s1 + $0xa0] sm:$0xf]
  %v80 = vld [vmem:[%s1 + $0xa4] sm:$0xf]
  %v81 = vld [vmem:[%s1 + $0xa8] sm:$0xf]
  %v82 = vld [vmem:[%s1 + $0xac] sm:$0xf]
  %v83 = vld [vmem:[%s1 + $0xb0] sm:$0xf]
  %v84 = vld [vmem:[%s1 + $0xb4] sm:$0xf]
  %v85 = vld [vmem:[%s1 + $0xb8] sm:$0xf]
  %v86 = vld [vmem:[%s1 + $0xbc] sm:$0xf]
  %v87 = vld [vmem:[%s1 + $0xc0] sm:$0xf]
  %v88 = vld [vmem:[%s1 + $0xc4] sm:$0xf]
  %v89 = vld [vmem:[%s1 + $0xc8] sm:$0xf]
  %v90 = vld [vmem:[%s1 + $0xcc] sm:$0xf]
  %v91 = vld [vmem:[%s1 + $0xd0] sm:$0xf]
  %v92 = vld [vmem:[%s1 + $0xd4] sm:$0xf]
  %v93 = vld [vmem:[%s1 + $0xd8] sm:$0xf]
  %v94 = vld [vmem:[%s1 + $0xdc] sm:$0xf]
  %v95 = vld [vmem:[%s1 + $0xe0] sm:$0xf]
  %v96 = vld [vmem:[%s1 + $0xe4] sm:$0xf]
  %v97 = vld [vmem:[%s1 + $0xe8] sm:$0xf]
  %v98 = vld [vmem:[%s1 + $0xec] sm:$0xf]
  %v99 = vld [vmem:[%s1 + $0xf0] sm:$0xf]
  %v100 = vld [vmem:[%s1 + $0xf4] sm:$0xf]
  %v101 = vld [vmem:[%s1 + $0xf8] sm:$0xf]
  %v102 = vld [vmem:[%s1 + $0xfc] sm:$0xf]
  %v103 = vld [vmem:[%s1 + $0x100] sm:$0xf]
  %v104 = vld [vmem:[%s1 + $0x104] sm:$0xf]
  %v105 = vld [vmem:[%s1 + $0x108] sm:$0xf]
  %v106 = vld [vmem:[%s1 + $0x10c] sm:$0xf]
  %v107 = vld [vmem:[%s1 + $0x110] sm:$0xf]
  %v108 = vld [vmem:[%s1 + $0x114] sm:$0xf]
  %v109 = vld [vmem:[%s1 + $0x118] sm:$0xf]
  %v110 = vld [vmem:[%s1 + $0x11c] sm:$0xf]
  %v111 = vld [vmem:[%s1 + $0x120] sm:$0xf]
  %v112 = vld [vmem:[%s1 + $0x124] sm:$0xf]
  %v113 = vld [vmem:[%s1 + $0x128] sm:$0xf]
  %v114 = vld [vmem:[%s1 + $0x12c] sm:$0xf]
  %v115 = vld [vmem:[%s1 + $0x130] sm:$0xf]
  %v116 = vld [vmem:[%s1 + $0x134] sm:$0xf]
  %v117 = vld [vmem:[%s1 + $0x138] sm:$0xf]
  %v118 = vld [vmem:[%s1 + $0x13c] sm:$0xf]
  %v119 = vld [vmem:[%s1 + $0x140] sm:$0xf]
  %v120 = vld [vmem:[%s1 + $0x144] sm:$0xf]
  %v121 = vld [vmem:[%s1 + $0x148] sm:$0xf]
  %v122 = vld [vmem:[%s1 + $0x14c] sm:$0xf]
  %v123 = vld [vmem:[%s1 + $0x150] sm:$0xf]
  %v124 = vld [vmem:[%s1 + $0x154] sm:$0xf]
  %v125 = vld [vmem:[%s1 + $0x158] sm:$0xf]
  %v126 = vld [vmem:[%s1 + $0x15c] sm:$0xf]
  %v127 = vld [vmem:[%s1 + $0x160] sm:$0xf]
  %v128 = vld [vmem:[%s1 + $0x164] sm:$0xf]
  %v129 = vld [vmem:[%s1 + $0x168] sm:$0xf]
  %v130 = vld [vmem:[%s1 + $0x16c] sm:$0xf]
  %v131 = vld [vmem:[%s1 + $0x170] sm:$0xf]
  %v132 = vld [vmem:[%s1 + $0x174] sm:$0xf]
  %v133 = vld [vmem:[%s1 + $0x178] sm:$0xf]
  %v134 = vld [vmem:[%s1 + $0x17c] sm:$0xf]
  %v135 = vpack.c.bf16 %v21, %v15
  %v136 = vpack.c.bf16 %v22, %v16
  %v137 = vpack.c.bf16 %v23, %v17
  %v138 = vpack.c.bf16 %v24, %v18
  %v139 = vpack.c.bf16 %v25, %v19
  %v140 = vpack.c.bf16 %v26, %v20
  %v141 = vpack.c.bf16 %v33, %v27
  %v142 = vpack.c.bf16 %v34, %v28
  %v143 = vpack.c.bf16 %v35, %v29
  %v144 = vpack.c.bf16 %v36, %v30
  %v145 = vpack.c.bf16 %v37, %v31
  %v146 = vpack.c.bf16 %v38, %v32
  %v147 = vld [vmem:[%s2] sm:$0xff]
  %v148 = vld [vmem:[%s2 + $0x8] sm:$0xff]
  %v149 = vld [vmem:[%s2 + $0x10] sm:$0xff]
  %v150 = vld [vmem:[%s2 + $0x18] sm:$0xff]
  %v247 = vunpack.c.l.b16 %v39
  %v248 = vunpack.c.l.b16 %v40
  %v249 = vunpack.c.l.b16 %v41
  %v250 = vunpack.c.l.b16 %v42
  %v251 = vunpack.c.l.b16 %v43
  %v252 = vunpack.c.l.b16 %v44
  %v253 = vunpack.c.l.b16 %v45
  %v254 = vunpack.c.l.b16 %v46
  %v255 = vunpack.c.l.b16 %v47
  %v256 = vunpack.c.l.b16 %v48
  %v257 = vunpack.c.l.b16 %v49
  %v258 = vunpack.c.l.b16 %v50
  %v259 = vunpack.c.l.b16 %v51
  %v260 = vunpack.c.l.b16 %v52
  %v261 = vunpack.c.l.b16 %v53
  %v262 = vunpack.c.l.b16 %v54
  %v263 = vunpack.c.l.b16 %v55
  %v264 = vunpack.c.l.b16 %v56
  %v265 = vunpack.c.l.b16 %v57
  %v266 = vunpack.c.l.b16 %v58
  %v267 = vunpack.c.l.b16 %v59
  %v268 = vunpack.c.l.b16 %v60
  %v269 = vunpack.c.l.b16 %v61
  %v270 = vunpack.c.l.b16 %v62
  %v271 = vunpack.c.l.b16 %v63
  %v272 = vunpack.c.l.b16 %v64
  %v273 = vunpack.c.l.b16 %v65
  %v274 = vunpack.c.l.b16 %v66
  %v275 = vunpack.c.l.b16 %v67
  %v276 = vunpack.c.l.b16 %v68
  %v277 = vunpack.c.l.b16 %v69
  %v278 = vunpack.c.l.b16 %v70
  %v279 = vunpack.c.l.b16 %v71
  %v280 = vunpack.c.l.b16 %v72
  %v281 = vunpack.c.l.b16 %v73
  %v282 = vunpack.c.l.b16 %v74
  %v283 = vunpack.c.l.b16 %v75
  %v284 = vunpack.c.l.b16 %v76
  %v285 = vunpack.c.l.b16 %v77
  %v286 = vunpack.c.l.b16 %v78
  %v287 = vunpack.c.l.b16 %v79
  %v288 = vunpack.c.l.b16 %v80
  %v289 = vunpack.c.l.b16 %v81
  %v290 = vunpack.c.l.b16 %v82
  %v291 = vunpack.c.l.b16 %v83
  %v292 = vunpack.c.l.b16 %v84
  %v293 = vunpack.c.l.b16 %v85
  %v294 = vunpack.c.l.b16 %v86
  %v295 = vunpack.c.l.b16 %v87
  %v296 = vunpack.c.l.b16 %v88
  %v297 = vunpack.c.l.b16 %v89
  %v298 = vunpack.c.l.b16 %v90
  %v299 = vunpack.c.l.b16 %v91
  %v300 = vunpack.c.l.b16 %v92
  %v301 = vunpack.c.l.b16 %v93
  %v302 = vunpack.c.l.b16 %v94
  %v303 = vunpack.c.l.b16 %v95
  %v304 = vunpack.c.l.b16 %v96
  %v305 = vunpack.c.l.b16 %v97
  %v306 = vunpack.c.l.b16 %v98
  %v307 = vunpack.c.l.b16 %v99
  %v308 = vunpack.c.l.b16 %v100
  %v309 = vunpack.c.l.b16 %v101
  %v310 = vunpack.c.l.b16 %v102
  %v311 = vunpack.c.l.b16 %v103
  %v312 = vunpack.c.l.b16 %v104
  %v313 = vunpack.c.l.b16 %v105
  %v314 = vunpack.c.l.b16 %v106
  %v315 = vunpack.c.l.b16 %v107
  %v316 = vunpack.c.l.b16 %v108
  %v317 = vunpack.c.l.b16 %v109
  %v318 = vunpack.c.l.b16 %v110
  %v319 = vunpack.c.l.b16 %v111
  %v320 = vunpack.c.l.b16 %v112
  %v321 = vunpack.c.l.b16 %v113
  %v322 = vunpack.c.l.b16 %v114
  %v323 = vunpack.c.l.b16 %v115
  %v324 = vunpack.c.l.b16 %v116
  %v325 = vunpack.c.l.b16 %v117
  %v326 = vunpack.c.l.b16 %v118
  %v327 = vunpack.c.l.b16 %v119
  %v328 = vunpack.c.l.b16 %v120
  %v329 = vunpack.c.l.b16 %v121
  %v330 = vunpack.c.l.b16 %v122
  %v331 = vunpack.c.l.b16 %v123
  %v332 = vunpack.c.l.b16 %v124
  %v333 = vunpack.c.l.b16 %v125
  %v334 = vunpack.c.l.b16 %v126
  %v335 = vunpack.c.l.b16 %v127
  %v336 = vunpack.c.l.b16 %v128
  %v337 = vunpack.c.l.b16 %v129
  %v338 = vunpack.c.l.b16 %v130
  %v339 = vunpack.c.l.b16 %v131
  %v340 = vunpack.c.l.b16 %v132
  %v341 = vunpack.c.l.b16 %v133
  %v342 = vunpack.c.l.b16 %v134
  %v343 = vpack.c.b16 %v248, %v247
  %v344 = vpack.c.b16 %v250, %v249
  %v345 = vpack.c.b16 %v252, %v251
  %v346 = vpack.c.b16 %v254, %v253
  %v347 = vpack.c.b16 %v256, %v255
  %v348 = vpack.c.b16 %v258, %v257
  %v349 = vpack.c.b16 %v260, %v259
  %v350 = vpack.c.b16 %v262, %v261
  %v351 = vpack.c.b16 %v264, %v263
  %v352 = vpack.c.b16 %v266, %v265
  %v353 = vpack.c.b16 %v268, %v267
  %v354 = vpack.c.b16 %v270, %v269
  %v355 = vpack.c.b16 %v272, %v271
  %v356 = vpack.c.b16 %v274, %v273
  %v357 = vpack.c.b16 %v276, %v275
  %v358 = vpack.c.b16 %v278, %v277
  %v359 = vpack.c.b16 %v280, %v279
  %v360 = vpack.c.b16 %v282, %v281
  %v361 = vpack.c.b16 %v284, %v283
  %v362 = vpack.c.b16 %v286, %v285
  %v363 = vpack.c.b16 %v288, %v287
  %v364 = vpack.c.b16 %v290, %v289
  %v365 = vpack.c.b16 %v292, %v291
  %v366 = vpack.c.b16 %v294, %v293
  %v367 = vpack.c.b16 %v296, %v295
  %v368 = vpack.c.b16 %v298, %v297
  %v369 = vpack.c.b16 %v300, %v299
  %v370 = vpack.c.b16 %v302, %v301
  %v371 = vpack.c.b16 %v304, %v303
  %v372 = vpack.c.b16 %v306, %v305
  %v373 = vpack.c.b16 %v308, %v307
  %v374 = vpack.c.b16 %v310, %v309
  %v375 = vpack.c.b16 %v312, %v311
  %v376 = vpack.c.b16 %v314, %v313
  %v377 = vpack.c.b16 %v316, %v315
  %v378 = vpack.c.b16 %v318, %v317
  %v379 = vpack.c.b16 %v320, %v319
  %v380 = vpack.c.b16 %v322, %v321
  %v381 = vpack.c.b16 %v324, %v323
  %v382 = vpack.c.b16 %v326, %v325
  %v383 = vpack.c.b16 %v328, %v327
  %v384 = vpack.c.b16 %v330, %v329
  %v385 = vpack.c.b16 %v332, %v331
  %v386 = vpack.c.b16 %v334, %v333
  %v387 = vpack.c.b16 %v336, %v335
  %v388 = vpack.c.b16 %v338, %v337
  %v389 = vpack.c.b16 %v340, %v339
  %v390 = vpack.c.b16 %v342, %v341
  %439 = vmatprep.subr.bf16.mxu0 0
  %440 = vmatpush1.bf16.msra.mxu0 %v343
  %441 = vmatprep.subr.bf16.mxu0 0
  %442 = vmatpush1.bf16.msra.mxu0 %v344
  %443 = vmatprep.subr.bf16.mxu0 0
  %444 = vmatpush1.bf16.msra.mxu0 %v345
  %445 = vmatprep.subr.bf16.mxu0 0
  %446 = vmatpush1.bf16.msra.mxu0 %v346
  %447 = vmatprep.subr.bf16.mxu0 0
  %448 = vmatpush1.bf16.msra.mxu0 %v347
  %449 = vmatprep.subr.bf16.mxu0 0
  %450 = vmatpush1.bf16.msra.mxu0 %v348
  %451 = vmatprep.subr.bf16.mxu0 0
  %452 = vmatpush1.bf16.msra.mxu0 %v349
  %453 = vmatprep.subr.bf16.mxu0 0
  %454 = vmatpush1.bf16.msra.mxu0 %v350
  %455 = vmatprep.subr.bf16.mxu0 0
  %456 = vmatpush1.bf16.msra.mxu0 %v351
  %457 = vmatprep.subr.bf16.mxu0 0
  %458 = vmatpush1.bf16.msra.mxu0 %v352
  %459 = vmatprep.subr.bf16.mxu0 0
  %460 = vmatpush1.bf16.msra.mxu0 %v353
  %461 = vmatprep.subr.bf16.mxu0 0
  %462 = vmatpush1.bf16.msra.mxu0 %v354
  %463 = vmatprep.subr.bf16.mxu0 0
  %464 = vmatpush1.bf16.msra.mxu0 %v355
  %465 = vmatprep.subr.bf16.mxu0 0
  %466 = vmatpush1.bf16.msra.mxu0 %v356
  %467 = vmatprep.subr.bf16.mxu0 0
  %468 = vmatpush1.bf16.msra.mxu0 %v357
  %469 = vmatprep.subr.bf16.mxu0 0
  %470 = vmatpush1.bf16.msra.mxu0 %v358
  %471 = vmatprep.mubr.bf16.mxu0 %v136
  %472 = vmatmul.mubr.bf16.gmra.mrb[0].mxu0 %v135
  %v473 = vpop.f32.mrb[0].mxu0
  %v474 = vadd.f32 %v147, %v473
  %v475 = vpop.f32.mrb[0].mxu0
  %v476 = vpop.f32.mrb[0].mxu0
  %v477 = vadd.f32 %v148, %v476
  %v478 = vpop.f32.mrb[0].mxu0
  %479 = vmatprep.mubr.bf16.mxu0 %v142
  %480 = vmatmul.mubr.bf16.gmra.mrb[0].mxu0 %v141
  %v481 = vpop.f32.mrb[0].mxu0
  %v482 = vadd.f32 %v149, %v481
  %v483 = vpop.f32.mrb[0].mxu0
  %v484 = vpop.f32.mrb[0].mxu0
  %v485 = vadd.f32 %v150, %v484
  %v486 = vpop.f32.mrb[0].mxu0
  %487 = vdwg.mxu0
  %488 = vmatprep.subr.bf16.mxu0 0
  %489 = vmatpush1.bf16.msra.mxu0 %v359
  %490 = vmatprep.subr.bf16.mxu0 0
  %491 = vmatpush1.bf16.msra.mxu0 %v360
  %492 = vmatprep.subr.bf16.mxu0 0
  %493 = vmatpush1.bf16.msra.mxu0 %v361
  %494 = vmatprep.subr.bf16.mxu0 0
  %495 = vmatpush1.bf16.msra.mxu0 %v362
  %496 = vmatprep.subr.bf16.mxu0 0
  %497 = vmatpush1.bf16.msra.mxu0 %v363
  %498 = vmatprep.subr.bf16.mxu0 0
  %499 = vmatpush1.bf16.msra.mxu0 %v364
  %500 = vmatprep.subr.bf16.mxu0 0
  %501 = vmatpush1.bf16.msra.mxu0 %v365
  %502 = vmatprep.subr.bf16.mxu0 0
  %503 = vmatpush1.bf16.msra.mxu0 %v366
  %504 = vmatprep.subr.bf16.mxu0 0
  %505 = vmatpush1.bf16.msra.mxu0 %v367
  %506 = vmatprep.subr.bf16.mxu0 0
  %507 = vmatpush1.bf16.msra.mxu0 %v368
  %508 = vmatprep.subr.bf16.mxu0 0
  %509 = vmatpush1.bf16.msra.mxu0 %v369
  %510 = vmatprep.subr.bf16.mxu0 0
  %511 = vmatpush1.bf16.msra.mxu0 %v370
  %512 = vmatprep.subr.bf16.mxu0 0
  %513 = vmatpush1.bf16.msra.mxu0 %v371
  %514 = vmatprep.subr.bf16.mxu0 0
  %515 = vmatpush1.bf16.msra.mxu0 %v372
  %516 = vmatprep.subr.bf16.mxu0 0
  %517 = vmatpush1.bf16.msra.mxu0 %v373
  %518 = vmatprep.subr.bf16.mxu0 0
  %519 = vmatpush1.bf16.msra.mxu0 %v374
  %520 = vmatprep.mubr.bf16.mxu0 %v138
  %521 = vmatmul.mubr.bf16.gmra.mrb[0].mxu0 %v137
  %v522 = vpop.f32.mrb[0].mxu0
  %v523 = vadd.f32 %v474, %v522
  %v524 = vpop.f32.mrb[0].mxu0
  %v525 = vpop.f32.mrb[0].mxu0
  %v526 = vadd.f32 %v477, %v525
  %v527 = vpop.f32.mrb[0].mxu0
  %528 = vmatprep.mubr.bf16.mxu0 %v144
  %529 = vmatmul.mubr.bf16.gmra.mrb[0].mxu0 %v143
  %v530 = vpop.f32.mrb[0].mxu0
  %v531 = vadd.f32 %v482, %v530
  %v532 = vpop.f32.mrb[0].mxu0
  %v533 = vpop.f32.mrb[0].mxu0
  %v534 = vadd.f32 %v485, %v533
  %v535 = vpop.f32.mrb[0].mxu0
  %536 = vdwg.mxu0
  %537 = vmatprep.subr.bf16.mxu0 0
  %538 = vmatpush1.bf16.msra.mxu0 %v375
  %539 = vmatprep.subr.bf16.mxu0 0
  %540 = vmatpush1.bf16.msra.mxu0 %v376
  %541 = vmatprep.subr.bf16.mxu0 0
  %542 = vmatpush1.bf16.msra.mxu0 %v377
  %543 = vmatprep.subr.bf16.mxu0 0
  %544 = vmatpush1.bf16.msra.mxu0 %v378
  %545 = vmatprep.subr.bf16.mxu0 0
  %546 = vmatpush1.bf16.msra.mxu0 %v379
  %547 = vmatprep.subr.bf16.mxu0 0
  %548 = vmatpush1.bf16.msra.mxu0 %v380
  %549 = vmatprep.subr.bf16.mxu0 0
  %550 = vmatpush1.bf16.msra.mxu0 %v381
  %551 = vmatprep.subr.bf16.mxu0 0
  %552 = vmatpush1.bf16.msra.mxu0 %v382
  %553 = vmatprep.subr.bf16.mxu0 0
  %554 = vmatpush1.bf16.msra.mxu0 %v383
  %555 = vmatprep.subr.bf16.mxu0 0
  %556 = vmatpush1.bf16.msra.mxu0 %v384
  %557 = vmatprep.subr.bf16.mxu0 0
  %558 = vmatpush1.bf16.msra.mxu0 %v385
  %559 = vmatprep.subr.bf16.mxu0 0
  %560 = vmatpush1.bf16.msra.mxu0 %v386
  %561 = vmatprep.subr.bf16.mxu0 0
  %562 = vmatpush1.bf16.msra.mxu0 %v387
  %563 = vmatprep.subr.bf16.mxu0 0
  %564 = vmatpush1.bf16.msra.mxu0 %v388
  %565 = vmatprep.subr.bf16.mxu0 0
  %566 = vmatpush1.bf16.msra.mxu0 %v389
  %567 = vmatprep.subr.bf16.mxu0 0
  %568 = vmatpush1.bf16.msra.mxu0 %v390
  %569 = vmatprep.mubr.bf16.mxu0 %v140
  %570 = vmatmul.mubr.bf16.gmra.mrb[0].mxu0 %v139
  %v571 = vpop.f32.mrb[0].mxu0
  %v572 = vadd.f32 %v523, %v571
  %v573 = vpop.f32.mrb[0].mxu0
  %v574 = vpop.f32.mrb[0].mxu0
  %v575 = vadd.f32 %v526, %v574
  %v576 = vpop.f32.mrb[0].mxu0
  %577 = vmatprep.mubr.bf16.mxu0 %v146
  %578 = vmatmul.mubr.bf16.gmra.mrb[0].mxu0 %v145
  %v579 = vpop.f32.mrb[0].mxu0
  %v580 = vadd.f32 %v531, %v579
  %v581 = vpop.f32.mrb[0].mxu0
  %v582 = vpop.f32.mrb[0].mxu0
  %v583 = vadd.f32 %v534, %v582
  %v584 = vpop.f32.mrb[0].mxu0
  %585 = vdwg.mxu0
  %vm586 = vcmask 523264
  %587 = vst.msk [vmem:[%s3] sm:$0xff] %vm586, %v572
  %588 = vst.msk [vmem:[%s3 + $0x8] sm:$0xff] %vm586, %v575
  %589 = vst.msk [vmem:[%s3 + $0x10] sm:$0xff] %vm586, %v580
  %590 = vst.msk [vmem:[%s3 + $0x18] sm:$0xff] %vm586, %v583
  // Predicated region
  $region14: #{forward.8} parent=0 // pred_check
    _
  $region15: #{forward.8} parent=0 // pred_check_branch
    %592 = sbr.rel (0) target = $region17
  $region16: #{forward.8} parent=0 // pred_region
    _
  $region17: #{forward.8} parent=0 // pred_fallthru
    _
  // Predicated region
  $region18: #{forward.8} parent=0 // pred_check
    _
  $region19: #{forward.8} parent=0 // pred_check_branch
    %594 = sbr.rel (0) target = $region21
  $region20: #{forward.8} parent=0 // pred_region
    _
  $region21: #{forward.8} parent=0 // pred_fallthru
    _

// kernel: forward.10
$region0: #{forward.10}
  #allocation0 [shape = 'u32[]', space=smem, size = 0x4, offset = 0x4, fixed_abs, tag = 'smem constant byte address 0x4 - core index']
  #allocation1 [shape = 'u32[144,128]{1,0:T(1,128)}', space=vmem, size = 0x12000, scoped, tag = 'internal scratch']
  %s0 = inlined_call_operand.vmem [shape: f32[8,256], index: 0, kind: input, shape index: {}]
  %s1 = inlined_call_operand.vmem [shape: bf16[256,128], index: 1, kind: input, shape index: {}]
  %s2 = inlined_call_operand.vmem [shape: f32[1,128], index: 2, kind: input, shape index: {}]
  %s3 = inlined_call_operand.vmem [shape: bf16[128,64], index: 3, kind: input, shape index: {}]
  %s4 = inlined_call_operand.vmem [shape: f32[1,64], index: 4, kind: input, shape index: {}]
  %s5 = inlined_call_operand.vmem [shape: bf16[64,64], index: 5, kind: input, shape index: {}]
  %s6 = inlined_call_operand.vmem [shape: f32[1,64], index: 6, kind: input, shape index: {}]
  %s7 = inlined_call_operand.vmem [shape: bf16[64,32], index: 7, kind: input, shape index: {}]
  %s8 = inlined_call_operand.vmem [shape: f32[1,32], index: 8, kind: input, shape index: {}]
  %s9 = inlined_call_operand.vmem [shape: bf16[32,32], index: 9, kind: input, shape index: {}]
  %s10 = inlined_call_operand.vmem [shape: bf16[32,32], index: 10, kind: input, shape index: {}]
  %s11 = inlined_call_operand.vmem [shape: f32[1,32], index: 11, kind: input, shape index: {}]
  %s12 = inlined_call_operand.vmem [shape: f32[8,32], index: 12, kind: output, shape index: {}]
  %s13 = sld [smem:[#allocation0]]
  $region58: #{forward.10} parent=0
    _
  %s15 = ssub.s32 1, %s13
  %s16 = scalar_select 0, %s15, %s13
  // Predicated region
  $region2: #{forward.10} parent=0 // pred_check
    _
  $region3: #{forward.10} parent=0 // pred_check_branch
    %18 = sbr.rel (0) target = $region5
  $region4: #{forward.10} parent=0 // pred_region
    _
  $region5: #{forward.10} parent=0 // pred_fallthru
    _
  // Predicated region
  $region6: #{forward.10} parent=0 // pred_check
    _
  $region7: #{forward.10} parent=0 // pred_check_branch
    %20 = sbr.rel (0) target = $region9
  $region8: #{forward.10} parent=0 // pred_region
    _
  $region9: #{forward.10} parent=0 // pred_fallthru
    _
  // Predicated region
  $region10: #{forward.10} parent=0 // pred_check
    _
  $region11: #{forward.10} parent=0 // pred_check_branch
    %22 = sbr.rel (0) target = $region13
  $region12: #{forward.10} parent=0 // pred_region
    _
  $region13: #{forward.10} parent=0 // pred_fallthru
    _
  // Predicated region
  $region14: #{forward.10} parent=0 // pred_check
    _
  $region15: #{forward.10} parent=0 // pred_check_branch
    %24 = sbr.rel (0) target = $region17
  $region16: #{forward.10} parent=0 // pred_region
    _
  $region17: #{forward.10} parent=0 // pred_fallthru
    _
  // Predicated region
  $region18: #{forward.10} parent=0 // pred_check
    _
  $region19: #{forward.10} parent=0 // pred_check_branch
    %26 = sbr.rel (0) target = $region21
  $region20: #{forward.10} parent=0 // pred_region
    _
  $region21: #{forward.10} parent=0 // pred_fallthru
    _
  // Predicated region
  $region22: #{forward.10} parent=0 // pred_check
    _
  $region23: #{forward.10} parent=0 // pred_check_branch
    %28 = sbr.rel (0) target = $region25
  $region24: #{forward.10} parent=0 // pred_region
    _
  $region25: #{forward.10} parent=0 // pred_fallthru
    _
  // Predicated region
  $region26: #{forward.10} parent=0 // pred_check
    _
  $region27: #{forward.10} parent=0 // pred_check_branch
    %30 = sbr.rel (0) target = $region29
  $region28: #{forward.10} parent=0 // pred_region
    _
  $region29: #{forward.10} parent=0 // pred_fallthru
    _
  // Predicated region
  $region30: #{forward.10} parent=0 // pred_check
    _
  $region31: #{forward.10} parent=0 // pred_check_branch
    %32 = sbr.rel (0) target = $region33
  $region32: #{forward.10} parent=0 // pred_region
    _
  $region33: #{forward.10} parent=0 // pred_fallthru
    _
  // Predicated region
  $region34: #{forward.10} parent=0 // pred_check
    _
  $region35: #{forward.10} parent=0 // pred_check_branch
    %34 = sbr.rel (0) target = $region37
  $region36: #{forward.10} parent=0 // pred_region
    _
  $region37: #{forward.10} parent=0 // pred_fallthru
    _
  // Predicated region
  $region38: #{forward.10} parent=0 // pred_check
    _
  $region39: #{forward.10} parent=0 // pred_check_branch
    %36 = sbr.rel (0) target = $region41
  $region40: #{forward.10} parent=0 // pred_region
    _
  $region41: #{forward.10} parent=0 // pred_fallthru
    _
  // Predicated region
  $region42: #{forward.10} parent=0 // pred_check
    _
  $region43: #{forward.10} parent=0 // pred_check_branch
    %38 = sbr.rel (0) target = $region45
  $region44: #{forward.10} parent=0 // pred_region
    _
  $region45: #{forward.10} parent=0 // pred_fallthru
    _
  // Predicated region
  $region46: #{forward.10} parent=0 // pred_check
    _
  $region47: #{forward.10} parent=0 // pred_check_branch
    %40 = sbr.rel (0) target = $region49
  $region48: #{forward.10} parent=0 // pred_region
    _
  $region49: #{forward.10} parent=0 // pred_fallthru
    _
  %v42 = vld [vmem:[%s0] sm:$0xff]
  %v43 = vld [vmem:[%s0 + $0x8] sm:$0xff]
  %v44 = vld [vmem:[%s1] sm:$0xf]
  %v45 = vld [vmem:[%s1 + $0x4] sm:$0xf]
  %v46 = vld [vmem:[%s1 + $0x8] sm:$0xf]
  %v47 = vld [vmem:[%s1 + $0xc] sm:$0xf]
  %v48 = vld [vmem:[%s1 + $0x10] sm:$0xf]
  %v49 = vld [vmem:[%s1 + $0x14] sm:$0xf]
  %v50 = vld [vmem:[%s1 + $0x18] sm:$0xf]
  %v51 = vld [vmem:[%s1 + $0x1c] sm:$0xf]
  %v52 = vld [vmem:[%s1 + $0x20] sm:$0xf]
  %v53 = vld [vmem:[%s1 + $0x24] sm:$0xf]
  %v54 = vld [vmem:[%s1 + $0x28] sm:$0xf]
  %v55 = vld [vmem:[%s1 + $0x2c] sm:$0xf]
  %v56 = vld [vmem:[%s1 + $0x30] sm:$0xf]
  %v57 = vld [vmem:[%s1 + $0x34] sm:$0xf]
  %v58 = vld [vmem:[%s1 + $0x38] sm:$0xf]
  %v59 = vld [vmem:[%s1 + $0x3c] sm:$0xf]
  %v60 = vld [vmem:[%s1 + $0x40] sm:$0xf]
  %v61 = vld [vmem:[%s1 + $0x44] sm:$0xf]
  %v62 = vld [vmem:[%s1 + $0x48] sm:$0xf]
  %v63 = vld [vmem:[%s1 + $0x4c] sm:$0xf]
  %v64 = vld [vmem:[%s1 + $0x50] sm:$0xf]
  %v65 = vld [vmem:[%s1 + $0x54] sm:$0xf]
  %v66 = vld [vmem:[%s1 + $0x58] sm:$0xf]
  %v67 = vld [vmem:[%s1 + $0x5c] sm:$0xf]
  %v68 = vld [vmem:[%s1 + $0x60] sm:$0xf]
  %v69 = vld [vmem:[%s1 + $0x64] sm:$0xf]
  %v70 = vld [vmem:[%s1 + $0x68] sm:$0xf]
  %v71 = vld [vmem:[%s1 + $0x6c] sm:$0xf]
  %v72 = vld [vmem:[%s1 + $0x70] sm:$0xf]
  %v73 = vld [vmem:[%s1 + $0x74] sm:$0xf]
  %v74 = vld [vmem:[%s1 + $0x78] sm:$0xf]
  %v75 = vld [vmem:[%s1 + $0x7c] sm:$0xf]
  %v76 = vld [vmem:[%s2] sm:$0x1]
  %v77 = vld [vmem:[%s3] sm:$0xf]
  %v78 = vld [vmem:[%s3 + $0x4] sm:$0xf]
  %v79 = vld [vmem:[%s3 + $0x8] sm:$0xf]
  %v80 = vld [vmem:[%s3 + $0xc] sm:$0xf]
  %v81 = vld [vmem:[%s3 + $0x10] sm:$0xf]
  %v82 = vld [vmem:[%s3 + $0x14] sm:$0xf]
  %v83 = vld [vmem:[%s3 + $0x18] sm:$0xf]
  %v84 = vld [vmem:[%s3 + $0x1c] sm:$0xf]
  %v85 = vld [vmem:[%s3 + $0x20] sm:$0xf]
  %v86 = vld [vmem:[%s3 + $0x24] sm:$0xf]
  %v87 = vld [vmem:[%s3 + $0x28] sm:$0xf]
  %v88 = vld [vmem:[%s3 + $0x2c] sm:$0xf]
  %v89 = vld [vmem:[%s3 + $0x30] sm:$0xf]
  %v90 = vld [vmem:[%s3 + $0x34] sm:$0xf]
  %v91 = vld [vmem:[%s3 + $0x38] sm:$0xf]
  %v92 = vld [vmem:[%s3 + $0x3c] sm:$0xf]
  %v93 = vld [vmem:[%s4] sm:$0x1]
  %v94 = vpack.c.bf16 %v42, %v42
  %v95 = vpack.c.bf16 %v43, %v43
  %v97 = vlaneseq
  %v98 = vshrl.u32 %v97, 7
  %v99 = vsub.s32 0, %v98
  %v100 = vrot.slane %v76, %v99
  %v134 = vunpack.c.l.b16 %v44
  %v135 = vunpack.c.l.b16 %v45
  %v136 = vunpack.c.l.b16 %v46
  %v137 = vunpack.c.l.b16 %v47
  %v138 = vunpack.c.l.b16 %v48
  %v139 = vunpack.c.l.b16 %v49
  %v140 = vunpack.c.l.b16 %v50
  %v141 = vunpack.c.l.b16 %v51
  %v142 = vunpack.c.l.b16 %v52
  %v143 = vunpack.c.l.b16 %v53
  %v144 = vunpack.c.l.b16 %v54
  %v145 = vunpack.c.l.b16 %v55
  %v146 = vunpack.c.l.b16 %v56
  %v147 = vunpack.c.l.b16 %v57
  %v148 = vunpack.c.l.b16 %v58
  %v149 = vunpack.c.l.b16 %v59
  %v150 = vunpack.c.l.b16 %v60
  %v151 = vunpack.c.l.b16 %v61
  %v152 = vunpack.c.l.b16 %v62
  %v153 = vunpack.c.l.b16 %v63
  %v154 = vunpack.c.l.b16 %v64
  %v155 = vunpack.c.l.b16 %v65
  %v156 = vunpack.c.l.b16 %v66
  %v157 = vunpack.c.l.b16 %v67
  %v158 = vunpack.c.l.b16 %v68
  %v159 = vunpack.c.l.b16 %v69
  %v160 = vunpack.c.l.b16 %v70
  %v161 = vunpack.c.l.b16 %v71
  %v162 = vunpack.c.l.b16 %v72
  %v163 = vunpack.c.l.b16 %v73
  %v164 = vunpack.c.l.b16 %v74
  %v165 = vunpack.c.l.b16 %v75
  %v166 = vpack.c.b16 %v135, %v134
  %v167 = vpack.c.b16 %v137, %v136
  %v168 = vpack.c.b16 %v139, %v138
  %v169 = vpack.c.b16 %v141, %v140
  %v170 = vpack.c.b16 %v143, %v142
  %v171 = vpack.c.b16 %v145, %v144
  %v172 = vpack.c.b16 %v147, %v146
  %v173 = vpack.c.b16 %v149, %v148
  %v174 = vpack.c.b16 %v151, %v150
  %v175 = vpack.c.b16 %v153, %v152
  %v176 = vpack.c.b16 %v155, %v154
  %v177 = vpack.c.b16 %v157, %v156
  %v178 = vpack.c.b16 %v159, %v158
  %v179 = vpack.c.b16 %v161, %v160
  %v180 = vpack.c.b16 %v163, %v162
  %v181 = vpack.c.b16 %v165, %v164
  %198 = vmatprep.subr.bf16.mxu0 0
  %199 = vmatpush1.bf16.msra.mxu0 %v166
  %200 = vmatprep.subr.bf16.mxu0 0
  %201 = vmatpush1.bf16.msra.mxu0 %v167
  %202 = vmatprep.subr.bf16.mxu0 0
  %203 = vmatpush1.bf16.msra.mxu0 %v168
  %204 = vmatprep.subr.bf16.mxu0 0
  %205 = vmatpush1.bf16.msra.mxu0 %v169
  %206 = vmatprep.subr.bf16.mxu0 0
  %207 = vmatpush1.bf16.msra.mxu0 %v170
  %208 = vmatprep.subr.bf16.mxu0 0
  %209 = vmatpush1.bf16.msra.mxu0 %v171
  %210 = vmatprep.subr.bf16.mxu0 0
  %211 = vmatpush1.bf16.msra.mxu0 %v172
  %212 = vmatprep.subr.bf16.mxu0 0
  %213 = vmatpush1.bf16.msra.mxu0 %v173
  %214 = vmatprep.subr.bf16.mxu0 0
  %215 = vmatpush1.bf16.msra.mxu0 %v174
  %216 = vmatprep.subr.bf16.mxu0 0
  %217 = vmatpush1.bf16.msra.mxu0 %v175
  %218 = vmatprep.subr.bf16.mxu0 0
  %219 = vmatpush1.bf16.msra.mxu0 %v176
  %220 = vmatprep.subr.bf16.mxu0 0
  %221 = vmatpush1.bf16.msra.mxu0 %v177
  %222 = vmatprep.subr.bf16.mxu0 0
  %223 = vmatpush1.bf16.msra.mxu0 %v178
  %224 = vmatprep.subr.bf16.mxu0 0
  %225 = vmatpush1.bf16.msra.mxu0 %v179
  %226 = vmatprep.subr.bf16.mxu0 0
  %227 = vmatpush1.bf16.msra.mxu0 %v180
  %228 = vmatprep.subr.bf16.mxu0 0
  %229 = vmatpush1.bf16.msra.mxu0 %v181
  %230 = vmatprep.mubr.bf16.mxu0 %v95
  %231 = vmatmul.mubr.bf16.gmra.mrb[0].mxu0 %v94
  %v232 = vpop.f32.mrb[0].mxu0
  %v233 = vadd.f32 %v100, %v232
  %v234 = vpop.f32.mrb[0].mxu0
  %v235 = vpop.f32.mrb[0].mxu0
  %v236 = vpop.f32.mrb[0].mxu0
  %237 = vdwg.mxu0
  %v238 = vmax.f32 %v233, 0.0
  %v239 = vpack.c.bf16 %v238, %v238
  %v241 = vlaneseq
  %v242 = vshrl.u32 %v241, 7
  %v243 = vsub.s32 0, %v242
  %v244 = vrot.slane %v93, %v243
  %v262 = vunpack.c.l.b16 %v77
  %v263 = vunpack.c.l.b16 %v78
  %v264 = vunpack.c.l.b16 %v79
  %v265 = vunpack.c.l.b16 %v80
  %v266 = vunpack.c.l.b16 %v81
  %v267 = vunpack.c.l.b16 %v82
  %v268 = vunpack.c.l.b16 %v83
  %v269 = vunpack.c.l.b16 %v84
  %v270 = vunpack.c.l.b16 %v85
  %v271 = vunpack.c.l.b16 %v86
  %v272 = vunpack.c.l.b16 %v87
  %v273 = vunpack.c.l.b16 %v88
  %v274 = vunpack.c.l.b16 %v89
  %v275 = vunpack.c.l.b16 %v90
  %v276 = vunpack.c.l.b16 %v91
  %v277 = vunpack.c.l.b16 %v92
  %v278 = vpack.c.b16 %v263, %v262
  %v279 = vpack.c.b16 %v265, %v264
  %v280 = vpack.c.b16 %v267, %v266
  %v281 = vpack.c.b16 %v269, %v268
  %v282 = vpack.c.b16 %v271, %v270
  %v283 = vpack.c.b16 %v273, %v272
  %v284 = vpack.c.b16 %v275, %v274
  %v285 = vpack.c.b16 %v277, %v276
  %294 = vmatprep.subr.bf16.mxu0 0
  %295 = vmatpush1.bf16.msra.mxu0 %v278
  %296 = vmatprep.subr.bf16.mxu0 0
  %297 = vmatpush1.bf16.msra.mxu0 %v279
  %298 = vmatprep.subr.bf16.mxu0 0
  %299 = vmatpush1.bf16.msra.mxu0 %v280
  %300 = vmatprep.subr.bf16.mxu0 0
  %301 = vmatpush1.bf16.msra.mxu0 %v281
  %302 = vmatprep.subr.bf16.mxu0 0
  %303 = vmatpush1.bf16.msra.mxu0 %v282
  %304 = vmatprep.subr.bf16.mxu0 0
  %305 = vmatpush1.bf16.msra.mxu0 %v283
  %306 = vmatprep.subr.bf16.mxu0 0
  %307 = vmatpush1.bf16.msra.mxu0 %v284
  %308 = vmatprep.subr.bf16.mxu0 0
  %309 = vmatpush1.bf16.msra.mxu0 %v285
  %310 = vmatprep.subr.bf16.mxu0 0
  %311 = vmatpush1.bf16.msra.mxu0 0
  %312 = vmatprep.subr.bf16.mxu0 0
  %313 = vmatpush1.bf16.msra.mxu0 0
  %314 = vmatprep.subr.bf16.mxu0 0
  %315 = vmatpush1.bf16.msra.mxu0 0
  %316 = vmatprep.subr.bf16.mxu0 0
  %317 = vmatpush1.bf16.msra.mxu0 0
  %318 = vmatprep.subr.bf16.mxu0 0
  %319 = vmatpush1.bf16.msra.mxu0 0
  %320 = vmatprep.subr.bf16.mxu0 0
  %321 = vmatpush1.bf16.msra.mxu0 0
  %322 = vmatprep.subr.bf16.mxu0 0
  %323 = vmatpush1.bf16.msra.mxu0 0
  %324 = vmatprep.subr.bf16.mxu0 0
  %325 = vmatpush1.bf16.msra.mxu0 0
  %326 = vmatprep.mubr.bf16.mxu0 0
  %327 = vmatmul.mubr.bf16.gmra.mrb[0].mxu0 %v239
  %v328 = vpop.f32.mrb[0].mxu0
  %v329 = vadd.f32 %v244, %v328
  %v330 = vpop.f32.mrb[0].mxu0
  %v331 = vpop.f32.mrb[0].mxu0
  %v332 = vpop.f32.mrb[0].mxu0
  %333 = vdwg.mxu0
  %v334 = vld [vmem:[%s5] sm:$0xf]
  %v335 = vld [vmem:[%s5 + $0x4] sm:$0xf]
  %v336 = vld [vmem:[%s5 + $0x8] sm:$0xf]
  %v337 = vld [vmem:[%s5 + $0xc] sm:$0xf]
  %v338 = vld [vmem:[%s5 + $0x10] sm:$0xf]
  %v339 = vld [vmem:[%s5 + $0x14] sm:$0xf]
  %v340 = vld [vmem:[%s5 + $0x18] sm:$0xf]
  %v341 = vld [vmem:[%s5 + $0x1c] sm:$0xf]
  %v342 = vld [vmem:[%s6] sm:$0x1]
  %v343 = vld [vmem:[%s7] sm:$0xf]
  %v344 = vld [vmem:[%s7 + $0x4] sm:$0xf]
  %v345 = vld [vmem:[%s7 + $0x8] sm:$0xf]
  %v346 = vld [vmem:[%s7 + $0xc] sm:$0xf]
  %v347 = vld [vmem:[%s7 + $0x10] sm:$0xf]
  %v348 = vld [vmem:[%s7 + $0x14] sm:$0xf]
  %v349 = vld [vmem:[%s7 + $0x18] sm:$0xf]
  %v350 = vld [vmem:[%s7 + $0x1c] sm:$0xf]
  %v351 = vld [vmem:[%s8] sm:$0x1]
  %v352 = vpack.c.bf16 %v329, %v329
  %v354 = vlaneseq
  %v355 = vshrl.u32 %v354, 7
  %v356 = vsub.s32 0, %v355
  %v357 = vrot.slane %v342, %v356
  %v367 = vunpack.c.l.b16 %v334
  %v368 = vunpack.c.l.b16 %v335
  %v369 = vunpack.c.l.b16 %v336
  %v370 = vunpack.c.l.b16 %v337
  %v371 = vunpack.c.l.b16 %v338
  %v372 = vunpack.c.l.b16 %v339
  %v373 = vunpack.c.l.b16 %v340
  %v374 = vunpack.c.l.b16 %v341
  %v375 = vpack.c.b16 %v368, %v367
  %v376 = vpack.c.b16 %v370, %v369
  %v377 = vpack.c.b16 %v372, %v371
  %v378 = vpack.c.b16 %v374, %v373
  %vm383 = vcmask 523264
  %v385 = vsel %vm383, %v352, 0
  %387 = vmatprep.subr.bf16.mxu0 0
  %388 = vmatpush1.bf16.msra.mxu0 %v375
  %389 = vmatprep.subr.bf16.mxu0 0
  %390 = vmatpush1.bf16.msra.mxu0 %v376
  %391 = vmatprep.subr.bf16.mxu0 0
  %392 = vmatpush1.bf16.msra.mxu0 %v377
  %393 = vmatprep.subr.bf16.mxu0 0
  %394 = vmatpush1.bf16.msra.mxu0 %v378
  %395 = vmatprep.subr.bf16.mxu0 0
  %396 = vmatpush1.bf16.msra.mxu0 0
  %397 = vmatprep.subr.bf16.mxu0 0
  %398 = vmatpush1.bf16.msra.mxu0 0
  %399 = vmatprep.subr.bf16.mxu0 0
  %400 = vmatpush1.bf16.msra.mxu0 0
  %401 = vmatprep.subr.bf16.mxu0 0
  %402 = vmatpush1.bf16.msra.mxu0 0
  %403 = vmatprep.subr.bf16.mxu0 0
  %404 = vmatpush1.bf16.msra.mxu0 0
  %405 = vmatprep.subr.bf16.mxu0 0
  %406 = vmatpush1.bf16.msra.mxu0 0
  %407 = vmatprep.subr.bf16.mxu0 0
  %408 = vmatpush1.bf16.msra.mxu0 0
  %409 = vmatprep.subr.bf16.mxu0 0
  %410 = vmatpush1.bf16.msra.mxu0 0
  %411 = vmatprep.subr.bf16.mxu0 0
  %412 = vmatpush1.bf16.msra.mxu0 0
  %413 = vmatprep.subr.bf16.mxu0 0
  %414 = vmatpush1.bf16.msra.mxu0 0
  %415 = vmatprep.subr.bf16.mxu0 0
  %416 = vmatpush1.bf16.msra.mxu0 0
  %417 = vmatprep.subr.bf16.mxu0 0
  %418 = vmatpush1.bf16.msra.mxu0 0
  %419 = vmatprep.mubr.bf16.mxu0 0
  %420 = vmatmul.mubr.bf16.gmra.mrb[0].mxu0 %v385
  %v421 = vpop.f32.mrb[0].mxu0
  %v422 = vadd.f32 %v357, %v421
  %v423 = vpop.f32.mrb[0].mxu0
  %v424 = vpop.f32.mrb[0].mxu0
  %v425 = vpop.f32.mrb[0].mxu0
  %426 = vdwg.mxu0
  %v427 = vmax.f32 %v422, 0.0
  %v428 = vpack.c.bf16 %v427, %v427
  %v430 = vlaneseq
  %v431 = vshrl.u32 %v430, 7
  %v432 = vsub.s32 0, %v431
  %v433 = vrot.slane %v351, %v432
  %v443 = vunpack.c.l.b16 %v343
  %v444 = vunpack.c.l.b16 %v344
  %v445 = vunpack.c.l.b16 %v345
  %v446 = vunpack.c.l.b16 %v346
  %v447 = vunpack.c.l.b16 %v347
  %v448 = vunpack.c.l.b16 %v348
  %v449 = vunpack.c.l.b16 %v349
  %v450 = vunpack.c.l.b16 %v350
  %v451 = vpack.c.b16 %v444, %v443
  %v452 = vpack.c.b16 %v446, %v445
  %v453 = vpack.c.b16 %v448, %v447
  %v454 = vpack.c.b16 %v450, %v449
  %v460 = vsel %vm383, %v428, 0
  %462 = vmatprep.subr.bf16.mxu0 0
  %463 = vmatpush1.bf16.msra.mxu0 %v451
  %464 = vmatprep.subr.bf16.mxu0 0
  %465 = vmatpush1.bf16.msra.mxu0 %v452
  %466 = vmatprep.subr.bf16.mxu0 0
  %467 = vmatpush1.bf16.msra.mxu0 %v453
  %468 = vmatprep.subr.bf16.mxu0 0
  %469 = vmatpush1.bf16.msra.mxu0 %v454
  %470 = vmatprep.subr.bf16.mxu0 0
  %471 = vmatpush1.bf16.msra.mxu0 0
  %472 = vmatprep.subr.bf16.mxu0 0
  %473 = vmatpush1.bf16.msra.mxu0 0
  %474 = vmatprep.subr.bf16.mxu0 0
  %475 = vmatpush1.bf16.msra.mxu0 0
  %476 = vmatprep.subr.bf16.mxu0 0
  %477 = vmatpush1.bf16.msra.mxu0 0
  %478 = vmatprep.subr.bf16.mxu0 0
  %479 = vmatpush1.bf16.msra.mxu0 0
  %480 = vmatprep.subr.bf16.mxu0 0
  %481 = vmatpush1.bf16.msra.mxu0 0
  %482 = vmatprep.subr.bf16.mxu0 0
  %483 = vmatpush1.bf16.msra.mxu0 0
  %484 = vmatprep.subr.bf16.mxu0 0
  %485 = vmatpush1.bf16.msra.mxu0 0
  %486 = vmatprep.subr.bf16.mxu0 0
  %487 = vmatpush1.bf16.msra.mxu0 0
  %488 = vmatprep.subr.bf16.mxu0 0
  %489 = vmatpush1.bf16.msra.mxu0 0
  %490 = vmatprep.subr.bf16.mxu0 0
  %491 = vmatpush1.bf16.msra.mxu0 0
  %492 = vmatprep.subr.bf16.mxu0 0
  %493 = vmatpush1.bf16.msra.mxu0 0
  %494 = vmatprep.mubr.bf16.mxu0 0
  %495 = vmatmul.mubr.bf16.gmra.mrb[0].mxu0 %v460
  %v496 = vpop.f32.mrb[0].mxu0
  %v497 = vadd.f32 %v433, %v496
  %v498 = vpop.f32.mrb[0].mxu0
  %v499 = vpop.f32.mrb[0].mxu0
  %v500 = vpop.f32.mrb[0].mxu0
  %501 = vdwg.mxu0
  %v502 = vld [vmem:[%s9] sm:$0xf]
  %v503 = vld [vmem:[%s9 + $0x4] sm:$0xf]
  %v504 = vld [vmem:[%s9 + $0x8] sm:$0xf]
  %v505 = vld [vmem:[%s9 + $0xc] sm:$0xf]
  %v506 = vpack.c.bf16 %v497, %v497
  %v511 = vunpack.c.l.b16 %v502
  %v512 = vunpack.c.l.b16 %v503
  %v513 = vunpack.c.l.b16 %v504
  %v514 = vunpack.c.l.b16 %v505
  %v515 = vpack.c.b16 %v512, %v511
  %v516 = vpack.c.b16 %v514, %v513
  %vm519 = vcmask 261120
  %v521 = vsel %vm519, %v506, 0
  %523 = vmatprep.subr.bf16.mxu0 0
  %524 = vmatpush1.bf16.msra.mxu0 %v515
  %525 = vmatprep.subr.bf16.mxu0 0
  %526 = vmatpush1.bf16.msra.mxu0 %v516
  %527 = vmatprep.subr.bf16.mxu0 0
  %528 = vmatpush1.bf16.msra.mxu0 0
  %529 = vmatprep.subr.bf16.mxu0 0
  %530 = vmatpush1.bf16.msra.mxu0 0
  %531 = vmatprep.subr.bf16.mxu0 0
  %532 = vmatpush1.bf16.msra.mxu0 0
  %533 = vmatprep.subr.bf16.mxu0 0
  %534 = vmatpush1.bf16.msra.mxu0 0
  %535 = vmatprep.subr.bf16.mxu0 0
  %536 = vmatpush1.bf16.msra.mxu0 0
  %537 = vmatprep.subr.bf16.mxu0 0
  %538 = vmatpush1.bf16.msra.mxu0 0
  %539 = vmatprep.subr.bf16.mxu0 0
  %540 = vmatpush1.bf16.msra.mxu0 0
  %541 = vmatprep.subr.bf16.mxu0 0
  %542 = vmatpush1.bf16.msra.mxu0 0
  %543 = vmatprep.subr.bf16.mxu0 0
  %544 = vmatpush1.bf16.msra.mxu0 0
  %545 = vmatprep.subr.bf16.mxu0 0
  %546 = vmatpush1.bf16.msra.mxu0 0
  %547 = vmatprep.subr.bf16.mxu0 0
  %548 = vmatpush1.bf16.msra.mxu0 0
  %549 = vmatprep.subr.bf16.mxu0 0
  %550 = vmatpush1.bf16.msra.mxu0 0
  %551 = vmatprep.subr.bf16.mxu0 0
  %552 = vmatpush1.bf16.msra.mxu0 0
  %553 = vmatprep.subr.bf16.mxu0 0
  %554 = vmatpush1.bf16.msra.mxu0 0
  %555 = vmatprep.mubr.bf16.mxu0 0
  %556 = vmatmul.mubr.bf16.gmra.mrb[0].mxu0 %v521
  %v557 = vpop.f32.mrb[0].mxu0
  %v558 = vadd.f32 0.0, %v557
  %v559 = vpop.f32.mrb[0].mxu0
  %v560 = vpop.f32.mrb[0].mxu0
  %v561 = vpop.f32.mrb[0].mxu0
  %562 = vdwg.mxu0
  %v563 = vld [vmem:[%s10] sm:$0xf]
  %v564 = vld [vmem:[%s10 + $0x4] sm:$0xf]
  %v565 = vld [vmem:[%s10 + $0x8] sm:$0xf]
  %v566 = vld [vmem:[%s10 + $0xc] sm:$0xf]
  %v567 = vpack.c.bf16 %v558, %v558
  %v568 = vld [vmem:[%s11] sm:$0x1]
  %v570 = vlaneseq
  %v571 = vshrl.u32 %v570, 7
  %v572 = vsub.s32 0, %v571
  %v573 = vrot.slane %v568, %v572
  %v579 = vunpack.c.l.b16 %v563
  %v580 = vunpack.c.l.b16 %v564
  %v581 = vunpack.c.l.b16 %v565
  %v582 = vunpack.c.l.b16 %v566
  %v583 = vpack.c.b16 %v580, %v579
  %v584 = vpack.c.b16 %v582, %v581
  %v588 = vsel %vm519, %v567, 0
  %590 = vmatprep.subr.bf16.mxu0 0
  %591 = vmatpush1.bf16.msra.mxu0 %v583
  %592 = vmatprep.subr.bf16.mxu0 0
  %593 = vmatpush1.bf16.msra.mxu0 %v584
  %594 = vmatprep.subr.bf16.mxu0 0
  %595 = vmatpush1.bf16.msra.mxu0 0
  %596 = vmatprep.subr.bf16.mxu0 0
  %597 = vmatpush1.bf16.msra.mxu0 0
  %598 = vmatprep.subr.bf16.mxu0 0
  %599 = vmatpush1.bf16.msra.mxu0 0
  %600 = vmatprep.subr.bf16.mxu0 0
  %601 = vmatpush1.bf16.msra.mxu0 0
  %602 = vmatprep.subr.bf16.mxu0 0
  %603 = vmatpush1.bf16.msra.mxu0 0
  %604 = vmatprep.subr.bf16.mxu0 0
  %605 = vmatpush1.bf16.msra.mxu0 0
  %606 = vmatprep.subr.bf16.mxu0 0
  %607 = vmatpush1.bf16.msra.mxu0 0
  %608 = vmatprep.subr.bf16.mxu0 0
  %609 = vmatpush1.bf16.msra.mxu0 0
  %610 = vmatprep.subr.bf16.mxu0 0
  %611 = vmatpush1.bf16.msra.mxu0 0
  %612 = vmatprep.subr.bf16.mxu0 0
  %613 = vmatpush1.bf16.msra.mxu0 0
  %614 = vmatprep.subr.bf16.mxu0 0
  %615 = vmatpush1.bf16.msra.mxu0 0
  %616 = vmatprep.subr.bf16.mxu0 0
  %617 = vmatpush1.bf16.msra.mxu0 0
  %618 = vmatprep.subr.bf16.mxu0 0
  %619 = vmatpush1.bf16.msra.mxu0 0
  %620 = vmatprep.subr.bf16.mxu0 0
  %621 = vmatpush1.bf16.msra.mxu0 0
  %622 = vmatprep.mubr.bf16.mxu0 0
  %623 = vmatmul.mubr.bf16.gmra.mrb[0].mxu0 %v588
  %v624 = vpop.f32.mrb[0].mxu0
  %v625 = vadd.f32 %v573, %v624
  %v626 = vpop.f32.mrb[0].mxu0
  %v627 = vpop.f32.mrb[0].mxu0
  %v628 = vpop.f32.mrb[0].mxu0
  %629 = vdwg.mxu0
  %630 = vst.msk [vmem:[%s12] sm:$0xff] %vm519, %v625
  // Predicated region
  $region50: #{forward.10} parent=0 // pred_check
    _
  $region51: #{forward.10} parent=0 // pred_check_branch
    %632 = sbr.rel (0) target = $region53
  $region52: #{forward.10} parent=0 // pred_region
    _
  $region53: #{forward.10} parent=0 // pred_fallthru
    _
  // Predicated region
  $region54: #{forward.10} parent=0 // pred_check
    _
  $region55: #{forward.10} parent=0 // pred_check_branch
    %634 = sbr.rel (0) target = $region57
  $region56: #{forward.10} parent=0 // pred_region
    _
  $region57: #{forward.10} parent=0 // pred_fallthru
    _

// kernel: forward.13
$region0: #{forward.13}
  #allocation0 [shape = 'u32[]', space=smem, size = 0x4, offset = 0x4, fixed_abs, tag = 'smem constant byte address 0x4 - core index']
  #allocation1 [shape = 'u32[144,128]{1,0:T(1,128)}', space=vmem, size = 0x12000, scoped, tag = 'internal scratch']
  %s0 = inlined_call_operand.vmem [shape: f32[40,64], index: 0, kind: input, shape index: {}]
  %s1 = inlined_call_operand.vmem [shape: f32[40,40], index: 1, kind: input, shape index: {}]
  %s2 = inlined_call_operand.vmem [shape: f32[1,64], index: 2, kind: input, shape index: {}]
  %s3 = inlined_call_operand.vmem [shape: f32[1,64], index: 3, kind: input, shape index: {}]
  %s4 = inlined_call_operand.vmem [shape: bf16[64,192], index: 4, kind: input, shape index: {}]
  %s5 = inlined_call_operand.vmem [shape: f32[1,192], index: 5, kind: input, shape index: {}]
  %s6 = inlined_call_operand.vmem [shape: bf16[64,64], index: 6, kind: input, shape index: {}]
  %s7 = inlined_call_operand.vmem [shape: f32[1,64], index: 7, kind: input, shape index: {}]
  %s8 = inlined_call_operand.vmem [shape: f32[1,64], index: 8, kind: input, shape index: {}]
  %s9 = inlined_call_operand.vmem [shape: f32[1,64], index: 9, kind: input, shape index: {}]
  %s10 = inlined_call_operand.vmem [shape: bf16[64,256], index: 10, kind: input, shape index: {}]
  %s11 = inlined_call_operand.vmem [shape: f32[1,256], index: 11, kind: input, shape index: {}]
  %s12 = inlined_call_operand.vmem [shape: bf16[256,64], index: 12, kind: input, shape index: {}]
  %s13 = inlined_call_operand.vmem [shape: f32[1,64], index: 13, kind: input, shape index: {}]
  %s14 = inlined_call_operand.vmem [shape: f32[40,64], index: 14, kind: output, shape index: {}]
  %s15 = sld [smem:[#allocation0]]
  $region66: #{forward.13} parent=0
    _
  %s17 = ssub.s32 1, %s15
  %s18 = scalar_select 0, %s17, %s15
  // Predicated region
  $region2: #{forward.13} parent=0 // pred_check
    _
  $region3: #{forward.13} parent=0 // pred_check_branch
    %20 = sbr.rel (0) target = $region5
  $region4: #{forward.13} parent=0 // pred_region
    _
  $region5: #{forward.13} parent=0 // pred_fallthru
    _
  // Predicated region
  $region6: #{forward.13} parent=0 // pred_check
    _
  $region7: #{forward.13} parent=0 // pred_check_branch
    %22 = sbr.rel (0) target = $region9
  $region8: #{forward.13} parent=0 // pred_region
    _
  $region9: #{forward.13} parent=0 // pred_fallthru
    _
  // Predicated region
  $region10: #{forward.13} parent=0 // pred_check
    _
  $region11: #{forward.13} parent=0 // pred_check_branch
    %24 = sbr.rel (0) target = $region13
  $region12: #{forward.13} parent=0 // pred_region
    _
  $region13: #{forward.13} parent=0 // pred_fallthru
    _
  // Predicated region
  $region14: #{forward.13} parent=0 // pred_check
    _
  $region15: #{forward.13} parent=0 // pred_check_branch
    %26 = sbr.rel (0) target = $region17
  $region16: #{forward.13} parent=0 // pred_region
    _
  $region17: #{forward.13} parent=0 // pred_fallthru
    _
  // Predicated region
  $region18: #{forward.13} parent=0 // pred_check
    _
  $region19: #{forward.13} parent=0 // pred_check_branch
    %28 = sbr.rel (0) target = $region21
  $region20: #{forward.13} parent=0 // pred_region
    _
  $region21: #{forward.13} parent=0 // pred_fallthru
    _
  // Predicated region
  $region22: #{forward.13} parent=0 // pred_check
    _
  $region23: #{forward.13} parent=0 // pred_check_branch
    %30 = sbr.rel (0) target = $region25
  $region24: #{forward.13} parent=0 // pred_region
    _
  $region25: #{forward.13} parent=0 // pred_fallthru
    _
  // Predicated region
  $region26: #{forward.13} parent=0 // pred_check
    _
  $region27: #{forward.13} parent=0 // pred_check_branch
    %32 = sbr.rel (0) target = $region29
  $region28: #{forward.13} parent=0 // pred_region
    _
  $region29: #{forward.13} parent=0 // pred_fallthru
    _
  // Predicated region
  $region30: #{forward.13} parent=0 // pred_check
    _
  $region31: #{forward.13} parent=0 // pred_check_branch
    %34 = sbr.rel (0) target = $region33
  $region32: #{forward.13} parent=0 // pred_region
    _
  $region33: #{forward.13} parent=0 // pred_fallthru
    _
  // Predicated region
  $region34: #{forward.13} parent=0 // pred_check
    _
  $region35: #{forward.13} parent=0 // pred_check_branch
    %36 = sbr.rel (0) target = $region37
  $region36: #{forward.13} parent=0 // pred_region
    _
  $region37: #{forward.13} parent=0 // pred_fallthru
    _
  // Predicated region
  $region38: #{forward.13} parent=0 // pred_check
    _
  $region39: #{forward.13} parent=0 // pred_check_branch
    %38 = sbr.rel (0) target = $region41
  $region40: #{forward.13} parent=0 // pred_region
    _
  $region41: #{forward.13} parent=0 // pred_fallthru
    _
  // Predicated region
  $region42: #{forward.13} parent=0 // pred_check
    _
  $region43: #{forward.13} parent=0 // pred_check_branch
    %40 = sbr.rel (0) target = $region45
  $region44: #{forward.13} parent=0 // pred_region
    _
  $region45: #{forward.13} parent=0 // pred_fallthru
    _
  // Predicated region
  $region46: #{forward.13} parent=0 // pred_check
    _
  $region47: #{forward.13} parent=0 // pred_check_branch
    %42 = sbr.rel (0) target = $region49
  $region48: #{forward.13} parent=0 // pred_region
    _
  $region49: #{forward.13} parent=0 // pred_fallthru
    _
  // Predicated region
  $region50: #{forward.13} parent=0 // pred_check
    _
  $region51: #{forward.13} parent=0 // pred_check_branch
    %44 = sbr.rel (0) target = $region53
  $region52: #{forward.13} parent=0 // pred_region
    _
  $region53: #{forward.13} parent=0 // pred_fallthru
    _
  // Predicated region
  $region54: #{forward.13} parent=0 // pred_check
    _
  $region55: #{forward.13} parent=0 // pred_check_branch
    %46 = sbr.rel (0) target = $region57
  $region56: #{forward.13} parent=0 // pred_region
    _
  $region57: #{forward.13} parent=0 // pred_fallthru
    _
  %v48 = vld [vmem:[%s0] sm:$0xff]
  %v49 = vld [vmem:[%s0 + $0x8] sm:$0xff]
  %v50 = vld [vmem:[%s0 + $0x10] sm:$0xff]
  %v51 = vld [vmem:[%s0 + $0x18] sm:$0xff]
  %v52 = vld [vmem:[%s0 + $0x20] sm:$0xff]
  %v53 = vld [vmem:[%s2] sm:$0x1]
  %v54 = vld [vmem:[%s3] sm:$0x1]
  %v55 = vld [vmem:[%s4] sm:$0xff]
  %v56 = vld [vmem:[%s4 + $0x8] sm:$0xff]
  %v57 = vld [vmem:[%s4 + $0x10] sm:$0xff]
  %v58 = vld [vmem:[%s4 + $0x18] sm:$0xff]
  %v59 = vld [vmem:[%s4 + $0x20] sm:$0xff]
  %v60 = vld [vmem:[%s4 + $0x28] sm:$0xff]
  %v61 = vld [vmem:[%s4 + $0x30] sm:$0xff]
  %v62 = vld [vmem:[%s4 + $0x38] sm:$0xff]
  %v63 = vld [vmem:[%s5] sm:$0x3]
  %v64 = vld [vmem:[%s6] sm:$0xf]
  %v65 = vld [vmem:[%s6 + $0x4] sm:$0xf]
  %v66 = vld [vmem:[%s6 + $0x8] sm:$0xf]
  %v67 = vld [vmem:[%s6 + $0xc] sm:$0xf]
  %v68 = vld [vmem:[%s6 + $0x10] sm:$0xf]
  %v69 = vld [vmem:[%s6 + $0x14] sm:$0xf]
  %v70 = vld [vmem:[%s6 + $0x18] sm:$0xf]
  %v71 = vld [vmem:[%s6 + $0x1c] sm:$0xf]
  %v72 = vld [vmem:[%s7] sm:$0x1]
  %v73 = vld [vmem:[%s8] sm:$0x1]
  %v74 = vld [vmem:[%s9] sm:$0x1]
  %v75 = vld [vmem:[%s10] sm:$0xff]
  %v76 = vld [vmem:[%s10 + $0x8] sm:$0xff]
  %v77 = vld [vmem:[%s10 + $0x10] sm:$0xff]
  %v78 = vld [vmem:[%s10 + $0x18] sm:$0xff]
  %v79 = vld [vmem:[%s10 + $0x20] sm:$0xff]
  %v80 = vld [vmem:[%s10 + $0x28] sm:$0xff]
  %v81 = vld [vmem:[%s10 + $0x30] sm:$0xff]
  %v82 = vld [vmem:[%s10 + $0x38] sm:$0xff]
  %v83 = vld [vmem:[%s11] sm:$0x3]
  %v84 = vld [vmem:[%s12] sm:$0xf]
  %v85 = vld [vmem:[%s12 + $0x4] sm:$0xf]
  %v86 = vld [vmem:[%s12 + $0x8] sm:$0xf]
  %v87 = vld [vmem:[%s12 + $0xc] sm:$0xf]
  %v88 = vld [vmem:[%s12 + $0x10] sm:$0xf]
  %v89 = vld [vmem:[%s12 + $0x14] sm:$0xf]
  %v90 = vld [vmem:[%s12 + $0x18] sm:$0xf]
  %v91 = vld [vmem:[%s12 + $0x1c] sm:$0xf]
  %v92 = vld [vmem:[%s12 + $0x20] sm:$0xf]
  %v93 = vld [vmem:[%s12 + $0x24] sm:$0xf]
  %v94 = vld [vmem:[%s12 + $0x28] sm:$0xf]
  %v95 = vld [vmem:[%s12 + $0x2c] sm:$0xf]
  %v96 = vld [vmem:[%s12 + $0x30] sm:$0xf]
  %v97 = vld [vmem:[%s12 + $0x34] sm:$0xf]
  %v98 = vld [vmem:[%s12 + $0x38] sm:$0xf]
  %v99 = vld [vmem:[%s12 + $0x3c] sm:$0xf]
  %v100 = vld [vmem:[%s12 + $0x40] sm:$0xf]
  %v101 = vld [vmem:[%s12 + $0x44] sm:$0xf]
  %v102 = vld [vmem:[%s12 + $0x48] sm:$0xf]
  %v103 = vld [vmem:[%s12 + $0x4c] sm:$0xf]
  %v104 = vld [vmem:[%s12 + $0x50] sm:$0xf]
  %v105 = vld [vmem:[%s12 + $0x54] sm:$0xf]
  %v106 = vld [vmem:[%s12 + $0x58] sm:$0xf]
  %v107 = vld [vmem:[%s12 + $0x5c] sm:$0xf]
  %v108 = vld [vmem:[%s12 + $0x60] sm:$0xf]
  %v109 = vld [vmem:[%s12 + $0x64] sm:$0xf]
  %v110 = vld [vmem:[%s12 + $0x68] sm:$0xf]
  %v111 = vld [vmem:[%s12 + $0x6c] sm:$0xf]
  %v112 = vld [vmem:[%s12 + $0x70] sm:$0xf]
  %v113 = vld [vmem:[%s12 + $0x74] sm:$0xf]
  %v114 = vld [vmem:[%s12 + $0x78] sm:$0xf]
  %v115 = vld [vmem:[%s12 + $0x7c] sm:$0xf]
  %v116 = vld [vmem:[%s13] sm:$0x1]
  %v117 = vld [vmem:[%s1] sm:$0xff]
  %v118 = vld [vmem:[%s1 + $0x8] sm:$0xff]
  %v119 = vld [vmem:[%s1 + $0x10] sm:$0xff]
  %v120 = vld [vmem:[%s1 + $0x18] sm:$0xff]
  %v121 = vld [vmem:[%s1 + $0x20] sm:$0xff]
  %vm122 = vcmask 523264
  %v123 = vsel %vm122, %v48, 0.0
  %124 = vadd.xlane.f32.xlu0 %v123
  %v125 = vpop.xlane.xlu0 %124
  %v126 = vsel %vm122, %v49, 0.0
  %127 = vadd.xlane.f32.xlu0 %v126
  %v128 = vpop.xlane.xlu0 %127
  %v129 = vsel %vm122, %v50, 0.0
  %130 = vadd.xlane.f32.xlu0 %v129
  %v131 = vpop.xlane.xlu0 %130
  %v132 = vsel %vm122, %v51, 0.0
  %133 = vadd.xlane.f32.xlu0 %v132
  %v134 = vpop.xlane.xlu0 %133
  %v135 = vsel %vm122, %v52, 0.0
  %136 = vadd.xlane.f32.xlu0 %v135
  %v137 = vpop.xlane.xlu0 %136
  %v138 = vrcp.pop 64.0
  %v139 = vmul.f32 %v125, %v138
  %v140 = vmul.f32 %v128, %v138
  %v141 = vmul.f32 %v131, %v138
  %v142 = vmul.f32 %v134, %v138
  %v143 = vmul.f32 %v137, %v138
  %v144 = vsub.f32 %v48, %v139
  %v145 = vsub.f32 %v49, %v140
  %v146 = vsub.f32 %v50, %v141
  %v147 = vsub.f32 %v51, %v142
  %v148 = vsub.f32 %v52, %v143
  %v149 = vmul.f32 %v144, %v144
  %v150 = vmul.f32 %v145, %v145
  %v151 = vmul.f32 %v146, %v146
  %v152 = vmul.f32 %v147, %v147
  %v153 = vmul.f32 %v148, %v148
  %v154 = vsel %vm122, %v149, 0.0
  %155 = vadd.xlane.f32.xlu0 %v154
  %v156 = vpop.xlane.xlu0 %155
  %v157 = vsel %vm122, %v150, 0.0
  %158 = vadd.xlane.f32.xlu0 %v157
  %v159 = vpop.xlane.xlu0 %158
  %v160 = vsel %vm122, %v151, 0.0
  %161 = vadd.xlane.f32.xlu0 %v160
  %v162 = vpop.xlane.xlu0 %161
  %v163 = vsel %vm122, %v152, 0.0
  %164 = vadd.xlane.f32.xlu0 %v163
  %v165 = vpop.xlane.xlu0 %164
  %v166 = vsel %vm122, %v153, 0.0
  %167 = vadd.xlane.f32.xlu0 %v166
  %v168 = vpop.xlane.xlu0 %167
  %v169 = vmul.f32 %v156, %v138
  %v170 = vmul.f32 %v159, %v138
  %v171 = vmul.f32 %v162, %v138
  %v172 = vmul.f32 %v165, %v138
  %v173 = vmul.f32 %v168, %v138
  %v174 = vadd.f32 %v169, 1e-05
  %v175 = vadd.f32 %v170, 1e-05
  %v176 = vadd.f32 %v171, 1e-05
  %v177 = vadd.f32 %v172, 1e-05
  %v178 = vadd.f32 %v173, 1e-05
  %v179 = vrsqrt.pop %v174
  %v180 = vrsqrt.pop %v175
  %v181 = vrsqrt.pop %v176
  %v182 = vrsqrt.pop %v177
  %v183 = vrsqrt.pop %v178
  %v184 = vmul.f32 %v144, %v179
  %v185 = vmul.f32 %v145, %v180
  %v186 = vmul.f32 %v146, %v181
  %v187 = vmul.f32 %v147, %v182
  %v188 = vmul.f32 %v148, %v183
  %v190 = vlaneseq
  %v191 = vshrl.u32 %v190, 7
  %v192 = vsub.s32 0, %v191
  %v193 = vrot.slane %v53, %v192
  %v195 = vmul.f32 %v184, %v193
  %v196 = vmul.f32 %v185, %v193
  %v197 = vmul.f32 %v186, %v193
  %v198 = vmul.f32 %v187, %v193
  %v199 = vmul.f32 %v188, %v193
  %v201 = vlaneseq
  %v202 = vshrl.u32 %v201, 7
  %v203 = vsub.s32 0, %v202
  %v204 = vrot.slane %v54, %v203
  %v206 = vadd.f32 %v195, %v204
  %v207 = vadd.f32 %v196, %v204
  %v208 = vadd.f32 %v197, %v204
  %v209 = vadd.f32 %v198, %v204
  %v210 = vadd.f32 %v199, %v204
  %v211 = vpack.c.bf16 %v207, %v206
  %v212 = vpack.c.bf16 %v209, %v208
  %v213 = vpack.c.bf16 %v210, %v210
  %v215 = vlaneseq
  %v216 = vshrl.u32 %v215, 7
  %v217 = vsub.s32 0, %v216
  %v218 = vrot.slane %v63, %v217
  %v219 = vlaneseq
  %v220 = vshrl.u32 %v219, 7
  %v221 = vsub.s32 1, %v220
  %v222 = vrot.slane %v63, %v221
  %v233 = vunpack.c.l.b16 %v55
  %v234 = vunpack.c.h.b16 %v55
  %v235 = vunpack.c.l.b16 %v56
  %v236 = vunpack.c.h.b16 %v56
  %v237 = vunpack.c.l.b16 %v57
  %v238 = vunpack.c.h.b16 %v57
  %v239 = vunpack.c.l.b16 %v58
  %v240 = vunpack.c.h.b16 %v58
  %v241 = vunpack.c.l.b16 %v59
  %v242 = vunpack.c.h.b16 %v59
  %v243 = vunpack.c.l.b16 %v60
  %v244 = vunpack.c.h.b16 %v60
  %v245 = vunpack.c.l.b16 %v61
  %v246 = vunpack.c.h.b16 %v61
  %v247 = vunpack.c.l.b16 %v62
  %v248 = vunpack.c.h.b16 %v62
  %v249 = vpack.c.b16 %v235, %v233
  %v250 = vpack.c.b16 %v236, %v234
  %v251 = vpack.c.b16 %v239, %v237
  %v252 = vpack.c.b16 %v240, %v238
  %v253 = vpack.c.b16 %v243, %v241
  %v254 = vpack.c.b16 %v244, %v242
  %v255 = vpack.c.b16 %v247, %v245
  %v256 = vpack.c.b16 %v248, %v246
  %v266 = vsel %vm122, %v211, 0
  %v269 = vsel %vm122, %v212, 0
  %v272 = vsel %vm122, %v213, 0
  %274 = vmatprep.subr.bf16.mxu0 %v250
  %275 = vmatpush1.bf16.msra.mxu0 %v249
  %276 = vmatprep.subr.bf16.mxu0 %v252
  %277 = vmatpush1.bf16.msra.mxu0 %v251
  %278 = vmatprep.subr.bf16.mxu0 %v254
  %279 = vmatpush1.bf16.msra.mxu0 %v253
  %280 = vmatprep.subr.bf16.mxu0 %v256
  %281 = vmatpush1.bf16.msra.mxu0 %v255
  %282 = vmatprep.subr.bf16.mxu0 0
  %283 = vmatpush1.bf16.msra.mxu0 0
  %284 = vmatprep.subr.bf16.mxu0 0
  %285 = vmatpush1.bf16.msra.mxu0 0
  %286 = vmatprep.subr.bf16.mxu0 0
  %287 = vmatpush1.bf16.msra.mxu0 0
  %288 = vmatprep.subr.bf16.mxu0 0
  %289 = vmatpush1.bf16.msra.mxu0 0
  %290 = vmatprep.subr.bf16.mxu0 0
  %291 = vmatpush1.bf16.msra.mxu0 0
  %292 = vmatprep.subr.bf16.mxu0 0
  %293 = vmatpush1.bf16.msra.mxu0 0
  %294 = vmatprep.subr.bf16.mxu0 0
  %295 = vmatpush1.bf16.msra.mxu0 0
  %296 = vmatprep.subr.bf16.mxu0 0
  %297 = vmatpush1.bf16.msra.mxu0 0
  %298 = vmatprep.subr.bf16.mxu0 0
  %299 = vmatpush1.bf16.msra.mxu0 0
  %300 = vmatprep.subr.bf16.mxu0 0
  %301 = vmatpush1.bf16.msra.mxu0 0
  %302 = vmatprep.subr.bf16.mxu0 0
  %303 = vmatpush1.bf16.msra.mxu0 0
  %304 = vmatprep.subr.bf16.mxu0 0
  %305 = vmatpush1.bf16.msra.mxu0 0
  %306 = vmatprep.mubr.bf16.mxu0 0
  %307 = vmatmul.mubr.bf16.gmra.mrb[0].mxu0 %v266
  %v308 = vpop.f32.mrb[0].mxu0
  %v309 = vadd.f32 %v218, %v308
  %v310 = vpop.f32.mrb[0].mxu0
  %v311 = vadd.f32 %v222, %v310
  %v312 = vpop.f32.mrb[0].mxu0
  %v313 = vadd.f32 %v218, %v312
  %v314 = vpop.f32.mrb[0].mxu0
  %v315 = vadd.f32 %v222, %v314
  %316 = vmatprep.mubr.bf16.mxu0 0
  %317 = vmatmul.mubr.bf16.gmra.mrb[0].mxu0 %v269
  %v318 = vpop.f32.mrb[0].mxu0
  %v319 = vadd.f32 %v218, %v318
  %v320 = vpop.f32.mrb[0].mxu0
  %v321 = vadd.f32 %v222, %v320
  %v322 = vpop.f32.mrb[0].mxu0
  %v323 = vadd.f32 %v218, %v322
  %v324 = vpop.f32.mrb[0].mxu0
  %v325 = vadd.f32 %v222, %v324
  %326 = vmatprep.mubr.bf16.mxu0 0
  %327 = vmatmul.mubr.bf16.gmra.mrb[0].mxu0 %v272
  %v328 = vpop.f32.mrb[0].mxu0
  %v329 = vadd.f32 %v218, %v328
  %v330 = vpop.f32.mrb[0].mxu0
  %v331 = vadd.f32 %v222, %v330
  %v332 = vpop.f32.mrb[0].mxu0
  %v333 = vpop.f32.mrb[0].mxu0
  %334 = vdwg.mxu0
  %v335 = vmul.f32 %v309, 0.25
  %v336 = vmul.f32 %v313, 0.25
  %v337 = vmul.f32 %v319, 0.25
  %v338 = vmul.f32 %v323, 0.25
  %v339 = vmul.f32 %v329, 0.25
  %v340 = vpack.c.bf16 %v336, %v335
  %v341 = vpack.c.bf16 %v338, %v337
  %v342 = vpack.c.bf16 %v339, %v339
  %v343 = vpack.c.bf16 %v313, %v309
  %v344 = vpack.c.bf16 %v323, %v319
  %v345 = vpack.c.bf16 %v329, %v329
  %349 = vrot.lane.b32.xlu0 %v343, 64
  %v350 = vpop.permute.xlu0 %349
  %351 = vrot.lane.b32.xlu0 %v344, 64
  %v352 = vpop.permute.xlu0 %351
  %353 = vrot.lane.b32.xlu0 %v345, 64
  %v354 = vpop.permute.xlu0 %353
  %vm355 = vcmask 130048
  %v357 = vsel %vm355, %v340, 0
  %v360 = vsel %vm355, %v341, 0
  %v363 = vsel %vm355, %v342, 0
  %v366 = vsel %vm355, %v350, 0
  %v369 = vsel %vm355, %v352, 0
  %v372 = vsel %vm355, %v354, 0
  %374 = vmatprep.subr.bf16.mxu0 0
  %375 = vmatpush1.bf16.xpose.msra.mxu0 %v366
  %376 = vmatprep.subr.bf16.mxu0 0
  %377 = vmatpush1.bf16.xpose.msra.mxu0 %v369
  %378 = vmatprep.subr.bf16.mxu0 0
  %379 = vmatpush1.bf16.xpose.msra.mxu0 %v372
  %380 = vmatprep.subr.bf16.mxu0 0
  %381 = vmatpush1.bf16.xpose.msra.mxu0 0
  %382 = vmatprep.subr.bf16.mxu0 0
  %383 = vmatpush1.bf16.xpose.msra.mxu0 0
  %384 = vmatprep.subr.bf16.mxu0 0
  %385 = vmatpush1.bf16.xpose.msra.mxu0 0
  %386 = vmatprep.subr.bf16.mxu0 0
  %387 = vmatpush1.bf16.xpose.msra.mxu0 0
  %388 = vmatprep.subr.bf16.mxu0 0
  %389 = vmatpush1.bf16.xpose.msra.mxu0 0
  %390 = vmatprep.subr.bf16.mxu0 0
  %391 = vmatpush1.bf16.xpose.msra.mxu0 0
  %392 = vmatprep.subr.bf16.mxu0 0
  %393 = vmatpush1.bf16.xpose.msra.mxu0 0
  %394 = vmatprep.subr.bf16.mxu0 0
  %395 = vmatpush1.bf16.xpose.msra.mxu0 0
  %396 = vmatprep.subr.bf16.mxu0 0
  %397 = vmatpush1.bf16.xpose.msra.mxu0 0
  %398 = vmatprep.subr.bf16.mxu0 0
  %399 = vmatpush1.bf16.xpose.msra.mxu0 0
  %400 = vmatprep.subr.bf16.mxu0 0
  %401 = vmatpush1.bf16.xpose.msra.mxu0 0
  %402 = vmatprep.subr.bf16.mxu0 0
  %403 = vmatpush1.bf16.xpose.msra.mxu0 0
  %404 = vmatprep.subr.bf16.mxu0 0
  %405 = vmatpush1.bf16.xpose.msra.mxu0 0
  %406 = vmatprep.mubr.bf16.mxu0 0
  %407 = vmatmul.mubr.bf16.gmra.mrb[0].mxu0 %v357
  %v408 = vpop.f32.mrb[0].mxu0
  %v409 = vadd.f32 %v117, %v408
  %v410 = vpop.f32.mrb[0].mxu0
  %v411 = vpop.f32.mrb[0].mxu0
  %v412 = vadd.f32 %v118, %v411
  %v413 = vpop.f32.mrb[0].mxu0
  %414 = vmatprep.mubr.bf16.mxu0 0
  %415 = vmatmul.mubr.bf16.gmra.mrb[0].mxu0 %v360
  %v416 = vpop.f32.mrb[0].mxu0
  %v417 = vadd.f32 %v119, %v416
  %v418 = vpop.f32.mrb[0].mxu0
  %v419 = vpop.f32.mrb[0].mxu0
  %v420 = vadd.f32 %v120, %v419
  %v421 = vpop.f32.mrb[0].mxu0
  %422 = vmatprep.mubr.bf16.mxu0 0
  %423 = vmatmul.mubr.bf16.gmra.mrb[0].mxu0 %v363
  %v424 = vpop.f32.mrb[0].mxu0
  %v425 = vadd.f32 %v121, %v424
  %v426 = vpop.f32.mrb[0].mxu0
  %v427 = vpop.f32.mrb[0].mxu0
  %v428 = vpop.f32.mrb[0].mxu0
  %429 = vdwg.mxu0
  %vm430 = vcmask 326656
  %v431 = vsel %vm430, %v409, -inf
  %432 = vmax.xlane.f32.xlu0 %v431
  %v433 = vpop.xlane.xlu0 %432
  %v434 = vsel %vm430, %v412, -inf
  %435 = vmax.xlane.f32.xlu0 %v434
  %v436 = vpop.xlane.xlu0 %435
  %v437 = vsel %vm430, %v417, -inf
  %438 = vmax.xlane.f32.xlu0 %v437
  %v439 = vpop.xlane.xlu0 %438
  %v440 = vsel %vm430, %v420, -inf
  %441 = vmax.xlane.f32.xlu0 %v440
  %v442 = vpop.xlane.xlu0 %441
  %v443 = vsel %vm430, %v425, -inf
  %444 = vmax.xlane.f32.xlu0 %v443
  %v445 = vpop.xlane.xlu0 %444
  %v446 = vsub.f32 %v409, %v433
  %v447 = vsub.f32 %v412, %v436
  %v448 = vsub.f32 %v417, %v439
  %v449 = vsub.f32 %v420, %v442
  %v450 = vsub.f32 %v425, %v445
  %v451 = vmul.f32 %v446, 1.442695
  %v452 = vpow.pop %v451
  %v453 = vmul.f32 %v447, 1.442695
  %v454 = vpow.pop %v453
  %v455 = vmul.f32 %v448, 1.442695
  %v456 = vpow.pop %v455
  %v457 = vmul.f32 %v449, 1.442695
  %v458 = vpow.pop %v457
  %v459 = vmul.f32 %v450, 1.442695
  %v460 = vpow.pop %v459
  %v461 = vsel %vm430, %v452, 0.0
  %462 = vadd.xlane.f32.xlu0 %v461
  %v463 = vpop.xlane.xlu0 %462
  %v464 = vsel %vm430, %v454, 0.0
  %465 = vadd.xlane.f32.xlu0 %v464
  %v466 = vpop.xlane.xlu0 %465
  %v467 = vsel %vm430, %v456, 0.0
  %468 = vadd.xlane.f32.xlu0 %v467
  %v469 = vpop.xlane.xlu0 %468
  %v470 = vsel %vm430, %v458, 0.0
  %471 = vadd.xlane.f32.xlu0 %v470
  %v472 = vpop.xlane.xlu0 %471
  %v473 = vsel %vm430, %v460, 0.0
  %474 = vadd.xlane.f32.xlu0 %v473
  %v475 = vpop.xlane.xlu0 %474
  %v476 = vrcp.pop %v463
  %v477 = vrcp.pop %v466
  %v478 = vrcp.pop %v469
  %v479 = vrcp.pop %v472
  %v480 = vrcp.pop %v475
  %v481 = vmul.f32 %v452, %v476
  %v482 = vmul.f32 %v454, %v477
  %v483 = vmul.f32 %v456, %v478
  %v484 = vmul.f32 %v458, %v479
  %v485 = vmul.f32 %v460, %v480
  %v486 = vpack.c.bf16 %v482, %v481
  %v487 = vpack.c.bf16 %v484, %v483
  %v488 = vpack.c.bf16 %v485, %v485
  %v489 = vpack.c.bf16 %v315, %v311
  %v490 = vpack.c.bf16 %v325, %v321
  %v491 = vpack.c.bf16 %v331, %v331
  %v493 = vsel %vm430, %v486, 0
  %v496 = vsel %vm430, %v487, 0
  %v499 = vsel %vm430, %v488, 0
  %vm501 = vcmask 1043456
  %v503 = vsel %vm501, %v491, 0
  %505 = vmatprep.subr.bf16.mxu0 0
  %506 = vmatpush1.bf16.msra.mxu0 %v489
  %507 = vmatprep.subr.bf16.mxu0 0
  %508 = vmatpush1.bf16.msra.mxu0 %v490
  %509 = vmatprep.subr.bf16.mxu0 0
  %510 = vmatpush1.bf16.msra.mxu0 %v503
  %511 = vmatprep.subr.bf16.mxu0 0
  %512 = vmatpush1.bf16.msra.mxu0 0
  %513 = vmatprep.subr.bf16.mxu0 0
  %514 = vmatpush1.bf16.msra.mxu0 0
  %515 = vmatprep.subr.bf16.mxu0 0
  %516 = vmatpush1.bf16.msra.mxu0 0
  %517 = vmatprep.subr.bf16.mxu0 0
  %518 = vmatpush1.bf16.msra.mxu0 0
  %519 = vmatprep.subr.bf16.mxu0 0
  %520 = vmatpush1.bf16.msra.mxu0 0
  %521 = vmatprep.subr.bf16.mxu0 0
  %522 = vmatpush1.bf16.msra.mxu0 0
  %523 = vmatprep.subr.bf16.mxu0 0
  %524 = vmatpush1.bf16.msra.mxu0 0
  %525 = vmatprep.subr.bf16.mxu0 0
  %526 = vmatpush1.bf16.msra.mxu0 0
  %527 = vmatprep.subr.bf16.mxu0 0
  %528 = vmatpush1.bf16.msra.mxu0 0
  %529 = vmatprep.subr.bf16.mxu0 0
  %530 = vmatpush1.bf16.msra.mxu0 0
  %531 = vmatprep.subr.bf16.mxu0 0
  %532 = vmatpush1.bf16.msra.mxu0 0
  %533 = vmatprep.subr.bf16.mxu0 0
  %534 = vmatpush1.bf16.msra.mxu0 0
  %535 = vmatprep.subr.bf16.mxu0 0
  %536 = vmatpush1.bf16.msra.mxu0 0
  %537 = vmatprep.mubr.bf16.mxu0 0
  %538 = vmatmul.mubr.bf16.gmra.mrb[0].mxu0 %v493
  %v539 = vpop.f32.mrb[0].mxu0
  %v540 = vadd.f32 0.0, %v539
  %v541 = vpop.f32.mrb[0].mxu0
  %v542 = vpop.f32.mrb[0].mxu0
  %v543 = vadd.f32 0.0, %v542
  %v544 = vpop.f32.mrb[0].mxu0
  %545 = vmatprep.mubr.bf16.mxu0 0
  %546 = vmatmul.mubr.bf16.gmra.mrb[0].mxu0 %v496
  %v547 = vpop.f32.mrb[0].mxu0
  %v548 = vadd.f32 0.0, %v547
  %v549 = vpop.f32.mrb[0].mxu0
  %v550 = vpop.f32.mrb[0].mxu0
  %v551 = vadd.f32 0.0, %v550
  %v552 = vpop.f32.mrb[0].mxu0
  %553 = vmatprep.mubr.bf16.mxu0 0
  %554 = vmatmul.mubr.bf16.gmra.mrb[0].mxu0 %v499
  %v555 = vpop.f32.mrb[0].mxu0
  %v556 = vadd.f32 0.0, %v555
  %v557 = vpop.f32.mrb[0].mxu0
  %v558 = vpop.f32.mrb[0].mxu0
  %v559 = vpop.f32.mrb[0].mxu0
  %560 = vdwg.mxu0
  %564 = vrot.lane.b32.xlu0 %v340, 112
  %v565 = vpop.permute.xlu0 %564
  %566 = vrot.lane.b32.xlu0 %v341, 112
  %v567 = vpop.permute.xlu0 %566
  %568 = vrot.lane.b32.xlu0 %v342, 112
  %v569 = vpop.permute.xlu0 %568
  %570 = vrot.lane.b32.xlu0 %v343, 48
  %v571 = vpop.permute.xlu0 %570
  %572 = vrot.lane.b32.xlu0 %v344, 48
  %v573 = vpop.permute.xlu0 %572
  %574 = vrot.lane.b32.xlu0 %v345, 48
  %v575 = vpop.permute.xlu0 %574
  %v577 = vsel %vm355, %v565, 0
  %v580 = vsel %vm355, %v567, 0
  %v583 = vsel %vm355, %v569, 0
  %v586 = vsel %vm355, %v571, 0
  %v589 = vsel %vm355, %v573, 0
  %v592 = vsel %vm355, %v575, 0
  %594 = vmatprep.subr.bf16.mxu0 0
  %595 = vmatpush1.bf16.xpose.msra.mxu0 %v586
  %596 = vmatprep.subr.bf16.mxu0 0
  %597 = vmatpush1.bf16.xpose.msra.mxu0 %v589
  %598 = vmatprep.subr.bf16.mxu0 0
  %599 = vmatpush1.bf16.xpose.msra.mxu0 %v592
  %600 = vmatprep.subr.bf16.mxu0 0
  %601 = vmatpush1.bf16.xpose.msra.mxu0 0
  %602 = vmatprep.subr.bf16.mxu0 0
  %603 = vmatpush1.bf16.xpose.msra.mxu0 0
  %604 = vmatprep.subr.bf16.mxu0 0
  %605 = vmatpush1.bf16.xpose.msra.mxu0 0
  %606 = vmatprep.subr.bf16.mxu0 0
  %607 = vmatpush1.bf16.xpose.msra.mxu0 0
  %608 = vmatprep.subr.bf16.mxu0 0
  %609 = vmatpush1.bf16.xpose.msra.mxu0 0
  %610 = vmatprep.subr.bf16.mxu0 0
  %611 = vmatpush1.bf16.xpose.msra.mxu0 0
  %612 = vmatprep.subr.bf16.mxu0 0
  %613 = vmatpush1.bf16.xpose.msra.mxu0 0
  %614 = vmatprep.subr.bf16.mxu0 0
  %615 = vmatpush1.bf16.xpose.msra.mxu0 0
  %616 = vmatprep.subr.bf16.mxu0 0
  %617 = vmatpush1.bf16.xpose.msra.mxu0 0
  %618 = vmatprep.subr.bf16.mxu0 0
  %619 = vmatpush1.bf16.xpose.msra.mxu0 0
  %620 = vmatprep.subr.bf16.mxu0 0
  %621 = vmatpush1.bf16.xpose.msra.mxu0 0
  %622 = vmatprep.subr.bf16.mxu0 0
  %623 = vmatpush1.bf16.xpose.msra.mxu0 0
  %624 = vmatprep.subr.bf16.mxu0 0
  %625 = vmatpush1.bf16.xpose.msra.mxu0 0
  %626 = vmatprep.mubr.bf16.mxu0 0
  %627 = vmatmul.mubr.bf16.gmra.mrb[0].mxu0 %v577
  %v628 = vpop.f32.mrb[0].mxu0
  %v629 = vadd.f32 %v117, %v628
  %v630 = vpop.f32.mrb[0].mxu0
  %v631 = vpop.f32.mrb[0].mxu0
  %v632 = vadd.f32 %v118, %v631
  %v633 = vpop.f32.mrb[0].mxu0
  %634 = vmatprep.mubr.bf16.mxu0 0
  %635 = vmatmul.mubr.bf16.gmra.mrb[0].mxu0 %v580
  %v636 = vpop.f32.mrb[0].mxu0
  %v637 = vadd.f32 %v119, %v636
  %v638 = vpop.f32.mrb[0].mxu0
  %v639 = vpop.f32.mrb[0].mxu0
  %v640 = vadd.f32 %v120, %v639
  %v641 = vpop.f32.mrb[0].mxu0
  %642 = vmatprep.mubr.bf16.mxu0 0
  %643 = vmatmul.mubr.bf16.gmra.mrb[0].mxu0 %v583
  %v644 = vpop.f32.mrb[0].mxu0
  %v645 = vadd.f32 %v121, %v644
  %v646 = vpop.f32.mrb[0].mxu0
  %v647 = vpop.f32.mrb[0].mxu0
  %v648 = vpop.f32.mrb[0].mxu0
  %649 = vdwg.mxu0
  %v650 = vsel %vm430, %v629, -inf
  %651 = vmax.xlane.f32.xlu0 %v650
  %v652 = vpop.xlane.xlu0 %651
  %v653 = vsel %vm430, %v632, -inf
  %654 = vmax.xlane.f32.xlu0 %v653
  %v655 = vpop.xlane.xlu0 %654
  %v656 = vsel %vm430, %v637, -inf
  %657 = vmax.xlane.f32.xlu0 %v656
  %v658 = vpop.xlane.xlu0 %657
  %v659 = vsel %vm430, %v640, -inf
  %660 = vmax.xlane.f32.xlu0 %v659
  %v661 = vpop.xlane.xlu0 %660
  %v662 = vsel %vm430, %v645, -inf
  %663 = vmax.xlane.f32.xlu0 %v662
  %v664 = vpop.xlane.xlu0 %663
  %v665 = vsub.f32 %v629, %v652
  %v666 = vsub.f32 %v632, %v655
  %v667 = vsub.f32 %v637, %v658
  %v668 = vsub.f32 %v640, %v661
  %v669 = vsub.f32 %v645, %v664
  %v670 = vmul.f32 %v665, 1.442695
  %v671 = vpow.pop %v670
  %v672 = vmul.f32 %v666, 1.442695
  %v673 = vpow.pop %v672
  %v674 = vmul.f32 %v667, 1.442695
  %v675 = vpow.pop %v674
  %v676 = vmul.f32 %v668, 1.442695
  %v677 = vpow.pop %v676
  %v678 = vmul.f32 %v669, 1.442695
  %v679 = vpow.pop %v678
  %v680 = vsel %vm430, %v671, 0.0
  %681 = vadd.xlane.f32.xlu0 %v680
  %v682 = vpop.xlane.xlu0 %681
  %v683 = vsel %vm430, %v673, 0.0
  %684 = vadd.xlane.f32.xlu0 %v683
  %v685 = vpop.xlane.xlu0 %684
  %v686 = vsel %vm430, %v675, 0.0
  %687 = vadd.xlane.f32.xlu0 %v686
  %v688 = vpop.xlane.xlu0 %687
  %v689 = vsel %vm430, %v677, 0.0
  %690 = vadd.xlane.f32.xlu0 %v689
  %v691 = vpop.xlane.xlu0 %690
  %v692 = vsel %vm430, %v679, 0.0
  %693 = vadd.xlane.f32.xlu0 %v692
  %v694 = vpop.xlane.xlu0 %693
  %v695 = vrcp.pop %v682
  %v696 = vrcp.pop %v685
  %v697 = vrcp.pop %v688
  %v698 = vrcp.pop %v691
  %v699 = vrcp.pop %v694
  %v700 = vmul.f32 %v671, %v695
  %v701 = vmul.f32 %v673, %v696
  %v702 = vmul.f32 %v675, %v697
  %v703 = vmul.f32 %v677, %v698
  %v704 = vmul.f32 %v679, %v699
  %v705 = vpack.c.bf16 %v701, %v700
  %v706 = vpack.c.bf16 %v703, %v702
  %v707 = vpack.c.bf16 %v704, %v704
  %711 = vrot.lane.b32.xlu0 %v489, 112
  %v712 = vpop.permute.xlu0 %711
  %713 = vrot.lane.b32.xlu0 %v490, 112
  %v714 = vpop.permute.xlu0 %713
  %715 = vrot.lane.b32.xlu0 %v491, 112
  %v716 = vpop.permute.xlu0 %715
  %v720 = vsel %vm430, %v705, 0
  %v723 = vsel %vm430, %v706, 0
  %v726 = vsel %vm430, %v707, 0
  %v729 = vsel %vm501, %v716, 0
  %731 = vmatprep.subr.bf16.mxu0 0
  %732 = vmatpush1.bf16.msra.mxu0 %v712
  %733 = vmatprep.subr.bf16.mxu0 0
  %734 = vmatpush1.bf16.msra.mxu0 %v714
  %735 = vmatprep.subr.bf16.mxu0 0
  %736 = vmatpush1.bf16.msra.mxu0 %v729
  %737 = vmatprep.subr.bf16.mxu0 0
  %738 = vmatpush1.bf16.msra.mxu0 0
  %739 = vmatprep.subr.bf16.mxu0 0
  %740 = vmatpush1.bf16.msra.mxu0 0
  %741 = vmatprep.subr.bf16.mxu0 0
  %742 = vmatpush1.bf16.msra.mxu0 0
  %743 = vmatprep.subr.bf16.mxu0 0
  %744 = vmatpush1.bf16.msra.mxu0 0
  %745 = vmatprep.subr.bf16.mxu0 0
  %746 = vmatpush1.bf16.msra.mxu0 0
  %747 = vmatprep.subr.bf16.mxu0 0
  %748 = vmatpush1.bf16.msra.mxu0 0
  %749 = vmatprep.subr.bf16.mxu0 0
  %750 = vmatpush1.bf16.msra.mxu0 0
  %751 = vmatprep.subr.bf16.mxu0 0
  %752 = vmatpush1.bf16.msra.mxu0 0
  %753 = vmatprep.subr.bf16.mxu0 0
  %754 = vmatpush1.bf16.msra.mxu0 0
  %755 = vmatprep.subr.bf16.mxu0 0
  %756 = vmatpush1.bf16.msra.mxu0 0
  %757 = vmatprep.subr.bf16.mxu0 0
  %758 = vmatpush1.bf16.msra.mxu0 0
  %759 = vmatprep.subr.bf16.mxu0 0
  %760 = vmatpush1.bf16.msra.mxu0 0
  %761 = vmatprep.subr.bf16.mxu0 0
  %762 = vmatpush1.bf16.msra.mxu0 0
  %763 = vmatprep.mubr.bf16.mxu0 0
  %764 = vmatmul.mubr.bf16.gmra.mrb[0].mxu0 %v720
  %v765 = vpop.f32.mrb[0].mxu0
  %v766 = vadd.f32 0.0, %v765
  %v767 = vpop.f32.mrb[0].mxu0
  %v768 = vpop.f32.mrb[0].mxu0
  %v769 = vadd.f32 0.0, %v768
  %v770 = vpop.f32.mrb[0].mxu0
  %771 = vmatprep.mubr.bf16.mxu0 0
  %772 = vmatmul.mubr.bf16.gmra.mrb[0].mxu0 %v723
  %v773 = vpop.f32.mrb[0].mxu0
  %v774 = vadd.f32 0.0, %v773
  %v775 = vpop.f32.mrb[0].mxu0
  %v776 = vpop.f32.mrb[0].mxu0
  %v777 = vadd.f32 0.0, %v776
  %v778 = vpop.f32.mrb[0].mxu0
  %779 = vmatprep.mubr.bf16.mxu0 0
  %780 = vmatmul.mubr.bf16.gmra.mrb[0].mxu0 %v726
  %v781 = vpop.f32.mrb[0].mxu0
  %v782 = vadd.f32 0.0, %v781
  %v783 = vpop.f32.mrb[0].mxu0
  %v784 = vpop.f32.mrb[0].mxu0
  %v785 = vpop.f32.mrb[0].mxu0
  %786 = vdwg.mxu0
  %787 = vrot.lane.b32.xlu0 %v340, 96
  %v788 = vpop.permute.xlu0 %787
  %789 = vrot.lane.b32.xlu0 %v341, 96
  %v790 = vpop.permute.xlu0 %789
  %791 = vrot.lane.b32.xlu0 %v342, 96
  %v792 = vpop.permute.xlu0 %791
  %793 = vrot.lane.b32.xlu0 %v343, 32
  %v794 = vpop.permute.xlu0 %793
  %795 = vrot.lane.b32.xlu0 %v344, 32
  %v796 = vpop.permute.xlu0 %795
  %797 = vrot.lane.b32.xlu0 %v345, 32
  %v798 = vpop.permute.xlu0 %797
  %v800 = vsel %vm355, %v788, 0
  %v803 = vsel %vm355, %v790, 0
  %v806 = vsel %vm355, %v792, 0
  %v809 = vsel %vm355, %v794, 0
  %v812 = vsel %vm355, %v796, 0
  %v815 = vsel %vm355, %v798, 0
  %817 = vmatprep.subr.bf16.mxu0 0
  %818 = vmatpush1.bf16.xpose.msra.mxu0 %v809
  %819 = vmatprep.subr.bf16.mxu0 0
  %820 = vmatpush1.bf16.xpose.msra.mxu0 %v812
  %821 = vmatprep.subr.bf16.mxu0 0
  %822 = vmatpush1.bf16.xpose.msra.mxu0 %v815
  %823 = vmatprep.subr.bf16.mxu0 0
  %824 = vmatpush1.bf16.xpose.msra.mxu0 0
  %825 = vmatprep.subr.bf16.mxu0 0
  %826 = vmatpush1.bf16.xpose.msra.mxu0 0
  %827 = vmatprep.subr.bf16.mxu0 0
  %828 = vmatpush1.bf16.xpose.msra.mxu0 0
  %829 = vmatprep.subr.bf16.mxu0 0
  %830 = vmatpush1.bf16.xpose.msra.mxu0 0
  %831 = vmatprep.subr.bf16.mxu0 0
  %832 = vmatpush1.bf16.xpose.msra.mxu0 0
  %833 = vmatprep.subr.bf16.mxu0 0
  %834 = vmatpush1.bf16.xpose.msra.mxu0 0
  %835 = vmatprep.subr.bf16.mxu0 0
  %836 = vmatpush1.bf16.xpose.msra.mxu0 0
  %837 = vmatprep.subr.bf16.mxu0 0
  %838 = vmatpush1.bf16.xpose.msra.mxu0 0
  %839 = vmatprep.subr.bf16.mxu0 0
  %840 = vmatpush1.bf16.xpose.msra.mxu0 0
  %841 = vmatprep.subr.bf16.mxu0 0
  %842 = vmatpush1.bf16.xpose.msra.mxu0 0
  %843 = vmatprep.subr.bf16.mxu0 0
  %844 = vmatpush1.bf16.xpose.msra.mxu0 0
  %845 = vmatprep.subr.bf16.mxu0 0
  %846 = vmatpush1.bf16.xpose.msra.mxu0 0
  %847 = vmatprep.subr.bf16.mxu0 0
  %848 = vmatpush1.bf16.xpose.msra.mxu0 0
  %849 = vmatprep.mubr.bf16.mxu0 0
  %850 = vmatmul.mubr.bf16.gmra.mrb[0].mxu0 %v800
  %v851 = vpop.f32.mrb[0].mxu0
  %v852 = vadd.f32 %v117, %v851
  %v853 = vpop.f32.mrb[0].mxu0
  %v854 = vpop.f32.mrb[0].mxu0
  %v855 = vadd.f32 %v118, %v854
  %v856 = vpop.f32.mrb[0].mxu0
  %857 = vmatprep.mubr.bf16.mxu0 0
  %858 = vmatmul.mubr.bf16.gmra.mrb[0].mxu0 %v803
  %v859 = vpop.f32.mrb[0].mxu0
  %v860 = vadd.f32 %v119, %v859
  %v861 = vpop.f32.mrb[0].mxu0
  %v862 = vpop.f32.mrb[0].mxu0
  %v863 = vadd.f32 %v120, %v862
  %v864 = vpop.f32.mrb[0].mxu0
  %865 = vmatprep.mubr.bf16.mxu0 0
  %866 = vmatmul.mubr.bf16.gmra.mrb[0].mxu0 %v806
  %v867 = vpop.f32.mrb[0].mxu0
  %v868 = vadd.f32 %v121, %v867
  %v869 = vpop.f32.mrb[0].mxu0
  %v870 = vpop.f32.mrb[0].mxu0
  %v871 = vpop.f32.mrb[0].mxu0
  %872 = vdwg.mxu0
  %v873 = vsel %vm430, %v852, -inf
  %874 = vmax.xlane.f32.xlu0 %v873
  %v875 = vpop.xlane.xlu0 %874
  %v876 = vsel %vm430, %v855, -inf
  %877 = vmax.xlane.f32.xlu0 %v876
  %v878 = vpop.xlane.xlu0 %877
  %v879 = vsel %vm430, %v860, -inf
  %880 = vmax.xlane.f32.xlu0 %v879
  %v881 = vpop.xlane.xlu0 %880
  %v882 = vsel %vm430, %v863, -inf
  %883 = vmax.xlane.f32.xlu0 %v882
  %v884 = vpop.xlane.xlu0 %883
  %v885 = vsel %vm430, %v868, -inf
  %886 = vmax.xlane.f32.xlu0 %v885
  %v887 = vpop.xlane.xlu0 %886
  %v888 = vsub.f32 %v852, %v875
  %v889 = vsub.f32 %v855, %v878
  %v890 = vsub.f32 %v860, %v881
  %v891 = vsub.f32 %v863, %v884
  %v892 = vsub.f32 %v868, %v887
  %v893 = vmul.f32 %v888, 1.442695
  %v894 = vpow.pop %v893
  %v895 = vmul.f32 %v889, 1.442695
  %v896 = vpow.pop %v895
  %v897 = vmul.f32 %v890, 1.442695
  %v898 = vpow.pop %v897
  %v899 = vmul.f32 %v891, 1.442695
  %v900 = vpow.pop %v899
  %v901 = vmul.f32 %v892, 1.442695
  %v902 = vpow.pop %v901
  %v903 = vsel %vm430, %v894, 0.0
  %904 = vadd.xlane.f32.xlu0 %v903
  %v905 = vpop.xlane.xlu0 %904
  %v906 = vsel %vm430, %v896, 0.0
  %907 = vadd.xlane.f32.xlu0 %v906
  %v908 = vpop.xlane.xlu0 %907
  %v909 = vsel %vm430, %v898, 0.0
  %910 = vadd.xlane.f32.xlu0 %v909
  %v911 = vpop.xlane.xlu0 %910
  %v912 = vsel %vm430, %v900, 0.0
  %913 = vadd.xlane.f32.xlu0 %v912
  %v914 = vpop.xlane.xlu0 %913
  %v915 = vsel %vm430, %v902, 0.0
  %916 = vadd.xlane.f32.xlu0 %v915
  %v917 = vpop.xlane.xlu0 %916
  %v918 = vrcp.pop %v905
  %v919 = vrcp.pop %v908
  %v920 = vrcp.pop %v911
  %v921 = vrcp.pop %v914
  %v922 = vrcp.pop %v917
  %v923 = vmul.f32 %v894, %v918
  %v924 = vmul.f32 %v896, %v919
  %v925 = vmul.f32 %v898, %v920
  %v926 = vmul.f32 %v900, %v921
  %v927 = vmul.f32 %v902, %v922
  %v928 = vpack.c.bf16 %v924, %v923
  %v929 = vpack.c.bf16 %v926, %v925
  %v930 = vpack.c.bf16 %v927, %v927
  %931 = vrot.lane.b32.xlu0 %v489, 96
  %v932 = vpop.permute.xlu0 %931
  %933 = vrot.lane.b32.xlu0 %v490, 96
  %v934 = vpop.permute.xlu0 %933
  %935 = vrot.lane.b32.xlu0 %v491, 96
  %v936 = vpop.permute.xlu0 %935
  %v940 = vsel %vm430, %v928, 0
  %v943 = vsel %vm430, %v929, 0
  %v946 = vsel %vm430, %v930, 0
  %v949 = vsel %vm501, %v936, 0
  %951 = vmatprep.subr.bf16.mxu0 0
  %952 = vmatpush1.bf16.msra.mxu0 %v932
  %953 = vmatprep.subr.bf16.mxu0 0
  %954 = vmatpush1.bf16.msra.mxu0 %v934
  %955 = vmatprep.subr.bf16.mxu0 0
  %956 = vmatpush1.bf16.msra.mxu0 %v949
  %957 = vmatprep.subr.bf16.mxu0 0
  %958 = vmatpush1.bf16.msra.mxu0 0
  %959 = vmatprep.subr.bf16.mxu0 0
  %960 = vmatpush1.bf16.msra.mxu0 0
  %961 = vmatprep.subr.bf16.mxu0 0
  %962 = vmatpush1.bf16.msra.mxu0 0
  %963 = vmatprep.subr.bf16.mxu0 0
  %964 = vmatpush1.bf16.msra.mxu0 0
  %965 = vmatprep.subr.bf16.mxu0 0
  %966 = vmatpush1.bf16.msra.mxu0 0
  %967 = vmatprep.subr.bf16.mxu0 0
  %968 = vmatpush1.bf16.msra.mxu0 0
  %969 = vmatprep.subr.bf16.mxu0 0
  %970 = vmatpush1.bf16.msra.mxu0 0
  %971 = vmatprep.subr.bf16.mxu0 0
  %972 = vmatpush1.bf16.msra.mxu0 0
  %973 = vmatprep.subr.bf16.mxu0 0
  %974 = vmatpush1.bf16.msra.mxu0 0
  %975 = vmatprep.subr.bf16.mxu0 0
  %976 = vmatpush1.bf16.msra.mxu0 0
  %977 = vmatprep.subr.bf16.mxu0 0
  %978 = vmatpush1.bf16.msra.mxu0 0
  %979 = vmatprep.subr.bf16.mxu0 0
  %980 = vmatpush1.bf16.msra.mxu0 0
  %981 = vmatprep.subr.bf16.mxu0 0
  %982 = vmatpush1.bf16.msra.mxu0 0
  %983 = vmatprep.mubr.bf16.mxu0 0
  %984 = vmatmul.mubr.bf16.gmra.mrb[0].mxu0 %v940
  %v985 = vpop.f32.mrb[0].mxu0
  %v986 = vadd.f32 0.0, %v985
  %v987 = vpop.f32.mrb[0].mxu0
  %v988 = vpop.f32.mrb[0].mxu0
  %v989 = vadd.f32 0.0, %v988
  %v990 = vpop.f32.mrb[0].mxu0
  %991 = vmatprep.mubr.bf16.mxu0 0
  %992 = vmatmul.mubr.bf16.gmra.mrb[0].mxu0 %v943
  %v993 = vpop.f32.mrb[0].mxu0
  %v994 = vadd.f32 0.0, %v993
  %v995 = vpop.f32.mrb[0].mxu0
  %v996 = vpop.f32.mrb[0].mxu0
  %v997 = vadd.f32 0.0, %v996
  %v998 = vpop.f32.mrb[0].mxu0
  %999 = vmatprep.mubr.bf16.mxu0 0
  %1000 = vmatmul.mubr.bf16.gmra.mrb[0].mxu0 %v946
  %v1001 = vpop.f32.mrb[0].mxu0
  %v1002 = vadd.f32 0.0, %v1001
  %v1003 = vpop.f32.mrb[0].mxu0
  %v1004 = vpop.f32.mrb[0].mxu0
  %v1005 = vpop.f32.mrb[0].mxu0
  %1006 = vdwg.mxu0
  %1007 = vrot.lane.b32.xlu0 %v340, 80
  %v1008 = vpop.permute.xlu0 %1007
  %1009 = vrot.lane.b32.xlu0 %v341, 80
  %v1010 = vpop.permute.xlu0 %1009
  %1011 = vrot.lane.b32.xlu0 %v342, 80
  %v1012 = vpop.permute.xlu0 %1011
  %1013 = vrot.lane.b32.xlu0 %v343, 16
  %v1014 = vpop.permute.xlu0 %1013
  %1015 = vrot.lane.b32.xlu0 %v344, 16
  %v1016 = vpop.permute.xlu0 %1015
  %1017 = vrot.lane.b32.xlu0 %v345, 16
  %v1018 = vpop.permute.xlu0 %1017
  %v1020 = vsel %vm355, %v1008, 0
  %v1023 = vsel %vm355, %v1010, 0
  %v1026 = vsel %vm355, %v1012, 0
  %v1029 = vsel %vm355, %v1014, 0
  %v1032 = vsel %vm355, %v1016, 0
  %v1035 = vsel %vm355, %v1018, 0
  %1037 = vmatprep.subr.bf16.mxu0 0
  %1038 = vmatpush1.bf16.xpose.msra.mxu0 %v1029
  %1039 = vmatprep.subr.bf16.mxu0 0
  %1040 = vmatpush1.bf16.xpose.msra.mxu0 %v1032
  %1041 = vmatprep.subr.bf16.mxu0 0
  %1042 = vmatpush1.bf16.xpose.msra.mxu0 %v1035
  %1043 = vmatprep.subr.bf16.mxu0 0
  %1044 = vmatpush1.bf16.xpose.msra.mxu0 0
  %1045 = vmatprep.subr.bf16.mxu0 0
  %1046 = vmatpush1.bf16.xpose.msra.mxu0 0
  %1047 = vmatprep.subr.bf16.mxu0 0
  %1048 = vmatpush1.bf16.xpose.msra.mxu0 0
  %1049 = vmatprep.subr.bf16.mxu0 0
  %1050 = vmatpush1.bf16.xpose.msra.mxu0 0
  %1051 = vmatprep.subr.bf16.mxu0 0
  %1052 = vmatpush1.bf16.xpose.msra.mxu0 0
  %1053 = vmatprep.subr.bf16.mxu0 0
  %1054 = vmatpush1.bf16.xpose.msra.mxu0 0
  %1055 = vmatprep.subr.bf16.mxu0 0
  %1056 = vmatpush1.bf16.xpose.msra.mxu0 0
  %1057 = vmatprep.subr.bf16.mxu0 0
  %1058 = vmatpush1.bf16.xpose.msra.mxu0 0
  %1059 = vmatprep.subr.bf16.mxu0 0
  %1060 = vmatpush1.bf16.xpose.msra.mxu0 0
  %1061 = vmatprep.subr.bf16.mxu0 0
  %1062 = vmatpush1.bf16.xpose.msra.mxu0 0
  %1063 = vmatprep.subr.bf16.mxu0 0
  %1064 = vmatpush1.bf16.xpose.msra.mxu0 0
  %1065 = vmatprep.subr.bf16.mxu0 0
  %1066 = vmatpush1.bf16.xpose.msra.mxu0 0
  %1067 = vmatprep.subr.bf16.mxu0 0
  %1068 = vmatpush1.bf16.xpose.msra.mxu0 0
  %1069 = vmatprep.mubr.bf16.mxu0 0
  %1070 = vmatmul.mubr.bf16.gmra.mrb[0].mxu0 %v1020
  %v1071 = vpop.f32.mrb[0].mxu0
  %v1072 = vadd.f32 %v117, %v1071
  %v1073 = vpop.f32.mrb[0].mxu0
  %v1074 = vpop.f32.mrb[0].mxu0
  %v1075 = vadd.f32 %v118, %v1074
  %v1076 = vpop.f32.mrb[0].mxu0
  %1077 = vmatprep.mubr.bf16.mxu0 0
  %1078 = vmatmul.mubr.bf16.gmra.mrb[0].mxu0 %v1023
  %v1079 = vpop.f32.mrb[0].mxu0
  %v1080 = vadd.f32 %v119, %v1079
  %v1081 = vpop.f32.mrb[0].mxu0
  %v1082 = vpop.f32.mrb[0].mxu0
  %v1083 = vadd.f32 %v120, %v1082
  %v1084 = vpop.f32.mrb[0].mxu0
  %1085 = vmatprep.mubr.bf16.mxu0 0
  %1086 = vmatmul.mubr.bf16.gmra.mrb[0].mxu0 %v1026
  %v1087 = vpop.f32.mrb[0].mxu0
  %v1088 = vadd.f32 %v121, %v1087
  %v1089 = vpop.f32.mrb[0].mxu0
  %v1090 = vpop.f32.mrb[0].mxu0
  %v1091 = vpop.f32.mrb[0].mxu0
  %1092 = vdwg.mxu0
  %v1093 = vsel %vm430, %v1072, -inf
  %1094 = vmax.xlane.f32.xlu0 %v1093
  %v1095 = vpop.xlane.xlu0 %1094
  %v1096 = vsel %vm430, %v1075, -inf
  %1097 = vmax.xlane.f32.xlu0 %v1096
  %v1098 = vpop.xlane.xlu0 %1097
  %v1099 = vsel %vm430, %v1080, -inf
  %1100 = vmax.xlane.f32.xlu0 %v1099
  %v1101 = vpop.xlane.xlu0 %1100
  %v1102 = vsel %vm430, %v1083, -inf
  %1103 = vmax.xlane.f32.xlu0 %v1102
  %v1104 = vpop.xlane.xlu0 %1103
  %v1105 = vsel %vm430, %v1088, -inf
  %1106 = vmax.xlane.f32.xlu0 %v1105
  %v1107 = vpop.xlane.xlu0 %1106
  %v1108 = vsub.f32 %v1072, %v1095
  %v1109 = vsub.f32 %v1075, %v1098
  %v1110 = vsub.f32 %v1080, %v1101
  %v1111 = vsub.f32 %v1083, %v1104
  %v1112 = vsub.f32 %v1088, %v1107
  %v1113 = vmul.f32 %v1108, 1.442695
  %v1114 = vpow.pop %v1113
  %v1115 = vmul.f32 %v1109, 1.442695
  %v1116 = vpow.pop %v1115
  %v1117 = vmul.f32 %v1110, 1.442695
  %v1118 = vpow.pop %v1117
  %v1119 = vmul.f32 %v1111, 1.442695
  %v1120 = vpow.pop %v1119
  %v1121 = vmul.f32 %v1112, 1.442695
  %v1122 = vpow.pop %v1121
  %v1123 = vsel %vm430, %v1114, 0.0
  %1124 = vadd.xlane.f32.xlu0 %v1123
  %v1125 = vpop.xlane.xlu0 %1124
  %v1126 = vsel %vm430, %v1116, 0.0
  %1127 = vadd.xlane.f32.xlu0 %v1126
  %v1128 = vpop.xlane.xlu0 %1127
  %v1129 = vsel %vm430, %v1118, 0.0
  %1130 = vadd.xlane.f32.xlu0 %v1129
  %v1131 = vpop.xlane.xlu0 %1130
  %v1132 = vsel %vm430, %v1120, 0.0
  %1133 = vadd.xlane.f32.xlu0 %v1132
  %v1134 = vpop.xlane.xlu0 %1133
  %v1135 = vsel %vm430, %v1122, 0.0
  %1136 = vadd.xlane.f32.xlu0 %v1135
  %v1137 = vpop.xlane.xlu0 %1136
  %v1138 = vrcp.pop %v1125
  %v1139 = vrcp.pop %v1128
  %v1140 = vrcp.pop %v1131
  %v1141 = vrcp.pop %v1134
  %v1142 = vrcp.pop %v1137
  %v1143 = vmul.f32 %v1114, %v1138
  %v1144 = vmul.f32 %v1116, %v1139
  %v1145 = vmul.f32 %v1118, %v1140
  %v1146 = vmul.f32 %v1120, %v1141
  %v1147 = vmul.f32 %v1122, %v1142
  %v1148 = vpack.c.bf16 %v1144, %v1143
  %v1149 = vpack.c.bf16 %v1146, %v1145
  %v1150 = vpack.c.bf16 %v1147, %v1147
  %1151 = vrot.lane.b32.xlu0 %v489, 80
  %v1152 = vpop.permute.xlu0 %1151
  %1153 = vrot.lane.b32.xlu0 %v490, 80
  %v1154 = vpop.permute.xlu0 %1153
  %1155 = vrot.lane.b32.xlu0 %v491, 80
  %v1156 = vpop.permute.xlu0 %1155
  %v1160 = vsel %vm430, %v1148, 0
  %v1163 = vsel %vm430, %v1149, 0
  %v1166 = vsel %vm430, %v1150, 0
  %v1169 = vsel %vm501, %v1156, 0
  %1171 = vmatprep.subr.bf16.mxu0 0
  %1172 = vmatpush1.bf16.msra.mxu0 %v1152
  %1173 = vmatprep.subr.bf16.mxu0 0
  %1174 = vmatpush1.bf16.msra.mxu0 %v1154
  %1175 = vmatprep.subr.bf16.mxu0 0
  %1176 = vmatpush1.bf16.msra.mxu0 %v1169
  %1177 = vmatprep.subr.bf16.mxu0 0
  %1178 = vmatpush1.bf16.msra.mxu0 0
  %1179 = vmatprep.subr.bf16.mxu0 0
  %1180 = vmatpush1.bf16.msra.mxu0 0
  %1181 = vmatprep.subr.bf16.mxu0 0
  %1182 = vmatpush1.bf16.msra.mxu0 0
  %1183 = vmatprep.subr.bf16.mxu0 0
  %1184 = vmatpush1.bf16.msra.mxu0 0
  %1185 = vmatprep.subr.bf16.mxu0 0
  %1186 = vmatpush1.bf16.msra.mxu0 0
  %1187 = vmatprep.subr.bf16.mxu0 0
  %1188 = vmatpush1.bf16.msra.mxu0 0
  %1189 = vmatprep.subr.bf16.mxu0 0
  %1190 = vmatpush1.bf16.msra.mxu0 0
  %1191 = vmatprep.subr.bf16.mxu0 0
  %1192 = vmatpush1.bf16.msra.mxu0 0
  %1193 = vmatprep.subr.bf16.mxu0 0
  %1194 = vmatpush1.bf16.msra.mxu0 0
  %1195 = vmatprep.subr.bf16.mxu0 0
  %1196 = vmatpush1.bf16.msra.mxu0 0
  %1197 = vmatprep.subr.bf16.mxu0 0
  %1198 = vmatpush1.bf16.msra.mxu0 0
  %1199 = vmatprep.subr.bf16.mxu0 0
  %1200 = vmatpush1.bf16.msra.mxu0 0
  %1201 = vmatprep.subr.bf16.mxu0 0
  %1202 = vmatpush1.bf16.msra.mxu0 0
  %1203 = vmatprep.mubr.bf16.mxu0 0
  %1204 = vmatmul.mubr.bf16.gmra.mrb[0].mxu0 %v1160
  %v1205 = vpop.f32.mrb[0].mxu0
  %v1206 = vadd.f32 0.0, %v1205
  %v1207 = vpop.f32.mrb[0].mxu0
  %v1208 = vpop.f32.mrb[0].mxu0
  %v1209 = vadd.f32 0.0, %v1208
  %v1210 = vpop.f32.mrb[0].mxu0
  %1211 = vmatprep.mubr.bf16.mxu0 0
  %1212 = vmatmul.mubr.bf16.gmra.mrb[0].mxu0 %v1163
  %v1213 = vpop.f32.mrb[0].mxu0
  %v1214 = vadd.f32 0.0, %v1213
  %v1215 = vpop.f32.mrb[0].mxu0
  %v1216 = vpop.f32.mrb[0].mxu0
  %v1217 = vadd.f32 0.0, %v1216
  %v1218 = vpop.f32.mrb[0].mxu0
  %1219 = vmatprep.mubr.bf16.mxu0 0
  %1220 = vmatmul.mubr.bf16.gmra.mrb[0].mxu0 %v1166
  %v1221 = vpop.f32.mrb[0].mxu0
  %v1222 = vadd.f32 0.0, %v1221
  %v1223 = vpop.f32.mrb[0].mxu0
  %v1224 = vpop.f32.mrb[0].mxu0
  %v1225 = vpop.f32.mrb[0].mxu0
  %1226 = vdwg.mxu0
  %1232 = vrot.lane.b32.xlu0 %v766, 16
  %v1233 = vpop.permute.xlu0 %1232
  %1234 = vrot.lane.b32.xlu0 %v769, 16
  %v1235 = vpop.permute.xlu0 %1234
  %1236 = vrot.lane.b32.xlu0 %v774, 16
  %v1237 = vpop.permute.xlu0 %1236
  %1238 = vrot.lane.b32.xlu0 %v777, 16
  %v1239 = vpop.permute.xlu0 %1238
  %1240 = vrot.lane.b32.xlu0 %v782, 16
  %v1241 = vpop.permute.xlu0 %1240
  %1252 = vrot.lane.b32.xlu0 %v986, 32
  %v1253 = vpop.permute.xlu0 %1252
  %1254 = vrot.lane.b32.xlu0 %v989, 32
  %v1255 = vpop.permute.xlu0 %1254
  %1256 = vrot.lane.b32.xlu0 %v994, 32
  %v1257 = vpop.permute.xlu0 %1256
  %1258 = vrot.lane.b32.xlu0 %v997, 32
  %v1259 = vpop.permute.xlu0 %1258
  %1260 = vrot.lane.b32.xlu0 %v1002, 32
  %v1261 = vpop.permute.xlu0 %1260
  %1272 = vrot.lane.b32.xlu0 %v1206, 48
  %v1273 = vpop.permute.xlu0 %1272
  %1274 = vrot.lane.b32.xlu0 %v1209, 48
  %v1275 = vpop.permute.xlu0 %1274
  %1276 = vrot.lane.b32.xlu0 %v1214, 48
  %v1277 = vpop.permute.xlu0 %1276
  %1278 = vrot.lane.b32.xlu0 %v1217, 48
  %v1279 = vpop.permute.xlu0 %1278
  %1280 = vrot.lane.b32.xlu0 %v1222, 48
  %v1281 = vpop.permute.xlu0 %1280
  %v1287 = vsel %vm355, %v540, %v1233
  %v1288 = vsel %vm355, %v543, %v1235
  %v1289 = vsel %vm355, %v548, %v1237
  %v1290 = vsel %vm355, %v551, %v1239
  %v1291 = vsel %vm355, %v556, %v1241
  %vm1292 = vcmask 261120
  %v1293 = vsel %vm1292, %v1287, %v1253
  %v1294 = vsel %vm1292, %v1288, %v1255
  %v1295 = vsel %vm1292, %v1289, %v1257
  %v1296 = vsel %vm1292, %v1290, %v1259
  %v1297 = vsel %vm1292, %v1291, %v1261
  %vm1298 = vcmask 392192
  %v1299 = vsel %vm1298, %v1293, %v1273
  %v1300 = vsel %vm1298, %v1294, %v1275
  %v1301 = vsel %vm1298, %v1295, %v1277
  %v1302 = vsel %vm1298, %v1296, %v1279
  %v1303 = vsel %vm1298, %v1297, %v1281
  %v1304 = vpack.c.bf16 %v1300, %v1299
  %v1305 = vpack.c.bf16 %v1302, %v1301
  %v1306 = vpack.c.bf16 %v1303, %v1303
  %v1308 = vlaneseq
  %v1309 = vshrl.u32 %v1308, 7
  %v1310 = vsub.s32 0, %v1309
  %v1311 = vrot.slane %v72, %v1310
  %v1321 = vunpack.c.l.b16 %v64
  %v1322 = vunpack.c.l.b16 %v65
  %v1323 = vunpack.c.l.b16 %v66
  %v1324 = vunpack.c.l.b16 %v67
  %v1325 = vunpack.c.l.b16 %v68
  %v1326 = vunpack.c.l.b16 %v69
  %v1327 = vunpack.c.l.b16 %v70
  %v1328 = vunpack.c.l.b16 %v71
  %v1329 = vpack.c.b16 %v1322, %v1321
  %v1330 = vpack.c.b16 %v1324, %v1323
  %v1331 = vpack.c.b16 %v1326, %v1325
  %v1332 = vpack.c.b16 %v1328, %v1327
  %v1338 = vsel %vm122, %v1304, 0
  %v1341 = vsel %vm122, %v1305, 0
  %v1344 = vsel %vm122, %v1306, 0
  %1346 = vmatprep.subr.bf16.mxu0 0
  %1347 = vmatpush1.bf16.msra.mxu0 %v1329
  %1348 = vmatprep.subr.bf16.mxu0 0
  %1349 = vmatpush1.bf16.msra.mxu0 %v1330
  %1350 = vmatprep.subr.bf16.mxu0 0
  %1351 = vmatpush1.bf16.msra.mxu0 %v1331
  %1352 = vmatprep.subr.bf16.mxu0 0
  %1353 = vmatpush1.bf16.msra.mxu0 %v1332
  %1354 = vmatprep.subr.bf16.mxu0 0
  %1355 = vmatpush1.bf16.msra.mxu0 0
  %1356 = vmatprep.subr.bf16.mxu0 0
  %1357 = vmatpush1.bf16.msra.mxu0 0
  %1358 = vmatprep.subr.bf16.mxu0 0
  %1359 = vmatpush1.bf16.msra.mxu0 0
  %1360 = vmatprep.subr.bf16.mxu0 0
  %1361 = vmatpush1.bf16.msra.mxu0 0
  %1362 = vmatprep.subr.bf16.mxu0 0
  %1363 = vmatpush1.bf16.msra.mxu0 0
  %1364 = vmatprep.subr.bf16.mxu0 0
  %1365 = vmatpush1.bf16.msra.mxu0 0
  %1366 = vmatprep.subr.bf16.mxu0 0
  %1367 = vmatpush1.bf16.msra.mxu0 0
  %1368 = vmatprep.subr.bf16.mxu0 0
  %1369 = vmatpush1.bf16.msra.mxu0 0
  %1370 = vmatprep.subr.bf16.mxu0 0
  %1371 = vmatpush1.bf16.msra.mxu0 0
  %1372 = vmatprep.subr.bf16.mxu0 0
  %1373 = vmatpush1.bf16.msra.mxu0 0
  %1374 = vmatprep.subr.bf16.mxu0 0
  %1375 = vmatpush1.bf16.msra.mxu0 0
  %1376 = vmatprep.subr.bf16.mxu0 0
  %1377 = vmatpush1.bf16.msra.mxu0 0
  %1378 = vmatprep.mubr.bf16.mxu0 0
  %1379 = vmatmul.mubr.bf16.gmra.mrb[0].mxu0 %v1338
  %v1380 = vpop.f32.mrb[0].mxu0
  %v1381 = vadd.f32 %v1311, %v1380
  %v1382 = vpop.f32.mrb[0].mxu0
  %v1383 = vpop.f32.mrb[0].mxu0
  %v1384 = vadd.f32 %v1311, %v1383
  %v1385 = vpop.f32.mrb[0].mxu0
  %1386 = vmatprep.mubr.bf16.mxu0 0
  %1387 = vmatmul.mubr.bf16.gmra.mrb[0].mxu0 %v1341
  %v1388 = vpop.f32.mrb[0].mxu0
  %v1389 = vadd.f32 %v1311, %v1388
  %v1390 = vpop.f32.mrb[0].mxu0
  %v1391 = vpop.f32.mrb[0].mxu0
  %v1392 = vadd.f32 %v1311, %v1391
  %v1393 = vpop.f32.mrb[0].mxu0
  %1394 = vmatprep.mubr.bf16.mxu0 0
  %1395 = vmatmul.mubr.bf16.gmra.mrb[0].mxu0 %v1344
  %v1396 = vpop.f32.mrb[0].mxu0
  %v1397 = vadd.f32 %v1311, %v1396
  %v1398 = vpop.f32.mrb[0].mxu0
  %v1399 = vpop.f32.mrb[0].mxu0
  %v1400 = vpop.f32.mrb[0].mxu0
  %1401 = vdwg.mxu0
  %v1402 = vadd.f32 %v48, %v1381
  %v1403 = vadd.f32 %v49, %v1384
  %v1404 = vadd.f32 %v50, %v1389
  %v1405 = vadd.f32 %v51, %v1392
  %v1406 = vadd.f32 %v52, %v1397
  %v1407 = vsel %vm122, %v1402, 0.0
  %1408 = vadd.xlane.f32.xlu0 %v1407
  %v1409 = vpop.xlane.xlu0 %1408
  %v1410 = vsel %vm122, %v1403, 0.0
  %1411 = vadd.xlane.f32.xlu0 %v1410
  %v1412 = vpop.xlane.xlu0 %1411
  %v1413 = vsel %vm122, %v1404, 0.0
  %1414 = vadd.xlane.f32.xlu0 %v1413
  %v1415 = vpop.xlane.xlu0 %1414
  %v1416 = vsel %vm122, %v1405, 0.0
  %1417 = vadd.xlane.f32.xlu0 %v1416
  %v1418 = vpop.xlane.xlu0 %1417
  %v1419 = vsel %vm122, %v1406, 0.0
  %1420 = vadd.xlane.f32.xlu0 %v1419
  %v1421 = vpop.xlane.xlu0 %1420
  %v1422 = vmul.f32 %v1409, %v138
  %v1423 = vmul.f32 %v1412, %v138
  %v1424 = vmul.f32 %v1415, %v138
  %v1425 = vmul.f32 %v1418, %v138
  %v1426 = vmul.f32 %v1421, %v138
  %v1427 = vsub.f32 %v1402, %v1422
  %v1428 = vsub.f32 %v1403, %v1423
  %v1429 = vsub.f32 %v1404, %v1424
  %v1430 = vsub.f32 %v1405, %v1425
  %v1431 = vsub.f32 %v1406, %v1426
  %v1432 = vmul.f32 %v1427, %v1427
  %v1433 = vmul.f32 %v1428, %v1428
  %v1434 = vmul.f32 %v1429, %v1429
  %v1435 = vmul.f32 %v1430, %v1430
  %v1436 = vmul.f32 %v1431, %v1431
  %v1437 = vsel %vm122, %v1432, 0.0
  %1438 = vadd.xlane.f32.xlu0 %v1437
  %v1439 = vpop.xlane.xlu0 %1438
  %v1440 = vsel %vm122, %v1433, 0.0
  %1441 = vadd.xlane.f32.xlu0 %v1440
  %v1442 = vpop.xlane.xlu0 %1441
  %v1443 = vsel %vm122, %v1434, 0.0
  %1444 = vadd.xlane.f32.xlu0 %v1443
  %v1445 = vpop.xlane.xlu0 %1444
  %v1446 = vsel %vm122, %v1435, 0.0
  %1447 = vadd.xlane.f32.xlu0 %v1446
  %v1448 = vpop.xlane.xlu0 %1447
  %v1449 = vsel %vm122, %v1436, 0.0
  %1450 = vadd.xlane.f32.xlu0 %v1449
  %v1451 = vpop.xlane.xlu0 %1450
  %v1452 = vmul.f32 %v1439, %v138
  %v1453 = vmul.f32 %v1442, %v138
  %v1454 = vmul.f32 %v1445, %v138
  %v1455 = vmul.f32 %v1448, %v138
  %v1456 = vmul.f32 %v1451, %v138
  %v1457 = vadd.f32 %v1452, 1e-05
  %v1458 = vadd.f32 %v1453, 1e-05
  %v1459 = vadd.f32 %v1454, 1e-05
  %v1460 = vadd.f32 %v1455, 1e-05
  %v1461 = vadd.f32 %v1456, 1e-05
  %v1462 = vrsqrt.pop %v1457
  %v1463 = vrsqrt.pop %v1458
  %v1464 = vrsqrt.pop %v1459
  %v1465 = vrsqrt.pop %v1460
  %v1466 = vrsqrt.pop %v1461
  %v1467 = vmul.f32 %v1427, %v1462
  %v1468 = vmul.f32 %v1428, %v1463
  %v1469 = vmul.f32 %v1429, %v1464
  %v1470 = vmul.f32 %v1430, %v1465
  %v1471 = vmul.f32 %v1431, %v1466
  %v1473 = vlaneseq
  %v1474 = vshrl.u32 %v1473, 7
  %v1475 = vsub.s32 0, %v1474
  %v1476 = vrot.slane %v73, %v1475
  %v1478 = vmul.f32 %v1467, %v1476
  %v1479 = vmul.f32 %v1468, %v1476
  %v1480 = vmul.f32 %v1469, %v1476
  %v1481 = vmul.f32 %v1470, %v1476
  %v1482 = vmul.f32 %v1471, %v1476
  %v1484 = vlaneseq
  %v1485 = vshrl.u32 %v1484, 7
  %v1486 = vsub.s32 0, %v1485
  %v1487 = vrot.slane %v74, %v1486
  %v1489 = vadd.f32 %v1478, %v1487
  %v1490 = vadd.f32 %v1479, %v1487
  %v1491 = vadd.f32 %v1480, %v1487
  %v1492 = vadd.f32 %v1481, %v1487
  %v1493 = vadd.f32 %v1482, %v1487
  %v1494 = vpack.c.bf16 %v1490, %v1489
  %v1495 = vpack.c.bf16 %v1492, %v1491
  %v1496 = vpack.c.bf16 %v1493, %v1493
  %v1498 = vlaneseq
  %v1499 = vshrl.u32 %v1498, 7
  %v1500 = vsub.s32 0, %v1499
  %v1501 = vrot.slane %v83, %v1500
  %v1502 = vlaneseq
  %v1503 = vshrl.u32 %v1502, 7
  %v1504 = vsub.s32 1, %v1503
  %v1505 = vrot.slane %v83, %v1504
  %v1516 = vunpack.c.l.b16 %v75
  %v1517 = vunpack.c.h.b16 %v75
  %v1518 = vunpack.c.l.b16 %v76
  %v1519 = vunpack.c.h.b16 %v76
  %v1520 = vunpack.c.l.b16 %v77
  %v1521 = vunpack.c.h.b16 %v77
  %v1522 = vunpack.c.l.b16 %v78
  %v1523 = vunpack.c.h.b16 %v78
  %v1524 = vunpack.c.l.b16 %v79
  %v1525 = vunpack.c.h.b16 %v79
  %v1526 = vunpack.c.l.b16 %v80
  %v1527 = vunpack.c.h.b16 %v80
  %v1528 = vunpack.c.l.b16 %v81
  %v1529 = vunpack.c.h.b16 %v81
  %v1530 = vunpack.c.l.b16 %v82
  %v1531 = vunpack.c.h.b16 %v82
  %v1532 = vpack.c.b16 %v1518, %v1516
  %v1533 = vpack.c.b16 %v1519, %v1517
  %v1534 = vpack.c.b16 %v1522, %v1520
  %v1535 = vpack.c.b16 %v1523, %v1521
  %v1536 = vpack.c.b16 %v1526, %v1524
  %v1537 = vpack.c.b16 %v1527, %v1525
  %v1538 = vpack.c.b16 %v1530, %v1528
  %v1539 = vpack.c.b16 %v1531, %v1529
  %v1549 = vsel %vm122, %v1494, 0
  %v1552 = vsel %vm122, %v1495, 0
  %v1555 = vsel %vm122, %v1496, 0
  %1557 = vmatprep.subr.bf16.mxu0 %v1533
  %1558 = vmatpush1.bf16.msra.mxu0 %v1532
  %1559 = vmatprep.subr.bf16.mxu0 %v1535
  %1560 = vmatpush1.bf16.msra.mxu0 %v1534
  %1561 = vmatprep.subr.bf16.mxu0 %v1537
  %1562 = vmatpush1.bf16.msra.mxu0 %v1536
  %1563 = vmatprep.subr.bf16.mxu0 %v1539
  %1564 = vmatpush1.bf16.msra.mxu0 %v1538
  %1565 = vmatprep.subr.bf16.mxu0 0
  %1566 = vmatpush1.bf16.msra.mxu0 0
  %1567 = vmatprep.subr.bf16.mxu0 0
  %1568 = vmatpush1.bf16.msra.mxu0 0
  %1569 = vmatprep.subr.bf16.mxu0 0
  %1570 = vmatpush1.bf16.msra.mxu0 0
  %1571 = vmatprep.subr.bf16.mxu0 0
  %1572 = vmatpush1.bf16.msra.mxu0 0
  %1573 = vmatprep.subr.bf16.mxu0 0
  %1574 = vmatpush1.bf16.msra.mxu0 0
  %1575 = vmatprep.subr.bf16.mxu0 0
  %1576 = vmatpush1.bf16.msra.mxu0 0
  %1577 = vmatprep.subr.bf16.mxu0 0
  %1578 = vmatpush1.bf16.msra.mxu0 0
  %1579 = vmatprep.subr.bf16.mxu0 0
  %1580 = vmatpush1.bf16.msra.mxu0 0
  %1581 = vmatprep.subr.bf16.mxu0 0
  %1582 = vmatpush1.bf16.msra.mxu0 0
  %1583 = vmatprep.subr.bf16.mxu0 0
  %1584 = vmatpush1.bf16.msra.mxu0 0
  %1585 = vmatprep.subr.bf16.mxu0 0
  %1586 = vmatpush1.bf16.msra.mxu0 0
  %1587 = vmatprep.subr.bf16.mxu0 0
  %1588 = vmatpush1.bf16.msra.mxu0 0
  %1589 = vmatprep.mubr.bf16.mxu0 0
  %1590 = vmatmul.mubr.bf16.gmra.mrb[0].mxu0 %v1549
  %v1591 = vpop.f32.mrb[0].mxu0
  %v1592 = vadd.f32 %v1501, %v1591
  %v1593 = vpop.f32.mrb[0].mxu0
  %v1594 = vadd.f32 %v1505, %v1593
  %v1595 = vpop.f32.mrb[0].mxu0
  %v1596 = vadd.f32 %v1501, %v1595
  %v1597 = vpop.f32.mrb[0].mxu0
  %v1598 = vadd.f32 %v1505, %v1597
  %1599 = vmatprep.mubr.bf16.mxu0 0
  %1600 = vmatmul.mubr.bf16.gmra.mrb[0].mxu0 %v1552
  %v1601 = vpop.f32.mrb[0].mxu0
  %v1602 = vadd.f32 %v1501, %v1601
  %v1603 = vpop.f32.mrb[0].mxu0
  %v1604 = vadd.f32 %v1505, %v1603
  %v1605 = vpop.f32.mrb[0].mxu0
  %v1606 = vadd.f32 %v1501, %v1605
  %v1607 = vpop.f32.mrb[0].mxu0
  %v1608 = vadd.f32 %v1505, %v1607
  %1609 = vmatprep.mubr.bf16.mxu0 0
  %1610 = vmatmul.mubr.bf16.gmra.mrb[0].mxu0 %v1555
  %v1611 = vpop.f32.mrb[0].mxu0
  %v1612 = vadd.f32 %v1501, %v1611
  %v1613 = vpop.f32.mrb[0].mxu0
  %v1614 = vadd.f32 %v1505, %v1613
  %v1615 = vpop.f32.mrb[0].mxu0
  %v1616 = vpop.f32.mrb[0].mxu0
  %1617 = vdwg.mxu0
  %v1618 = vmul.f32 %v1592, 1.702
  %v1619 = vmul.f32 %v1594, 1.702
  %v1620 = vmul.f32 %v1596, 1.702
  %v1621 = vmul.f32 %v1598, 1.702
  %v1622 = vmul.f32 %v1602, 1.702
  %v1623 = vmul.f32 %v1604, 1.702
  %v1624 = vmul.f32 %v1606, 1.702
  %v1625 = vmul.f32 %v1608, 1.702
  %v1626 = vmul.f32 %v1612, 1.702
  %v1627 = vmul.f32 %v1614, 1.702
  %v1628 = vxor.u32 %v1618, 2147483648
  %v1629 = vxor.u32 %v1619, 2147483648
  %v1630 = vxor.u32 %v1620, 2147483648
  %v1631 = vxor.u32 %v1621, 2147483648
  %v1632 = vxor.u32 %v1622, 2147483648
  %v1633 = vxor.u32 %v1623, 2147483648
  %v1634 = vxor.u32 %v1624, 2147483648
  %v1635 = vxor.u32 %v1625, 2147483648
  %v1636 = vxor.u32 %v1626, 2147483648
  %v1637 = vxor.u32 %v1627, 2147483648
  %v1638 = vmul.f32 %v1628, 1.442695
  %v1639 = vpow.pop %v1638
  %v1640 = vmul.f32 %v1629, 1.442695
  %v1641 = vpow.pop %v1640
  %v1642 = vmul.f32 %v1630, 1.442695
  %v1643 = vpow.pop %v1642
  %v1644 = vmul.f32 %v1631, 1.442695
  %v1645 = vpow.pop %v1644
  %v1646 = vmul.f32 %v1632, 1.442695
  %v1647 = vpow.pop %v1646
  %v1648 = vmul.f32 %v1633, 1.442695
  %v1649 = vpow.pop %v1648
  %v1650 = vmul.f32 %v1634, 1.442695
  %v1651 = vpow.pop %v1650
  %v1652 = vmul.f32 %v1635, 1.442695
  %v1653 = vpow.pop %v1652
  %v1654 = vmul.f32 %v1636, 1.442695
  %v1655 = vpow.pop %v1654
  %v1656 = vmul.f32 %v1637, 1.442695
  %v1657 = vpow.pop %v1656
  %v1658 = vadd.f32 %v1639, 1.0
  %v1659 = vadd.f32 %v1641, 1.0
  %v1660 = vadd.f32 %v1643, 1.0
  %v1661 = vadd.f32 %v1645, 1.0
  %v1662 = vadd.f32 %v1647, 1.0
  %v1663 = vadd.f32 %v1649, 1.0
  %v1664 = vadd.f32 %v1651, 1.0
  %v1665 = vadd.f32 %v1653, 1.0
  %v1666 = vadd.f32 %v1655, 1.0
  %v1667 = vadd.f32 %v1657, 1.0
  %v1668 = vrcp.pop %v1658
  %v1669 = vmul.f32 1.0, %v1668
  %v1670 = vrcp.pop %v1659
  %v1671 = vmul.f32 1.0, %v1670
  %v1672 = vrcp.pop %v1660
  %v1673 = vmul.f32 1.0, %v1672
  %v1674 = vrcp.pop %v1661
  %v1675 = vmul.f32 1.0, %v1674
  %v1676 = vrcp.pop %v1662
  %v1677 = vmul.f32 1.0, %v1676
  %v1678 = vrcp.pop %v1663
  %v1679 = vmul.f32 1.0, %v1678
  %v1680 = vrcp.pop %v1664
  %v1681 = vmul.f32 1.0, %v1680
  %v1682 = vrcp.pop %v1665
  %v1683 = vmul.f32 1.0, %v1682
  %v1684 = vrcp.pop %v1666
  %v1685 = vmul.f32 1.0, %v1684
  %v1686 = vrcp.pop %v1667
  %v1687 = vmul.f32 1.0, %v1686
  %v1688 = vmul.f32 %v1592, %v1669
  %v1689 = vmul.f32 %v1594, %v1671
  %v1690 = vmul.f32 %v1596, %v1673
  %v1691 = vmul.f32 %v1598, %v1675
  %v1692 = vmul.f32 %v1602, %v1677
  %v1693 = vmul.f32 %v1604, %v1679
  %v1694 = vmul.f32 %v1606, %v1681
  %v1695 = vmul.f32 %v1608, %v1683
  %v1696 = vmul.f32 %v1612, %v1685
  %v1697 = vmul.f32 %v1614, %v1687
  %v1698 = vpack.c.bf16 %v1690, %v1688
  %v1699 = vpack.c.bf16 %v1691, %v1689
  %v1700 = vpack.c.bf16 %v1694, %v1692
  %v1701 = vpack.c.bf16 %v1695, %v1693
  %v1702 = vpack.c.bf16 %v1696, %v1696
  %v1703 = vpack.c.bf16 %v1697, %v1697
  %v1705 = vlaneseq
  %v1706 = vshrl.u32 %v1705, 7
  %v1707 = vsub.s32 0, %v1706
  %v1708 = vrot.slane %v116, %v1707
  %v1742 = vunpack.c.l.b16 %v84
  %v1743 = vunpack.c.l.b16 %v85
  %v1744 = vunpack.c.l.b16 %v86
  %v1745 = vunpack.c.l.b16 %v87
  %v1746 = vunpack.c.l.b16 %v88
  %v1747 = vunpack.c.l.b16 %v89
  %v1748 = vunpack.c.l.b16 %v90
  %v1749 = vunpack.c.l.b16 %v91
  %v1750 = vunpack.c.l.b16 %v92
  %v1751 = vunpack.c.l.b16 %v93
  %v1752 = vunpack.c.l.b16 %v94
  %v1753 = vunpack.c.l.b16 %v95
  %v1754 = vunpack.c.l.b16 %v96
  %v1755 = vunpack.c.l.b16 %v97
  %v1756 = vunpack.c.l.b16 %v98
  %v1757 = vunpack.c.l.b16 %v99
  %v1758 = vunpack.c.l.b16 %v100
  %v1759 = vunpack.c.l.b16 %v101
  %v1760 = vunpack.c.l.b16 %v102
  %v1761 = vunpack.c.l.b16 %v103
  %v1762 = vunpack.c.l.b16 %v104
  %v1763 = vunpack.c.l.b16 %v105
  %v1764 = vunpack.c.l.b16 %v106
  %v1765 = vunpack.c.l.b16 %v107
  %v1766 = vunpack.c.l.b16 %v108
  %v1767 = vunpack.c.l.b16 %v109
  %v1768 = vunpack.c.l.b16 %v110
  %v1769 = vunpack.c.l.b16 %v111
  %v1770 = vunpack.c.l.b16 %v112
  %v1771 = vunpack.c.l.b16 %v113
  %v1772 = vunpack.c.l.b16 %v114
  %v1773 = vunpack.c.l.b16 %v115
  %v1774 = vpack.c.b16 %v1743, %v1742
  %v1775 = vpack.c.b16 %v1745, %v1744
  %v1776 = vpack.c.b16 %v1747, %v1746
  %v1777 = vpack.c.b16 %v1749, %v1748
  %v1778 = vpack.c.b16 %v1751, %v1750
  %v1779 = vpack.c.b16 %v1753, %v1752
  %v1780 = vpack.c.b16 %v1755, %v1754
  %v1781 = vpack.c.b16 %v1757, %v1756
  %v1782 = vpack.c.b16 %v1759, %v1758
  %v1783 = vpack.c.b16 %v1761, %v1760
  %v1784 = vpack.c.b16 %v1763, %v1762
  %v1785 = vpack.c.b16 %v1765, %v1764
  %v1786 = vpack.c.b16 %v1767, %v1766
  %v1787 = vpack.c.b16 %v1769, %v1768
  %v1788 = vpack.c.b16 %v1771, %v1770
  %v1789 = vpack.c.b16 %v1773, %v1772
  %1806 = vmatprep.subr.bf16.mxu0 0
  %1807 = vmatpush1.bf16.msra.mxu0 %v1774
  %1808 = vmatprep.subr.bf16.mxu0 0
  %1809 = vmatpush1.bf16.msra.mxu0 %v1775
  %1810 = vmatprep.subr.bf16.mxu0 0
  %1811 = vmatpush1.bf16.msra.mxu0 %v1776
  %1812 = vmatprep.subr.bf16.mxu0 0
  %1813 = vmatpush1.bf16.msra.mxu0 %v1777
  %1814 = vmatprep.subr.bf16.mxu0 0
  %1815 = vmatpush1.bf16.msra.mxu0 %v1778
  %1816 = vmatprep.subr.bf16.mxu0 0
  %1817 = vmatpush1.bf16.msra.mxu0 %v1779
  %1818 = vmatprep.subr.bf16.mxu0 0
  %1819 = vmatpush1.bf16.msra.mxu0 %v1780
  %1820 = vmatprep.subr.bf16.mxu0 0
  %1821 = vmatpush1.bf16.msra.mxu0 %v1781
  %1822 = vmatprep.subr.bf16.mxu0 0
  %1823 = vmatpush1.bf16.msra.mxu0 %v1782
  %1824 = vmatprep.subr.bf16.mxu0 0
  %1825 = vmatpush1.bf16.msra.mxu0 %v1783
  %1826 = vmatprep.subr.bf16.mxu0 0
  %1827 = vmatpush1.bf16.msra.mxu0 %v1784
  %1828 = vmatprep.subr.bf16.mxu0 0
  %1829 = vmatpush1.bf16.msra.mxu0 %v1785
  %1830 = vmatprep.subr.bf16.mxu0 0
  %1831 = vmatpush1.bf16.msra.mxu0 %v1786
  %1832 = vmatprep.subr.bf16.mxu0 0
  %1833 = vmatpush1.bf16.msra.mxu0 %v1787
  %1834 = vmatprep.subr.bf16.mxu0 0
  %1835 = vmatpush1.bf16.msra.mxu0 %v1788
  %1836 = vmatprep.subr.bf16.mxu0 0
  %1837 = vmatpush1.bf16.msra.mxu0 %v1789
  %1838 = vmatprep.mubr.bf16.mxu0 %v1699
  %1839 = vmatmul.mubr.bf16.gmra.mrb[0].mxu0 %v1698
  %v1840 = vpop.f32.mrb[0].mxu0
  %v1841 = vadd.f32 %v1708, %v1840
  %v1842 = vpop.f32.mrb[0].mxu0
  %v1843 = vpop.f32.mrb[0].mxu0
  %v1844 = vadd.f32 %v1708, %v1843
  %v1845 = vpop.f32.mrb[0].mxu0
  %1846 = vmatprep.mubr.bf16.mxu0 %v1701
  %1847 = vmatmul.mubr.bf16.gmra.mrb[0].mxu0 %v1700
  %v1848 = vpop.f32.mrb[0].mxu0
  %v1849 = vadd.f32 %v1708, %v1848
  %v1850 = vpop.f32.mrb[0].mxu0
  %v1851 = vpop.f32.mrb[0].mxu0
  %v1852 = vadd.f32 %v1708, %v1851
  %v1853 = vpop.f32.mrb[0].mxu0
  %1854 = vmatprep.mubr.bf16.mxu0 %v1703
  %1855 = vmatmul.mubr.bf16.gmra.mrb[0].mxu0 %v1702
  %v1856 = vpop.f32.mrb[0].mxu0
  %v1857 = vadd.f32 %v1708, %v1856
  %v1858 = vpop.f32.mrb[0].mxu0
  %v1859 = vpop.f32.mrb[0].mxu0
  %v1860 = vpop.f32.mrb[0].mxu0
  %1861 = vdwg.mxu0
  %v1862 = vadd.f32 %v1402, %v1841
  %v1863 = vadd.f32 %v1403, %v1844
  %v1864 = vadd.f32 %v1404, %v1849
  %v1865 = vadd.f32 %v1405, %v1852
  %v1866 = vadd.f32 %v1406, %v1857
  %1867 = vst.msk [vmem:[%s14] sm:$0xff] %vm122, %v1862
  %1868 = vst.msk [vmem:[%s14 + $0x8] sm:$0xff] %vm122, %v1863
  %1869 = vst.msk [vmem:[%s14 + $0x10] sm:$0xff] %vm122, %v1864
  %1870 = vst.msk [vmem:[%s14 + $0x18] sm:$0xff] %vm122, %v1865
  %1871 = vst.msk [vmem:[%s14 + $0x20] sm:$0xff] %vm122, %v1866
  // Predicated region
  $region58: #{forward.13} parent=0 // pred_check
    _
  $region59: #{forward.13} parent=0 // pred_check_branch
    %1873 = sbr.rel (0) target = $region61
  $region60: #{forward.13} parent=0 // pred_region
    _
  $region61: #{forward.13} parent=0 // pred_fallthru
    _
  // Predicated region
  $region62: #{forward.13} parent=0 // pred_check
    _
  $region63: #{forward.13} parent=0 // pred_check_branch
    %1875 = sbr.rel (0) target = $region65
  $region64: #{forward.13} parent=0 // pred_region
    _
  $region65: #{forward.13} parent=0 // pred_fallthru
    _

// kernel: forward.11
$region0: #{forward.11}
  #allocation0 [shape = 'u32[]', space=smem, size = 0x4, offset = 0x4, fixed_abs, tag = 'smem constant byte address 0x4 - core index']
  #allocation1 [shape = 'u32[144,128]{1,0:T(1,128)}', space=vmem, size = 0x12000, scoped, tag = 'internal scratch']
  %s0 = inlined_call_operand.vmem [shape: f32[40,64], index: 0, kind: input, shape index: {}]
  %s1 = inlined_call_operand.vmem [shape: f32[40,32], index: 1, kind: input, shape index: {}]
  %s2 = inlined_call_operand.vmem [shape: f32[40,64], index: 2, kind: input, shape index: {}]
  %s3 = inlined_call_operand.vmem [shape: f32[40,40], index: 3, kind: input, shape index: {}]
  %s4 = inlined_call_operand.vmem [shape: bf16[64,64], index: 4, kind: input, shape index: {}]
  %s5 = inlined_call_operand.vmem [shape: f32[1,64], index: 5, kind: input, shape index: {}]
  %s6 = inlined_call_operand.vmem [shape: bf16[64,32], index: 6, kind: input, shape index: {}]
  %s7 = inlined_call_operand.vmem [shape: f32[1,32], index: 7, kind: input, shape index: {}]
  %s8 = inlined_call_operand.vmem [shape: bf16[32,64], index: 8, kind: input, shape index: {}]
  %s9 = inlined_call_operand.vmem [shape: f32[1,64], index: 9, kind: input, shape index: {}]
  %s10 = inlined_call_operand.vmem [shape: bf16[64,64], index: 10, kind: input, shape index: {}]
  %s11 = inlined_call_operand.vmem [shape: f32[1,64], index: 11, kind: input, shape index: {}]
  %s12 = inlined_call_operand.vmem [shape: f32[1,64], index: 12, kind: input, shape index: {}]
  %s13 = inlined_call_operand.vmem [shape: f32[1,64], index: 13, kind: input, shape index: {}]
  %s14 = inlined_call_operand.vmem [shape: bf16[64,192], index: 14, kind: input, shape index: {}]
  %s15 = inlined_call_operand.vmem [shape: f32[1,192], index: 15, kind: input, shape index: {}]
  %s16 = inlined_call_operand.vmem [shape: bf16[64,64], index: 16, kind: input, shape index: {}]
  %s17 = inlined_call_operand.vmem [shape: f32[1,64], index: 17, kind: input, shape index: {}]
  %s18 = inlined_call_operand.vmem [shape: f32[1,64], index: 18, kind: input, shape index: {}]
  %s19 = inlined_call_operand.vmem [shape: f32[1,64], index: 19, kind: input, shape index: {}]
  %s20 = inlined_call_operand.vmem [shape: bf16[64,256], index: 20, kind: input, shape index: {}]
  %s21 = inlined_call_operand.vmem [shape: f32[1,256], index: 21, kind: input, shape index: {}]
  %s22 = inlined_call_operand.vmem [shape: bf16[256,64], index: 22, kind: input, shape index: {}]
  %s23 = inlined_call_operand.vmem [shape: f32[1,64], index: 23, kind: input, shape index: {}]
  %s24 = inlined_call_operand.vmem [shape: f32[40,64], index: 24, kind: output, shape index: {}]
  %s25 = sld [smem:[#allocation0]]
  $region106: #{forward.11} parent=0
    _
  %s27 = ssub.s32 1, %s25
  %s28 = scalar_select 0, %s27, %s25
  // Predicated region
  $region2: #{forward.11} parent=0 // pred_check
    _
  $region3: #{forward.11} parent=0 // pred_check_branch
    %30 = sbr.rel (0) target = $region5
  $region4: #{forward.11} parent=0 // pred_region
    _
  $region5: #{forward.11} parent=0 // pred_fallthru
    _
  // Predicated region
  $region6: #{forward.11} parent=0 // pred_check
    _
  $region7: #{forward.11} parent=0 // pred_check_branch
    %32 = sbr.rel (0) target = $region9
  $region8: #{forward.11} parent=0 // pred_region
    _
  $region9: #{forward.11} parent=0 // pred_fallthru
    _
  // Predicated region
  $region10: #{forward.11} parent=0 // pred_check
    _
  $region11: #{forward.11} parent=0 // pred_check_branch
    %34 = sbr.rel (0) target = $region13
  $region12: #{forward.11} parent=0 // pred_region
    _
  $region13: #{forward.11} parent=0 // pred_fallthru
    _
  // Predicated region
  $region14: #{forward.11} parent=0 // pred_check
    _
  $region15: #{forward.11} parent=0 // pred_check_branch
    %36 = sbr.rel (0) target = $region17
  $region16: #{forward.11} parent=0 // pred_region
    _
  $region17: #{forward.11} parent=0 // pred_fallthru
    _
  // Predicated region
  $region18: #{forward.11} parent=0 // pred_check
    _
  $region19: #{forward.11} parent=0 // pred_check_branch
    %38 = sbr.rel (0) target = $region21
  $region20: #{forward.11} parent=0 // pred_region
    _
  $region21: #{forward.11} parent=0 // pred_fallthru
    _
  // Predicated region
  $region22: #{forward.11} parent=0 // pred_check
    _
  $region23: #{forward.11} parent=0 // pred_check_branch
    %40 = sbr.rel (0) target = $region25
  $region24: #{forward.11} parent=0 // pred_region
    _
  $region25: #{forward.11} parent=0 // pred_fallthru
    _
  // Predicated region
  $region26: #{forward.11} parent=0 // pred_check
    _
  $region27: #{forward.11} parent=0 // pred_check_branch
    %42 = sbr.rel (0) target = $region29
  $region28: #{forward.11} parent=0 // pred_region
    _
  $region29: #{forward.11} parent=0 // pred_fallthru
    _
  // Predicated region
  $region30: #{forward.11} parent=0 // pred_check
    _
  $region31: #{forward.11} parent=0 // pred_check_branch
    %44 = sbr.rel (0) target = $region33
  $region32: #{forward.11} parent=0 // pred_region
    _
  $region33: #{forward.11} parent=0 // pred_fallthru
    _
  // Predicated region
  $region34: #{forward.11} parent=0 // pred_check
    _
  $region35: #{forward.11} parent=0 // pred_check_branch
    %46 = sbr.rel (0) target = $region37
  $region36: #{forward.11} parent=0 // pred_region
    _
  $region37: #{forward.11} parent=0 // pred_fallthru
    _
  // Predicated region
  $region38: #{forward.11} parent=0 // pred_check
    _
  $region39: #{forward.11} parent=0 // pred_check_branch
    %48 = sbr.rel (0) target = $region41
  $region40: #{forward.11} parent=0 // pred_region
    _
  $region41: #{forward.11} parent=0 // pred_fallthru
    _
  // Predicated region
  $region42: #{forward.11} parent=0 // pred_check
    _
  $region43: #{forward.11} parent=0 // pred_check_branch
    %50 = sbr.rel (0) target = $region45
  $region44: #{forward.11} parent=0 // pred_region
    _
  $region45: #{forward.11} parent=0 // pred_fallthru
    _
  // Predicated region
  $region46: #{forward.11} parent=0 // pred_check
    _
  $region47: #{forward.11} parent=0 // pred_check_branch
    %52 = sbr.rel (0) target = $region49
  $region48: #{forward.11} parent=0 // pred_region
    _
  $region49: #{forward.11} parent=0 // pred_fallthru
    _
  // Predicated region
  $region50: #{forward.11} parent=0 // pred_check
    _
  $region51: #{forward.11} parent=0 // pred_check_branch
    %54 = sbr.rel (0) target = $region53
  $region52: #{forward.11} parent=0 // pred_region
    _
  $region53: #{forward.11} parent=0 // pred_fallthru
    _
  // Predicated region
  $region54: #{forward.11} parent=0 // pred_check
    _
  $region55: #{forward.11} parent=0 // pred_check_branch
    %56 = sbr.rel (0) target = $region57
  $region56: #{forward.11} parent=0 // pred_region
    _
  $region57: #{forward.11} parent=0 // pred_fallthru
    _
  // Predicated region
  $region58: #{forward.11} parent=0 // pred_check
    _
  $region59: #{forward.11} parent=0 // pred_check_branch
    %58 = sbr.rel (0) target = $region61
  $region60: #{forward.11} parent=0 // pred_region
    _
  $region61: #{forward.11} parent=0 // pred_fallthru
    _
  // Predicated region
  $region62: #{forward.11} parent=0 // pred_check
    _
  $region63: #{forward.11} parent=0 // pred_check_branch
    %60 = sbr.rel (0) target = $region65
  $region64: #{forward.11} parent=0 // pred_region
    _
  $region65: #{forward.11} parent=0 // pred_fallthru
    _
  // Predicated region
  $region66: #{forward.11} parent=0 // pred_check
    _
  $region67: #{forward.11} parent=0 // pred_check_branch
    %62 = sbr.rel (0) target = $region69
  $region68: #{forward.11} parent=0 // pred_region
    _
  $region69: #{forward.11} parent=0 // pred_fallthru
    _
  // Predicated region
  $region70: #{forward.11} parent=0 // pred_check
    _
  $region71: #{forward.11} parent=0 // pred_check_branch
    %64 = sbr.rel (0) target = $region73
  $region72: #{forward.11} parent=0 // pred_region
    _
  $region73: #{forward.11} parent=0 // pred_fallthru
    _
  // Predicated region
  $region74: #{forward.11} parent=0 // pred_check
    _
  $region75: #{forward.11} parent=0 // pred_check_branch
    %66 = sbr.rel (0) target = $region77
  $region76: #{forward.11} parent=0 // pred_region
    _
  $region77: #{forward.11} parent=0 // pred_fallthru
    _
  // Predicated region
  $region78: #{forward.11} parent=0 // pred_check
    _
  $region79: #{forward.11} parent=0 // pred_check_branch
    %68 = sbr.rel (0) target = $region81
  $region80: #{forward.11} parent=0 // pred_region
    _
  $region81: #{forward.11} parent=0 // pred_fallthru
    _
  // Predicated region
  $region82: #{forward.11} parent=0 // pred_check
    _
  $region83: #{forward.11} parent=0 // pred_check_branch
    %70 = sbr.rel (0) target = $region85
  $region84: #{forward.11} parent=0 // pred_region
    _
  $region85: #{forward.11} parent=0 // pred_fallthru
    _
  // Predicated region
  $region86: #{forward.11} parent=0 // pred_check
    _
  $region87: #{forward.11} parent=0 // pred_check_branch
    %72 = sbr.rel (0) target = $region89
  $region88: #{forward.11} parent=0 // pred_region
    _
  $region89: #{forward.11} parent=0 // pred_fallthru
    _
  // Predicated region
  $region90: #{forward.11} parent=0 // pred_check
    _
  $region91: #{forward.11} parent=0 // pred_check_branch
    %74 = sbr.rel (0) target = $region93
  $region92: #{forward.11} parent=0 // pred_region
    _
  $region93: #{forward.11} parent=0 // pred_fallthru
    _
  // Predicated region
  $region94: #{forward.11} parent=0 // pred_check
    _
  $region95: #{forward.11} parent=0 // pred_check_branch
    %76 = sbr.rel (0) target = $region97
  $region96: #{forward.11} parent=0 // pred_region
    _
  $region97: #{forward.11} parent=0 // pred_fallthru
    _
  %v78 = vld [vmem:[%s0] sm:$0xff]
  %v79 = vld [vmem:[%s0 + $0x8] sm:$0xff]
  %v80 = vld [vmem:[%s0 + $0x10] sm:$0xff]
  %v81 = vld [vmem:[%s0 + $0x18] sm:$0xff]
  %v82 = vld [vmem:[%s0 + $0x20] sm:$0xff]
  %v83 = vld [vmem:[%s4] sm:$0xf]
  %v84 = vld [vmem:[%s4 + $0x4] sm:$0xf]
  %v85 = vld [vmem:[%s4 + $0x8] sm:$0xf]
  %v86 = vld [vmem:[%s4 + $0xc] sm:$0xf]
  %v87 = vld [vmem:[%s4 + $0x10] sm:$0xf]
  %v88 = vld [vmem:[%s4 + $0x14] sm:$0xf]
  %v89 = vld [vmem:[%s4 + $0x18] sm:$0xf]
  %v90 = vld [vmem:[%s4 + $0x1c] sm:$0xf]
  %v91 = vld [vmem:[%s5] sm:$0x1]
  %v92 = vld [vmem:[%s6] sm:$0xf]
  %v93 = vld [vmem:[%s6 + $0x4] sm:$0xf]
  %v94 = vld [vmem:[%s6 + $0x8] sm:$0xf]
  %v95 = vld [vmem:[%s6 + $0xc] sm:$0xf]
  %v96 = vld [vmem:[%s6 + $0x10] sm:$0xf]
  %v97 = vld [vmem:[%s6 + $0x14] sm:$0xf]
  %v98 = vld [vmem:[%s6 + $0x18] sm:$0xf]
  %v99 = vld [vmem:[%s6 + $0x1c] sm:$0xf]
  %v100 = vld [vmem:[%s7] sm:$0x1]
  %v101 = vpack.c.bf16 %v79, %v78
  %v102 = vpack.c.bf16 %v81, %v80
  %v103 = vpack.c.bf16 %v82, %v82
  %v105 = vlaneseq
  %v106 = vshrl.u32 %v105, 7
  %v107 = vsub.s32 0, %v106
  %v108 = vrot.slane %v91, %v107
  %v118 = vunpack.c.l.b16 %v83
  %v119 = vunpack.c.l.b16 %v84
  %v120 = vunpack.c.l.b16 %v85
  %v121 = vunpack.c.l.b16 %v86
  %v122 = vunpack.c.l.b16 %v87
  %v123 = vunpack.c.l.b16 %v88
  %v124 = vunpack.c.l.b16 %v89
  %v125 = vunpack.c.l.b16 %v90
  %v126 = vpack.c.b16 %v119, %v118
  %v127 = vpack.c.b16 %v121, %v120
  %v128 = vpack.c.b16 %v123, %v122
  %v129 = vpack.c.b16 %v125, %v124
  %vm134 = vcmask 523264
  %v136 = vsel %vm134, %v101, 0
  %v139 = vsel %vm134, %v102, 0
  %v142 = vsel %vm134, %v103, 0
  %144 = vmatprep.subr.bf16.mxu0 0
  %145 = vmatpush1.bf16.msra.mxu0 %v126
  %146 = vmatprep.subr.bf16.mxu0 0
  %147 = vmatpush1.bf16.msra.mxu0 %v127
  %148 = vmatprep.subr.bf16.mxu0 0
  %149 = vmatpush1.bf16.msra.mxu0 %v128
  %150 = vmatprep.subr.bf16.mxu0 0
  %151 = vmatpush1.bf16.msra.mxu0 %v129
  %152 = vmatprep.subr.bf16.mxu0 0
  %153 = vmatpush1.bf16.msra.mxu0 0
  %154 = vmatprep.subr.bf16.mxu0 0
  %155 = vmatpush1.bf16.msra.mxu0 0
  %156 = vmatprep.subr.bf16.mxu0 0
  %157 = vmatpush1.bf16.msra.mxu0 0
  %158 = vmatprep.subr.bf16.mxu0 0
  %159 = vmatpush1.bf16.msra.mxu0 0
  %160 = vmatprep.subr.bf16.mxu0 0
  %161 = vmatpush1.bf16.msra.mxu0 0
  %162 = vmatprep.subr.bf16.mxu0 0
  %163 = vmatpush1.bf16.msra.mxu0 0
  %164 = vmatprep.subr.bf16.mxu0 0
  %165 = vmatpush1.bf16.msra.mxu0 0
  %166 = vmatprep.subr.bf16.mxu0 0
  %167 = vmatpush1.bf16.msra.mxu0 0
  %168 = vmatprep.subr.bf16.mxu0 0
  %169 = vmatpush1.bf16.msra.mxu0 0
  %170 = vmatprep.subr.bf16.mxu0 0
  %171 = vmatpush1.bf16.msra.mxu0 0
  %172 = vmatprep.subr.bf16.mxu0 0
  %173 = vmatpush1.bf16.msra.mxu0 0
  %174 = vmatprep.subr.bf16.mxu0 0
  %175 = vmatpush1.bf16.msra.mxu0 0
  %176 = vmatprep.mubr.bf16.mxu0 0
  %177 = vmatmul.mubr.bf16.gmra.mrb[0].mxu0 %v136
  %v178 = vpop.f32.mrb[0].mxu0
  %v179 = vadd.f32 %v108, %v178
  %v180 = vpop.f32.mrb[0].mxu0
  %v181 = vpop.f32.mrb[0].mxu0
  %v182 = vadd.f32 %v108, %v181
  %v183 = vpop.f32.mrb[0].mxu0
  %184 = vmatprep.mubr.bf16.mxu0 0
  %185 = vmatmul.mubr.bf16.gmra.mrb[0].mxu0 %v139
  %v186 = vpop.f32.mrb[0].mxu0
  %v187 = vadd.f32 %v108, %v186
  %v188 = vpop.f32.mrb[0].mxu0
  %v189 = vpop.f32.mrb[0].mxu0
  %v190 = vadd.f32 %v108, %v189
  %v191 = vpop.f32.mrb[0].mxu0
  %192 = vmatprep.mubr.bf16.mxu0 0
  %193 = vmatmul.mubr.bf16.gmra.mrb[0].mxu0 %v142
  %v194 = vpop.f32.mrb[0].mxu0
  %v195 = vadd.f32 %v108, %v194
  %v196 = vpop.f32.mrb[0].mxu0
  %v197 = vpop.f32.mrb[0].mxu0
  %v198 = vpop.f32.mrb[0].mxu0
  %199 = vdwg.mxu0
  %v200 = vmax.f32 %v179, 0.0
  %v201 = vmax.f32 %v182, 0.0
  %v202 = vmax.f32 %v187, 0.0
  %v203 = vmax.f32 %v190, 0.0
  %v204 = vmax.f32 %v195, 0.0
  %v205 = vpack.c.bf16 %v201, %v200
  %v206 = vpack.c.bf16 %v203, %v202
  %v207 = vpack.c.bf16 %v204, %v204
  %v209 = vlaneseq
  %v210 = vshrl.u32 %v209, 7
  %v211 = vsub.s32 0, %v210
  %v212 = vrot.slane %v100, %v211
  %v222 = vunpack.c.l.b16 %v92
  %v223 = vunpack.c.l.b16 %v93
  %v224 = vunpack.c.l.b16 %v94
  %v225 = vunpack.c.l.b16 %v95
  %v226 = vunpack.c.l.b16 %v96
  %v227 = vunpack.c.l.b16 %v97
  %v228 = vunpack.c.l.b16 %v98
  %v229 = vunpack.c.l.b16 %v99
  %v230 = vpack.c.b16 %v223, %v222
  %v231 = vpack.c.b16 %v225, %v224
  %v232 = vpack.c.b16 %v227, %v226
  %v233 = vpack.c.b16 %v229, %v228
  %v239 = vsel %vm134, %v205, 0
  %v242 = vsel %vm134, %v206, 0
  %v245 = vsel %vm134, %v207, 0
  %247 = vmatprep.subr.bf16.mxu0 0
  %248 = vmatpush1.bf16.msra.mxu0 %v230
  %249 = vmatprep.subr.bf16.mxu0 0
  %250 = vmatpush1.bf16.msra.mxu0 %v231
  %251 = vmatprep.subr.bf16.mxu0 0
  %252 = vmatpush1.bf16.msra.mxu0 %v232
  %253 = vmatprep.subr.bf16.mxu0 0
  %254 = vmatpush1.bf16.msra.mxu0 %v233
  %255 = vmatprep.subr.bf16.mxu0 0
  %256 = vmatpush1.bf16.msra.mxu0 0
  %257 = vmatprep.subr.bf16.mxu0 0
  %258 = vmatpush1.bf16.msra.mxu0 0
  %259 = vmatprep.subr.bf16.mxu0 0
  %260 = vmatpush1.bf16.msra.mxu0 0
  %261 = vmatprep.subr.bf16.mxu0 0
  %262 = vmatpush1.bf16.msra.mxu0 0
  %263 = vmatprep.subr.bf16.mxu0 0
  %264 = vmatpush1.bf16.msra.mxu0 0
  %265 = vmatprep.subr.bf16.mxu0 0
  %266 = vmatpush1.bf16.msra.mxu0 0
  %267 = vmatprep.subr.bf16.mxu0 0
  %268 = vmatpush1.bf16.msra.mxu0 0
  %269 = vmatprep.subr.bf16.mxu0 0
  %270 = vmatpush1.bf16.msra.mxu0 0
  %271 = vmatprep.subr.bf16.mxu0 0
  %272 = vmatpush1.bf16.msra.mxu0 0
  %273 = vmatprep.subr.bf16.mxu0 0
  %274 = vmatpush1.bf16.msra.mxu0 0
  %275 = vmatprep.subr.bf16.mxu0 0
  %276 = vmatpush1.bf16.msra.mxu0 0
  %277 = vmatprep.subr.bf16.mxu0 0
  %278 = vmatpush1.bf16.msra.mxu0 0
  %279 = vmatprep.mubr.bf16.mxu0 0
  %280 = vmatmul.mubr.bf16.gmra.mrb[0].mxu0 %v239
  %v281 = vpop.f32.mrb[0].mxu0
  %v282 = vadd.f32 %v212, %v281
  %v283 = vpop.f32.mrb[0].mxu0
  %v284 = vpop.f32.mrb[0].mxu0
  %v285 = vadd.f32 %v212, %v284
  %v286 = vpop.f32.mrb[0].mxu0
  %287 = vmatprep.mubr.bf16.mxu0 0
  %288 = vmatmul.mubr.bf16.gmra.mrb[0].mxu0 %v242
  %v289 = vpop.f32.mrb[0].mxu0
  %v290 = vadd.f32 %v212, %v289
  %v291 = vpop.f32.mrb[0].mxu0
  %v292 = vpop.f32.mrb[0].mxu0
  %v293 = vadd.f32 %v212, %v292
  %v294 = vpop.f32.mrb[0].mxu0
  %295 = vmatprep.mubr.bf16.mxu0 0
  %296 = vmatmul.mubr.bf16.gmra.mrb[0].mxu0 %v245
  %v297 = vpop.f32.mrb[0].mxu0
  %v298 = vadd.f32 %v212, %v297
  %v299 = vpop.f32.mrb[0].mxu0
  %v300 = vpop.f32.mrb[0].mxu0
  %v301 = vpop.f32.mrb[0].mxu0
  %302 = vdwg.mxu0
  %v303 = vld [vmem:[%s1] sm:$0xff]
  %v304 = vld [vmem:[%s1 + $0x8] sm:$0xff]
  %v305 = vld [vmem:[%s1 + $0x10] sm:$0xff]
  %v306 = vld [vmem:[%s1 + $0x18] sm:$0xff]
  %v307 = vld [vmem:[%s1 + $0x20] sm:$0xff]
  %v308 = vadd.f32 %v282, %v303
  %v309 = vadd.f32 %v285, %v304
  %v310 = vadd.f32 %v290, %v305
  %v311 = vadd.f32 %v293, %v306
  %v312 = vadd.f32 %v298, %v307
  %v313 = vld [vmem:[%s8] sm:$0xf]
  %v314 = vld [vmem:[%s8 + $0x4] sm:$0xf]
  %v315 = vld [vmem:[%s8 + $0x8] sm:$0xf]
  %v316 = vld [vmem:[%s8 + $0xc] sm:$0xf]
  %v317 = vld [vmem:[%s9] sm:$0x1]
  %v318 = vld [vmem:[%s10] sm:$0xf]
  %v319 = vld [vmem:[%s10 + $0x4] sm:$0xf]
  %v320 = vld [vmem:[%s10 + $0x8] sm:$0xf]
  %v321 = vld [vmem:[%s10 + $0xc] sm:$0xf]
  %v322 = vld [vmem:[%s10 + $0x10] sm:$0xf]
  %v323 = vld [vmem:[%s10 + $0x14] sm:$0xf]
  %v324 = vld [vmem:[%s10 + $0x18] sm:$0xf]
  %v325 = vld [vmem:[%s10 + $0x1c] sm:$0xf]
  %v326 = vld [vmem:[%s11] sm:$0x1]
  %v327 = vpack.c.bf16 %v309, %v308
  %v328 = vpack.c.bf16 %v311, %v310
  %v329 = vpack.c.bf16 %v312, %v312
  %v331 = vlaneseq
  %v332 = vshrl.u32 %v331, 7
  %v333 = vsub.s32 0, %v332
  %v334 = vrot.slane %v317, %v333
  %v340 = vunpack.c.l.b16 %v313
  %v341 = vunpack.c.l.b16 %v314
  %v342 = vunpack.c.l.b16 %v315
  %v343 = vunpack.c.l.b16 %v316
  %v344 = vpack.c.b16 %v341, %v340
  %v345 = vpack.c.b16 %v343, %v342
  %vm348 = vcmask 261120
  %v350 = vsel %vm348, %v327, 0
  %v353 = vsel %vm348, %v328, 0
  %v356 = vsel %vm348, %v329, 0
  %358 = vmatprep.subr.bf16.mxu0 0
  %359 = vmatpush1.bf16.msra.mxu0 %v344
  %360 = vmatprep.subr.bf16.mxu0 0
  %361 = vmatpush1.bf16.msra.mxu0 %v345
  %362 = vmatprep.subr.bf16.mxu0 0
  %363 = vmatpush1.bf16.msra.mxu0 0
  %364 = vmatprep.subr.bf16.mxu0 0
  %365 = vmatpush1.bf16.msra.mxu0 0
  %366 = vmatprep.subr.bf16.mxu0 0
  %367 = vmatpush1.bf16.msra.mxu0 0
  %368 = vmatprep.subr.bf16.mxu0 0
  %369 = vmatpush1.bf16.msra.mxu0 0
  %370 = vmatprep.subr.bf16.mxu0 0
  %371 = vmatpush1.bf16.msra.mxu0 0
  %372 = vmatprep.subr.bf16.mxu0 0
  %373 = vmatpush1.bf16.msra.mxu0 0
  %374 = vmatprep.subr.bf16.mxu0 0
  %375 = vmatpush1.bf16.msra.mxu0 0
  %376 = vmatprep.subr.bf16.mxu0 0
  %377 = vmatpush1.bf16.msra.mxu0 0
  %378 = vmatprep.subr.bf16.mxu0 0
  %379 = vmatpush1.bf16.msra.mxu0 0
  %380 = vmatprep.subr.bf16.mxu0 0
  %381 = vmatpush1.bf16.msra.mxu0 0
  %382 = vmatprep.subr.bf16.mxu0 0
  %383 = vmatpush1.bf16.msra.mxu0 0
  %384 = vmatprep.subr.bf16.mxu0 0
  %385 = vmatpush1.bf16.msra.mxu0 0
  %386 = vmatprep.subr.bf16.mxu0 0
  %387 = vmatpush1.bf16.msra.mxu0 0
  %388 = vmatprep.subr.bf16.mxu0 0
  %389 = vmatpush1.bf16.msra.mxu0 0
  %390 = vmatprep.mubr.bf16.mxu0 0
  %391 = vmatmul.mubr.bf16.gmra.mrb[0].mxu0 %v350
  %v392 = vpop.f32.mrb[0].mxu0
  %v393 = vadd.f32 %v334, %v392
  %v394 = vpop.f32.mrb[0].mxu0
  %v395 = vpop.f32.mrb[0].mxu0
  %v396 = vadd.f32 %v334, %v395
  %v397 = vpop.f32.mrb[0].mxu0
  %398 = vmatprep.mubr.bf16.mxu0 0
  %399 = vmatmul.mubr.bf16.gmra.mrb[0].mxu0 %v353
  %v400 = vpop.f32.mrb[0].mxu0
  %v401 = vadd.f32 %v334, %v400
  %v402 = vpop.f32.mrb[0].mxu0
  %v403 = vpop.f32.mrb[0].mxu0
  %v404 = vadd.f32 %v334, %v403
  %v405 = vpop.f32.mrb[0].mxu0
  %406 = vmatprep.mubr.bf16.mxu0 0
  %407 = vmatmul.mubr.bf16.gmra.mrb[0].mxu0 %v356
  %v408 = vpop.f32.mrb[0].mxu0
  %v409 = vadd.f32 %v334, %v408
  %v410 = vpop.f32.mrb[0].mxu0
  %v411 = vpop.f32.mrb[0].mxu0
  %v412 = vpop.f32.mrb[0].mxu0
  %413 = vdwg.mxu0
  %v414 = vmax.f32 %v393, 0.0
  %v415 = vmax.f32 %v396, 0.0
  %v416 = vmax.f32 %v401, 0.0
  %v417 = vmax.f32 %v404, 0.0
  %v418 = vmax.f32 %v409, 0.0
  %v419 = vpack.c.bf16 %v415, %v414
  %v420 = vpack.c.bf16 %v417, %v416
  %v421 = vpack.c.bf16 %v418, %v418
  %v423 = vlaneseq
  %v424 = vshrl.u32 %v423, 7
  %v425 = vsub.s32 0, %v424
  %v426 = vrot.slane %v326, %v425
  %v436 = vunpack.c.l.b16 %v318
  %v437 = vunpack.c.l.b16 %v319
  %v438 = vunpack.c.l.b16 %v320
  %v439 = vunpack.c.l.b16 %v321
  %v440 = vunpack.c.l.b16 %v322
  %v441 = vunpack.c.l.b16 %v323
  %v442 = vunpack.c.l.b16 %v324
  %v443 = vunpack.c.l.b16 %v325
  %v444 = vpack.c.b16 %v437, %v436
  %v445 = vpack.c.b16 %v439, %v438
  %v446 = vpack.c.b16 %v441, %v440
  %v447 = vpack.c.b16 %v443, %v442
  %v453 = vsel %vm134, %v419, 0
  %v456 = vsel %vm134, %v420, 0
  %v459 = vsel %vm134, %v421, 0
  %461 = vmatprep.subr.bf16.mxu0 0
  %462 = vmatpush1.bf16.msra.mxu0 %v444
  %463 = vmatprep.subr.bf16.mxu0 0
  %464 = vmatpush1.bf16.msra.mxu0 %v445
  %465 = vmatprep.subr.bf16.mxu0 0
  %466 = vmatpush1.bf16.msra.mxu0 %v446
  %467 = vmatprep.subr.bf16.mxu0 0
  %468 = vmatpush1.bf16.msra.mxu0 %v447
  %469 = vmatprep.subr.bf16.mxu0 0
  %470 = vmatpush1.bf16.msra.mxu0 0
  %471 = vmatprep.subr.bf16.mxu0 0
  %472 = vmatpush1.bf16.msra.mxu0 0
  %473 = vmatprep.subr.bf16.mxu0 0
  %474 = vmatpush1.bf16.msra.mxu0 0
  %475 = vmatprep.subr.bf16.mxu0 0
  %476 = vmatpush1.bf16.msra.mxu0 0
  %477 = vmatprep.subr.bf16.mxu0 0
  %478 = vmatpush1.bf16.msra.mxu0 0
  %479 = vmatprep.subr.bf16.mxu0 0
  %480 = vmatpush1.bf16.msra.mxu0 0
  %481 = vmatprep.subr.bf16.mxu0 0
  %482 = vmatpush1.bf16.msra.mxu0 0
  %483 = vmatprep.subr.bf16.mxu0 0
  %484 = vmatpush1.bf16.msra.mxu0 0
  %485 = vmatprep.subr.bf16.mxu0 0
  %486 = vmatpush1.bf16.msra.mxu0 0
  %487 = vmatprep.subr.bf16.mxu0 0
  %488 = vmatpush1.bf16.msra.mxu0 0
  %489 = vmatprep.subr.bf16.mxu0 0
  %490 = vmatpush1.bf16.msra.mxu0 0
  %491 = vmatprep.subr.bf16.mxu0 0
  %492 = vmatpush1.bf16.msra.mxu0 0
  %493 = vmatprep.mubr.bf16.mxu0 0
  %494 = vmatmul.mubr.bf16.gmra.mrb[0].mxu0 %v453
  %v495 = vpop.f32.mrb[0].mxu0
  %v496 = vadd.f32 %v426, %v495
  %v497 = vpop.f32.mrb[0].mxu0
  %v498 = vpop.f32.mrb[0].mxu0
  %v499 = vadd.f32 %v426, %v498
  %v500 = vpop.f32.mrb[0].mxu0
  %501 = vmatprep.mubr.bf16.mxu0 0
  %502 = vmatmul.mubr.bf16.gmra.mrb[0].mxu0 %v456
  %v503 = vpop.f32.mrb[0].mxu0
  %v504 = vadd.f32 %v426, %v503
  %v505 = vpop.f32.mrb[0].mxu0
  %v506 = vpop.f32.mrb[0].mxu0
  %v507 = vadd.f32 %v426, %v506
  %v508 = vpop.f32.mrb[0].mxu0
  %509 = vmatprep.mubr.bf16.mxu0 0
  %510 = vmatmul.mubr.bf16.gmra.mrb[0].mxu0 %v459
  %v511 = vpop.f32.mrb[0].mxu0
  %v512 = vadd.f32 %v426, %v511
  %v513 = vpop.f32.mrb[0].mxu0
  %v514 = vpop.f32.mrb[0].mxu0
  %v515 = vpop.f32.mrb[0].mxu0
  %516 = vdwg.mxu0
  %v517 = vld [vmem:[%s2] sm:$0xff]
  %v518 = vld [vmem:[%s2 + $0x8] sm:$0xff]
  %v519 = vld [vmem:[%s2 + $0x10] sm:$0xff]
  %v520 = vld [vmem:[%s2 + $0x18] sm:$0xff]
  %v521 = vld [vmem:[%s2 + $0x20] sm:$0xff]
  %v522 = vmul.f32 %v496, %v517
  %v523 = vmul.f32 %v499, %v518
  %v524 = vmul.f32 %v504, %v519
  %v525 = vmul.f32 %v507, %v520
  %v526 = vmul.f32 %v512, %v521
  %v527 = vadd.f32 %v78, %v522
  %v528 = vadd.f32 %v79, %v523
  %v529 = vadd.f32 %v80, %v524
  %v530 = vadd.f32 %v81, %v525
  %v531 = vadd.f32 %v82, %v526
  %v532 = vld [vmem:[%s12] sm:$0x1]
  %v533 = vld [vmem:[%s13] sm:$0x1]
  %v534 = vld [vmem:[%s14] sm:$0xff]
  %v535 = vld [vmem:[%s14 + $0x8] sm:$0xff]
  %v536 = vld [vmem:[%s14 + $0x10] sm:$0xff]
  %v537 = vld [vmem:[%s14 + $0x18] sm:$0xff]
  %v538 = vld [vmem:[%s14 + $0x20] sm:$0xff]
  %v539 = vld [vmem:[%s14 + $0x28] sm:$0xff]
  %v540 = vld [vmem:[%s14 + $0x30] sm:$0xff]
  %v541 = vld [vmem:[%s14 + $0x38] sm:$0xff]
  %v542 = vld [vmem:[%s15] sm:$0x3]
  %v543 = vld [vmem:[%s16] sm:$0xf]
  %v544 = vld [vmem:[%s16 + $0x4] sm:$0xf]
  %v545 = vld [vmem:[%s16 + $0x8] sm:$0xf]
  %v546 = vld [vmem:[%s16 + $0xc] sm:$0xf]
  %v547 = vld [vmem:[%s16 + $0x10] sm:$0xf]
  %v548 = vld [vmem:[%s16 + $0x14] sm:$0xf]
  %v549 = vld [vmem:[%s16 + $0x18] sm:$0xf]
  %v550 = vld [vmem:[%s16 + $0x1c] sm:$0xf]
  %v551 = vld [vmem:[%s17] sm:$0x1]
  %v552 = vld [vmem:[%s18] sm:$0x1]
  %v553 = vld [vmem:[%s19] sm:$0x1]
  %v554 = vld [vmem:[%s20] sm:$0xff]
  %v555 = vld [vmem:[%s20 + $0x8] sm:$0xff]
  %v556 = vld [vmem:[%s20 + $0x10] sm:$0xff]
  %v557 = vld [vmem:[%s20 + $0x18] sm:$0xff]
  %v558 = vld [vmem:[%s20 + $0x20] sm:$0xff]
  %v559 = vld [vmem:[%s20 + $0x28] sm:$0xff]
  %v560 = vld [vmem:[%s20 + $0x30] sm:$0xff]
  %v561 = vld [vmem:[%s20 + $0x38] sm:$0xff]
  %v562 = vld [vmem:[%s21] sm:$0x3]
  %v563 = vld [vmem:[%s22] sm:$0xf]
  %v564 = vld [vmem:[%s22 + $0x4] sm:$0xf]
  %v565 = vld [vmem:[%s22 + $0x8] sm:$0xf]
  %v566 = vld [vmem:[%s22 + $0xc] sm:$0xf]
  %v567 = vld [vmem:[%s22 + $0x10] sm:$0xf]
  %v568 = vld [vmem:[%s22 + $0x14] sm:$0xf]
  %v569 = vld [vmem:[%s22 + $0x18] sm:$0xf]
  %v570 = vld [vmem:[%s22 + $0x1c] sm:$0xf]
  %v571 = vld [vmem:[%s22 + $0x20] sm:$0xf]
  %v572 = vld [vmem:[%s22 + $0x24] sm:$0xf]
  %v573 = vld [vmem:[%s22 + $0x28] sm:$0xf]
  %v574 = vld [vmem:[%s22 + $0x2c] sm:$0xf]
  %v575 = vld [vmem:[%s22 + $0x30] sm:$0xf]
  %v576 = vld [vmem:[%s22 + $0x34] sm:$0xf]
  %v577 = vld [vmem:[%s22 + $0x38] sm:$0xf]
  %v578 = vld [vmem:[%s22 + $0x3c] sm:$0xf]
  %v579 = vld [vmem:[%s22 + $0x40] sm:$0xf]
  %v580 = vld [vmem:[%s22 + $0x44] sm:$0xf]
  %v581 = vld [vmem:[%s22 + $0x48] sm:$0xf]
  %v582 = vld [vmem:[%s22 + $0x4c] sm:$0xf]
  %v583 = vld [vmem:[%s22 + $0x50] sm:$0xf]
  %v584 = vld [vmem:[%s22 + $0x54] sm:$0xf]
  %v585 = vld [vmem:[%s22 + $0x58] sm:$0xf]
  %v586 = vld [vmem:[%s22 + $0x5c] sm:$0xf]
  %v587 = vld [vmem:[%s22 + $0x60] sm:$0xf]
  %v588 = vld [vmem:[%s22 + $0x64] sm:$0xf]
  %v589 = vld [vmem:[%s22 + $0x68] sm:$0xf]
  %v590 = vld [vmem:[%s22 + $0x6c] sm:$0xf]
  %v591 = vld [vmem:[%s22 + $0x70] sm:$0xf]
  %v592 = vld [vmem:[%s22 + $0x74] sm:$0xf]
  %v593 = vld [vmem:[%s22 + $0x78] sm:$0xf]
  %v594 = vld [vmem:[%s22 + $0x7c] sm:$0xf]
  %v595 = vld [vmem:[%s23] sm:$0x1]
  %v596 = vld [vmem:[%s3] sm:$0xff]
  %v597 = vld [vmem:[%s3 + $0x8] sm:$0xff]
  %v598 = vld [vmem:[%s3 + $0x10] sm:$0xff]
  %v599 = vld [vmem:[%s3 + $0x18] sm:$0xff]
  %v600 = vld [vmem:[%s3 + $0x20] sm:$0xff]
  %v601 = vsel %vm134, %v527, 0.0
  %602 = vadd.xlane.f32.xlu0 %v601
  %v603 = vpop.xlane.xlu0 %602
  %v604 = vsel %vm134, %v528, 0.0
  %605 = vadd.xlane.f32.xlu0 %v604
  %v606 = vpop.xlane.xlu0 %605
  %v607 = vsel %vm134, %v529, 0.0
  %608 = vadd.xlane.f32.xlu0 %v607
  %v609 = vpop.xlane.xlu0 %608
  %v610 = vsel %vm134, %v530, 0.0
  %611 = vadd.xlane.f32.xlu0 %v610
  %v612 = vpop.xlane.xlu0 %611
  %v613 = vsel %vm134, %v531, 0.0
  %614 = vadd.xlane.f32.xlu0 %v613
  %v615 = vpop.xlane.xlu0 %614
  %v616 = vrcp.pop 64.0
  %v617 = vmul.f32 %v603, %v616
  %v618 = vmul.f32 %v606, %v616
  %v619 = vmul.f32 %v609, %v616
  %v620 = vmul.f32 %v612, %v616
  %v621 = vmul.f32 %v615, %v616
  %v622 = vsub.f32 %v527, %v617
  %v623 = vsub.f32 %v528, %v618
  %v624 = vsub.f32 %v529, %v619
  %v625 = vsub.f32 %v530, %v620
  %v626 = vsub.f32 %v531, %v621
  %v627 = vmul.f32 %v622, %v622
  %v628 = vmul.f32 %v623, %v623
  %v629 = vmul.f32 %v624, %v624
  %v630 = vmul.f32 %v625, %v625
  %v631 = vmul.f32 %v626, %v626
  %v632 = vsel %vm134, %v627, 0.0
  %633 = vadd.xlane.f32.xlu0 %v632
  %v634 = vpop.xlane.xlu0 %633
  %v635 = vsel %vm134, %v628, 0.0
  %636 = vadd.xlane.f32.xlu0 %v635
  %v637 = vpop.xlane.xlu0 %636
  %v638 = vsel %vm134, %v629, 0.0
  %639 = vadd.xlane.f32.xlu0 %v638
  %v640 = vpop.xlane.xlu0 %639
  %v641 = vsel %vm134, %v630, 0.0
  %642 = vadd.xlane.f32.xlu0 %v641
  %v643 = vpop.xlane.xlu0 %642
  %v644 = vsel %vm134, %v631, 0.0
  %645 = vadd.xlane.f32.xlu0 %v644
  %v646 = vpop.xlane.xlu0 %645
  %v647 = vmul.f32 %v634, %v616
  %v648 = vmul.f32 %v637, %v616
  %v649 = vmul.f32 %v640, %v616
  %v650 = vmul.f32 %v643, %v616
  %v651 = vmul.f32 %v646, %v616
  %v652 = vadd.f32 %v647, 1e-05
  %v653 = vadd.f32 %v648, 1e-05
  %v654 = vadd.f32 %v649, 1e-05
  %v655 = vadd.f32 %v650, 1e-05
  %v656 = vadd.f32 %v651, 1e-05
  %v657 = vrsqrt.pop %v652
  %v658 = vrsqrt.pop %v653
  %v659 = vrsqrt.pop %v654
  %v660 = vrsqrt.pop %v655
  %v661 = vrsqrt.pop %v656
  %v662 = vmul.f32 %v622, %v657
  %v663 = vmul.f32 %v623, %v658
  %v664 = vmul.f32 %v624, %v659
  %v665 = vmul.f32 %v625, %v660
  %v666 = vmul.f32 %v626, %v661
  %v668 = vlaneseq
  %v669 = vshrl.u32 %v668, 7
  %v670 = vsub.s32 0, %v669
  %v671 = vrot.slane %v532, %v670
  %v673 = vmul.f32 %v662, %v671
  %v674 = vmul.f32 %v663, %v671
  %v675 = vmul.f32 %v664, %v671
  %v676 = vmul.f32 %v665, %v671
  %v677 = vmul.f32 %v666, %v671
  %v679 = vlaneseq
  %v680 = vshrl.u32 %v679, 7
  %v681 = vsub.s32 0, %v680
  %v682 = vrot.slane %v533, %v681
  %v684 = vadd.f32 %v673, %v682
  %v685 = vadd.f32 %v674, %v682
  %v686 = vadd.f32 %v675, %v682
  %v687 = vadd.f32 %v676, %v682
  %v688 = vadd.f32 %v677, %v682
  %v689 = vpack.c.bf16 %v685, %v684
  %v690 = vpack.c.bf16 %v687, %v686
  %v691 = vpack.c.bf16 %v688, %v688
  %v693 = vlaneseq
  %v694 = vshrl.u32 %v693, 7
  %v695 = vsub.s32 0, %v694
  %v696 = vrot.slane %v542, %v695
  %v697 = vlaneseq
  %v698 = vshrl.u32 %v697, 7
  %v699 = vsub.s32 1, %v698
  %v700 = vrot.slane %v542, %v699
  %v711 = vunpack.c.l.b16 %v534
  %v712 = vunpack.c.h.b16 %v534
  %v713 = vunpack.c.l.b16 %v535
  %v714 = vunpack.c.h.b16 %v535
  %v715 = vunpack.c.l.b16 %v536
  %v716 = vunpack.c.h.b16 %v536
  %v717 = vunpack.c.l.b16 %v537
  %v718 = vunpack.c.h.b16 %v537
  %v719 = vunpack.c.l.b16 %v538
  %v720 = vunpack.c.h.b16 %v538
  %v721 = vunpack.c.l.b16 %v539
  %v722 = vunpack.c.h.b16 %v539
  %v723 = vunpack.c.l.b16 %v540
  %v724 = vunpack.c.h.b16 %v540
  %v725 = vunpack.c.l.b16 %v541
  %v726 = vunpack.c.h.b16 %v541
  %v727 = vpack.c.b16 %v713, %v711
  %v728 = vpack.c.b16 %v714, %v712
  %v729 = vpack.c.b16 %v717, %v715
  %v730 = vpack.c.b16 %v718, %v716
  %v731 = vpack.c.b16 %v721, %v719
  %v732 = vpack.c.b16 %v722, %v720
  %v733 = vpack.c.b16 %v725, %v723
  %v734 = vpack.c.b16 %v726, %v724
  %v744 = vsel %vm134, %v689, 0
  %v747 = vsel %vm134, %v690, 0
  %v750 = vsel %vm134, %v691, 0
  %752 = vmatprep.subr.bf16.mxu0 %v728
  %753 = vmatpush1.bf16.msra.mxu0 %v727
  %754 = vmatprep.subr.bf16.mxu0 %v730
  %755 = vmatpush1.bf16.msra.mxu0 %v729
  %756 = vmatprep.subr.bf16.mxu0 %v732
  %757 = vmatpush1.bf16.msra.mxu0 %v731
  %758 = vmatprep.subr.bf16.mxu0 %v734
  %759 = vmatpush1.bf16.msra.mxu0 %v733
  %760 = vmatprep.subr.bf16.mxu0 0
  %761 = vmatpush1.bf16.msra.mxu0 0
  %762 = vmatprep.subr.bf16.mxu0 0
  %763 = vmatpush1.bf16.msra.mxu0 0
  %764 = vmatprep.subr.bf16.mxu0 0
  %765 = vmatpush1.bf16.msra.mxu0 0
  %766 = vmatprep.subr.bf16.mxu0 0
  %767 = vmatpush1.bf16.msra.mxu0 0
  %768 = vmatprep.subr.bf16.mxu0 0
  %769 = vmatpush1.bf16.msra.mxu0 0
  %770 = vmatprep.subr.bf16.mxu0 0
  %771 = vmatpush1.bf16.msra.mxu0 0
  %772 = vmatprep.subr.bf16.mxu0 0
  %773 = vmatpush1.bf16.msra.mxu0 0
  %774 = vmatprep.subr.bf16.mxu0 0
  %775 = vmatpush1.bf16.msra.mxu0 0
  %776 = vmatprep.subr.bf16.mxu0 0
  %777 = vmatpush1.bf16.msra.mxu0 0
  %778 = vmatprep.subr.bf16.mxu0 0
  %779 = vmatpush1.bf16.msra.mxu0 0
  %780 = vmatprep.subr.bf16.mxu0 0
  %781 = vmatpush1.bf16.msra.mxu0 0
  %782 = vmatprep.subr.bf16.mxu0 0
  %783 = vmatpush1.bf16.msra.mxu0 0
  %784 = vmatprep.mubr.bf16.mxu0 0
  %785 = vmatmul.mubr.bf16.gmra.mrb[0].mxu0 %v744
  %v786 = vpop.f32.mrb[0].mxu0
  %v787 = vadd.f32 %v696, %v786
  %v788 = vpop.f32.mrb[0].mxu0
  %v789 = vadd.f32 %v700, %v788
  %v790 = vpop.f32.mrb[0].mxu0
  %v791 = vadd.f32 %v696, %v790
  %v792 = vpop.f32.mrb[0].mxu0
  %v793 = vadd.f32 %v700, %v792
  %794 = vmatprep.mubr.bf16.mxu0 0
  %795 = vmatmul.mubr.bf16.gmra.mrb[0].mxu0 %v747
  %v796 = vpop.f32.mrb[0].mxu0
  %v797 = vadd.f32 %v696, %v796
  %v798 = vpop.f32.mrb[0].mxu0
  %v799 = vadd.f32 %v700, %v798
  %v800 = vpop.f32.mrb[0].mxu0
  %v801 = vadd.f32 %v696, %v800
  %v802 = vpop.f32.mrb[0].mxu0
  %v803 = vadd.f32 %v700, %v802
  %804 = vmatprep.mubr.bf16.mxu0 0
  %805 = vmatmul.mubr.bf16.gmra.mrb[0].mxu0 %v750
  %v806 = vpop.f32.mrb[0].mxu0
  %v807 = vadd.f32 %v696, %v806
  %v808 = vpop.f32.mrb[0].mxu0
  %v809 = vadd.f32 %v700, %v808
  %v810 = vpop.f32.mrb[0].mxu0
  %v811 = vpop.f32.mrb[0].mxu0
  %812 = vdwg.mxu0
  %v813 = vmul.f32 %v787, 0.25
  %v814 = vmul.f32 %v791, 0.25
  %v815 = vmul.f32 %v797, 0.25
  %v816 = vmul.f32 %v801, 0.25
  %v817 = vmul.f32 %v807, 0.25
  %v818 = vpack.c.bf16 %v814, %v813
  %v819 = vpack.c.bf16 %v816, %v815
  %v820 = vpack.c.bf16 %v817, %v817
  %v821 = vpack.c.bf16 %v791, %v787
  %v822 = vpack.c.bf16 %v801, %v797
  %v823 = vpack.c.bf16 %v807, %v807
  %827 = vrot.lane.b32.xlu0 %v821, 64
  %v828 = vpop.permute.xlu0 %827
  %829 = vrot.lane.b32.xlu0 %v822, 64
  %v830 = vpop.permute.xlu0 %829
  %831 = vrot.lane.b32.xlu0 %v823, 64
  %v832 = vpop.permute.xlu0 %831
  %vm833 = vcmask 130048
  %v835 = vsel %vm833, %v818, 0
  %v838 = vsel %vm833, %v819, 0
  %v841 = vsel %vm833, %v820, 0
  %v844 = vsel %vm833, %v828, 0
  %v847 = vsel %vm833, %v830, 0
  %v850 = vsel %vm833, %v832, 0
  %852 = vmatprep.subr.bf16.mxu0 0
  %853 = vmatpush1.bf16.xpose.msra.mxu0 %v844
  %854 = vmatprep.subr.bf16.mxu0 0
  %855 = vmatpush1.bf16.xpose.msra.mxu0 %v847
  %856 = vmatprep.subr.bf16.mxu0 0
  %857 = vmatpush1.bf16.xpose.msra.mxu0 %v850
  %858 = vmatprep.subr.bf16.mxu0 0
  %859 = vmatpush1.bf16.xpose.msra.mxu0 0
  %860 = vmatprep.subr.bf16.mxu0 0
  %861 = vmatpush1.bf16.xpose.msra.mxu0 0
  %862 = vmatprep.subr.bf16.mxu0 0
  %863 = vmatpush1.bf16.xpose.msra.mxu0 0
  %864 = vmatprep.subr.bf16.mxu0 0
  %865 = vmatpush1.bf16.xpose.msra.mxu0 0
  %866 = vmatprep.subr.bf16.mxu0 0
  %867 = vmatpush1.bf16.xpose.msra.mxu0 0
  %868 = vmatprep.subr.bf16.mxu0 0
  %869 = vmatpush1.bf16.xpose.msra.mxu0 0
  %870 = vmatprep.subr.bf16.mxu0 0
  %871 = vmatpush1.bf16.xpose.msra.mxu0 0
  %872 = vmatprep.subr.bf16.mxu0 0
  %873 = vmatpush1.bf16.xpose.msra.mxu0 0
  %874 = vmatprep.subr.bf16.mxu0 0
  %875 = vmatpush1.bf16.xpose.msra.mxu0 0
  %876 = vmatprep.subr.bf16.mxu0 0
  %877 = vmatpush1.bf16.xpose.msra.mxu0 0
  %878 = vmatprep.subr.bf16.mxu0 0
  %879 = vmatpush1.bf16.xpose.msra.mxu0 0
  %880 = vmatprep.subr.bf16.mxu0 0
  %881 = vmatpush1.bf16.xpose.msra.mxu0 0
  %882 = vmatprep.subr.bf16.mxu0 0
  %883 = vmatpush1.bf16.xpose.msra.mxu0 0
  %884 = vmatprep.mubr.bf16.mxu0 0
  %885 = vmatmul.mubr.bf16.gmra.mrb[0].mxu0 %v835
  %v886 = vpop.f32.mrb[0].mxu0
  %v887 = vadd.f32 %v596, %v886
  %v888 = vpop.f32.mrb[0].mxu0
  %v889 = vpop.f32.mrb[0].mxu0
  %v890 = vadd.f32 %v597, %v889
  %v891 = vpop.f32.mrb[0].mxu0
  %892 = vmatprep.mubr.bf16.mxu0 0
  %893 = vmatmul.mubr.bf16.gmra.mrb[0].mxu0 %v838
  %v894 = vpop.f32.mrb[0].mxu0
  %v895 = vadd.f32 %v598, %v894
  %v896 = vpop.f32.mrb[0].mxu0
  %v897 = vpop.f32.mrb[0].mxu0
  %v898 = vadd.f32 %v599, %v897
  %v899 = vpop.f32.mrb[0].mxu0
  %900 = vmatprep.mubr.bf16.mxu0 0
  %901 = vmatmul.mubr.bf16.gmra.mrb[0].mxu0 %v841
  %v902 = vpop.f32.mrb[0].mxu0
  %v903 = vadd.f32 %v600, %v902
  %v904 = vpop.f32.mrb[0].mxu0
  %v905 = vpop.f32.mrb[0].mxu0
  %v906 = vpop.f32.mrb[0].mxu0
  %907 = vdwg.mxu0
  %vm908 = vcmask 326656
  %v909 = vsel %vm908, %v887, -inf
  %910 = vmax.xlane.f32.xlu0 %v909
  %v911 = vpop.xlane.xlu0 %910
  %v912 = vsel %vm908, %v890, -inf
  %913 = vmax.xlane.f32.xlu0 %v912
  %v914 = vpop.xlane.xlu0 %913
  %v915 = vsel %vm908, %v895, -inf
  %916 = vmax.xlane.f32.xlu0 %v915
  %v917 = vpop.xlane.xlu0 %916
  %v918 = vsel %vm908, %v898, -inf
  %919 = vmax.xlane.f32.xlu0 %v918
  %v920 = vpop.xlane.xlu0 %919
  %v921 = vsel %vm908, %v903, -inf
  %922 = vmax.xlane.f32.xlu0 %v921
  %v923 = vpop.xlane.xlu0 %922
  %v924 = vsub.f32 %v887, %v911
  %v925 = vsub.f32 %v890, %v914
  %v926 = vsub.f32 %v895, %v917
  %v927 = vsub.f32 %v898, %v920
  %v928 = vsub.f32 %v903, %v923
  %v929 = vmul.f32 %v924, 1.442695
  %v930 = vpow.pop %v929
  %v931 = vmul.f32 %v925, 1.442695
  %v932 = vpow.pop %v931
  %v933 = vmul.f32 %v926, 1.442695
  %v934 = vpow.pop %v933
  %v935 = vmul.f32 %v927, 1.442695
  %v936 = vpow.pop %v935
  %v937 = vmul.f32 %v928, 1.442695
  %v938 = vpow.pop %v937
  %v939 = vsel %vm908, %v930, 0.0
  %940 = vadd.xlane.f32.xlu0 %v939
  %v941 = vpop.xlane.xlu0 %940
  %v942 = vsel %vm908, %v932, 0.0
  %943 = vadd.xlane.f32.xlu0 %v942
  %v944 = vpop.xlane.xlu0 %943
  %v945 = vsel %vm908, %v934, 0.0
  %946 = vadd.xlane.f32.xlu0 %v945
  %v947 = vpop.xlane.xlu0 %946
  %v948 = vsel %vm908, %v936, 0.0
  %949 = vadd.xlane.f32.xlu0 %v948
  %v950 = vpop.xlane.xlu0 %949
  %v951 = vsel %vm908, %v938, 0.0
  %952 = vadd.xlane.f32.xlu0 %v951
  %v953 = vpop.xlane.xlu0 %952
  %v954 = vrcp.pop %v941
  %v955 = vrcp.pop %v944
  %v956 = vrcp.pop %v947
  %v957 = vrcp.pop %v950
  %v958 = vrcp.pop %v953
  %v959 = vmul.f32 %v930, %v954
  %v960 = vmul.f32 %v932, %v955
  %v961 = vmul.f32 %v934, %v956
  %v962 = vmul.f32 %v936, %v957
  %v963 = vmul.f32 %v938, %v958
  %v964 = vpack.c.bf16 %v960, %v959
  %v965 = vpack.c.bf16 %v962, %v961
  %v966 = vpack.c.bf16 %v963, %v963
  %v967 = vpack.c.bf16 %v793, %v789
  %v968 = vpack.c.bf16 %v803, %v799
  %v969 = vpack.c.bf16 %v809, %v809
  %v971 = vsel %vm908, %v964, 0
  %v974 = vsel %vm908, %v965, 0
  %v977 = vsel %vm908, %v966, 0
  %vm979 = vcmask 1043456
  %v981 = vsel %vm979, %v969, 0
  %983 = vmatprep.subr.bf16.mxu0 0
  %984 = vmatpush1.bf16.msra.mxu0 %v967
  %985 = vmatprep.subr.bf16.mxu0 0
  %986 = vmatpush1.bf16.msra.mxu0 %v968
  %987 = vmatprep.subr.bf16.mxu0 0
  %988 = vmatpush1.bf16.msra.mxu0 %v981
  %989 = vmatprep.subr.bf16.mxu0 0
  %990 = vmatpush1.bf16.msra.mxu0 0
  %991 = vmatprep.subr.bf16.mxu0 0
  %992 = vmatpush1.bf16.msra.mxu0 0
  %993 = vmatprep.subr.bf16.mxu0 0
  %994 = vmatpush1.bf16.msra.mxu0 0
  %995 = vmatprep.subr.bf16.mxu0 0
  %996 = vmatpush1.bf16.msra.mxu0 0
  %997 = vmatprep.subr.bf16.mxu0 0
  %998 = vmatpush1.bf16.msra.mxu0 0
  %999 = vmatprep.subr.bf16.mxu0 0
  %1000 = vmatpush1.bf16.msra.mxu0 0
  %1001 = vmatprep.subr.bf16.mxu0 0
  %1002 = vmatpush1.bf16.msra.mxu0 0
  %1003 = vmatprep.subr.bf16.mxu0 0
  %1004 = vmatpush1.bf16.msra.mxu0 0
  %1005 = vmatprep.subr.bf16.mxu0 0
  %1006 = vmatpush1.bf16.msra.mxu0 0
  %1007 = vmatprep.subr.bf16.mxu0 0
  %1008 = vmatpush1.bf16.msra.mxu0 0
  %1009 = vmatprep.subr.bf16.mxu0 0
  %1010 = vmatpush1.bf16.msra.mxu0 0
  %1011 = vmatprep.subr.bf16.mxu0 0
  %1012 = vmatpush1.bf16.msra.mxu0 0
  %1013 = vmatprep.subr.bf16.mxu0 0
  %1014 = vmatpush1.bf16.msra.mxu0 0
  %1015 = vmatprep.mubr.bf16.mxu0 0
  %1016 = vmatmul.mubr.bf16.gmra.mrb[0].mxu0 %v971
  %v1017 = vpop.f32.mrb[0].mxu0
  %v1018 = vadd.f32 0.0, %v1017
  %v1019 = vpop.f32.mrb[0].mxu0
  %v1020 = vpop.f32.mrb[0].mxu0
  %v1021 = vadd.f32 0.0, %v1020
  %v1022 = vpop.f32.mrb[0].mxu0
  %1023 = vmatprep.mubr.bf16.mxu0 0
  %1024 = vmatmul.mubr.bf16.gmra.mrb[0].mxu0 %v974
  %v1025 = vpop.f32.mrb[0].mxu0
  %v1026 = vadd.f32 0.0, %v1025
  %v1027 = vpop.f32.mrb[0].mxu0
  %v1028 = vpop.f32.mrb[0].mxu0
  %v1029 = vadd.f32 0.0, %v1028
  %v1030 = vpop.f32.mrb[0].mxu0
  %1031 = vmatprep.mubr.bf16.mxu0 0
  %1032 = vmatmul.mubr.bf16.gmra.mrb[0].mxu0 %v977
  %v1033 = vpop.f32.mrb[0].mxu0
  %v1034 = vadd.f32 0.0, %v1033
  %v1035 = vpop.f32.mrb[0].mxu0
  %v1036 = vpop.f32.mrb[0].mxu0
  %v1037 = vpop.f32.mrb[0].mxu0
  %1038 = vdwg.mxu0
  %1042 = vrot.lane.b32.xlu0 %v818, 112
  %v1043 = vpop.permute.xlu0 %1042
  %1044 = vrot.lane.b32.xlu0 %v819, 112
  %v1045 = vpop.permute.xlu0 %1044
  %1046 = vrot.lane.b32.xlu0 %v820, 112
  %v1047 = vpop.permute.xlu0 %1046
  %1048 = vrot.lane.b32.xlu0 %v821, 48
  %v1049 = vpop.permute.xlu0 %1048
  %1050 = vrot.lane.b32.xlu0 %v822, 48
  %v1051 = vpop.permute.xlu0 %1050
  %1052 = vrot.lane.b32.xlu0 %v823, 48
  %v1053 = vpop.permute.xlu0 %1052
  %v1055 = vsel %vm833, %v1043, 0
  %v1058 = vsel %vm833, %v1045, 0
  %v1061 = vsel %vm833, %v1047, 0
  %v1064 = vsel %vm833, %v1049, 0
  %v1067 = vsel %vm833, %v1051, 0
  %v1070 = vsel %vm833, %v1053, 0
  %1072 = vmatprep.subr.bf16.mxu0 0
  %1073 = vmatpush1.bf16.xpose.msra.mxu0 %v1064
  %1074 = vmatprep.subr.bf16.mxu0 0
  %1075 = vmatpush1.bf16.xpose.msra.mxu0 %v1067
  %1076 = vmatprep.subr.bf16.mxu0 0
  %1077 = vmatpush1.bf16.xpose.msra.mxu0 %v1070
  %1078 = vmatprep.subr.bf16.mxu0 0
  %1079 = vmatpush1.bf16.xpose.msra.mxu0 0
  %1080 = vmatprep.subr.bf16.mxu0 0
  %1081 = vmatpush1.bf16.xpose.msra.mxu0 0
  %1082 = vmatprep.subr.bf16.mxu0 0
  %1083 = vmatpush1.bf16.xpose.msra.mxu0 0
  %1084 = vmatprep.subr.bf16.mxu0 0
  %1085 = vmatpush1.bf16.xpose.msra.mxu0 0
  %1086 = vmatprep.subr.bf16.mxu0 0
  %1087 = vmatpush1.bf16.xpose.msra.mxu0 0
  %1088 = vmatprep.subr.bf16.mxu0 0
  %1089 = vmatpush1.bf16.xpose.msra.mxu0 0
  %1090 = vmatprep.subr.bf16.mxu0 0
  %1091 = vmatpush1.bf16.xpose.msra.mxu0 0
  %1092 = vmatprep.subr.bf16.mxu0 0
  %1093 = vmatpush1.bf16.xpose.msra.mxu0 0
  %1094 = vmatprep.subr.bf16.mxu0 0
  %1095 = vmatpush1.bf16.xpose.msra.mxu0 0
  %1096 = vmatprep.subr.bf16.mxu0 0
  %1097 = vmatpush1.bf16.xpose.msra.mxu0 0
  %1098 = vmatprep.subr.bf16.mxu0 0
  %1099 = vmatpush1.bf16.xpose.msra.mxu0 0
  %1100 = vmatprep.subr.bf16.mxu0 0
  %1101 = vmatpush1.bf16.xpose.msra.mxu0 0
  %1102 = vmatprep.subr.bf16.mxu0 0
  %1103 = vmatpush1.bf16.xpose.msra.mxu0 0
  %1104 = vmatprep.mubr.bf16.mxu0 0
  %1105 = vmatmul.mubr.bf16.gmra.mrb[0].mxu0 %v1055
  %v1106 = vpop.f32.mrb[0].mxu0
  %v1107 = vadd.f32 %v596, %v1106
  %v1108 = vpop.f32.mrb[0].mxu0
  %v1109 = vpop.f32.mrb[0].mxu0
  %v1110 = vadd.f32 %v597, %v1109
  %v1111 = vpop.f32.mrb[0].mxu0
  %1112 = vmatprep.mubr.bf16.mxu0 0
  %1113 = vmatmul.mubr.bf16.gmra.mrb[0].mxu0 %v1058
  %v1114 = vpop.f32.mrb[0].mxu0
  %v1115 = vadd.f32 %v598, %v1114
  %v1116 = vpop.f32.mrb[0].mxu0
  %v1117 = vpop.f32.mrb[0].mxu0
  %v1118 = vadd.f32 %v599, %v1117
  %v1119 = vpop.f32.mrb[0].mxu0
  %1120 = vmatprep.mubr.bf16.mxu0 0
  %1121 = vmatmul.mubr.bf16.gmra.mrb[0].mxu0 %v1061
  %v1122 = vpop.f32.mrb[0].mxu0
  %v1123 = vadd.f32 %v600, %v1122
  %v1124 = vpop.f32.mrb[0].mxu0
  %v1125 = vpop.f32.mrb[0].mxu0
  %v1126 = vpop.f32.mrb[0].mxu0
  %1127 = vdwg.mxu0
  %v1128 = vsel %vm908, %v1107, -inf
  %1129 = vmax.xlane.f32.xlu0 %v1128
  %v1130 = vpop.xlane.xlu0 %1129
  %v1131 = vsel %vm908, %v1110, -inf
  %1132 = vmax.xlane.f32.xlu0 %v1131
  %v1133 = vpop.xlane.xlu0 %1132
  %v1134 = vsel %vm908, %v1115, -inf
  %1135 = vmax.xlane.f32.xlu0 %v1134
  %v1136 = vpop.xlane.xlu0 %1135
  %v1137 = vsel %vm908, %v1118, -inf
  %1138 = vmax.xlane.f32.xlu0 %v1137
  %v1139 = vpop.xlane.xlu0 %1138
  %v1140 = vsel %vm908, %v1123, -inf
  %1141 = vmax.xlane.f32.xlu0 %v1140
  %v1142 = vpop.xlane.xlu0 %1141
  %v1143 = vsub.f32 %v1107, %v1130
  %v1144 = vsub.f32 %v1110, %v1133
  %v1145 = vsub.f32 %v1115, %v1136
  %v1146 = vsub.f32 %v1118, %v1139
  %v1147 = vsub.f32 %v1123, %v1142
  %v1148 = vmul.f32 %v1143, 1.442695
  %v1149 = vpow.pop %v1148
  %v1150 = vmul.f32 %v1144, 1.442695
  %v1151 = vpow.pop %v1150
  %v1152 = vmul.f32 %v1145, 1.442695
  %v1153 = vpow.pop %v1152
  %v1154 = vmul.f32 %v1146, 1.442695
  %v1155 = vpow.pop %v1154
  %v1156 = vmul.f32 %v1147, 1.442695
  %v1157 = vpow.pop %v1156
  %v1158 = vsel %vm908, %v1149, 0.0
  %1159 = vadd.xlane.f32.xlu0 %v1158
  %v1160 = vpop.xlane.xlu0 %1159
  %v1161 = vsel %vm908, %v1151, 0.0
  %1162 = vadd.xlane.f32.xlu0 %v1161
  %v1163 = vpop.xlane.xlu0 %1162
  %v1164 = vsel %vm908, %v1153, 0.0
  %1165 = vadd.xlane.f32.xlu0 %v1164
  %v1166 = vpop.xlane.xlu0 %1165
  %v1167 = vsel %vm908, %v1155, 0.0
  %1168 = vadd.xlane.f32.xlu0 %v1167
  %v1169 = vpop.xlane.xlu0 %1168
  %v1170 = vsel %vm908, %v1157, 0.0
  %1171 = vadd.xlane.f32.xlu0 %v1170
  %v1172 = vpop.xlane.xlu0 %1171
  %v1173 = vrcp.pop %v1160
  %v1174 = vrcp.pop %v1163
  %v1175 = vrcp.pop %v1166
  %v1176 = vrcp.pop %v1169
  %v1177 = vrcp.pop %v1172
  %v1178 = vmul.f32 %v1149, %v1173
  %v1179 = vmul.f32 %v1151, %v1174
  %v1180 = vmul.f32 %v1153, %v1175
  %v1181 = vmul.f32 %v1155, %v1176
  %v1182 = vmul.f32 %v1157, %v1177
  %v1183 = vpack.c.bf16 %v1179, %v1178
  %v1184 = vpack.c.bf16 %v1181, %v1180
  %v1185 = vpack.c.bf16 %v1182, %v1182
  %1189 = vrot.lane.b32.xlu0 %v967, 112
  %v1190 = vpop.permute.xlu0 %1189
  %1191 = vrot.lane.b32.xlu0 %v968, 112
  %v1192 = vpop.permute.xlu0 %1191
  %1193 = vrot.lane.b32.xlu0 %v969, 112
  %v1194 = vpop.permute.xlu0 %1193
  %v1198 = vsel %vm908, %v1183, 0
  %v1201 = vsel %vm908, %v1184, 0
  %v1204 = vsel %vm908, %v1185, 0
  %v1207 = vsel %vm979, %v1194, 0
  %1209 = vmatprep.subr.bf16.mxu0 0
  %1210 = vmatpush1.bf16.msra.mxu0 %v1190
  %1211 = vmatprep.subr.bf16.mxu0 0
  %1212 = vmatpush1.bf16.msra.mxu0 %v1192
  %1213 = vmatprep.subr.bf16.mxu0 0
  %1214 = vmatpush1.bf16.msra.mxu0 %v1207
  %1215 = vmatprep.subr.bf16.mxu0 0
  %1216 = vmatpush1.bf16.msra.mxu0 0
  %1217 = vmatprep.subr.bf16.mxu0 0
  %1218 = vmatpush1.bf16.msra.mxu0 0
  %1219 = vmatprep.subr.bf16.mxu0 0
  %1220 = vmatpush1.bf16.msra.mxu0 0
  %1221 = vmatprep.subr.bf16.mxu0 0
  %1222 = vmatpush1.bf16.msra.mxu0 0
  %1223 = vmatprep.subr.bf16.mxu0 0
  %1224 = vmatpush1.bf16.msra.mxu0 0
  %1225 = vmatprep.subr.bf16.mxu0 0
  %1226 = vmatpush1.bf16.msra.mxu0 0
  %1227 = vmatprep.subr.bf16.mxu0 0
  %1228 = vmatpush1.bf16.msra.mxu0 0
  %1229 = vmatprep.subr.bf16.mxu0 0
  %1230 = vmatpush1.bf16.msra.mxu0 0
  %1231 = vmatprep.subr.bf16.mxu0 0
  %1232 = vmatpush1.bf16.msra.mxu0 0
  %1233 = vmatprep.subr.bf16.mxu0 0
  %1234 = vmatpush1.bf16.msra.mxu0 0
  %1235 = vmatprep.subr.bf16.mxu0 0
  %1236 = vmatpush1.bf16.msra.mxu0 0
  %1237 = vmatprep.subr.bf16.mxu0 0
  %1238 = vmatpush1.bf16.msra.mxu0 0
  %1239 = vmatprep.subr.bf16.mxu0 0
  %1240 = vmatpush1.bf16.msra.mxu0 0
  %1241 = vmatprep.mubr.bf16.mxu0 0
  %1242 = vmatmul.mubr.bf16.gmra.mrb[0].mxu0 %v1198
  %v1243 = vpop.f32.mrb[0].mxu0
  %v1244 = vadd.f32 0.0, %v1243
  %v1245 = vpop.f32.mrb[0].mxu0
  %v1246 = vpop.f32.mrb[0].mxu0
  %v1247 = vadd.f32 0.0, %v1246
  %v1248 = vpop.f32.mrb[0].mxu0
  %1249 = vmatprep.mubr.bf16.mxu0 0
  %1250 = vmatmul.mubr.bf16.gmra.mrb[0].mxu0 %v1201
  %v1251 = vpop.f32.mrb[0].mxu0
  %v1252 = vadd.f32 0.0, %v1251
  %v1253 = vpop.f32.mrb[0].mxu0
  %v1254 = vpop.f32.mrb[0].mxu0
  %v1255 = vadd.f32 0.0, %v1254
  %v1256 = vpop.f32.mrb[0].mxu0
  %1257 = vmatprep.mubr.bf16.mxu0 0
  %1258 = vmatmul.mubr.bf16.gmra.mrb[0].mxu0 %v1204
  %v1259 = vpop.f32.mrb[0].mxu0
  %v1260 = vadd.f32 0.0, %v1259
  %v1261 = vpop.f32.mrb[0].mxu0
  %v1262 = vpop.f32.mrb[0].mxu0
  %v1263 = vpop.f32.mrb[0].mxu0
  %1264 = vdwg.mxu0
  %1265 = vrot.lane.b32.xlu0 %v818, 96
  %v1266 = vpop.permute.xlu0 %1265
  %1267 = vrot.lane.b32.xlu0 %v819, 96
  %v1268 = vpop.permute.xlu0 %1267
  %1269 = vrot.lane.b32.xlu0 %v820, 96
  %v1270 = vpop.permute.xlu0 %1269
  %1271 = vrot.lane.b32.xlu0 %v821, 32
  %v1272 = vpop.permute.xlu0 %1271
  %1273 = vrot.lane.b32.xlu0 %v822, 32
  %v1274 = vpop.permute.xlu0 %1273
  %1275 = vrot.lane.b32.xlu0 %v823, 32
  %v1276 = vpop.permute.xlu0 %1275
  %v1278 = vsel %vm833, %v1266, 0
  %v1281 = vsel %vm833, %v1268, 0
  %v1284 = vsel %vm833, %v1270, 0
  %v1287 = vsel %vm833, %v1272, 0
  %v1290 = vsel %vm833, %v1274, 0
  %v1293 = vsel %vm833, %v1276, 0
  %1295 = vmatprep.subr.bf16.mxu0 0
  %1296 = vmatpush1.bf16.xpose.msra.mxu0 %v1287
  %1297 = vmatprep.subr.bf16.mxu0 0
  %1298 = vmatpush1.bf16.xpose.msra.mxu0 %v1290
  %1299 = vmatprep.subr.bf16.mxu0 0
  %1300 = vmatpush1.bf16.xpose.msra.mxu0 %v1293
  %1301 = vmatprep.subr.bf16.mxu0 0
  %1302 = vmatpush1.bf16.xpose.msra.mxu0 0
  %1303 = vmatprep.subr.bf16.mxu0 0
  %1304 = vmatpush1.bf16.xpose.msra.mxu0 0
  %1305 = vmatprep.subr.bf16.mxu0 0
  %1306 = vmatpush1.bf16.xpose.msra.mxu0 0
  %1307 = vmatprep.subr.bf16.mxu0 0
  %1308 = vmatpush1.bf16.xpose.msra.mxu0 0
  %1309 = vmatprep.subr.bf16.mxu0 0
  %1310 = vmatpush1.bf16.xpose.msra.mxu0 0
  %1311 = vmatprep.subr.bf16.mxu0 0
  %1312 = vmatpush1.bf16.xpose.msra.mxu0 0
  %1313 = vmatprep.subr.bf16.mxu0 0
  %1314 = vmatpush1.bf16.xpose.msra.mxu0 0
  %1315 = vmatprep.subr.bf16.mxu0 0
  %1316 = vmatpush1.bf16.xpose.msra.mxu0 0
  %1317 = vmatprep.subr.bf16.mxu0 0
  %1318 = vmatpush1.bf16.xpose.msra.mxu0 0
  %1319 = vmatprep.subr.bf16.mxu0 0
  %1320 = vmatpush1.bf16.xpose.msra.mxu0 0
  %1321 = vmatprep.subr.bf16.mxu0 0
  %1322 = vmatpush1.bf16.xpose.msra.mxu0 0
  %1323 = vmatprep.subr.bf16.mxu0 0
  %1324 = vmatpush1.bf16.xpose.msra.mxu0 0
  %1325 = vmatprep.subr.bf16.mxu0 0
  %1326 = vmatpush1.bf16.xpose.msra.mxu0 0
  %1327 = vmatprep.mubr.bf16.mxu0 0
  %1328 = vmatmul.mubr.bf16.gmra.mrb[0].mxu0 %v1278
  %v1329 = vpop.f32.mrb[0].mxu0
  %v1330 = vadd.f32 %v596, %v1329
  %v1331 = vpop.f32.mrb[0].mxu0
  %v1332 = vpop.f32.mrb[0].mxu0
  %v1333 = vadd.f32 %v597, %v1332
  %v1334 = vpop.f32.mrb[0].mxu0
  %1335 = vmatprep.mubr.bf16.mxu0 0
  %1336 = vmatmul.mubr.bf16.gmra.mrb[0].mxu0 %v1281
  %v1337 = vpop.f32.mrb[0].mxu0
  %v1338 = vadd.f32 %v598, %v1337
  %v1339 = vpop.f32.mrb[0].mxu0
  %v1340 = vpop.f32.mrb[0].mxu0
  %v1341 = vadd.f32 %v599, %v1340
  %v1342 = vpop.f32.mrb[0].mxu0
  %1343 = vmatprep.mubr.bf16.mxu0 0
  %1344 = vmatmul.mubr.bf16.gmra.mrb[0].mxu0 %v1284
  %v1345 = vpop.f32.mrb[0].mxu0
  %v1346 = vadd.f32 %v600, %v1345
  %v1347 = vpop.f32.mrb[0].mxu0
  %v1348 = vpop.f32.mrb[0].mxu0
  %v1349 = vpop.f32.mrb[0].mxu0
  %1350 = vdwg.mxu0
  %v1351 = vsel %vm908, %v1330, -inf
  %1352 = vmax.xlane.f32.xlu0 %v1351
  %v1353 = vpop.xlane.xlu0 %1352
  %v1354 = vsel %vm908, %v1333, -inf
  %1355 = vmax.xlane.f32.xlu0 %v1354
  %v1356 = vpop.xlane.xlu0 %1355
  %v1357 = vsel %vm908, %v1338, -inf
  %1358 = vmax.xlane.f32.xlu0 %v1357
  %v1359 = vpop.xlane.xlu0 %1358
  %v1360 = vsel %vm908, %v1341, -inf
  %1361 = vmax.xlane.f32.xlu0 %v1360
  %v1362 = vpop.xlane.xlu0 %1361
  %v1363 = vsel %vm908, %v1346, -inf
  %1364 = vmax.xlane.f32.xlu0 %v1363
  %v1365 = vpop.xlane.xlu0 %1364
  %v1366 = vsub.f32 %v1330, %v1353
  %v1367 = vsub.f32 %v1333, %v1356
  %v1368 = vsub.f32 %v1338, %v1359
  %v1369 = vsub.f32 %v1341, %v1362
  %v1370 = vsub.f32 %v1346, %v1365
  %v1371 = vmul.f32 %v1366, 1.442695
  %v1372 = vpow.pop %v1371
  %v1373 = vmul.f32 %v1367, 1.442695
  %v1374 = vpow.pop %v1373
  %v1375 = vmul.f32 %v1368, 1.442695
  %v1376 = vpow.pop %v1375
  %v1377 = vmul.f32 %v1369, 1.442695
  %v1378 = vpow.pop %v1377
  %v1379 = vmul.f32 %v1370, 1.442695
  %v1380 = vpow.pop %v1379
  %v1381 = vsel %vm908, %v1372, 0.0
  %1382 = vadd.xlane.f32.xlu0 %v1381
  %v1383 = vpop.xlane.xlu0 %1382
  %v1384 = vsel %vm908, %v1374, 0.0
  %1385 = vadd.xlane.f32.xlu0 %v1384
  %v1386 = vpop.xlane.xlu0 %1385
  %v1387 = vsel %vm908, %v1376, 0.0
  %1388 = vadd.xlane.f32.xlu0 %v1387
  %v1389 = vpop.xlane.xlu0 %1388
  %v1390 = vsel %vm908, %v1378, 0.0
  %1391 = vadd.xlane.f32.xlu0 %v1390
  %v1392 = vpop.xlane.xlu0 %1391
  %v1393 = vsel %vm908, %v1380, 0.0
  %1394 = vadd.xlane.f32.xlu0 %v1393
  %v1395 = vpop.xlane.xlu0 %1394
  %v1396 = vrcp.pop %v1383
  %v1397 = vrcp.pop %v1386
  %v1398 = vrcp.pop %v1389
  %v1399 = vrcp.pop %v1392
  %v1400 = vrcp.pop %v1395
  %v1401 = vmul.f32 %v1372, %v1396
  %v1402 = vmul.f32 %v1374, %v1397
  %v1403 = vmul.f32 %v1376, %v1398
  %v1404 = vmul.f32 %v1378, %v1399
  %v1405 = vmul.f32 %v1380, %v1400
  %v1406 = vpack.c.bf16 %v1402, %v1401
  %v1407 = vpack.c.bf16 %v1404, %v1403
  %v1408 = vpack.c.bf16 %v1405, %v1405
  %1409 = vrot.lane.b32.xlu0 %v967, 96
  %v1410 = vpop.permute.xlu0 %1409
  %1411 = vrot.lane.b32.xlu0 %v968, 96
  %v1412 = vpop.permute.xlu0 %1411
  %1413 = vrot.lane.b32.xlu0 %v969, 96
  %v1414 = vpop.permute.xlu0 %1413
  %v1418 = vsel %vm908, %v1406, 0
  %v1421 = vsel %vm908, %v1407, 0
  %v1424 = vsel %vm908, %v1408, 0
  %v1427 = vsel %vm979, %v1414, 0
  %1429 = vmatprep.subr.bf16.mxu0 0
  %1430 = vmatpush1.bf16.msra.mxu0 %v1410
  %1431 = vmatprep.subr.bf16.mxu0 0
  %1432 = vmatpush1.bf16.msra.mxu0 %v1412
  %1433 = vmatprep.subr.bf16.mxu0 0
  %1434 = vmatpush1.bf16.msra.mxu0 %v1427
  %1435 = vmatprep.subr.bf16.mxu0 0
  %1436 = vmatpush1.bf16.msra.mxu0 0
  %1437 = vmatprep.subr.bf16.mxu0 0
  %1438 = vmatpush1.bf16.msra.mxu0 0
  %1439 = vmatprep.subr.bf16.mxu0 0
  %1440 = vmatpush1.bf16.msra.mxu0 0
  %1441 = vmatprep.subr.bf16.mxu0 0
  %1442 = vmatpush1.bf16.msra.mxu0 0
  %1443 = vmatprep.subr.bf16.mxu0 0
  %1444 = vmatpush1.bf16.msra.mxu0 0
  %1445 = vmatprep.subr.bf16.mxu0 0
  %1446 = vmatpush1.bf16.msra.mxu0 0
  %1447 = vmatprep.subr.bf16.mxu0 0
  %1448 = vmatpush1.bf16.msra.mxu0 0
  %1449 = vmatprep.subr.bf16.mxu0 0
  %1450 = vmatpush1.bf16.msra.mxu0 0
  %1451 = vmatprep.subr.bf16.mxu0 0
  %1452 = vmatpush1.bf16.msra.mxu0 0
  %1453 = vmatprep.subr.bf16.mxu0 0
  %1454 = vmatpush1.bf16.msra.mxu0 0
  %1455 = vmatprep.subr.bf16.mxu0 0
  %1456 = vmatpush1.bf16.msra.mxu0 0
  %1457 = vmatprep.subr.bf16.mxu0 0
  %1458 = vmatpush1.bf16.msra.mxu0 0
  %1459 = vmatprep.subr.bf16.mxu0 0
  %1460 = vmatpush1.bf16.msra.mxu0 0
  %1461 = vmatprep.mubr.bf16.mxu0 0
  %1462 = vmatmul.mubr.bf16.gmra.mrb[0].mxu0 %v1418
  %v1463 = vpop.f32.mrb[0].mxu0
  %v1464 = vadd.f32 0.0, %v1463
  %v1465 = vpop.f32.mrb[0].mxu0
  %v1466 = vpop.f32.mrb[0].mxu0
  %v1467 = vadd.f32 0.0, %v1466
  %v1468 = vpop.f32.mrb[0].mxu0
  %1469 = vmatprep.mubr.bf16.mxu0 0
  %1470 = vmatmul.mubr.bf16.gmra.mrb[0].mxu0 %v1421
  %v1471 = vpop.f32.mrb[0].mxu0
  %v1472 = vadd.f32 0.0, %v1471
  %v1473 = vpop.f32.mrb[0].mxu0
  %v1474 = vpop.f32.mrb[0].mxu0
  %v1475 = vadd.f32 0.0, %v1474
  %v1476 = vpop.f32.mrb[0].mxu0
  %1477 = vmatprep.mubr.bf16.mxu0 0
  %1478 = vmatmul.mubr.bf16.gmra.mrb[0].mxu0 %v1424
  %v1479 = vpop.f32.mrb[0].mxu0
  %v1480 = vadd.f32 0.0, %v1479
  %v1481 = vpop.f32.mrb[0].mxu0
  %v1482 = vpop.f32.mrb[0].mxu0
  %v1483 = vpop.f32.mrb[0].mxu0
  %1484 = vdwg.mxu0
  %1485 = vrot.lane.b32.xlu0 %v818, 80
  %v1486 = vpop.permute.xlu0 %1485
  %1487 = vrot.lane.b32.xlu0 %v819, 80
  %v1488 = vpop.permute.xlu0 %1487
  %1489 = vrot.lane.b32.xlu0 %v820, 80
  %v1490 = vpop.permute.xlu0 %1489
  %1491 = vrot.lane.b32.xlu0 %v821, 16
  %v1492 = vpop.permute.xlu0 %1491
  %1493 = vrot.lane.b32.xlu0 %v822, 16
  %v1494 = vpop.permute.xlu0 %1493
  %1495 = vrot.lane.b32.xlu0 %v823, 16
  %v1496 = vpop.permute.xlu0 %1495
  %v1498 = vsel %vm833, %v1486, 0
  %v1501 = vsel %vm833, %v1488, 0
  %v1504 = vsel %vm833, %v1490, 0
  %v1507 = vsel %vm833, %v1492, 0
  %v1510 = vsel %vm833, %v1494, 0
  %v1513 = vsel %vm833, %v1496, 0
  %1515 = vmatprep.subr.bf16.mxu0 0
  %1516 = vmatpush1.bf16.xpose.msra.mxu0 %v1507
  %1517 = vmatprep.subr.bf16.mxu0 0
  %1518 = vmatpush1.bf16.xpose.msra.mxu0 %v1510
  %1519 = vmatprep.subr.bf16.mxu0 0
  %1520 = vmatpush1.bf16.xpose.msra.mxu0 %v1513
  %1521 = vmatprep.subr.bf16.mxu0 0
  %1522 = vmatpush1.bf16.xpose.msra.mxu0 0
  %1523 = vmatprep.subr.bf16.mxu0 0
  %1524 = vmatpush1.bf16.xpose.msra.mxu0 0
  %1525 = vmatprep.subr.bf16.mxu0 0
  %1526 = vmatpush1.bf16.xpose.msra.mxu0 0
  %1527 = vmatprep.subr.bf16.mxu0 0
  %1528 = vmatpush1.bf16.xpose.msra.mxu0 0
  %1529 = vmatprep.subr.bf16.mxu0 0
  %1530 = vmatpush1.bf16.xpose.msra.mxu0 0
  %1531 = vmatprep.subr.bf16.mxu0 0
  %1532 = vmatpush1.bf16.xpose.msra.mxu0 0
  %1533 = vmatprep.subr.bf16.mxu0 0
  %1534 = vmatpush1.bf16.xpose.msra.mxu0 0
  %1535 = vmatprep.subr.bf16.mxu0 0
  %1536 = vmatpush1.bf16.xpose.msra.mxu0 0
  %1537 = vmatprep.subr.bf16.mxu0 0
  %1538 = vmatpush1.bf16.xpose.msra.mxu0 0
  %1539 = vmatprep.subr.bf16.mxu0 0
  %1540 = vmatpush1.bf16.xpose.msra.mxu0 0
  %1541 = vmatprep.subr.bf16.mxu0 0
  %1542 = vmatpush1.bf16.xpose.msra.mxu0 0
  %1543 = vmatprep.subr.bf16.mxu0 0
  %1544 = vmatpush1.bf16.xpose.msra.mxu0 0
  %1545 = vmatprep.subr.bf16.mxu0 0
  %1546 = vmatpush1.bf16.xpose.msra.mxu0 0
  %1547 = vmatprep.mubr.bf16.mxu0 0
  %1548 = vmatmul.mubr.bf16.gmra.mrb[0].mxu0 %v1498
  %v1549 = vpop.f32.mrb[0].mxu0
  %v1550 = vadd.f32 %v596, %v1549
  %v1551 = vpop.f32.mrb[0].mxu0
  %v1552 = vpop.f32.mrb[0].mxu0
  %v1553 = vadd.f32 %v597, %v1552
  %v1554 = vpop.f32.mrb[0].mxu0
  %1555 = vmatprep.mubr.bf16.mxu0 0
  %1556 = vmatmul.mubr.bf16.gmra.mrb[0].mxu0 %v1501
  %v1557 = vpop.f32.mrb[0].mxu0
  %v1558 = vadd.f32 %v598, %v1557
  %v1559 = vpop.f32.mrb[0].mxu0
  %v1560 = vpop.f32.mrb[0].mxu0
  %v1561 = vadd.f32 %v599, %v1560
  %v1562 = vpop.f32.mrb[0].mxu0
  %1563 = vmatprep.mubr.bf16.mxu0 0
  %1564 = vmatmul.mubr.bf16.gmra.mrb[0].mxu0 %v1504
  %v1565 = vpop.f32.mrb[0].mxu0
  %v1566 = vadd.f32 %v600, %v1565
  %v1567 = vpop.f32.mrb[0].mxu0
  %v1568 = vpop.f32.mrb[0].mxu0
  %v1569 = vpop.f32.mrb[0].mxu0
  %1570 = vdwg.mxu0
  %v1571 = vsel %vm908, %v1550, -inf
  %1572 = vmax.xlane.f32.xlu0 %v1571
  %v1573 = vpop.xlane.xlu0 %1572
  %v1574 = vsel %vm908, %v1553, -inf
  %1575 = vmax.xlane.f32.xlu0 %v1574
  %v1576 = vpop.xlane.xlu0 %1575
  %v1577 = vsel %vm908, %v1558, -inf
  %1578 = vmax.xlane.f32.xlu0 %v1577
  %v1579 = vpop.xlane.xlu0 %1578
  %v1580 = vsel %vm908, %v1561, -inf
  %1581 = vmax.xlane.f32.xlu0 %v1580
  %v1582 = vpop.xlane.xlu0 %1581
  %v1583 = vsel %vm908, %v1566, -inf
  %1584 = vmax.xlane.f32.xlu0 %v1583
  %v1585 = vpop.xlane.xlu0 %1584
  %v1586 = vsub.f32 %v1550, %v1573
  %v1587 = vsub.f32 %v1553, %v1576
  %v1588 = vsub.f32 %v1558, %v1579
  %v1589 = vsub.f32 %v1561, %v1582
  %v1590 = vsub.f32 %v1566, %v1585
  %v1591 = vmul.f32 %v1586, 1.442695
  %v1592 = vpow.pop %v1591
  %v1593 = vmul.f32 %v1587, 1.442695
  %v1594 = vpow.pop %v1593
  %v1595 = vmul.f32 %v1588, 1.442695
  %v1596 = vpow.pop %v1595
  %v1597 = vmul.f32 %v1589, 1.442695
  %v1598 = vpow.pop %v1597
  %v1599 = vmul.f32 %v1590, 1.442695
  %v1600 = vpow.pop %v1599
  %v1601 = vsel %vm908, %v1592, 0.0
  %1602 = vadd.xlane.f32.xlu0 %v1601
  %v1603 = vpop.xlane.xlu0 %1602
  %v1604 = vsel %vm908, %v1594, 0.0
  %1605 = vadd.xlane.f32.xlu0 %v1604
  %v1606 = vpop.xlane.xlu0 %1605
  %v1607 = vsel %vm908, %v1596, 0.0
  %1608 = vadd.xlane.f32.xlu0 %v1607
  %v1609 = vpop.xlane.xlu0 %1608
  %v1610 = vsel %vm908, %v1598, 0.0
  %1611 = vadd.xlane.f32.xlu0 %v1610
  %v1612 = vpop.xlane.xlu0 %1611
  %v1613 = vsel %vm908, %v1600, 0.0
  %1614 = vadd.xlane.f32.xlu0 %v1613
  %v1615 = vpop.xlane.xlu0 %1614
  %v1616 = vrcp.pop %v1603
  %v1617 = vrcp.pop %v1606
  %v1618 = vrcp.pop %v1609
  %v1619 = vrcp.pop %v1612
  %v1620 = vrcp.pop %v1615
  %v1621 = vmul.f32 %v1592, %v1616
  %v1622 = vmul.f32 %v1594, %v1617
  %v1623 = vmul.f32 %v1596, %v1618
  %v1624 = vmul.f32 %v1598, %v1619
  %v1625 = vmul.f32 %v1600, %v1620
  %v1626 = vpack.c.bf16 %v1622, %v1621
  %v1627 = vpack.c.bf16 %v1624, %v1623
  %v1628 = vpack.c.bf16 %v1625, %v1625
  %1629 = vrot.lane.b32.xlu0 %v967, 80
  %v1630 = vpop.permute.xlu0 %1629
  %1631 = vrot.lane.b32.xlu0 %v968, 80
  %v1632 = vpop.permute.xlu0 %1631
  %1633 = vrot.lane.b32.xlu0 %v969, 80
  %v1634 = vpop.permute.xlu0 %1633
  %v1638 = vsel %vm908, %v1626, 0
  %v1641 = vsel %vm908, %v1627, 0
  %v1644 = vsel %vm908, %v1628, 0
  %v1647 = vsel %vm979, %v1634, 0
  %1649 = vmatprep.subr.bf16.mxu0 0
  %1650 = vmatpush1.bf16.msra.mxu0 %v1630
  %1651 = vmatprep.subr.bf16.mxu0 0
  %1652 = vmatpush1.bf16.msra.mxu0 %v1632
  %1653 = vmatprep.subr.bf16.mxu0 0
  %1654 = vmatpush1.bf16.msra.mxu0 %v1647
  %1655 = vmatprep.subr.bf16.mxu0 0
  %1656 = vmatpush1.bf16.msra.mxu0 0
  %1657 = vmatprep.subr.bf16.mxu0 0
  %1658 = vmatpush1.bf16.msra.mxu0 0
  %1659 = vmatprep.subr.bf16.mxu0 0
  %1660 = vmatpush1.bf16.msra.mxu0 0
  %1661 = vmatprep.subr.bf16.mxu0 0
  %1662 = vmatpush1.bf16.msra.mxu0 0
  %1663 = vmatprep.subr.bf16.mxu0 0
  %1664 = vmatpush1.bf16.msra.mxu0 0
  %1665 = vmatprep.subr.bf16.mxu0 0
  %1666 = vmatpush1.bf16.msra.mxu0 0
  %1667 = vmatprep.subr.bf16.mxu0 0
  %1668 = vmatpush1.bf16.msra.mxu0 0
  %1669 = vmatprep.subr.bf16.mxu0 0
  %1670 = vmatpush1.bf16.msra.mxu0 0
  %1671 = vmatprep.subr.bf16.mxu0 0
  %1672 = vmatpush1.bf16.msra.mxu0 0
  %1673 = vmatprep.subr.bf16.mxu0 0
  %1674 = vmatpush1.bf16.msra.mxu0 0
  %1675 = vmatprep.subr.bf16.mxu0 0
  %1676 = vmatpush1.bf16.msra.mxu0 0
  %1677 = vmatprep.subr.bf16.mxu0 0
  %1678 = vmatpush1.bf16.msra.mxu0 0
  %1679 = vmatprep.subr.bf16.mxu0 0
  %1680 = vmatpush1.bf16.msra.mxu0 0
  %1681 = vmatprep.mubr.bf16.mxu0 0
  %1682 = vmatmul.mubr.bf16.gmra.mrb[0].mxu0 %v1638
  %v1683 = vpop.f32.mrb[0].mxu0
  %v1684 = vadd.f32 0.0, %v1683
  %v1685 = vpop.f32.mrb[0].mxu0
  %v1686 = vpop.f32.mrb[0].mxu0
  %v1687 = vadd.f32 0.0, %v1686
  %v1688 = vpop.f32.mrb[0].mxu0
  %1689 = vmatprep.mubr.bf16.mxu0 0
  %1690 = vmatmul.mubr.bf16.gmra.mrb[0].mxu0 %v1641
  %v1691 = vpop.f32.mrb[0].mxu0
  %v1692 = vadd.f32 0.0, %v1691
  %v1693 = vpop.f32.mrb[0].mxu0
  %v1694 = vpop.f32.mrb[0].mxu0
  %v1695 = vadd.f32 0.0, %v1694
  %v1696 = vpop.f32.mrb[0].mxu0
  %1697 = vmatprep.mubr.bf16.mxu0 0
  %1698 = vmatmul.mubr.bf16.gmra.mrb[0].mxu0 %v1644
  %v1699 = vpop.f32.mrb[0].mxu0
  %v1700 = vadd.f32 0.0, %v1699
  %v1701 = vpop.f32.mrb[0].mxu0
  %v1702 = vpop.f32.mrb[0].mxu0
  %v1703 = vpop.f32.mrb[0].mxu0
  %1704 = vdwg.mxu0
  %1710 = vrot.lane.b32.xlu0 %v1244, 16
  %v1711 = vpop.permute.xlu0 %1710
  %1712 = vrot.lane.b32.xlu0 %v1247, 16
  %v1713 = vpop.permute.xlu0 %1712
  %1714 = vrot.lane.b32.xlu0 %v1252, 16
  %v1715 = vpop.permute.xlu0 %1714
  %1716 = vrot.lane.b32.xlu0 %v1255, 16
  %v1717 = vpop.permute.xlu0 %1716
  %1718 = vrot.lane.b32.xlu0 %v1260, 16
  %v1719 = vpop.permute.xlu0 %1718
  %1730 = vrot.lane.b32.xlu0 %v1464, 32
  %v1731 = vpop.permute.xlu0 %1730
  %1732 = vrot.lane.b32.xlu0 %v1467, 32
  %v1733 = vpop.permute.xlu0 %1732
  %1734 = vrot.lane.b32.xlu0 %v1472, 32
  %v1735 = vpop.permute.xlu0 %1734
  %1736 = vrot.lane.b32.xlu0 %v1475, 32
  %v1737 = vpop.permute.xlu0 %1736
  %1738 = vrot.lane.b32.xlu0 %v1480, 32
  %v1739 = vpop.permute.xlu0 %1738
  %1750 = vrot.lane.b32.xlu0 %v1684, 48
  %v1751 = vpop.permute.xlu0 %1750
  %1752 = vrot.lane.b32.xlu0 %v1687, 48
  %v1753 = vpop.permute.xlu0 %1752
  %1754 = vrot.lane.b32.xlu0 %v1692, 48
  %v1755 = vpop.permute.xlu0 %1754
  %1756 = vrot.lane.b32.xlu0 %v1695, 48
  %v1757 = vpop.permute.xlu0 %1756
  %1758 = vrot.lane.b32.xlu0 %v1700, 48
  %v1759 = vpop.permute.xlu0 %1758
  %v1765 = vsel %vm833, %v1018, %v1711
  %v1766 = vsel %vm833, %v1021, %v1713
  %v1767 = vsel %vm833, %v1026, %v1715
  %v1768 = vsel %vm833, %v1029, %v1717
  %v1769 = vsel %vm833, %v1034, %v1719
  %v1770 = vsel %vm348, %v1765, %v1731
  %v1771 = vsel %vm348, %v1766, %v1733
  %v1772 = vsel %vm348, %v1767, %v1735
  %v1773 = vsel %vm348, %v1768, %v1737
  %v1774 = vsel %vm348, %v1769, %v1739
  %vm1775 = vcmask 392192
  %v1776 = vsel %vm1775, %v1770, %v1751
  %v1777 = vsel %vm1775, %v1771, %v1753
  %v1778 = vsel %vm1775, %v1772, %v1755
  %v1779 = vsel %vm1775, %v1773, %v1757
  %v1780 = vsel %vm1775, %v1774, %v1759
  %v1781 = vpack.c.bf16 %v1777, %v1776
  %v1782 = vpack.c.bf16 %v1779, %v1778
  %v1783 = vpack.c.bf16 %v1780, %v1780
  %v1785 = vlaneseq
  %v1786 = vshrl.u32 %v1785, 7
  %v1787 = vsub.s32 0, %v1786
  %v1788 = vrot.slane %v551, %v1787
  %v1798 = vunpack.c.l.b16 %v543
  %v1799 = vunpack.c.l.b16 %v544
  %v1800 = vunpack.c.l.b16 %v545
  %v1801 = vunpack.c.l.b16 %v546
  %v1802 = vunpack.c.l.b16 %v547
  %v1803 = vunpack.c.l.b16 %v548
  %v1804 = vunpack.c.l.b16 %v549
  %v1805 = vunpack.c.l.b16 %v550
  %v1806 = vpack.c.b16 %v1799, %v1798
  %v1807 = vpack.c.b16 %v1801, %v1800
  %v1808 = vpack.c.b16 %v1803, %v1802
  %v1809 = vpack.c.b16 %v1805, %v1804
  %v1815 = vsel %vm134, %v1781, 0
  %v1818 = vsel %vm134, %v1782, 0
  %v1821 = vsel %vm134, %v1783, 0
  %1823 = vmatprep.subr.bf16.mxu0 0
  %1824 = vmatpush1.bf16.msra.mxu0 %v1806
  %1825 = vmatprep.subr.bf16.mxu0 0
  %1826 = vmatpush1.bf16.msra.mxu0 %v1807
  %1827 = vmatprep.subr.bf16.mxu0 0
  %1828 = vmatpush1.bf16.msra.mxu0 %v1808
  %1829 = vmatprep.subr.bf16.mxu0 0
  %1830 = vmatpush1.bf16.msra.mxu0 %v1809
  %1831 = vmatprep.subr.bf16.mxu0 0
  %1832 = vmatpush1.bf16.msra.mxu0 0
  %1833 = vmatprep.subr.bf16.mxu0 0
  %1834 = vmatpush1.bf16.msra.mxu0 0
  %1835 = vmatprep.subr.bf16.mxu0 0
  %1836 = vmatpush1.bf16.msra.mxu0 0
  %1837 = vmatprep.subr.bf16.mxu0 0
  %1838 = vmatpush1.bf16.msra.mxu0 0
  %1839 = vmatprep.subr.bf16.mxu0 0
  %1840 = vmatpush1.bf16.msra.mxu0 0
  %1841 = vmatprep.subr.bf16.mxu0 0
  %1842 = vmatpush1.bf16.msra.mxu0 0
  %1843 = vmatprep.subr.bf16.mxu0 0
  %1844 = vmatpush1.bf16.msra.mxu0 0
  %1845 = vmatprep.subr.bf16.mxu0 0
  %1846 = vmatpush1.bf16.msra.mxu0 0
  %1847 = vmatprep.subr.bf16.mxu0 0
  %1848 = vmatpush1.bf16.msra.mxu0 0
  %1849 = vmatprep.subr.bf16.mxu0 0
  %1850 = vmatpush1.bf16.msra.mxu0 0
  %1851 = vmatprep.subr.bf16.mxu0 0
  %1852 = vmatpush1.bf16.msra.mxu0 0
  %1853 = vmatprep.subr.bf16.mxu0 0
  %1854 = vmatpush1.bf16.msra.mxu0 0
  %1855 = vmatprep.mubr.bf16.mxu0 0
  %1856 = vmatmul.mubr.bf16.gmra.mrb[0].mxu0 %v1815
  %v1857 = vpop.f32.mrb[0].mxu0
  %v1858 = vadd.f32 %v1788, %v1857
  %v1859 = vpop.f32.mrb[0].mxu0
  %v1860 = vpop.f32.mrb[0].mxu0
  %v1861 = vadd.f32 %v1788, %v1860
  %v1862 = vpop.f32.mrb[0].mxu0
  %1863 = vmatprep.mubr.bf16.mxu0 0
  %1864 = vmatmul.mubr.bf16.gmra.mrb[0].mxu0 %v1818
  %v1865 = vpop.f32.mrb[0].mxu0
  %v1866 = vadd.f32 %v1788, %v1865
  %v1867 = vpop.f32.mrb[0].mxu0
  %v1868 = vpop.f32.mrb[0].mxu0
  %v1869 = vadd.f32 %v1788, %v1868
  %v1870 = vpop.f32.mrb[0].mxu0
  %1871 = vmatprep.mubr.bf16.mxu0 0
  %1872 = vmatmul.mubr.bf16.gmra.mrb[0].mxu0 %v1821
  %v1873 = vpop.f32.mrb[0].mxu0
  %v1874 = vadd.f32 %v1788, %v1873
  %v1875 = vpop.f32.mrb[0].mxu0
  %v1876 = vpop.f32.mrb[0].mxu0
  %v1877 = vpop.f32.mrb[0].mxu0
  %1878 = vdwg.mxu0
  %v1879 = vadd.f32 %v527, %v1858
  %v1880 = vadd.f32 %v528, %v1861
  %v1881 = vadd.f32 %v529, %v1866
  %v1882 = vadd.f32 %v530, %v1869
  %v1883 = vadd.f32 %v531, %v1874
  %v1884 = vsel %vm134, %v1879, 0.0
  %1885 = vadd.xlane.f32.xlu0 %v1884
  %v1886 = vpop.xlane.xlu0 %1885
  %v1887 = vsel %vm134, %v1880, 0.0
  %1888 = vadd.xlane.f32.xlu0 %v1887
  %v1889 = vpop.xlane.xlu0 %1888
  %v1890 = vsel %vm134, %v1881, 0.0
  %1891 = vadd.xlane.f32.xlu0 %v1890
  %v1892 = vpop.xlane.xlu0 %1891
  %v1893 = vsel %vm134, %v1882, 0.0
  %1894 = vadd.xlane.f32.xlu0 %v1893
  %v1895 = vpop.xlane.xlu0 %1894
  %v1896 = vsel %vm134, %v1883, 0.0
  %1897 = vadd.xlane.f32.xlu0 %v1896
  %v1898 = vpop.xlane.xlu0 %1897
  %v1899 = vmul.f32 %v1886, %v616
  %v1900 = vmul.f32 %v1889, %v616
  %v1901 = vmul.f32 %v1892, %v616
  %v1902 = vmul.f32 %v1895, %v616
  %v1903 = vmul.f32 %v1898, %v616
  %v1904 = vsub.f32 %v1879, %v1899
  %v1905 = vsub.f32 %v1880, %v1900
  %v1906 = vsub.f32 %v1881, %v1901
  %v1907 = vsub.f32 %v1882, %v1902
  %v1908 = vsub.f32 %v1883, %v1903
  %v1909 = vmul.f32 %v1904, %v1904
  %v1910 = vmul.f32 %v1905, %v1905
  %v1911 = vmul.f32 %v1906, %v1906
  %v1912 = vmul.f32 %v1907, %v1907
  %v1913 = vmul.f32 %v1908, %v1908
  %v1914 = vsel %vm134, %v1909, 0.0
  %1915 = vadd.xlane.f32.xlu0 %v1914
  %v1916 = vpop.xlane.xlu0 %1915
  %v1917 = vsel %vm134, %v1910, 0.0
  %1918 = vadd.xlane.f32.xlu0 %v1917
  %v1919 = vpop.xlane.xlu0 %1918
  %v1920 = vsel %vm134, %v1911, 0.0
  %1921 = vadd.xlane.f32.xlu0 %v1920
  %v1922 = vpop.xlane.xlu0 %1921
  %v1923 = vsel %vm134, %v1912, 0.0
  %1924 = vadd.xlane.f32.xlu0 %v1923
  %v1925 = vpop.xlane.xlu0 %1924
  %v1926 = vsel %vm134, %v1913, 0.0
  %1927 = vadd.xlane.f32.xlu0 %v1926
  %v1928 = vpop.xlane.xlu0 %1927
  %v1929 = vmul.f32 %v1916, %v616
  %v1930 = vmul.f32 %v1919, %v616
  %v1931 = vmul.f32 %v1922, %v616
  %v1932 = vmul.f32 %v1925, %v616
  %v1933 = vmul.f32 %v1928, %v616
  %v1934 = vadd.f32 %v1929, 1e-05
  %v1935 = vadd.f32 %v1930, 1e-05
  %v1936 = vadd.f32 %v1931, 1e-05
  %v1937 = vadd.f32 %v1932, 1e-05
  %v1938 = vadd.f32 %v1933, 1e-05
  %v1939 = vrsqrt.pop %v1934
  %v1940 = vrsqrt.pop %v1935
  %v1941 = vrsqrt.pop %v1936
  %v1942 = vrsqrt.pop %v1937
  %v1943 = vrsqrt.pop %v1938
  %v1944 = vmul.f32 %v1904, %v1939
  %v1945 = vmul.f32 %v1905, %v1940
  %v1946 = vmul.f32 %v1906, %v1941
  %v1947 = vmul.f32 %v1907, %v1942
  %v1948 = vmul.f32 %v1908, %v1943
  %v1950 = vlaneseq
  %v1951 = vshrl.u32 %v1950, 7
  %v1952 = vsub.s32 0, %v1951
  %v1953 = vrot.slane %v552, %v1952
  %v1955 = vmul.f32 %v1944, %v1953
  %v1956 = vmul.f32 %v1945, %v1953
  %v1957 = vmul.f32 %v1946, %v1953
  %v1958 = vmul.f32 %v1947, %v1953
  %v1959 = vmul.f32 %v1948, %v1953
  %v1961 = vlaneseq
  %v1962 = vshrl.u32 %v1961, 7
  %v1963 = vsub.s32 0, %v1962
  %v1964 = vrot.slane %v553, %v1963
  %v1966 = vadd.f32 %v1955, %v1964
  %v1967 = vadd.f32 %v1956, %v1964
  %v1968 = vadd.f32 %v1957, %v1964
  %v1969 = vadd.f32 %v1958, %v1964
  %v1970 = vadd.f32 %v1959, %v1964
  %v1971 = vpack.c.bf16 %v1967, %v1966
  %v1972 = vpack.c.bf16 %v1969, %v1968
  %v1973 = vpack.c.bf16 %v1970, %v1970
  %v1975 = vlaneseq
  %v1976 = vshrl.u32 %v1975, 7
  %v1977 = vsub.s32 0, %v1976
  %v1978 = vrot.slane %v562, %v1977
  %v1979 = vlaneseq
  %v1980 = vshrl.u32 %v1979, 7
  %v1981 = vsub.s32 1, %v1980
  %v1982 = vrot.slane %v562, %v1981
  %v1993 = vunpack.c.l.b16 %v554
  %v1994 = vunpack.c.h.b16 %v554
  %v1995 = vunpack.c.l.b16 %v555
  %v1996 = vunpack.c.h.b16 %v555
  %v1997 = vunpack.c.l.b16 %v556
  %v1998 = vunpack.c.h.b16 %v556
  %v1999 = vunpack.c.l.b16 %v557
  %v2000 = vunpack.c.h.b16 %v557
  %v2001 = vunpack.c.l.b16 %v558
  %v2002 = vunpack.c.h.b16 %v558
  %v2003 = vunpack.c.l.b16 %v559
  %v2004 = vunpack.c.h.b16 %v559
  %v2005 = vunpack.c.l.b16 %v560
  %v2006 = vunpack.c.h.b16 %v560
  %v2007 = vunpack.c.l.b16 %v561
  %v2008 = vunpack.c.h.b16 %v561
  %v2009 = vpack.c.b16 %v1995, %v1993
  %v2010 = vpack.c.b16 %v1996, %v1994
  %v2011 = vpack.c.b16 %v1999, %v1997
  %v2012 = vpack.c.b16 %v2000, %v1998
  %v2013 = vpack.c.b16 %v2003, %v2001
  %v2014 = vpack.c.b16 %v2004, %v2002
  %v2015 = vpack.c.b16 %v2007, %v2005
  %v2016 = vpack.c.b16 %v2008, %v2006
  %v2026 = vsel %vm134, %v1971, 0
  %v2029 = vsel %vm134, %v1972, 0
  %v2032 = vsel %vm134, %v1973, 0
  %2034 = vmatprep.subr.bf16.mxu0 %v2010
  %2035 = vmatpush1.bf16.msra.mxu0 %v2009
  %2036 = vmatprep.subr.bf16.mxu0 %v2012
  %2037 = vmatpush1.bf16.msra.mxu0 %v2011
  %2038 = vmatprep.subr.bf16.mxu0 %v2014
  %2039 = vmatpush1.bf16.msra.mxu0 %v2013
  %2040 = vmatprep.subr.bf16.mxu0 %v2016
  %2041 = vmatpush1.bf16.msra.mxu0 %v2015
  %2042 = vmatprep.subr.bf16.mxu0 0
  %2043 = vmatpush1.bf16.msra.mxu0 0
  %2044 = vmatprep.subr.bf16.mxu0 0
  %2045 = vmatpush1.bf16.msra.mxu0 0
  %2046 = vmatprep.subr.bf16.mxu0 0
  %2047 = vmatpush1.bf16.msra.mxu0 0
  %2048 = vmatprep.subr.bf16.mxu0 0
  %2049 = vmatpush1.bf16.msra.mxu0 0
  %2050 = vmatprep.subr.bf16.mxu0 0
  %2051 = vmatpush1.bf16.msra.mxu0 0
  %2052 = vmatprep.subr.bf16.mxu0 0
  %2053 = vmatpush1.bf16.msra.mxu0 0
  %2054 = vmatprep.subr.bf16.mxu0 0
  %2055 = vmatpush1.bf16.msra.mxu0 0
  %2056 = vmatprep.subr.bf16.mxu0 0
  %2057 = vmatpush1.bf16.msra.mxu0 0
  %2058 = vmatprep.subr.bf16.mxu0 0
  %2059 = vmatpush1.bf16.msra.mxu0 0
  %2060 = vmatprep.subr.bf16.mxu0 0
  %2061 = vmatpush1.bf16.msra.mxu0 0
  %2062 = vmatprep.subr.bf16.mxu0 0
  %2063 = vmatpush1.bf16.msra.mxu0 0
  %2064 = vmatprep.subr.bf16.mxu0 0
  %2065 = vmatpush1.bf16.msra.mxu0 0
  %2066 = vmatprep.mubr.bf16.mxu0 0
  %2067 = vmatmul.mubr.bf16.gmra.mrb[0].mxu0 %v2026
  %v2068 = vpop.f32.mrb[0].mxu0
  %v2069 = vadd.f32 %v1978, %v2068
  %v2070 = vpop.f32.mrb[0].mxu0
  %v2071 = vadd.f32 %v1982, %v2070
  %v2072 = vpop.f32.mrb[0].mxu0
  %v2073 = vadd.f32 %v1978, %v2072
  %v2074 = vpop.f32.mrb[0].mxu0
  %v2075 = vadd.f32 %v1982, %v2074
  %2076 = vmatprep.mubr.bf16.mxu0 0
  %2077 = vmatmul.mubr.bf16.gmra.mrb[0].mxu0 %v2029
  %v2078 = vpop.f32.mrb[0].mxu0
  %v2079 = vadd.f32 %v1978, %v2078
  %v2080 = vpop.f32.mrb[0].mxu0
  %v2081 = vadd.f32 %v1982, %v2080
  %v2082 = vpop.f32.mrb[0].mxu0
  %v2083 = vadd.f32 %v1978, %v2082
  %v2084 = vpop.f32.mrb[0].mxu0
  %v2085 = vadd.f32 %v1982, %v2084
  %2086 = vmatprep.mubr.bf16.mxu0 0
  %2087 = vmatmul.mubr.bf16.gmra.mrb[0].mxu0 %v2032
  %v2088 = vpop.f32.mrb[0].mxu0
  %v2089 = vadd.f32 %v1978, %v2088
  %v2090 = vpop.f32.mrb[0].mxu0
  %v2091 = vadd.f32 %v1982, %v2090
  %v2092 = vpop.f32.mrb[0].mxu0
  %v2093 = vpop.f32.mrb[0].mxu0
  %2094 = vdwg.mxu0
  %v2095 = vmul.f32 %v2069, 1.702
  %v2096 = vmul.f32 %v2071, 1.702
  %v2097 = vmul.f32 %v2073, 1.702
  %v2098 = vmul.f32 %v2075, 1.702
  %v2099 = vmul.f32 %v2079, 1.702
  %v2100 = vmul.f32 %v2081, 1.702
  %v2101 = vmul.f32 %v2083, 1.702
  %v2102 = vmul.f32 %v2085, 1.702
  %v2103 = vmul.f32 %v2089, 1.702
  %v2104 = vmul.f32 %v2091, 1.702
  %v2105 = vxor.u32 %v2095, 2147483648
  %v2106 = vxor.u32 %v2096, 2147483648
  %v2107 = vxor.u32 %v2097, 2147483648
  %v2108 = vxor.u32 %v2098, 2147483648
  %v2109 = vxor.u32 %v2099, 2147483648
  %v2110 = vxor.u32 %v2100, 2147483648
  %v2111 = vxor.u32 %v2101, 2147483648
  %v2112 = vxor.u32 %v2102, 2147483648
  %v2113 = vxor.u32 %v2103, 2147483648
  %v2114 = vxor.u32 %v2104, 2147483648
  %v2115 = vmul.f32 %v2105, 1.442695
  %v2116 = vpow.pop %v2115
  %v2117 = vmul.f32 %v2106, 1.442695
  %v2118 = vpow.pop %v2117
  %v2119 = vmul.f32 %v2107, 1.442695
  %v2120 = vpow.pop %v2119
  %v2121 = vmul.f32 %v2108, 1.442695
  %v2122 = vpow.pop %v2121
  %v2123 = vmul.f32 %v2109, 1.442695
  %v2124 = vpow.pop %v2123
  %v2125 = vmul.f32 %v2110, 1.442695
  %v2126 = vpow.pop %v2125
  %v2127 = vmul.f32 %v2111, 1.442695
  %v2128 = vpow.pop %v2127
  %v2129 = vmul.f32 %v2112, 1.442695
  %v2130 = vpow.pop %v2129
  %v2131 = vmul.f32 %v2113, 1.442695
  %v2132 = vpow.pop %v2131
  %v2133 = vmul.f32 %v2114, 1.442695
  %v2134 = vpow.pop %v2133
  %v2135 = vadd.f32 %v2116, 1.0
  %v2136 = vadd.f32 %v2118, 1.0
  %v2137 = vadd.f32 %v2120, 1.0
  %v2138 = vadd.f32 %v2122, 1.0
  %v2139 = vadd.f32 %v2124, 1.0
  %v2140 = vadd.f32 %v2126, 1.0
  %v2141 = vadd.f32 %v2128, 1.0
  %v2142 = vadd.f32 %v2130, 1.0
  %v2143 = vadd.f32 %v2132, 1.0
  %v2144 = vadd.f32 %v2134, 1.0
  %v2145 = vrcp.pop %v2135
  %v2146 = vmul.f32 1.0, %v2145
  %v2147 = vrcp.pop %v2136
  %v2148 = vmul.f32 1.0, %v2147
  %v2149 = vrcp.pop %v2137
  %v2150 = vmul.f32 1.0, %v2149
  %v2151 = vrcp.pop %v2138
  %v2152 = vmul.f32 1.0, %v2151
  %v2153 = vrcp.pop %v2139
  %v2154 = vmul.f32 1.0, %v2153
  %v2155 = vrcp.pop %v2140
  %v2156 = vmul.f32 1.0, %v2155
  %v2157 = vrcp.pop %v2141
  %v2158 = vmul.f32 1.0, %v2157
  %v2159 = vrcp.pop %v2142
  %v2160 = vmul.f32 1.0, %v2159
  %v2161 = vrcp.pop %v2143
  %v2162 = vmul.f32 1.0, %v2161
  %v2163 = vrcp.pop %v2144
  %v2164 = vmul.f32 1.0, %v2163
  %v2165 = vmul.f32 %v2069, %v2146
  %v2166 = vmul.f32 %v2071, %v2148
  %v2167 = vmul.f32 %v2073, %v2150
  %v2168 = vmul.f32 %v2075, %v2152
  %v2169 = vmul.f32 %v2079, %v2154
  %v2170 = vmul.f32 %v2081, %v2156
  %v2171 = vmul.f32 %v2083, %v2158
  %v2172 = vmul.f32 %v2085, %v2160
  %v2173 = vmul.f32 %v2089, %v2162
  %v2174 = vmul.f32 %v2091, %v2164
  %v2175 = vpack.c.bf16 %v2167, %v2165
  %v2176 = vpack.c.bf16 %v2168, %v2166
  %v2177 = vpack.c.bf16 %v2171, %v2169
  %v2178 = vpack.c.bf16 %v2172, %v2170
  %v2179 = vpack.c.bf16 %v2173, %v2173
  %v2180 = vpack.c.bf16 %v2174, %v2174
  %v2182 = vlaneseq
  %v2183 = vshrl.u32 %v2182, 7
  %v2184 = vsub.s32 0, %v2183
  %v2185 = vrot.slane %v595, %v2184
  %v2219 = vunpack.c.l.b16 %v563
  %v2220 = vunpack.c.l.b16 %v564
  %v2221 = vunpack.c.l.b16 %v565
  %v2222 = vunpack.c.l.b16 %v566
  %v2223 = vunpack.c.l.b16 %v567
  %v2224 = vunpack.c.l.b16 %v568
  %v2225 = vunpack.c.l.b16 %v569
  %v2226 = vunpack.c.l.b16 %v570
  %v2227 = vunpack.c.l.b16 %v571
  %v2228 = vunpack.c.l.b16 %v572
  %v2229 = vunpack.c.l.b16 %v573
  %v2230 = vunpack.c.l.b16 %v574
  %v2231 = vunpack.c.l.b16 %v575
  %v2232 = vunpack.c.l.b16 %v576
  %v2233 = vunpack.c.l.b16 %v577
  %v2234 = vunpack.c.l.b16 %v578
  %v2235 = vunpack.c.l.b16 %v579
  %v2236 = vunpack.c.l.b16 %v580
  %v2237 = vunpack.c.l.b16 %v581
  %v2238 = vunpack.c.l.b16 %v582
  %v2239 = vunpack.c.l.b16 %v583
  %v2240 = vunpack.c.l.b16 %v584
  %v2241 = vunpack.c.l.b16 %v585
  %v2242 = vunpack.c.l.b16 %v586
  %v2243 = vunpack.c.l.b16 %v587
  %v2244 = vunpack.c.l.b16 %v588
  %v2245 = vunpack.c.l.b16 %v589
  %v2246 = vunpack.c.l.b16 %v590
  %v2247 = vunpack.c.l.b16 %v591
  %v2248 = vunpack.c.l.b16 %v592
  %v2249 = vunpack.c.l.b16 %v593
  %v2250 = vunpack.c.l.b16 %v594
  %v2251 = vpack.c.b16 %v2220, %v2219
  %v2252 = vpack.c.b16 %v2222, %v2221
  %v2253 = vpack.c.b16 %v2224, %v2223
  %v2254 = vpack.c.b16 %v2226, %v2225
  %v2255 = vpack.c.b16 %v2228, %v2227
  %v2256 = vpack.c.b16 %v2230, %v2229
  %v2257 = vpack.c.b16 %v2232, %v2231
  %v2258 = vpack.c.b16 %v2234, %v2233
  %v2259 = vpack.c.b16 %v2236, %v2235
  %v2260 = vpack.c.b16 %v2238, %v2237
  %v2261 = vpack.c.b16 %v2240, %v2239
  %v2262 = vpack.c.b16 %v2242, %v2241
  %v2263 = vpack.c.b16 %v2244, %v2243
  %v2264 = vpack.c.b16 %v2246, %v2245
  %v2265 = vpack.c.b16 %v2248, %v2247
  %v2266 = vpack.c.b16 %v2250, %v2249
  %2283 = vmatprep.subr.bf16.mxu0 0
  %2284 = vmatpush1.bf16.msra.mxu0 %v2251
  %2285 = vmatprep.subr.bf16.mxu0 0
  %2286 = vmatpush1.bf16.msra.mxu0 %v2252
  %2287 = vmatprep.subr.bf16.mxu0 0
  %2288 = vmatpush1.bf16.msra.mxu0 %v2253
  %2289 = vmatprep.subr.bf16.mxu0 0
  %2290 = vmatpush1.bf16.msra.mxu0 %v2254
  %2291 = vmatprep.subr.bf16.mxu0 0
  %2292 = vmatpush1.bf16.msra.mxu0 %v2255
  %2293 = vmatprep.subr.bf16.mxu0 0
  %2294 = vmatpush1.bf16.msra.mxu0 %v2256
  %2295 = vmatprep.subr.bf16.mxu0 0
  %2296 = vmatpush1.bf16.msra.mxu0 %v2257
  %2297 = vmatprep.subr.bf16.mxu0 0
  %2298 = vmatpush1.bf16.msra.mxu0 %v2258
  %2299 = vmatprep.subr.bf16.mxu0 0
  %2300 = vmatpush1.bf16.msra.mxu0 %v2259
  %2301 = vmatprep.subr.bf16.mxu0 0
  %2302 = vmatpush1.bf16.msra.mxu0 %v2260
  %2303 = vmatprep.subr.bf16.mxu0 0
  %2304 = vmatpush1.bf16.msra.mxu0 %v2261
  %2305 = vmatprep.subr.bf16.mxu0 0
  %2306 = vmatpush1.bf16.msra.mxu0 %v2262
  %2307 = vmatprep.subr.bf16.mxu0 0
  %2308 = vmatpush1.bf16.msra.mxu0 %v2263
  %2309 = vmatprep.subr.bf16.mxu0 0
  %2310 = vmatpush1.bf16.msra.mxu0 %v2264
  %2311 = vmatprep.subr.bf16.mxu0 0
  %2312 = vmatpush1.bf16.msra.mxu0 %v2265
  %2313 = vmatprep.subr.bf16.mxu0 0
  %2314 = vmatpush1.bf16.msra.mxu0 %v2266
  %2315 = vmatprep.mubr.bf16.mxu0 %v2176
  %2316 = vmatmul.mubr.bf16.gmra.mrb[0].mxu0 %v2175
  %v2317 = vpop.f32.mrb[0].mxu0
  %v2318 = vadd.f32 %v2185, %v2317
  %v2319 = vpop.f32.mrb[0].mxu0
  %v2320 = vpop.f32.mrb[0].mxu0
  %v2321 = vadd.f32 %v2185, %v2320
  %v2322 = vpop.f32.mrb[0].mxu0
  %2323 = vmatprep.mubr.bf16.mxu0 %v2178
  %2324 = vmatmul.mubr.bf16.gmra.mrb[0].mxu0 %v2177
  %v2325 = vpop.f32.mrb[0].mxu0
  %v2326 = vadd.f32 %v2185, %v2325
  %v2327 = vpop.f32.mrb[0].mxu0
  %v2328 = vpop.f32.mrb[0].mxu0
  %v2329 = vadd.f32 %v2185, %v2328
  %v2330 = vpop.f32.mrb[0].mxu0
  %2331 = vmatprep.mubr.bf16.mxu0 %v2180
  %2332 = vmatmul.mubr.bf16.gmra.mrb[0].mxu0 %v2179
  %v2333 = vpop.f32.mrb[0].mxu0
  %v2334 = vadd.f32 %v2185, %v2333
  %v2335 = vpop.f32.mrb[0].mxu0
  %v2336 = vpop.f32.mrb[0].mxu0
  %v2337 = vpop.f32.mrb[0].mxu0
  %2338 = vdwg.mxu0
  %v2339 = vadd.f32 %v1879, %v2318
  %v2340 = vadd.f32 %v1880, %v2321
  %v2341 = vadd.f32 %v1881, %v2326
  %v2342 = vadd.f32 %v1882, %v2329
  %v2343 = vadd.f32 %v1883, %v2334
  %2344 = vst.msk [vmem:[%s24] sm:$0xff] %vm134, %v2339
  %2345 = vst.msk [vmem:[%s24 + $0x8] sm:$0xff] %vm134, %v2340
  %2346 = vst.msk [vmem:[%s24 + $0x10] sm:$0xff] %vm134, %v2341
  %2347 = vst.msk [vmem:[%s24 + $0x18] sm:$0xff] %vm134, %v2342
  %2348 = vst.msk [vmem:[%s24 + $0x20] sm:$0xff] %vm134, %v2343
  // Predicated region
  $region98: #{forward.11} parent=0 // pred_check
    _
  $region99: #{forward.11} parent=0 // pred_check_branch
    %2350 = sbr.rel (0) target = $region101
  $region100: #{forward.11} parent=0 // pred_region
    _
  $region101: #{forward.11} parent=0 // pred_fallthru
    _
  // Predicated region
  $region102: #{forward.11} parent=0 // pred_check
    _
  $region103: #{forward.11} parent=0 // pred_check_branch
    %2352 = sbr.rel (0) target = $region105
  $region104: #{forward.11} parent=0 // pred_region
    _
  $region105: #{forward.11} parent=0 // pred_fallthru
    _

// kernel: forward.15
$region0: #{forward.15}
  #allocation0 [shape = 'u32[]', space=smem, size = 0x4, offset = 0x4, fixed_abs, tag = 'smem constant byte address 0x4 - core index']
  #allocation1 [shape = 'u32[144,128]{1,0:T(1,128)}', space=vmem, size = 0x12000, scoped, tag = 'internal scratch']
  #allocation2 [shape = 'f32[1,1]{1,0:T(1,128)S(1)}', space=vmem, size = 0x200, scoped, tag = 'scoped memory for forward.15']
  %s0 = inlined_call_operand.vmem [shape: f32[8,64], index: 0, kind: input, shape index: {}]
  %s1 = inlined_call_operand.vmem [shape: f32[8,64], index: 1, kind: input, shape index: {}]
  %s2 = inlined_call_operand.vmem [shape: f32[16,96], index: 2, kind: input, shape index: {}]
  %s3 = inlined_call_operand.vmem [shape: f32[8,16], index: 3, kind: input, shape index: {}]
  %s4 = inlined_call_operand.vmem [shape: f32[1,64], index: 4, kind: input, shape index: {}]
  %s5 = inlined_call_operand.vmem [shape: f32[1,64], index: 5, kind: input, shape index: {}]
  %s6 = inlined_call_operand.vmem [shape: bf16[64,128], index: 6, kind: input, shape index: {}]
  %s7 = inlined_call_operand.vmem [shape: bf16[96,128], index: 7, kind: input, shape index: {}]
  %s8 = inlined_call_operand.vmem [shape: f32[1,128], index: 8, kind: input, shape index: {}]
  %s9 = inlined_call_operand.vmem [shape: bf16[128,128], index: 9, kind: input, shape index: {}]
  %s10 = inlined_call_operand.vmem [shape: bf16[128,256], index: 10, kind: input, shape index: {}]
  %s11 = inlined_call_operand.vmem [shape: bf16[128,128], index: 11, kind: input, shape index: {}]
  %s12 = inlined_call_operand.vmem [shape: f32[1,128], index: 12, kind: input, shape index: {}]
  %s13 = inlined_call_operand.vmem [shape: bf16[128,256], index: 13, kind: input, shape index: {}]
  %s14 = inlined_call_operand.vmem [shape: f32[1,256], index: 14, kind: input, shape index: {}]
  %s15 = inlined_call_operand.vmem [shape: bf16[256,128], index: 15, kind: input, shape index: {}]
  %s16 = inlined_call_operand.vmem [shape: f32[1,128], index: 16, kind: input, shape index: {}]
  %s17 = inlined_call_operand.vmem [shape: bf16[128,64], index: 17, kind: input, shape index: {}]
  %s18 = inlined_call_operand.vmem [shape: f32[1,64], index: 18, kind: input, shape index: {}]
  %s19 = inlined_call_operand.vmem [shape: bf16[64,1], index: 19, kind: input, shape index: {}]
  %s20 = inlined_call_operand.<no memory space> [shape: f32[1,1], index: 20, kind: input, shape index: {}]
  %s21 = inlined_call_operand.vmem [shape: f32[8,1], index: 21, kind: output, shape index: {}]
  %s22 = sld [smem:[#allocation0]]
  $region94: #{forward.15} parent=0
    _
  %s24 = ssub.s32 1, %s22
  %s25 = scalar_select 0, %s24, %s22
  %v26 = vstv %s20
  %27 = vst [vmem:[#allocation2] sm:$0x1] %v26
  // Predicated region
  $region2: #{forward.15} parent=0 // pred_check
    _
  $region3: #{forward.15} parent=0 // pred_check_branch
    %29 = sbr.rel (0) target = $region5
  $region4: #{forward.15} parent=0 // pred_region
    _
  $region5: #{forward.15} parent=0 // pred_fallthru
    _
  // Predicated region
  $region6: #{forward.15} parent=0 // pred_check
    _
  $region7: #{forward.15} parent=0 // pred_check_branch
    %31 = sbr.rel (0) target = $region9
  $region8: #{forward.15} parent=0 // pred_region
    _
  $region9: #{forward.15} parent=0 // pred_fallthru
    _
  // Predicated region
  $region10: #{forward.15} parent=0 // pred_check
    _
  $region11: #{forward.15} parent=0 // pred_check_branch
    %33 = sbr.rel (0) target = $region13
  $region12: #{forward.15} parent=0 // pred_region
    _
  $region13: #{forward.15} parent=0 // pred_fallthru
    _
  // Predicated region
  $region14: #{forward.15} parent=0 // pred_check
    _
  $region15: #{forward.15} parent=0 // pred_check_branch
    %35 = sbr.rel (0) target = $region17
  $region16: #{forward.15} parent=0 // pred_region
    _
  $region17: #{forward.15} parent=0 // pred_fallthru
    _
  // Predicated region
  $region18: #{forward.15} parent=0 // pred_check
    _
  $region19: #{forward.15} parent=0 // pred_check_branch
    %37 = sbr.rel (0) target = $region21
  $region20: #{forward.15} parent=0 // pred_region
    _
  $region21: #{forward.15} parent=0 // pred_fallthru
    _
  // Predicated region
  $region22: #{forward.15} parent=0 // pred_check
    _
  $region23: #{forward.15} parent=0 // pred_check_branch
    %39 = sbr.rel (0) target = $region25
  $region24: #{forward.15} parent=0 // pred_region
    _
  $region25: #{forward.15} parent=0 // pred_fallthru
    _
  // Predicated region
  $region26: #{forward.15} parent=0 // pred_check
    _
  $region27: #{forward.15} parent=0 // pred_check_branch
    %41 = sbr.rel (0) target = $region29
  $region28: #{forward.15} parent=0 // pred_region
    _
  $region29: #{forward.15} parent=0 // pred_fallthru
    _
  // Predicated region
  $region30: #{forward.15} parent=0 // pred_check
    _
  $region31: #{forward.15} parent=0 // pred_check_branch
    %43 = sbr.rel (0) target = $region33
  $region32: #{forward.15} parent=0 // pred_region
    _
  $region33: #{forward.15} parent=0 // pred_fallthru
    _
  // Predicated region
  $region34: #{forward.15} parent=0 // pred_check
    _
  $region35: #{forward.15} parent=0 // pred_check_branch
    %45 = sbr.rel (0) target = $region37
  $region36: #{forward.15} parent=0 // pred_region
    _
  $region37: #{forward.15} parent=0 // pred_fallthru
    _
  // Predicated region
  $region38: #{forward.15} parent=0 // pred_check
    _
  $region39: #{forward.15} parent=0 // pred_check_branch
    %47 = sbr.rel (0) target = $region41
  $region40: #{forward.15} parent=0 // pred_region
    _
  $region41: #{forward.15} parent=0 // pred_fallthru
    _
  // Predicated region
  $region42: #{forward.15} parent=0 // pred_check
    _
  $region43: #{forward.15} parent=0 // pred_check_branch
    %49 = sbr.rel (0) target = $region45
  $region44: #{forward.15} parent=0 // pred_region
    _
  $region45: #{forward.15} parent=0 // pred_fallthru
    _
  // Predicated region
  $region46: #{forward.15} parent=0 // pred_check
    _
  $region47: #{forward.15} parent=0 // pred_check_branch
    %51 = sbr.rel (0) target = $region49
  $region48: #{forward.15} parent=0 // pred_region
    _
  $region49: #{forward.15} parent=0 // pred_fallthru
    _
  // Predicated region
  $region50: #{forward.15} parent=0 // pred_check
    _
  $region51: #{forward.15} parent=0 // pred_check_branch
    %53 = sbr.rel (0) target = $region53
  $region52: #{forward.15} parent=0 // pred_region
    _
  $region53: #{forward.15} parent=0 // pred_fallthru
    _
  // Predicated region
  $region54: #{forward.15} parent=0 // pred_check
    _
  $region55: #{forward.15} parent=0 // pred_check_branch
    %55 = sbr.rel (0) target = $region57
  $region56: #{forward.15} parent=0 // pred_region
    _
  $region57: #{forward.15} parent=0 // pred_fallthru
    _
  // Predicated region
  $region58: #{forward.15} parent=0 // pred_check
    _
  $region59: #{forward.15} parent=0 // pred_check_branch
    %57 = sbr.rel (0) target = $region61
  $region60: #{forward.15} parent=0 // pred_region
    _
  $region61: #{forward.15} parent=0 // pred_fallthru
    _
  // Predicated region
  $region62: #{forward.15} parent=0 // pred_check
    _
  $region63: #{forward.15} parent=0 // pred_check_branch
    %59 = sbr.rel (0) target = $region65
  $region64: #{forward.15} parent=0 // pred_region
    _
  $region65: #{forward.15} parent=0 // pred_fallthru
    _
  // Predicated region
  $region66: #{forward.15} parent=0 // pred_check
    _
  $region67: #{forward.15} parent=0 // pred_check_branch
    %61 = sbr.rel (0) target = $region69
  $region68: #{forward.15} parent=0 // pred_region
    _
  $region69: #{forward.15} parent=0 // pred_fallthru
    _
  // Predicated region
  $region70: #{forward.15} parent=0 // pred_check
    _
  $region71: #{forward.15} parent=0 // pred_check_branch
    %63 = sbr.rel (0) target = $region73
  $region72: #{forward.15} parent=0 // pred_region
    _
  $region73: #{forward.15} parent=0 // pred_fallthru
    _
  // Predicated region
  $region74: #{forward.15} parent=0 // pred_check
    _
  $region75: #{forward.15} parent=0 // pred_check_branch
    %65 = sbr.rel (0) target = $region77
  $region76: #{forward.15} parent=0 // pred_region
    _
  $region77: #{forward.15} parent=0 // pred_fallthru
    _
  // Predicated region
  $region78: #{forward.15} parent=0 // pred_check
    _
  $region79: #{forward.15} parent=0 // pred_check_branch
    %67 = sbr.rel (0) target = $region81
  $region80: #{forward.15} parent=0 // pred_region
    _
  $region81: #{forward.15} parent=0 // pred_fallthru
    _
  // Predicated region
  $region82: #{forward.15} parent=0 // pred_check
    _
  $region83: #{forward.15} parent=0 // pred_check_branch
    %69 = sbr.rel (0) target = $region85
  $region84: #{forward.15} parent=0 // pred_region
    _
  $region85: #{forward.15} parent=0 // pred_fallthru
    _
  %v71 = vld [vmem:[%s0] sm:$0xff]
  %v72 = vld [vmem:[%s4] sm:$0x1]
  %v73 = vld [vmem:[%s5] sm:$0x1]
  %vm74 = vcmask 523264
  %v75 = vsel %vm74, %v71, 0.0
  %76 = vadd.xlane.f32.xlu0 %v75
  %v77 = vpop.xlane.xlu0 %76
  %v78 = vrcp.pop 64.0
  %v79 = vmul.f32 %v77, %v78
  %v80 = vsub.f32 %v71, %v79
  %v81 = vmul.f32 %v80, %v80
  %v82 = vsel %vm74, %v81, 0.0
  %83 = vadd.xlane.f32.xlu0 %v82
  %v84 = vpop.xlane.xlu0 %83
  %v85 = vmul.f32 %v84, %v78
  %v86 = vadd.f32 %v85, 1e-05
  %v87 = vrsqrt.pop %v86
  %v88 = vmul.f32 %v80, %v87
  %v90 = vlaneseq
  %v91 = vshrl.u32 %v90, 7
  %v92 = vsub.s32 0, %v91
  %v93 = vrot.slane %v72, %v92
  %v95 = vmul.f32 %v88, %v93
  %v97 = vlaneseq
  %v98 = vshrl.u32 %v97, 7
  %v99 = vsub.s32 0, %v98
  %v100 = vrot.slane %v73, %v99
  %v102 = vadd.f32 %v95, %v100
  %v103 = vld [vmem:[%s6] sm:$0xf]
  %v104 = vld [vmem:[%s6 + $0x4] sm:$0xf]
  %v105 = vld [vmem:[%s6 + $0x8] sm:$0xf]
  %v106 = vld [vmem:[%s6 + $0xc] sm:$0xf]
  %v107 = vld [vmem:[%s6 + $0x10] sm:$0xf]
  %v108 = vld [vmem:[%s6 + $0x14] sm:$0xf]
  %v109 = vld [vmem:[%s6 + $0x18] sm:$0xf]
  %v110 = vld [vmem:[%s6 + $0x1c] sm:$0xf]
  %v111 = vpack.c.bf16 %v102, %v102
  %v120 = vunpack.c.l.b16 %v103
  %v121 = vunpack.c.l.b16 %v104
  %v122 = vunpack.c.l.b16 %v105
  %v123 = vunpack.c.l.b16 %v106
  %v124 = vunpack.c.l.b16 %v107
  %v125 = vunpack.c.l.b16 %v108
  %v126 = vunpack.c.l.b16 %v109
  %v127 = vunpack.c.l.b16 %v110
  %v128 = vpack.c.b16 %v121, %v120
  %v129 = vpack.c.b16 %v123, %v122
  %v130 = vpack.c.b16 %v125, %v124
  %v131 = vpack.c.b16 %v127, %v126
  %v137 = vsel %vm74, %v111, 0
  %139 = vmatprep.subr.bf16.mxu0 0
  %140 = vmatpush1.bf16.msra.mxu0 %v128
  %141 = vmatprep.subr.bf16.mxu0 0
  %142 = vmatpush1.bf16.msra.mxu0 %v129
  %143 = vmatprep.subr.bf16.mxu0 0
  %144 = vmatpush1.bf16.msra.mxu0 %v130
  %145 = vmatprep.subr.bf16.mxu0 0
  %146 = vmatpush1.bf16.msra.mxu0 %v131
  %147 = vmatprep.subr.bf16.mxu0 0
  %148 = vmatpush1.bf16.msra.mxu0 0
  %149 = vmatprep.subr.bf16.mxu0 0
  %150 = vmatpush1.bf16.msra.mxu0 0
  %151 = vmatprep.subr.bf16.mxu0 0
  %152 = vmatpush1.bf16.msra.mxu0 0
  %153 = vmatprep.subr.bf16.mxu0 0
  %154 = vmatpush1.bf16.msra.mxu0 0
  %155 = vmatprep.subr.bf16.mxu0 0
  %156 = vmatpush1.bf16.msra.mxu0 0
  %157 = vmatprep.subr.bf16.mxu0 0
  %158 = vmatpush1.bf16.msra.mxu0 0
  %159 = vmatprep.subr.bf16.mxu0 0
  %160 = vmatpush1.bf16.msra.mxu0 0
  %161 = vmatprep.subr.bf16.mxu0 0
  %162 = vmatpush1.bf16.msra.mxu0 0
  %163 = vmatprep.subr.bf16.mxu0 0
  %164 = vmatpush1.bf16.msra.mxu0 0
  %165 = vmatprep.subr.bf16.mxu0 0
  %166 = vmatpush1.bf16.msra.mxu0 0
  %167 = vmatprep.subr.bf16.mxu0 0
  %168 = vmatpush1.bf16.msra.mxu0 0
  %169 = vmatprep.subr.bf16.mxu0 0
  %170 = vmatpush1.bf16.msra.mxu0 0
  %171 = vmatprep.mubr.bf16.mxu0 0
  %172 = vmatmul.mubr.bf16.gmra.mrb[0].mxu0 %v137
  %v173 = vpop.f32.mrb[0].mxu0
  %v174 = vadd.f32 0.0, %v173
  %v175 = vpop.f32.mrb[0].mxu0
  %v176 = vpop.f32.mrb[0].mxu0
  %v177 = vpop.f32.mrb[0].mxu0
  %178 = vdwg.mxu0
  %v179 = vld [vmem:[%s1] sm:$0xff]
  %v180 = vsel %vm74, %v179, 0.0
  %181 = vadd.xlane.f32.xlu0 %v180
  %v182 = vpop.xlane.xlu0 %181
  %v183 = vmul.f32 %v182, %v78
  %v184 = vsub.f32 %v179, %v183
  %v185 = vmul.f32 %v184, %v184
  %v186 = vsel %vm74, %v185, 0.0
  %187 = vadd.xlane.f32.xlu0 %v186
  %v188 = vpop.xlane.xlu0 %187
  %v189 = vmul.f32 %v188, %v78
  %v190 = vadd.f32 %v189, 1e-05
  %v191 = vrsqrt.pop %v190
  %v192 = vmul.f32 %v184, %v191
  %v193 = vmul.f32 %v192, %v93
  %v194 = vadd.f32 %v193, %v100
  %v195 = vpack.c.bf16 %v194, %v194
  %v196 = vld [vmem:[%s2] sm:$0xff]
  %v197 = vld [vmem:[%s2 + $0x8] sm:$0xff]
  %v198 = vld [vmem:[%s7] sm:$0xf]
  %v199 = vld [vmem:[%s7 + $0x4] sm:$0xf]
  %v200 = vld [vmem:[%s7 + $0x8] sm:$0xf]
  %v201 = vld [vmem:[%s7 + $0xc] sm:$0xf]
  %v202 = vld [vmem:[%s7 + $0x10] sm:$0xf]
  %v203 = vld [vmem:[%s7 + $0x14] sm:$0xf]
  %v204 = vld [vmem:[%s7 + $0x18] sm:$0xf]
  %v205 = vld [vmem:[%s7 + $0x1c] sm:$0xf]
  %v206 = vld [vmem:[%s7 + $0x20] sm:$0xf]
  %v207 = vld [vmem:[%s7 + $0x24] sm:$0xf]
  %v208 = vld [vmem:[%s7 + $0x28] sm:$0xf]
  %v209 = vld [vmem:[%s7 + $0x2c] sm:$0xf]
  %v210 = vpack.c.bf16 %v197, %v196
  %v211 = vld [vmem:[%s8] sm:$0x1]
  %v213 = vlaneseq
  %v214 = vshrl.u32 %v213, 7
  %v215 = vsub.s32 0, %v214
  %v216 = vrot.slane %v211, %v215
  %v230 = vunpack.c.l.b16 %v198
  %v231 = vunpack.c.l.b16 %v199
  %v232 = vunpack.c.l.b16 %v200
  %v233 = vunpack.c.l.b16 %v201
  %v234 = vunpack.c.l.b16 %v202
  %v235 = vunpack.c.l.b16 %v203
  %v236 = vunpack.c.l.b16 %v204
  %v237 = vunpack.c.l.b16 %v205
  %v238 = vunpack.c.l.b16 %v206
  %v239 = vunpack.c.l.b16 %v207
  %v240 = vunpack.c.l.b16 %v208
  %v241 = vunpack.c.l.b16 %v209
  %v242 = vpack.c.b16 %v231, %v230
  %v243 = vpack.c.b16 %v233, %v232
  %v244 = vpack.c.b16 %v235, %v234
  %v245 = vpack.c.b16 %v237, %v236
  %v246 = vpack.c.b16 %v239, %v238
  %v247 = vpack.c.b16 %v241, %v240
  %vm254 = vcmask 785408
  %v256 = vsel %vm254, %v210, 0
  %258 = vmatprep.subr.bf16.mxu0 0
  %259 = vmatpush1.bf16.msra.mxu0 %v242
  %260 = vmatprep.subr.bf16.mxu0 0
  %261 = vmatpush1.bf16.msra.mxu0 %v243
  %262 = vmatprep.subr.bf16.mxu0 0
  %263 = vmatpush1.bf16.msra.mxu0 %v244
  %264 = vmatprep.subr.bf16.mxu0 0
  %265 = vmatpush1.bf16.msra.mxu0 %v245
  %266 = vmatprep.subr.bf16.mxu0 0
  %267 = vmatpush1.bf16.msra.mxu0 %v246
  %268 = vmatprep.subr.bf16.mxu0 0
  %269 = vmatpush1.bf16.msra.mxu0 %v247
  %270 = vmatprep.subr.bf16.mxu0 0
  %271 = vmatpush1.bf16.msra.mxu0 0
  %272 = vmatprep.subr.bf16.mxu0 0
  %273 = vmatpush1.bf16.msra.mxu0 0
  %274 = vmatprep.subr.bf16.mxu0 0
  %275 = vmatpush1.bf16.msra.mxu0 0
  %276 = vmatprep.subr.bf16.mxu0 0
  %277 = vmatpush1.bf16.msra.mxu0 0
  %278 = vmatprep.subr.bf16.mxu0 0
  %279 = vmatpush1.bf16.msra.mxu0 0
  %280 = vmatprep.subr.bf16.mxu0 0
  %281 = vmatpush1.bf16.msra.mxu0 0
  %282 = vmatprep.subr.bf16.mxu0 0
  %283 = vmatpush1.bf16.msra.mxu0 0
  %284 = vmatprep.subr.bf16.mxu0 0
  %285 = vmatpush1.bf16.msra.mxu0 0
  %286 = vmatprep.subr.bf16.mxu0 0
  %287 = vmatpush1.bf16.msra.mxu0 0
  %288 = vmatprep.subr.bf16.mxu0 0
  %289 = vmatpush1.bf16.msra.mxu0 0
  %290 = vmatprep.mubr.bf16.mxu0 0
  %291 = vmatmul.mubr.bf16.gmra.mrb[0].mxu0 %v256
  %v292 = vpop.f32.mrb[0].mxu0
  %v293 = vadd.f32 %v216, %v292
  %v294 = vpop.f32.mrb[0].mxu0
  %v295 = vpop.f32.mrb[0].mxu0
  %v296 = vadd.f32 %v216, %v295
  %v297 = vpop.f32.mrb[0].mxu0
  %298 = vdwg.mxu0
  %v299 = vld [vmem:[%s9] sm:$0xf]
  %v300 = vld [vmem:[%s9 + $0x4] sm:$0xf]
  %v301 = vld [vmem:[%s9 + $0x8] sm:$0xf]
  %v302 = vld [vmem:[%s9 + $0xc] sm:$0xf]
  %v303 = vld [vmem:[%s9 + $0x10] sm:$0xf]
  %v304 = vld [vmem:[%s9 + $0x14] sm:$0xf]
  %v305 = vld [vmem:[%s9 + $0x18] sm:$0xf]
  %v306 = vld [vmem:[%s9 + $0x1c] sm:$0xf]
  %v307 = vld [vmem:[%s9 + $0x20] sm:$0xf]
  %v308 = vld [vmem:[%s9 + $0x24] sm:$0xf]
  %v309 = vld [vmem:[%s9 + $0x28] sm:$0xf]
  %v310 = vld [vmem:[%s9 + $0x2c] sm:$0xf]
  %v311 = vld [vmem:[%s9 + $0x30] sm:$0xf]
  %v312 = vld [vmem:[%s9 + $0x34] sm:$0xf]
  %v313 = vld [vmem:[%s9 + $0x38] sm:$0xf]
  %v314 = vld [vmem:[%s9 + $0x3c] sm:$0xf]
  %v315 = vpack.c.bf16 %v174, %v174
  %v332 = vunpack.c.l.b16 %v299
  %v333 = vunpack.c.l.b16 %v300
  %v334 = vunpack.c.l.b16 %v301
  %v335 = vunpack.c.l.b16 %v302
  %v336 = vunpack.c.l.b16 %v303
  %v337 = vunpack.c.l.b16 %v304
  %v338 = vunpack.c.l.b16 %v305
  %v339 = vunpack.c.l.b16 %v306
  %v340 = vunpack.c.l.b16 %v307
  %v341 = vunpack.c.l.b16 %v308
  %v342 = vunpack.c.l.b16 %v309
  %v343 = vunpack.c.l.b16 %v310
  %v344 = vunpack.c.l.b16 %v311
  %v345 = vunpack.c.l.b16 %v312
  %v346 = vunpack.c.l.b16 %v313
  %v347 = vunpack.c.l.b16 %v314
  %v348 = vpack.c.b16 %v333, %v332
  %v349 = vpack.c.b16 %v335, %v334
  %v350 = vpack.c.b16 %v337, %v336
  %v351 = vpack.c.b16 %v339, %v338
  %v352 = vpack.c.b16 %v341, %v340
  %v353 = vpack.c.b16 %v343, %v342
  %v354 = vpack.c.b16 %v345, %v344
  %v355 = vpack.c.b16 %v347, %v346
  %364 = vmatprep.subr.bf16.mxu0 0
  %365 = vmatpush1.bf16.msra.mxu0 %v348
  %366 = vmatprep.subr.bf16.mxu0 0
  %367 = vmatpush1.bf16.msra.mxu0 %v349
  %368 = vmatprep.subr.bf16.mxu0 0
  %369 = vmatpush1.bf16.msra.mxu0 %v350
  %370 = vmatprep.subr.bf16.mxu0 0
  %371 = vmatpush1.bf16.msra.mxu0 %v351
  %372 = vmatprep.subr.bf16.mxu0 0
  %373 = vmatpush1.bf16.msra.mxu0 %v352
  %374 = vmatprep.subr.bf16.mxu0 0
  %375 = vmatpush1.bf16.msra.mxu0 %v353
  %376 = vmatprep.subr.bf16.mxu0 0
  %377 = vmatpush1.bf16.msra.mxu0 %v354
  %378 = vmatprep.subr.bf16.mxu0 0
  %379 = vmatpush1.bf16.msra.mxu0 %v355
  %380 = vmatprep.subr.bf16.mxu0 0
  %381 = vmatpush1.bf16.msra.mxu0 0
  %382 = vmatprep.subr.bf16.mxu0 0
  %383 = vmatpush1.bf16.msra.mxu0 0
  %384 = vmatprep.subr.bf16.mxu0 0
  %385 = vmatpush1.bf16.msra.mxu0 0
  %386 = vmatprep.subr.bf16.mxu0 0
  %387 = vmatpush1.bf16.msra.mxu0 0
  %388 = vmatprep.subr.bf16.mxu0 0
  %389 = vmatpush1.bf16.msra.mxu0 0
  %390 = vmatprep.subr.bf16.mxu0 0
  %391 = vmatpush1.bf16.msra.mxu0 0
  %392 = vmatprep.subr.bf16.mxu0 0
  %393 = vmatpush1.bf16.msra.mxu0 0
  %394 = vmatprep.subr.bf16.mxu0 0
  %395 = vmatpush1.bf16.msra.mxu0 0
  %396 = vmatprep.mubr.bf16.mxu0 0
  %397 = vmatmul.mubr.bf16.gmra.mrb[0].mxu0 %v315
  %v398 = vpop.f32.mrb[0].mxu0
  %v399 = vadd.f32 0.0, %v398
  %v400 = vpop.f32.mrb[0].mxu0
  %v401 = vpop.f32.mrb[0].mxu0
  %v402 = vpop.f32.mrb[0].mxu0
  %403 = vdwg.mxu0
  %v404 = vld [vmem:[%s10] sm:$0xff]
  %v405 = vld [vmem:[%s10 + $0x8] sm:$0xff]
  %v406 = vld [vmem:[%s10 + $0x10] sm:$0xff]
  %v407 = vld [vmem:[%s10 + $0x18] sm:$0xff]
  %v408 = vld [vmem:[%s10 + $0x20] sm:$0xff]
  %v409 = vld [vmem:[%s10 + $0x28] sm:$0xff]
  %v410 = vld [vmem:[%s10 + $0x30] sm:$0xff]
  %v411 = vld [vmem:[%s10 + $0x38] sm:$0xff]
  %v412 = vld [vmem:[%s10 + $0x40] sm:$0xff]
  %v413 = vld [vmem:[%s10 + $0x48] sm:$0xff]
  %v414 = vld [vmem:[%s10 + $0x50] sm:$0xff]
  %v415 = vld [vmem:[%s10 + $0x58] sm:$0xff]
  %v416 = vld [vmem:[%s10 + $0x60] sm:$0xff]
  %v417 = vld [vmem:[%s10 + $0x68] sm:$0xff]
  %v418 = vld [vmem:[%s10 + $0x70] sm:$0xff]
  %v419 = vld [vmem:[%s10 + $0x78] sm:$0xff]
  %v420 = vpack.c.bf16 %v296, %v293
  %v437 = vunpack.c.l.b16 %v404
  %v438 = vunpack.c.h.b16 %v404
  %v439 = vunpack.c.l.b16 %v405
  %v440 = vunpack.c.h.b16 %v405
  %v441 = vunpack.c.l.b16 %v406
  %v442 = vunpack.c.h.b16 %v406
  %v443 = vunpack.c.l.b16 %v407
  %v444 = vunpack.c.h.b16 %v407
  %v445 = vunpack.c.l.b16 %v408
  %v446 = vunpack.c.h.b16 %v408
  %v447 = vunpack.c.l.b16 %v409
  %v448 = vunpack.c.h.b16 %v409
  %v449 = vunpack.c.l.b16 %v410
  %v450 = vunpack.c.h.b16 %v410
  %v451 = vunpack.c.l.b16 %v411
  %v452 = vunpack.c.h.b16 %v411
  %v453 = vunpack.c.l.b16 %v412
  %v454 = vunpack.c.h.b16 %v412
  %v455 = vunpack.c.l.b16 %v413
  %v456 = vunpack.c.h.b16 %v413
  %v457 = vunpack.c.l.b16 %v414
  %v458 = vunpack.c.h.b16 %v414
  %v459 = vunpack.c.l.b16 %v415
  %v460 = vunpack.c.h.b16 %v415
  %v461 = vunpack.c.l.b16 %v416
  %v462 = vunpack.c.h.b16 %v416
  %v463 = vunpack.c.l.b16 %v417
  %v464 = vunpack.c.h.b16 %v417
  %v465 = vunpack.c.l.b16 %v418
  %v466 = vunpack.c.h.b16 %v418
  %v467 = vunpack.c.l.b16 %v419
  %v468 = vunpack.c.h.b16 %v419
  %v469 = vpack.c.b16 %v439, %v437
  %v470 = vpack.c.b16 %v440, %v438
  %v471 = vpack.c.b16 %v443, %v441
  %v472 = vpack.c.b16 %v444, %v442
  %v473 = vpack.c.b16 %v447, %v445
  %v474 = vpack.c.b16 %v448, %v446
  %v475 = vpack.c.b16 %v451, %v449
  %v476 = vpack.c.b16 %v452, %v450
  %v477 = vpack.c.b16 %v455, %v453
  %v478 = vpack.c.b16 %v456, %v454
  %v479 = vpack.c.b16 %v459, %v457
  %v480 = vpack.c.b16 %v460, %v458
  %v481 = vpack.c.b16 %v463, %v461
  %v482 = vpack.c.b16 %v464, %v462
  %v483 = vpack.c.b16 %v467, %v465
  %v484 = vpack.c.b16 %v468, %v466
  %501 = vmatprep.subr.bf16.mxu0 %v470
  %502 = vmatpush1.bf16.msra.mxu0 %v469
  %503 = vmatprep.subr.bf16.mxu0 %v472
  %504 = vmatpush1.bf16.msra.mxu0 %v471
  %505 = vmatprep.subr.bf16.mxu0 %v474
  %506 = vmatpush1.bf16.msra.mxu0 %v473
  %507 = vmatprep.subr.bf16.mxu0 %v476
  %508 = vmatpush1.bf16.msra.mxu0 %v475
  %509 = vmatprep.subr.bf16.mxu0 %v478
  %510 = vmatpush1.bf16.msra.mxu0 %v477
  %511 = vmatprep.subr.bf16.mxu0 %v480
  %512 = vmatpush1.bf16.msra.mxu0 %v479
  %513 = vmatprep.subr.bf16.mxu0 %v482
  %514 = vmatpush1.bf16.msra.mxu0 %v481
  %515 = vmatprep.subr.bf16.mxu0 %v484
  %516 = vmatpush1.bf16.msra.mxu0 %v483
  %517 = vmatprep.subr.bf16.mxu0 0
  %518 = vmatpush1.bf16.msra.mxu0 0
  %519 = vmatprep.subr.bf16.mxu0 0
  %520 = vmatpush1.bf16.msra.mxu0 0
  %521 = vmatprep.subr.bf16.mxu0 0
  %522 = vmatpush1.bf16.msra.mxu0 0
  %523 = vmatprep.subr.bf16.mxu0 0
  %524 = vmatpush1.bf16.msra.mxu0 0
  %525 = vmatprep.subr.bf16.mxu0 0
  %526 = vmatpush1.bf16.msra.mxu0 0
  %527 = vmatprep.subr.bf16.mxu0 0
  %528 = vmatpush1.bf16.msra.mxu0 0
  %529 = vmatprep.subr.bf16.mxu0 0
  %530 = vmatpush1.bf16.msra.mxu0 0
  %531 = vmatprep.subr.bf16.mxu0 0
  %532 = vmatpush1.bf16.msra.mxu0 0
  %533 = vmatprep.mubr.bf16.mxu0 0
  %534 = vmatmul.mubr.bf16.gmra.mrb[0].mxu0 %v420
  %v535 = vpop.f32.mrb[0].mxu0
  %v536 = vadd.f32 0.0, %v535
  %v537 = vpop.f32.mrb[0].mxu0
  %v538 = vadd.f32 0.0, %v537
  %v539 = vpop.f32.mrb[0].mxu0
  %v540 = vadd.f32 0.0, %v539
  %v541 = vpop.f32.mrb[0].mxu0
  %v542 = vadd.f32 0.0, %v541
  %543 = vdwg.mxu0
  %v544 = vld [vmem:[%s3] sm:$0xff]
  %v545 = vmul.f32 %v399, 0.25
  %v546 = vpack.c.bf16 %v545, %v545
  %v547 = vpack.c.bf16 %v540, %v536
  %vm548 = vcmask 130048
  %v550 = vsel %vm548, %v546, 0
  %v553 = vsel %vm548, %v547, 0
  %555 = vmatprep.subr.bf16.mxu0 0
  %556 = vmatpush1.bf16.xpose.msra.mxu0 %v553
  %557 = vmatprep.subr.bf16.mxu0 0
  %558 = vmatpush1.bf16.xpose.msra.mxu0 0
  %559 = vmatprep.subr.bf16.mxu0 0
  %560 = vmatpush1.bf16.xpose.msra.mxu0 0
  %561 = vmatprep.subr.bf16.mxu0 0
  %562 = vmatpush1.bf16.xpose.msra.mxu0 0
  %563 = vmatprep.subr.bf16.mxu0 0
  %564 = vmatpush1.bf16.xpose.msra.mxu0 0
  %565 = vmatprep.subr.bf16.mxu0 0
  %566 = vmatpush1.bf16.xpose.msra.mxu0 0
  %567 = vmatprep.subr.bf16.mxu0 0
  %568 = vmatpush1.bf16.xpose.msra.mxu0 0
  %569 = vmatprep.subr.bf16.mxu0 0
  %570 = vmatpush1.bf16.xpose.msra.mxu0 0
  %571 = vmatprep.subr.bf16.mxu0 0
  %572 = vmatpush1.bf16.xpose.msra.mxu0 0
  %573 = vmatprep.subr.bf16.mxu0 0
  %574 = vmatpush1.bf16.xpose.msra.mxu0 0
  %575 = vmatprep.subr.bf16.mxu0 0
  %576 = vmatpush1.bf16.xpose.msra.mxu0 0
  %577 = vmatprep.subr.bf16.mxu0 0
  %578 = vmatpush1.bf16.xpose.msra.mxu0 0
  %579 = vmatprep.subr.bf16.mxu0 0
  %580 = vmatpush1.bf16.xpose.msra.mxu0 0
  %581 = vmatprep.subr.bf16.mxu0 0
  %582 = vmatpush1.bf16.xpose.msra.mxu0 0
  %583 = vmatprep.subr.bf16.mxu0 0
  %584 = vmatpush1.bf16.xpose.msra.mxu0 0
  %585 = vmatprep.subr.bf16.mxu0 0
  %586 = vmatpush1.bf16.xpose.msra.mxu0 0
  %587 = vmatprep.mubr.bf16.mxu0 0
  %588 = vmatmul.mubr.bf16.gmra.mrb[0].mxu0 %v550
  %v589 = vpop.f32.mrb[0].mxu0
  %v590 = vadd.f32 %v544, %v589
  %v591 = vpop.f32.mrb[0].mxu0
  %v592 = vpop.f32.mrb[0].mxu0
  %v593 = vpop.f32.mrb[0].mxu0
  %594 = vdwg.mxu0
  %v595 = vsel %vm548, %v590, -inf
  %596 = vmax.xlane.f32.xlu0 %v595
  %v597 = vpop.xlane.xlu0 %596
  %v598 = vsub.f32 %v590, %v597
  %v599 = vmul.f32 %v598, 1.442695
  %v600 = vpow.pop %v599
  %v601 = vsel %vm548, %v600, 0.0
  %602 = vadd.xlane.f32.xlu0 %v601
  %v603 = vpop.xlane.xlu0 %602
  %v604 = vrcp.pop %v603
  %v605 = vmul.f32 %v600, %v604
  %v606 = vpack.c.bf16 %v605, %v605
  %v607 = vpack.c.bf16 %v542, %v538
  %v609 = vsel %vm548, %v606, 0
  %611 = vmatprep.subr.bf16.mxu0 0
  %612 = vmatpush1.bf16.msra.mxu0 %v607
  %613 = vmatprep.subr.bf16.mxu0 0
  %614 = vmatpush1.bf16.msra.mxu0 0
  %615 = vmatprep.subr.bf16.mxu0 0
  %616 = vmatpush1.bf16.msra.mxu0 0
  %617 = vmatprep.subr.bf16.mxu0 0
  %618 = vmatpush1.bf16.msra.mxu0 0
  %619 = vmatprep.subr.bf16.mxu0 0
  %620 = vmatpush1.bf16.msra.mxu0 0
  %621 = vmatprep.subr.bf16.mxu0 0
  %622 = vmatpush1.bf16.msra.mxu0 0
  %623 = vmatprep.subr.bf16.mxu0 0
  %624 = vmatpush1.bf16.msra.mxu0 0
  %625 = vmatprep.subr.bf16.mxu0 0
  %626 = vmatpush1.bf16.msra.mxu0 0
  %627 = vmatprep.subr.bf16.mxu0 0
  %628 = vmatpush1.bf16.msra.mxu0 0
  %629 = vmatprep.subr.bf16.mxu0 0
  %630 = vmatpush1.bf16.msra.mxu0 0
  %631 = vmatprep.subr.bf16.mxu0 0
  %632 = vmatpush1.bf16.msra.mxu0 0
  %633 = vmatprep.subr.bf16.mxu0 0
  %634 = vmatpush1.bf16.msra.mxu0 0
  %635 = vmatprep.subr.bf16.mxu0 0
  %636 = vmatpush1.bf16.msra.mxu0 0
  %637 = vmatprep.subr.bf16.mxu0 0
  %638 = vmatpush1.bf16.msra.mxu0 0
  %639 = vmatprep.subr.bf16.mxu0 0
  %640 = vmatpush1.bf16.msra.mxu0 0
  %641 = vmatprep.subr.bf16.mxu0 0
  %642 = vmatpush1.bf16.msra.mxu0 0
  %643 = vmatprep.mubr.bf16.mxu0 0
  %644 = vmatmul.mubr.bf16.gmra.mrb[0].mxu0 %v609
  %v645 = vpop.f32.mrb[0].mxu0
  %v646 = vadd.f32 0.0, %v645
  %v647 = vpop.f32.mrb[0].mxu0
  %v648 = vpop.f32.mrb[0].mxu0
  %v649 = vpop.f32.mrb[0].mxu0
  %650 = vdwg.mxu0
  %652 = vrot.lane.b32.xlu0 %v546, 112
  %v653 = vpop.permute.xlu0 %652
  %655 = vrot.lane.b32.xlu0 %v547, 112
  %v656 = vpop.permute.xlu0 %655
  %v658 = vsel %vm548, %v653, 0
  %v661 = vsel %vm548, %v656, 0
  %663 = vmatprep.subr.bf16.mxu0 0
  %664 = vmatpush1.bf16.xpose.msra.mxu0 %v661
  %665 = vmatprep.subr.bf16.mxu0 0
  %666 = vmatpush1.bf16.xpose.msra.mxu0 0
  %667 = vmatprep.subr.bf16.mxu0 0
  %668 = vmatpush1.bf16.xpose.msra.mxu0 0
  %669 = vmatprep.subr.bf16.mxu0 0
  %670 = vmatpush1.bf16.xpose.msra.mxu0 0
  %671 = vmatprep.subr.bf16.mxu0 0
  %672 = vmatpush1.bf16.xpose.msra.mxu0 0
  %673 = vmatprep.subr.bf16.mxu0 0
  %674 = vmatpush1.bf16.xpose.msra.mxu0 0
  %675 = vmatprep.subr.bf16.mxu0 0
  %676 = vmatpush1.bf16.xpose.msra.mxu0 0
  %677 = vmatprep.subr.bf16.mxu0 0
  %678 = vmatpush1.bf16.xpose.msra.mxu0 0
  %679 = vmatprep.subr.bf16.mxu0 0
  %680 = vmatpush1.bf16.xpose.msra.mxu0 0
  %681 = vmatprep.subr.bf16.mxu0 0
  %682 = vmatpush1.bf16.xpose.msra.mxu0 0
  %683 = vmatprep.subr.bf16.mxu0 0
  %684 = vmatpush1.bf16.xpose.msra.mxu0 0
  %685 = vmatprep.subr.bf16.mxu0 0
  %686 = vmatpush1.bf16.xpose.msra.mxu0 0
  %687 = vmatprep.subr.bf16.mxu0 0
  %688 = vmatpush1.bf16.xpose.msra.mxu0 0
  %689 = vmatprep.subr.bf16.mxu0 0
  %690 = vmatpush1.bf16.xpose.msra.mxu0 0
  %691 = vmatprep.subr.bf16.mxu0 0
  %692 = vmatpush1.bf16.xpose.msra.mxu0 0
  %693 = vmatprep.subr.bf16.mxu0 0
  %694 = vmatpush1.bf16.xpose.msra.mxu0 0
  %695 = vmatprep.mubr.bf16.mxu0 0
  %696 = vmatmul.mubr.bf16.gmra.mrb[0].mxu0 %v658
  %v697 = vpop.f32.mrb[0].mxu0
  %v698 = vadd.f32 %v544, %v697
  %v699 = vpop.f32.mrb[0].mxu0
  %v700 = vpop.f32.mrb[0].mxu0
  %v701 = vpop.f32.mrb[0].mxu0
  %702 = vdwg.mxu0
  %v703 = vsel %vm548, %v698, -inf
  %704 = vmax.xlane.f32.xlu0 %v703
  %v705 = vpop.xlane.xlu0 %704
  %v706 = vsub.f32 %v698, %v705
  %v707 = vmul.f32 %v706, 1.442695
  %v708 = vpow.pop %v707
  %v709 = vsel %vm548, %v708, 0.0
  %710 = vadd.xlane.f32.xlu0 %v709
  %v711 = vpop.xlane.xlu0 %710
  %v712 = vrcp.pop %v711
  %v713 = vmul.f32 %v708, %v712
  %v714 = vpack.c.bf16 %v713, %v713
  %716 = vrot.lane.b32.xlu0 %v607, 112
  %v717 = vpop.permute.xlu0 %716
  %v720 = vsel %vm548, %v714, 0
  %722 = vmatprep.subr.bf16.mxu0 0
  %723 = vmatpush1.bf16.msra.mxu0 %v717
  %724 = vmatprep.subr.bf16.mxu0 0
  %725 = vmatpush1.bf16.msra.mxu0 0
  %726 = vmatprep.subr.bf16.mxu0 0
  %727 = vmatpush1.bf16.msra.mxu0 0
  %728 = vmatprep.subr.bf16.mxu0 0
  %729 = vmatpush1.bf16.msra.mxu0 0
  %730 = vmatprep.subr.bf16.mxu0 0
  %731 = vmatpush1.bf16.msra.mxu0 0
  %732 = vmatprep.subr.bf16.mxu0 0
  %733 = vmatpush1.bf16.msra.mxu0 0
  %734 = vmatprep.subr.bf16.mxu0 0
  %735 = vmatpush1.bf16.msra.mxu0 0
  %736 = vmatprep.subr.bf16.mxu0 0
  %737 = vmatpush1.bf16.msra.mxu0 0
  %738 = vmatprep.subr.bf16.mxu0 0
  %739 = vmatpush1.bf16.msra.mxu0 0
  %740 = vmatprep.subr.bf16.mxu0 0
  %741 = vmatpush1.bf16.msra.mxu0 0
  %742 = vmatprep.subr.bf16.mxu0 0
  %743 = vmatpush1.bf16.msra.mxu0 0
  %744 = vmatprep.subr.bf16.mxu0 0
  %745 = vmatpush1.bf16.msra.mxu0 0
  %746 = vmatprep.subr.bf16.mxu0 0
  %747 = vmatpush1.bf16.msra.mxu0 0
  %748 = vmatprep.subr.bf16.mxu0 0
  %749 = vmatpush1.bf16.msra.mxu0 0
  %750 = vmatprep.subr.bf16.mxu0 0
  %751 = vmatpush1.bf16.msra.mxu0 0
  %752 = vmatprep.subr.bf16.mxu0 0
  %753 = vmatpush1.bf16.msra.mxu0 0
  %754 = vmatprep.mubr.bf16.mxu0 0
  %755 = vmatmul.mubr.bf16.gmra.mrb[0].mxu0 %v720
  %v756 = vpop.f32.mrb[0].mxu0
  %v757 = vadd.f32 0.0, %v756
  %v758 = vpop.f32.mrb[0].mxu0
  %v759 = vpop.f32.mrb[0].mxu0
  %v760 = vpop.f32.mrb[0].mxu0
  %761 = vdwg.mxu0
  %762 = vrot.lane.b32.xlu0 %v546, 96
  %v763 = vpop.permute.xlu0 %762
  %764 = vrot.lane.b32.xlu0 %v547, 96
  %v765 = vpop.permute.xlu0 %764
  %v767 = vsel %vm548, %v763, 0
  %v770 = vsel %vm548, %v765, 0
  %772 = vmatprep.subr.bf16.mxu0 0
  %773 = vmatpush1.bf16.xpose.msra.mxu0 %v770
  %774 = vmatprep.subr.bf16.mxu0 0
  %775 = vmatpush1.bf16.xpose.msra.mxu0 0
  %776 = vmatprep.subr.bf16.mxu0 0
  %777 = vmatpush1.bf16.xpose.msra.mxu0 0
  %778 = vmatprep.subr.bf16.mxu0 0
  %779 = vmatpush1.bf16.xpose.msra.mxu0 0
  %780 = vmatprep.subr.bf16.mxu0 0
  %781 = vmatpush1.bf16.xpose.msra.mxu0 0
  %782 = vmatprep.subr.bf16.mxu0 0
  %783 = vmatpush1.bf16.xpose.msra.mxu0 0
  %784 = vmatprep.subr.bf16.mxu0 0
  %785 = vmatpush1.bf16.xpose.msra.mxu0 0
  %786 = vmatprep.subr.bf16.mxu0 0
  %787 = vmatpush1.bf16.xpose.msra.mxu0 0
  %788 = vmatprep.subr.bf16.mxu0 0
  %789 = vmatpush1.bf16.xpose.msra.mxu0 0
  %790 = vmatprep.subr.bf16.mxu0 0
  %791 = vmatpush1.bf16.xpose.msra.mxu0 0
  %792 = vmatprep.subr.bf16.mxu0 0
  %793 = vmatpush1.bf16.xpose.msra.mxu0 0
  %794 = vmatprep.subr.bf16.mxu0 0
  %795 = vmatpush1.bf16.xpose.msra.mxu0 0
  %796 = vmatprep.subr.bf16.mxu0 0
  %797 = vmatpush1.bf16.xpose.msra.mxu0 0
  %798 = vmatprep.subr.bf16.mxu0 0
  %799 = vmatpush1.bf16.xpose.msra.mxu0 0
  %800 = vmatprep.subr.bf16.mxu0 0
  %801 = vmatpush1.bf16.xpose.msra.mxu0 0
  %802 = vmatprep.subr.bf16.mxu0 0
  %803 = vmatpush1.bf16.xpose.msra.mxu0 0
  %804 = vmatprep.mubr.bf16.mxu0 0
  %805 = vmatmul.mubr.bf16.gmra.mrb[0].mxu0 %v767
  %v806 = vpop.f32.mrb[0].mxu0
  %v807 = vadd.f32 %v544, %v806
  %v808 = vpop.f32.mrb[0].mxu0
  %v809 = vpop.f32.mrb[0].mxu0
  %v810 = vpop.f32.mrb[0].mxu0
  %811 = vdwg.mxu0
  %v812 = vsel %vm548, %v807, -inf
  %813 = vmax.xlane.f32.xlu0 %v812
  %v814 = vpop.xlane.xlu0 %813
  %v815 = vsub.f32 %v807, %v814
  %v816 = vmul.f32 %v815, 1.442695
  %v817 = vpow.pop %v816
  %v818 = vsel %vm548, %v817, 0.0
  %819 = vadd.xlane.f32.xlu0 %v818
  %v820 = vpop.xlane.xlu0 %819
  %v821 = vrcp.pop %v820
  %v822 = vmul.f32 %v817, %v821
  %v823 = vpack.c.bf16 %v822, %v822
  %824 = vrot.lane.b32.xlu0 %v607, 96
  %v825 = vpop.permute.xlu0 %824
  %v828 = vsel %vm548, %v823, 0
  %830 = vmatprep.subr.bf16.mxu0 0
  %831 = vmatpush1.bf16.msra.mxu0 %v825
  %832 = vmatprep.subr.bf16.mxu0 0
  %833 = vmatpush1.bf16.msra.mxu0 0
  %834 = vmatprep.subr.bf16.mxu0 0
  %835 = vmatpush1.bf16.msra.mxu0 0
  %836 = vmatprep.subr.bf16.mxu0 0
  %837 = vmatpush1.bf16.msra.mxu0 0
  %838 = vmatprep.subr.bf16.mxu0 0
  %839 = vmatpush1.bf16.msra.mxu0 0
  %840 = vmatprep.subr.bf16.mxu0 0
  %841 = vmatpush1.bf16.msra.mxu0 0
  %842 = vmatprep.subr.bf16.mxu0 0
  %843 = vmatpush1.bf16.msra.mxu0 0
  %844 = vmatprep.subr.bf16.mxu0 0
  %845 = vmatpush1.bf16.msra.mxu0 0
  %846 = vmatprep.subr.bf16.mxu0 0
  %847 = vmatpush1.bf16.msra.mxu0 0
  %848 = vmatprep.subr.bf16.mxu0 0
  %849 = vmatpush1.bf16.msra.mxu0 0
  %850 = vmatprep.subr.bf16.mxu0 0
  %851 = vmatpush1.bf16.msra.mxu0 0
  %852 = vmatprep.subr.bf16.mxu0 0
  %853 = vmatpush1.bf16.msra.mxu0 0
  %854 = vmatprep.subr.bf16.mxu0 0
  %855 = vmatpush1.bf16.msra.mxu0 0
  %856 = vmatprep.subr.bf16.mxu0 0
  %857 = vmatpush1.bf16.msra.mxu0 0
  %858 = vmatprep.subr.bf16.mxu0 0
  %859 = vmatpush1.bf16.msra.mxu0 0
  %860 = vmatprep.subr.bf16.mxu0 0
  %861 = vmatpush1.bf16.msra.mxu0 0
  %862 = vmatprep.mubr.bf16.mxu0 0
  %863 = vmatmul.mubr.bf16.gmra.mrb[0].mxu0 %v828
  %v864 = vpop.f32.mrb[0].mxu0
  %v865 = vadd.f32 0.0, %v864
  %v866 = vpop.f32.mrb[0].mxu0
  %v867 = vpop.f32.mrb[0].mxu0
  %v868 = vpop.f32.mrb[0].mxu0
  %869 = vdwg.mxu0
  %870 = vrot.lane.b32.xlu0 %v546, 80
  %v871 = vpop.permute.xlu0 %870
  %872 = vrot.lane.b32.xlu0 %v547, 80
  %v873 = vpop.permute.xlu0 %872
  %v875 = vsel %vm548, %v871, 0
  %v878 = vsel %vm548, %v873, 0
  %880 = vmatprep.subr.bf16.mxu0 0
  %881 = vmatpush1.bf16.xpose.msra.mxu0 %v878
  %882 = vmatprep.subr.bf16.mxu0 0
  %883 = vmatpush1.bf16.xpose.msra.mxu0 0
  %884 = vmatprep.subr.bf16.mxu0 0
  %885 = vmatpush1.bf16.xpose.msra.mxu0 0
  %886 = vmatprep.subr.bf16.mxu0 0
  %887 = vmatpush1.bf16.xpose.msra.mxu0 0
  %888 = vmatprep.subr.bf16.mxu0 0
  %889 = vmatpush1.bf16.xpose.msra.mxu0 0
  %890 = vmatprep.subr.bf16.mxu0 0
  %891 = vmatpush1.bf16.xpose.msra.mxu0 0
  %892 = vmatprep.subr.bf16.mxu0 0
  %893 = vmatpush1.bf16.xpose.msra.mxu0 0
  %894 = vmatprep.subr.bf16.mxu0 0
  %895 = vmatpush1.bf16.xpose.msra.mxu0 0
  %896 = vmatprep.subr.bf16.mxu0 0
  %897 = vmatpush1.bf16.xpose.msra.mxu0 0
  %898 = vmatprep.subr.bf16.mxu0 0
  %899 = vmatpush1.bf16.xpose.msra.mxu0 0
  %900 = vmatprep.subr.bf16.mxu0 0
  %901 = vmatpush1.bf16.xpose.msra.mxu0 0
  %902 = vmatprep.subr.bf16.mxu0 0
  %903 = vmatpush1.bf16.xpose.msra.mxu0 0
  %904 = vmatprep.subr.bf16.mxu0 0
  %905 = vmatpush1.bf16.xpose.msra.mxu0 0
  %906 = vmatprep.subr.bf16.mxu0 0
  %907 = vmatpush1.bf16.xpose.msra.mxu0 0
  %908 = vmatprep.subr.bf16.mxu0 0
  %909 = vmatpush1.bf16.xpose.msra.mxu0 0
  %910 = vmatprep.subr.bf16.mxu0 0
  %911 = vmatpush1.bf16.xpose.msra.mxu0 0
  %912 = vmatprep.mubr.bf16.mxu0 0
  %913 = vmatmul.mubr.bf16.gmra.mrb[0].mxu0 %v875
  %v914 = vpop.f32.mrb[0].mxu0
  %v915 = vadd.f32 %v544, %v914
  %v916 = vpop.f32.mrb[0].mxu0
  %v917 = vpop.f32.mrb[0].mxu0
  %v918 = vpop.f32.mrb[0].mxu0
  %919 = vdwg.mxu0
  %v920 = vsel %vm548, %v915, -inf
  %921 = vmax.xlane.f32.xlu0 %v920
  %v922 = vpop.xlane.xlu0 %921
  %v923 = vsub.f32 %v915, %v922
  %v924 = vmul.f32 %v923, 1.442695
  %v925 = vpow.pop %v924
  %v926 = vsel %vm548, %v925, 0.0
  %927 = vadd.xlane.f32.xlu0 %v926
  %v928 = vpop.xlane.xlu0 %927
  %v929 = vrcp.pop %v928
  %v930 = vmul.f32 %v925, %v929
  %v931 = vpack.c.bf16 %v930, %v930
  %932 = vrot.lane.b32.xlu0 %v607, 80
  %v933 = vpop.permute.xlu0 %932
  %v936 = vsel %vm548, %v931, 0
  %938 = vmatprep.subr.bf16.mxu0 0
  %939 = vmatpush1.bf16.msra.mxu0 %v933
  %940 = vmatprep.subr.bf16.mxu0 0
  %941 = vmatpush1.bf16.msra.mxu0 0
  %942 = vmatprep.subr.bf16.mxu0 0
  %943 = vmatpush1.bf16.msra.mxu0 0
  %944 = vmatprep.subr.bf16.mxu0 0
  %945 = vmatpush1.bf16.msra.mxu0 0
  %946 = vmatprep.subr.bf16.mxu0 0
  %947 = vmatpush1.bf16.msra.mxu0 0
  %948 = vmatprep.subr.bf16.mxu0 0
  %949 = vmatpush1.bf16.msra.mxu0 0
  %950 = vmatprep.subr.bf16.mxu0 0
  %951 = vmatpush1.bf16.msra.mxu0 0
  %952 = vmatprep.subr.bf16.mxu0 0
  %953 = vmatpush1.bf16.msra.mxu0 0
  %954 = vmatprep.subr.bf16.mxu0 0
  %955 = vmatpush1.bf16.msra.mxu0 0
  %956 = vmatprep.subr.bf16.mxu0 0
  %957 = vmatpush1.bf16.msra.mxu0 0
  %958 = vmatprep.subr.bf16.mxu0 0
  %959 = vmatpush1.bf16.msra.mxu0 0
  %960 = vmatprep.subr.bf16.mxu0 0
  %961 = vmatpush1.bf16.msra.mxu0 0
  %962 = vmatprep.subr.bf16.mxu0 0
  %963 = vmatpush1.bf16.msra.mxu0 0
  %964 = vmatprep.subr.bf16.mxu0 0
  %965 = vmatpush1.bf16.msra.mxu0 0
  %966 = vmatprep.subr.bf16.mxu0 0
  %967 = vmatpush1.bf16.msra.mxu0 0
  %968 = vmatprep.subr.bf16.mxu0 0
  %969 = vmatpush1.bf16.msra.mxu0 0
  %970 = vmatprep.mubr.bf16.mxu0 0
  %971 = vmatmul.mubr.bf16.gmra.mrb[0].mxu0 %v936
  %v972 = vpop.f32.mrb[0].mxu0
  %v973 = vadd.f32 0.0, %v972
  %v974 = vpop.f32.mrb[0].mxu0
  %v975 = vpop.f32.mrb[0].mxu0
  %v976 = vpop.f32.mrb[0].mxu0
  %977 = vdwg.mxu0
  %978 = vrot.lane.b32.xlu0 %v546, 64
  %v979 = vpop.permute.xlu0 %978
  %980 = vrot.lane.b32.xlu0 %v547, 64
  %v981 = vpop.permute.xlu0 %980
  %v983 = vsel %vm548, %v979, 0
  %v986 = vsel %vm548, %v981, 0
  %988 = vmatprep.subr.bf16.mxu0 0
  %989 = vmatpush1.bf16.xpose.msra.mxu0 %v986
  %990 = vmatprep.subr.bf16.mxu0 0
  %991 = vmatpush1.bf16.xpose.msra.mxu0 0
  %992 = vmatprep.subr.bf16.mxu0 0
  %993 = vmatpush1.bf16.xpose.msra.mxu0 0
  %994 = vmatprep.subr.bf16.mxu0 0
  %995 = vmatpush1.bf16.xpose.msra.mxu0 0
  %996 = vmatprep.subr.bf16.mxu0 0
  %997 = vmatpush1.bf16.xpose.msra.mxu0 0
  %998 = vmatprep.subr.bf16.mxu0 0
  %999 = vmatpush1.bf16.xpose.msra.mxu0 0
  %1000 = vmatprep.subr.bf16.mxu0 0
  %1001 = vmatpush1.bf16.xpose.msra.mxu0 0
  %1002 = vmatprep.subr.bf16.mxu0 0
  %1003 = vmatpush1.bf16.xpose.msra.mxu0 0
  %1004 = vmatprep.subr.bf16.mxu0 0
  %1005 = vmatpush1.bf16.xpose.msra.mxu0 0
  %1006 = vmatprep.subr.bf16.mxu0 0
  %1007 = vmatpush1.bf16.xpose.msra.mxu0 0
  %1008 = vmatprep.subr.bf16.mxu0 0
  %1009 = vmatpush1.bf16.xpose.msra.mxu0 0
  %1010 = vmatprep.subr.bf16.mxu0 0
  %1011 = vmatpush1.bf16.xpose.msra.mxu0 0
  %1012 = vmatprep.subr.bf16.mxu0 0
  %1013 = vmatpush1.bf16.xpose.msra.mxu0 0
  %1014 = vmatprep.subr.bf16.mxu0 0
  %1015 = vmatpush1.bf16.xpose.msra.mxu0 0
  %1016 = vmatprep.subr.bf16.mxu0 0
  %1017 = vmatpush1.bf16.xpose.msra.mxu0 0
  %1018 = vmatprep.subr.bf16.mxu0 0
  %1019 = vmatpush1.bf16.xpose.msra.mxu0 0
  %1020 = vmatprep.mubr.bf16.mxu0 0
  %1021 = vmatmul.mubr.bf16.gmra.mrb[0].mxu0 %v983
  %v1022 = vpop.f32.mrb[0].mxu0
  %v1023 = vadd.f32 %v544, %v1022
  %v1024 = vpop.f32.mrb[0].mxu0
  %v1025 = vpop.f32.mrb[0].mxu0
  %v1026 = vpop.f32.mrb[0].mxu0
  %1027 = vdwg.mxu0
  %v1028 = vsel %vm548, %v1023, -inf
  %1029 = vmax.xlane.f32.xlu0 %v1028
  %v1030 = vpop.xlane.xlu0 %1029
  %v1031 = vsub.f32 %v1023, %v1030
  %v1032 = vmul.f32 %v1031, 1.442695
  %v1033 = vpow.pop %v1032
  %v1034 = vsel %vm548, %v1033, 0.0
  %1035 = vadd.xlane.f32.xlu0 %v1034
  %v1036 = vpop.xlane.xlu0 %1035
  %v1037 = vrcp.pop %v1036
  %v1038 = vmul.f32 %v1033, %v1037
  %v1039 = vpack.c.bf16 %v1038, %v1038
  %1040 = vrot.lane.b32.xlu0 %v607, 64
  %v1041 = vpop.permute.xlu0 %1040
  %v1044 = vsel %vm548, %v1039, 0
  %1046 = vmatprep.subr.bf16.mxu0 0
  %1047 = vmatpush1.bf16.msra.mxu0 %v1041
  %1048 = vmatprep.subr.bf16.mxu0 0
  %1049 = vmatpush1.bf16.msra.mxu0 0
  %1050 = vmatprep.subr.bf16.mxu0 0
  %1051 = vmatpush1.bf16.msra.mxu0 0
  %1052 = vmatprep.subr.bf16.mxu0 0
  %1053 = vmatpush1.bf16.msra.mxu0 0
  %1054 = vmatprep.subr.bf16.mxu0 0
  %1055 = vmatpush1.bf16.msra.mxu0 0
  %1056 = vmatprep.subr.bf16.mxu0 0
  %1057 = vmatpush1.bf16.msra.mxu0 0
  %1058 = vmatprep.subr.bf16.mxu0 0
  %1059 = vmatpush1.bf16.msra.mxu0 0
  %1060 = vmatprep.subr.bf16.mxu0 0
  %1061 = vmatpush1.bf16.msra.mxu0 0
  %1062 = vmatprep.subr.bf16.mxu0 0
  %1063 = vmatpush1.bf16.msra.mxu0 0
  %1064 = vmatprep.subr.bf16.mxu0 0
  %1065 = vmatpush1.bf16.msra.mxu0 0
  %1066 = vmatprep.subr.bf16.mxu0 0
  %1067 = vmatpush1.bf16.msra.mxu0 0
  %1068 = vmatprep.subr.bf16.mxu0 0
  %1069 = vmatpush1.bf16.msra.mxu0 0
  %1070 = vmatprep.subr.bf16.mxu0 0
  %1071 = vmatpush1.bf16.msra.mxu0 0
  %1072 = vmatprep.subr.bf16.mxu0 0
  %1073 = vmatpush1.bf16.msra.mxu0 0
  %1074 = vmatprep.subr.bf16.mxu0 0
  %1075 = vmatpush1.bf16.msra.mxu0 0
  %1076 = vmatprep.subr.bf16.mxu0 0
  %1077 = vmatpush1.bf16.msra.mxu0 0
  %1078 = vmatprep.mubr.bf16.mxu0 0
  %1079 = vmatmul.mubr.bf16.gmra.mrb[0].mxu0 %v1044
  %v1080 = vpop.f32.mrb[0].mxu0
  %v1081 = vadd.f32 0.0, %v1080
  %v1082 = vpop.f32.mrb[0].mxu0
  %v1083 = vpop.f32.mrb[0].mxu0
  %v1084 = vpop.f32.mrb[0].mxu0
  %1085 = vdwg.mxu0
  %1086 = vrot.lane.b32.xlu0 %v546, 48
  %v1087 = vpop.permute.xlu0 %1086
  %1088 = vrot.lane.b32.xlu0 %v547, 48
  %v1089 = vpop.permute.xlu0 %1088
  %v1091 = vsel %vm548, %v1087, 0
  %v1094 = vsel %vm548, %v1089, 0
  %1096 = vmatprep.subr.bf16.mxu0 0
  %1097 = vmatpush1.bf16.xpose.msra.mxu0 %v1094
  %1098 = vmatprep.subr.bf16.mxu0 0
  %1099 = vmatpush1.bf16.xpose.msra.mxu0 0
  %1100 = vmatprep.subr.bf16.mxu0 0
  %1101 = vmatpush1.bf16.xpose.msra.mxu0 0
  %1102 = vmatprep.subr.bf16.mxu0 0
  %1103 = vmatpush1.bf16.xpose.msra.mxu0 0
  %1104 = vmatprep.subr.bf16.mxu0 0
  %1105 = vmatpush1.bf16.xpose.msra.mxu0 0
  %1106 = vmatprep.subr.bf16.mxu0 0
  %1107 = vmatpush1.bf16.xpose.msra.mxu0 0
  %1108 = vmatprep.subr.bf16.mxu0 0
  %1109 = vmatpush1.bf16.xpose.msra.mxu0 0
  %1110 = vmatprep.subr.bf16.mxu0 0
  %1111 = vmatpush1.bf16.xpose.msra.mxu0 0
  %1112 = vmatprep.subr.bf16.mxu0 0
  %1113 = vmatpush1.bf16.xpose.msra.mxu0 0
  %1114 = vmatprep.subr.bf16.mxu0 0
  %1115 = vmatpush1.bf16.xpose.msra.mxu0 0
  %1116 = vmatprep.subr.bf16.mxu0 0
  %1117 = vmatpush1.bf16.xpose.msra.mxu0 0
  %1118 = vmatprep.subr.bf16.mxu0 0
  %1119 = vmatpush1.bf16.xpose.msra.mxu0 0
  %1120 = vmatprep.subr.bf16.mxu0 0
  %1121 = vmatpush1.bf16.xpose.msra.mxu0 0
  %1122 = vmatprep.subr.bf16.mxu0 0
  %1123 = vmatpush1.bf16.xpose.msra.mxu0 0
  %1124 = vmatprep.subr.bf16.mxu0 0
  %1125 = vmatpush1.bf16.xpose.msra.mxu0 0
  %1126 = vmatprep.subr.bf16.mxu0 0
  %1127 = vmatpush1.bf16.xpose.msra.mxu0 0
  %1128 = vmatprep.mubr.bf16.mxu0 0
  %1129 = vmatmul.mubr.bf16.gmra.mrb[0].mxu0 %v1091
  %v1130 = vpop.f32.mrb[0].mxu0
  %v1131 = vadd.f32 %v544, %v1130
  %v1132 = vpop.f32.mrb[0].mxu0
  %v1133 = vpop.f32.mrb[0].mxu0
  %v1134 = vpop.f32.mrb[0].mxu0
  %1135 = vdwg.mxu0
  %v1136 = vsel %vm548, %v1131, -inf
  %1137 = vmax.xlane.f32.xlu0 %v1136
  %v1138 = vpop.xlane.xlu0 %1137
  %v1139 = vsub.f32 %v1131, %v1138
  %v1140 = vmul.f32 %v1139, 1.442695
  %v1141 = vpow.pop %v1140
  %v1142 = vsel %vm548, %v1141, 0.0
  %1143 = vadd.xlane.f32.xlu0 %v1142
  %v1144 = vpop.xlane.xlu0 %1143
  %v1145 = vrcp.pop %v1144
  %v1146 = vmul.f32 %v1141, %v1145
  %v1147 = vpack.c.bf16 %v1146, %v1146
  %1148 = vrot.lane.b32.xlu0 %v607, 48
  %v1149 = vpop.permute.xlu0 %1148
  %v1152 = vsel %vm548, %v1147, 0
  %1154 = vmatprep.subr.bf16.mxu0 0
  %1155 = vmatpush1.bf16.msra.mxu0 %v1149
  %1156 = vmatprep.subr.bf16.mxu0 0
  %1157 = vmatpush1.bf16.msra.mxu0 0
  %1158 = vmatprep.subr.bf16.mxu0 0
  %1159 = vmatpush1.bf16.msra.mxu0 0
  %1160 = vmatprep.subr.bf16.mxu0 0
  %1161 = vmatpush1.bf16.msra.mxu0 0
  %1162 = vmatprep.subr.bf16.mxu0 0
  %1163 = vmatpush1.bf16.msra.mxu0 0
  %1164 = vmatprep.subr.bf16.mxu0 0
  %1165 = vmatpush1.bf16.msra.mxu0 0
  %1166 = vmatprep.subr.bf16.mxu0 0
  %1167 = vmatpush1.bf16.msra.mxu0 0
  %1168 = vmatprep.subr.bf16.mxu0 0
  %1169 = vmatpush1.bf16.msra.mxu0 0
  %1170 = vmatprep.subr.bf16.mxu0 0
  %1171 = vmatpush1.bf16.msra.mxu0 0
  %1172 = vmatprep.subr.bf16.mxu0 0
  %1173 = vmatpush1.bf16.msra.mxu0 0
  %1174 = vmatprep.subr.bf16.mxu0 0
  %1175 = vmatpush1.bf16.msra.mxu0 0
  %1176 = vmatprep.subr.bf16.mxu0 0
  %1177 = vmatpush1.bf16.msra.mxu0 0
  %1178 = vmatprep.subr.bf16.mxu0 0
  %1179 = vmatpush1.bf16.msra.mxu0 0
  %1180 = vmatprep.subr.bf16.mxu0 0
  %1181 = vmatpush1.bf16.msra.mxu0 0
  %1182 = vmatprep.subr.bf16.mxu0 0
  %1183 = vmatpush1.bf16.msra.mxu0 0
  %1184 = vmatprep.subr.bf16.mxu0 0
  %1185 = vmatpush1.bf16.msra.mxu0 0
  %1186 = vmatprep.mubr.bf16.mxu0 0
  %1187 = vmatmul.mubr.bf16.gmra.mrb[0].mxu0 %v1152
  %v1188 = vpop.f32.mrb[0].mxu0
  %v1189 = vadd.f32 0.0, %v1188
  %v1190 = vpop.f32.mrb[0].mxu0
  %v1191 = vpop.f32.mrb[0].mxu0
  %v1192 = vpop.f32.mrb[0].mxu0
  %1193 = vdwg.mxu0
  %1194 = vrot.lane.b32.xlu0 %v546, 32
  %v1195 = vpop.permute.xlu0 %1194
  %1196 = vrot.lane.b32.xlu0 %v547, 32
  %v1197 = vpop.permute.xlu0 %1196
  %v1199 = vsel %vm548, %v1195, 0
  %v1202 = vsel %vm548, %v1197, 0
  %1204 = vmatprep.subr.bf16.mxu0 0
  %1205 = vmatpush1.bf16.xpose.msra.mxu0 %v1202
  %1206 = vmatprep.subr.bf16.mxu0 0
  %1207 = vmatpush1.bf16.xpose.msra.mxu0 0
  %1208 = vmatprep.subr.bf16.mxu0 0
  %1209 = vmatpush1.bf16.xpose.msra.mxu0 0
  %1210 = vmatprep.subr.bf16.mxu0 0
  %1211 = vmatpush1.bf16.xpose.msra.mxu0 0
  %1212 = vmatprep.subr.bf16.mxu0 0
  %1213 = vmatpush1.bf16.xpose.msra.mxu0 0
  %1214 = vmatprep.subr.bf16.mxu0 0
  %1215 = vmatpush1.bf16.xpose.msra.mxu0 0
  %1216 = vmatprep.subr.bf16.mxu0 0
  %1217 = vmatpush1.bf16.xpose.msra.mxu0 0
  %1218 = vmatprep.subr.bf16.mxu0 0
  %1219 = vmatpush1.bf16.xpose.msra.mxu0 0
  %1220 = vmatprep.subr.bf16.mxu0 0
  %1221 = vmatpush1.bf16.xpose.msra.mxu0 0
  %1222 = vmatprep.subr.bf16.mxu0 0
  %1223 = vmatpush1.bf16.xpose.msra.mxu0 0
  %1224 = vmatprep.subr.bf16.mxu0 0
  %1225 = vmatpush1.bf16.xpose.msra.mxu0 0
  %1226 = vmatprep.subr.bf16.mxu0 0
  %1227 = vmatpush1.bf16.xpose.msra.mxu0 0
  %1228 = vmatprep.subr.bf16.mxu0 0
  %1229 = vmatpush1.bf16.xpose.msra.mxu0 0
  %1230 = vmatprep.subr.bf16.mxu0 0
  %1231 = vmatpush1.bf16.xpose.msra.mxu0 0
  %1232 = vmatprep.subr.bf16.mxu0 0
  %1233 = vmatpush1.bf16.xpose.msra.mxu0 0
  %1234 = vmatprep.subr.bf16.mxu0 0
  %1235 = vmatpush1.bf16.xpose.msra.mxu0 0
  %1236 = vmatprep.mubr.bf16.mxu0 0
  %1237 = vmatmul.mubr.bf16.gmra.mrb[0].mxu0 %v1199
  %v1238 = vpop.f32.mrb[0].mxu0
  %v1239 = vadd.f32 %v544, %v1238
  %v1240 = vpop.f32.mrb[0].mxu0
  %v1241 = vpop.f32.mrb[0].mxu0
  %v1242 = vpop.f32.mrb[0].mxu0
  %1243 = vdwg.mxu0
  %v1244 = vsel %vm548, %v1239, -inf
  %1245 = vmax.xlane.f32.xlu0 %v1244
  %v1246 = vpop.xlane.xlu0 %1245
  %v1247 = vsub.f32 %v1239, %v1246
  %v1248 = vmul.f32 %v1247, 1.442695
  %v1249 = vpow.pop %v1248
  %v1250 = vsel %vm548, %v1249, 0.0
  %1251 = vadd.xlane.f32.xlu0 %v1250
  %v1252 = vpop.xlane.xlu0 %1251
  %v1253 = vrcp.pop %v1252
  %v1254 = vmul.f32 %v1249, %v1253
  %v1255 = vpack.c.bf16 %v1254, %v1254
  %1256 = vrot.lane.b32.xlu0 %v607, 32
  %v1257 = vpop.permute.xlu0 %1256
  %v1260 = vsel %vm548, %v1255, 0
  %1262 = vmatprep.subr.bf16.mxu0 0
  %1263 = vmatpush1.bf16.msra.mxu0 %v1257
  %1264 = vmatprep.subr.bf16.mxu0 0
  %1265 = vmatpush1.bf16.msra.mxu0 0
  %1266 = vmatprep.subr.bf16.mxu0 0
  %1267 = vmatpush1.bf16.msra.mxu0 0
  %1268 = vmatprep.subr.bf16.mxu0 0
  %1269 = vmatpush1.bf16.msra.mxu0 0
  %1270 = vmatprep.subr.bf16.mxu0 0
  %1271 = vmatpush1.bf16.msra.mxu0 0
  %1272 = vmatprep.subr.bf16.mxu0 0
  %1273 = vmatpush1.bf16.msra.mxu0 0
  %1274 = vmatprep.subr.bf16.mxu0 0
  %1275 = vmatpush1.bf16.msra.mxu0 0
  %1276 = vmatprep.subr.bf16.mxu0 0
  %1277 = vmatpush1.bf16.msra.mxu0 0
  %1278 = vmatprep.subr.bf16.mxu0 0
  %1279 = vmatpush1.bf16.msra.mxu0 0
  %1280 = vmatprep.subr.bf16.mxu0 0
  %1281 = vmatpush1.bf16.msra.mxu0 0
  %1282 = vmatprep.subr.bf16.mxu0 0
  %1283 = vmatpush1.bf16.msra.mxu0 0
  %1284 = vmatprep.subr.bf16.mxu0 0
  %1285 = vmatpush1.bf16.msra.mxu0 0
  %1286 = vmatprep.subr.bf16.mxu0 0
  %1287 = vmatpush1.bf16.msra.mxu0 0
  %1288 = vmatprep.subr.bf16.mxu0 0
  %1289 = vmatpush1.bf16.msra.mxu0 0
  %1290 = vmatprep.subr.bf16.mxu0 0
  %1291 = vmatpush1.bf16.msra.mxu0 0
  %1292 = vmatprep.subr.bf16.mxu0 0
  %1293 = vmatpush1.bf16.msra.mxu0 0
  %1294 = vmatprep.mubr.bf16.mxu0 0
  %1295 = vmatmul.mubr.bf16.gmra.mrb[0].mxu0 %v1260
  %v1296 = vpop.f32.mrb[0].mxu0
  %v1297 = vadd.f32 0.0, %v1296
  %v1298 = vpop.f32.mrb[0].mxu0
  %v1299 = vpop.f32.mrb[0].mxu0
  %v1300 = vpop.f32.mrb[0].mxu0
  %1301 = vdwg.mxu0
  %1302 = vrot.lane.b32.xlu0 %v546, 16
  %v1303 = vpop.permute.xlu0 %1302
  %1304 = vrot.lane.b32.xlu0 %v547, 16
  %v1305 = vpop.permute.xlu0 %1304
  %v1307 = vsel %vm548, %v1303, 0
  %v1310 = vsel %vm548, %v1305, 0
  %1312 = vmatprep.subr.bf16.mxu0 0
  %1313 = vmatpush1.bf16.xpose.msra.mxu0 %v1310
  %1314 = vmatprep.subr.bf16.mxu0 0
  %1315 = vmatpush1.bf16.xpose.msra.mxu0 0
  %1316 = vmatprep.subr.bf16.mxu0 0
  %1317 = vmatpush1.bf16.xpose.msra.mxu0 0
  %1318 = vmatprep.subr.bf16.mxu0 0
  %1319 = vmatpush1.bf16.xpose.msra.mxu0 0
  %1320 = vmatprep.subr.bf16.mxu0 0
  %1321 = vmatpush1.bf16.xpose.msra.mxu0 0
  %1322 = vmatprep.subr.bf16.mxu0 0
  %1323 = vmatpush1.bf16.xpose.msra.mxu0 0
  %1324 = vmatprep.subr.bf16.mxu0 0
  %1325 = vmatpush1.bf16.xpose.msra.mxu0 0
  %1326 = vmatprep.subr.bf16.mxu0 0
  %1327 = vmatpush1.bf16.xpose.msra.mxu0 0
  %1328 = vmatprep.subr.bf16.mxu0 0
  %1329 = vmatpush1.bf16.xpose.msra.mxu0 0
  %1330 = vmatprep.subr.bf16.mxu0 0
  %1331 = vmatpush1.bf16.xpose.msra.mxu0 0
  %1332 = vmatprep.subr.bf16.mxu0 0
  %1333 = vmatpush1.bf16.xpose.msra.mxu0 0
  %1334 = vmatprep.subr.bf16.mxu0 0
  %1335 = vmatpush1.bf16.xpose.msra.mxu0 0
  %1336 = vmatprep.subr.bf16.mxu0 0
  %1337 = vmatpush1.bf16.xpose.msra.mxu0 0
  %1338 = vmatprep.subr.bf16.mxu0 0
  %1339 = vmatpush1.bf16.xpose.msra.mxu0 0
  %1340 = vmatprep.subr.bf16.mxu0 0
  %1341 = vmatpush1.bf16.xpose.msra.mxu0 0
  %1342 = vmatprep.subr.bf16.mxu0 0
  %1343 = vmatpush1.bf16.xpose.msra.mxu0 0
  %1344 = vmatprep.mubr.bf16.mxu0 0
  %1345 = vmatmul.mubr.bf16.gmra.mrb[0].mxu0 %v1307
  %v1346 = vpop.f32.mrb[0].mxu0
  %v1347 = vadd.f32 %v544, %v1346
  %v1348 = vpop.f32.mrb[0].mxu0
  %v1349 = vpop.f32.mrb[0].mxu0
  %v1350 = vpop.f32.mrb[0].mxu0
  %1351 = vdwg.mxu0
  %v1352 = vsel %vm548, %v1347, -inf
  %1353 = vmax.xlane.f32.xlu0 %v1352
  %v1354 = vpop.xlane.xlu0 %1353
  %v1355 = vsub.f32 %v1347, %v1354
  %v1356 = vmul.f32 %v1355, 1.442695
  %v1357 = vpow.pop %v1356
  %v1358 = vsel %vm548, %v1357, 0.0
  %1359 = vadd.xlane.f32.xlu0 %v1358
  %v1360 = vpop.xlane.xlu0 %1359
  %v1361 = vrcp.pop %v1360
  %v1362 = vmul.f32 %v1357, %v1361
  %v1363 = vpack.c.bf16 %v1362, %v1362
  %1364 = vrot.lane.b32.xlu0 %v607, 16
  %v1365 = vpop.permute.xlu0 %1364
  %v1368 = vsel %vm548, %v1363, 0
  %1370 = vmatprep.subr.bf16.mxu0 0
  %1371 = vmatpush1.bf16.msra.mxu0 %v1365
  %1372 = vmatprep.subr.bf16.mxu0 0
  %1373 = vmatpush1.bf16.msra.mxu0 0
  %1374 = vmatprep.subr.bf16.mxu0 0
  %1375 = vmatpush1.bf16.msra.mxu0 0
  %1376 = vmatprep.subr.bf16.mxu0 0
  %1377 = vmatpush1.bf16.msra.mxu0 0
  %1378 = vmatprep.subr.bf16.mxu0 0
  %1379 = vmatpush1.bf16.msra.mxu0 0
  %1380 = vmatprep.subr.bf16.mxu0 0
  %1381 = vmatpush1.bf16.msra.mxu0 0
  %1382 = vmatprep.subr.bf16.mxu0 0
  %1383 = vmatpush1.bf16.msra.mxu0 0
  %1384 = vmatprep.subr.bf16.mxu0 0
  %1385 = vmatpush1.bf16.msra.mxu0 0
  %1386 = vmatprep.subr.bf16.mxu0 0
  %1387 = vmatpush1.bf16.msra.mxu0 0
  %1388 = vmatprep.subr.bf16.mxu0 0
  %1389 = vmatpush1.bf16.msra.mxu0 0
  %1390 = vmatprep.subr.bf16.mxu0 0
  %1391 = vmatpush1.bf16.msra.mxu0 0
  %1392 = vmatprep.subr.bf16.mxu0 0
  %1393 = vmatpush1.bf16.msra.mxu0 0
  %1394 = vmatprep.subr.bf16.mxu0 0
  %1395 = vmatpush1.bf16.msra.mxu0 0
  %1396 = vmatprep.subr.bf16.mxu0 0
  %1397 = vmatpush1.bf16.msra.mxu0 0
  %1398 = vmatprep.subr.bf16.mxu0 0
  %1399 = vmatpush1.bf16.msra.mxu0 0
  %1400 = vmatprep.subr.bf16.mxu0 0
  %1401 = vmatpush1.bf16.msra.mxu0 0
  %1402 = vmatprep.mubr.bf16.mxu0 0
  %1403 = vmatmul.mubr.bf16.gmra.mrb[0].mxu0 %v1368
  %v1404 = vpop.f32.mrb[0].mxu0
  %v1405 = vadd.f32 0.0, %v1404
  %v1406 = vpop.f32.mrb[0].mxu0
  %v1407 = vpop.f32.mrb[0].mxu0
  %v1408 = vpop.f32.mrb[0].mxu0
  %1409 = vdwg.mxu0
  %1411 = vrot.lane.b32.xlu0 %v757, 16
  %v1412 = vpop.permute.xlu0 %1411
  %1415 = vrot.lane.b32.xlu0 %v865, 32
  %v1416 = vpop.permute.xlu0 %1415
  %1419 = vrot.lane.b32.xlu0 %v973, 48
  %v1420 = vpop.permute.xlu0 %1419
  %1423 = vrot.lane.b32.xlu0 %v1081, 64
  %v1424 = vpop.permute.xlu0 %1423
  %1427 = vrot.lane.b32.xlu0 %v1189, 80
  %v1428 = vpop.permute.xlu0 %1427
  %1431 = vrot.lane.b32.xlu0 %v1297, 96
  %v1432 = vpop.permute.xlu0 %1431
  %1435 = vrot.lane.b32.xlu0 %v1405, 112
  %v1436 = vpop.permute.xlu0 %1435
  %v1438 = vsel %vm548, %v646, %v1412
  %vm1439 = vcmask 261120
  %v1440 = vsel %vm1439, %v1438, %v1416
  %vm1441 = vcmask 392192
  %v1442 = vsel %vm1441, %v1440, %v1420
  %v1443 = vsel %vm74, %v1442, %v1424
  %vm1444 = vcmask 654336
  %v1445 = vsel %vm1444, %v1443, %v1428
  %v1446 = vsel %vm254, %v1445, %v1432
  %vm1447 = vcmask 916480
  %v1448 = vsel %vm1447, %v1446, %v1436
  %v1449 = vld [vmem:[%s11] sm:$0xf]
  %v1450 = vld [vmem:[%s11 + $0x4] sm:$0xf]
  %v1451 = vld [vmem:[%s11 + $0x8] sm:$0xf]
  %v1452 = vld [vmem:[%s11 + $0xc] sm:$0xf]
  %v1453 = vld [vmem:[%s11 + $0x10] sm:$0xf]
  %v1454 = vld [vmem:[%s11 + $0x14] sm:$0xf]
  %v1455 = vld [vmem:[%s11 + $0x18] sm:$0xf]
  %v1456 = vld [vmem:[%s11 + $0x1c] sm:$0xf]
  %v1457 = vld [vmem:[%s11 + $0x20] sm:$0xf]
  %v1458 = vld [vmem:[%s11 + $0x24] sm:$0xf]
  %v1459 = vld [vmem:[%s11 + $0x28] sm:$0xf]
  %v1460 = vld [vmem:[%s11 + $0x2c] sm:$0xf]
  %v1461 = vld [vmem:[%s11 + $0x30] sm:$0xf]
  %v1462 = vld [vmem:[%s11 + $0x34] sm:$0xf]
  %v1463 = vld [vmem:[%s11 + $0x38] sm:$0xf]
  %v1464 = vld [vmem:[%s11 + $0x3c] sm:$0xf]
  %v1465 = vpack.c.bf16 %v1448, %v1448
  %v1466 = vld [vmem:[%s12] sm:$0x1]
  %v1468 = vlaneseq
  %v1469 = vshrl.u32 %v1468, 7
  %v1470 = vsub.s32 0, %v1469
  %v1471 = vrot.slane %v1466, %v1470
  %v1489 = vunpack.c.l.b16 %v1449
  %v1490 = vunpack.c.l.b16 %v1450
  %v1491 = vunpack.c.l.b16 %v1451
  %v1492 = vunpack.c.l.b16 %v1452
  %v1493 = vunpack.c.l.b16 %v1453
  %v1494 = vunpack.c.l.b16 %v1454
  %v1495 = vunpack.c.l.b16 %v1455
  %v1496 = vunpack.c.l.b16 %v1456
  %v1497 = vunpack.c.l.b16 %v1457
  %v1498 = vunpack.c.l.b16 %v1458
  %v1499 = vunpack.c.l.b16 %v1459
  %v1500 = vunpack.c.l.b16 %v1460
  %v1501 = vunpack.c.l.b16 %v1461
  %v1502 = vunpack.c.l.b16 %v1462
  %v1503 = vunpack.c.l.b16 %v1463
  %v1504 = vunpack.c.l.b16 %v1464
  %v1505 = vpack.c.b16 %v1490, %v1489
  %v1506 = vpack.c.b16 %v1492, %v1491
  %v1507 = vpack.c.b16 %v1494, %v1493
  %v1508 = vpack.c.b16 %v1496, %v1495
  %v1509 = vpack.c.b16 %v1498, %v1497
  %v1510 = vpack.c.b16 %v1500, %v1499
  %v1511 = vpack.c.b16 %v1502, %v1501
  %v1512 = vpack.c.b16 %v1504, %v1503
  %1521 = vmatprep.subr.bf16.mxu0 0
  %1522 = vmatpush1.bf16.msra.mxu0 %v1505
  %1523 = vmatprep.subr.bf16.mxu0 0
  %1524 = vmatpush1.bf16.msra.mxu0 %v1506
  %1525 = vmatprep.subr.bf16.mxu0 0
  %1526 = vmatpush1.bf16.msra.mxu0 %v1507
  %1527 = vmatprep.subr.bf16.mxu0 0
  %1528 = vmatpush1.bf16.msra.mxu0 %v1508
  %1529 = vmatprep.subr.bf16.mxu0 0
  %1530 = vmatpush1.bf16.msra.mxu0 %v1509
  %1531 = vmatprep.subr.bf16.mxu0 0
  %1532 = vmatpush1.bf16.msra.mxu0 %v1510
  %1533 = vmatprep.subr.bf16.mxu0 0
  %1534 = vmatpush1.bf16.msra.mxu0 %v1511
  %1535 = vmatprep.subr.bf16.mxu0 0
  %1536 = vmatpush1.bf16.msra.mxu0 %v1512
  %1537 = vmatprep.subr.bf16.mxu0 0
  %1538 = vmatpush1.bf16.msra.mxu0 0
  %1539 = vmatprep.subr.bf16.mxu0 0
  %1540 = vmatpush1.bf16.msra.mxu0 0
  %1541 = vmatprep.subr.bf16.mxu0 0
  %1542 = vmatpush1.bf16.msra.mxu0 0
  %1543 = vmatprep.subr.bf16.mxu0 0
  %1544 = vmatpush1.bf16.msra.mxu0 0
  %1545 = vmatprep.subr.bf16.mxu0 0
  %1546 = vmatpush1.bf16.msra.mxu0 0
  %1547 = vmatprep.subr.bf16.mxu0 0
  %1548 = vmatpush1.bf16.msra.mxu0 0
  %1549 = vmatprep.subr.bf16.mxu0 0
  %1550 = vmatpush1.bf16.msra.mxu0 0
  %1551 = vmatprep.subr.bf16.mxu0 0
  %1552 = vmatpush1.bf16.msra.mxu0 0
  %1553 = vmatprep.mubr.bf16.mxu0 0
  %1554 = vmatmul.mubr.bf16.gmra.mrb[0].mxu0 %v1465
  %v1555 = vpop.f32.mrb[0].mxu0
  %v1556 = vadd.f32 %v1471, %v1555
  %v1557 = vpop.f32.mrb[0].mxu0
  %v1558 = vpop.f32.mrb[0].mxu0
  %v1559 = vpop.f32.mrb[0].mxu0
  %1560 = vdwg.mxu0
  %v1562 = vsel %vm74, %v195, 0
  %1564 = vmatprep.subr.bf16.mxu0 0
  %1565 = vmatpush1.bf16.msra.mxu0 %v128
  %1566 = vmatprep.subr.bf16.mxu0 0
  %1567 = vmatpush1.bf16.msra.mxu0 %v129
  %1568 = vmatprep.subr.bf16.mxu0 0
  %1569 = vmatpush1.bf16.msra.mxu0 %v130
  %1570 = vmatprep.subr.bf16.mxu0 0
  %1571 = vmatpush1.bf16.msra.mxu0 %v131
  %1572 = vmatprep.subr.bf16.mxu0 0
  %1573 = vmatpush1.bf16.msra.mxu0 0
  %1574 = vmatprep.subr.bf16.mxu0 0
  %1575 = vmatpush1.bf16.msra.mxu0 0
  %1576 = vmatprep.subr.bf16.mxu0 0
  %1577 = vmatpush1.bf16.msra.mxu0 0
  %1578 = vmatprep.subr.bf16.mxu0 0
  %1579 = vmatpush1.bf16.msra.mxu0 0
  %1580 = vmatprep.subr.bf16.mxu0 0
  %1581 = vmatpush1.bf16.msra.mxu0 0
  %1582 = vmatprep.subr.bf16.mxu0 0
  %1583 = vmatpush1.bf16.msra.mxu0 0
  %1584 = vmatprep.subr.bf16.mxu0 0
  %1585 = vmatpush1.bf16.msra.mxu0 0
  %1586 = vmatprep.subr.bf16.mxu0 0
  %1587 = vmatpush1.bf16.msra.mxu0 0
  %1588 = vmatprep.subr.bf16.mxu0 0
  %1589 = vmatpush1.bf16.msra.mxu0 0
  %1590 = vmatprep.subr.bf16.mxu0 0
  %1591 = vmatpush1.bf16.msra.mxu0 0
  %1592 = vmatprep.subr.bf16.mxu0 0
  %1593 = vmatpush1.bf16.msra.mxu0 0
  %1594 = vmatprep.subr.bf16.mxu0 0
  %1595 = vmatpush1.bf16.msra.mxu0 0
  %1596 = vmatprep.mubr.bf16.mxu0 0
  %1597 = vmatmul.mubr.bf16.gmra.mrb[0].mxu0 %v1562
  %v1598 = vpop.f32.mrb[0].mxu0
  %v1599 = vadd.f32 %v1556, %v1598
  %v1600 = vpop.f32.mrb[0].mxu0
  %v1601 = vpop.f32.mrb[0].mxu0
  %v1602 = vpop.f32.mrb[0].mxu0
  %1603 = vdwg.mxu0
  %v1604 = vld [vmem:[%s13] sm:$0xff]
  %v1605 = vld [vmem:[%s13 + $0x8] sm:$0xff]
  %v1606 = vld [vmem:[%s13 + $0x10] sm:$0xff]
  %v1607 = vld [vmem:[%s13 + $0x18] sm:$0xff]
  %v1608 = vld [vmem:[%s13 + $0x20] sm:$0xff]
  %v1609 = vld [vmem:[%s13 + $0x28] sm:$0xff]
  %v1610 = vld [vmem:[%s13 + $0x30] sm:$0xff]
  %v1611 = vld [vmem:[%s13 + $0x38] sm:$0xff]
  %v1612 = vld [vmem:[%s13 + $0x40] sm:$0xff]
  %v1613 = vld [vmem:[%s13 + $0x48] sm:$0xff]
  %v1614 = vld [vmem:[%s13 + $0x50] sm:$0xff]
  %v1615 = vld [vmem:[%s13 + $0x58] sm:$0xff]
  %v1616 = vld [vmem:[%s13 + $0x60] sm:$0xff]
  %v1617 = vld [vmem:[%s13 + $0x68] sm:$0xff]
  %v1618 = vld [vmem:[%s13 + $0x70] sm:$0xff]
  %v1619 = vld [vmem:[%s13 + $0x78] sm:$0xff]
  %v1620 = vld [vmem:[%s14] sm:$0x3]
  %v1621 = vld [vmem:[%s15] sm:$0xf]
  %v1622 = vld [vmem:[%s15 + $0x4] sm:$0xf]
  %v1623 = vld [vmem:[%s15 + $0x8] sm:$0xf]
  %v1624 = vld [vmem:[%s15 + $0xc] sm:$0xf]
  %v1625 = vld [vmem:[%s15 + $0x10] sm:$0xf]
  %v1626 = vld [vmem:[%s15 + $0x14] sm:$0xf]
  %v1627 = vld [vmem:[%s15 + $0x18] sm:$0xf]
  %v1628 = vld [vmem:[%s15 + $0x1c] sm:$0xf]
  %v1629 = vld [vmem:[%s15 + $0x20] sm:$0xf]
  %v1630 = vld [vmem:[%s15 + $0x24] sm:$0xf]
  %v1631 = vld [vmem:[%s15 + $0x28] sm:$0xf]
  %v1632 = vld [vmem:[%s15 + $0x2c] sm:$0xf]
  %v1633 = vld [vmem:[%s15 + $0x30] sm:$0xf]
  %v1634 = vld [vmem:[%s15 + $0x34] sm:$0xf]
  %v1635 = vld [vmem:[%s15 + $0x38] sm:$0xf]
  %v1636 = vld [vmem:[%s15 + $0x3c] sm:$0xf]
  %v1637 = vld [vmem:[%s15 + $0x40] sm:$0xf]
  %v1638 = vld [vmem:[%s15 + $0x44] sm:$0xf]
  %v1639 = vld [vmem:[%s15 + $0x48] sm:$0xf]
  %v1640 = vld [vmem:[%s15 + $0x4c] sm:$0xf]
  %v1641 = vld [vmem:[%s15 + $0x50] sm:$0xf]
  %v1642 = vld [vmem:[%s15 + $0x54] sm:$0xf]
  %v1643 = vld [vmem:[%s15 + $0x58] sm:$0xf]
  %v1644 = vld [vmem:[%s15 + $0x5c] sm:$0xf]
  %v1645 = vld [vmem:[%s15 + $0x60] sm:$0xf]
  %v1646 = vld [vmem:[%s15 + $0x64] sm:$0xf]
  %v1647 = vld [vmem:[%s15 + $0x68] sm:$0xf]
  %v1648 = vld [vmem:[%s15 + $0x6c] sm:$0xf]
  %v1649 = vld [vmem:[%s15 + $0x70] sm:$0xf]
  %v1650 = vld [vmem:[%s15 + $0x74] sm:$0xf]
  %v1651 = vld [vmem:[%s15 + $0x78] sm:$0xf]
  %v1652 = vld [vmem:[%s15 + $0x7c] sm:$0xf]
  %v1653 = vld [vmem:[%s16] sm:$0x1]
  %v1654 = vpack.c.bf16 %v1599, %v1599
  %v1656 = vlaneseq
  %v1657 = vshrl.u32 %v1656, 7
  %v1658 = vsub.s32 0, %v1657
  %v1659 = vrot.slane %v1620, %v1658
  %v1660 = vlaneseq
  %v1661 = vshrl.u32 %v1660, 7
  %v1662 = vsub.s32 1, %v1661
  %v1663 = vrot.slane %v1620, %v1662
  %v1682 = vunpack.c.l.b16 %v1604
  %v1683 = vunpack.c.h.b16 %v1604
  %v1684 = vunpack.c.l.b16 %v1605
  %v1685 = vunpack.c.h.b16 %v1605
  %v1686 = vunpack.c.l.b16 %v1606
  %v1687 = vunpack.c.h.b16 %v1606
  %v1688 = vunpack.c.l.b16 %v1607
  %v1689 = vunpack.c.h.b16 %v1607
  %v1690 = vunpack.c.l.b16 %v1608
  %v1691 = vunpack.c.h.b16 %v1608
  %v1692 = vunpack.c.l.b16 %v1609
  %v1693 = vunpack.c.h.b16 %v1609
  %v1694 = vunpack.c.l.b16 %v1610
  %v1695 = vunpack.c.h.b16 %v1610
  %v1696 = vunpack.c.l.b16 %v1611
  %v1697 = vunpack.c.h.b16 %v1611
  %v1698 = vunpack.c.l.b16 %v1612
  %v1699 = vunpack.c.h.b16 %v1612
  %v1700 = vunpack.c.l.b16 %v1613
  %v1701 = vunpack.c.h.b16 %v1613
  %v1702 = vunpack.c.l.b16 %v1614
  %v1703 = vunpack.c.h.b16 %v1614
  %v1704 = vunpack.c.l.b16 %v1615
  %v1705 = vunpack.c.h.b16 %v1615
  %v1706 = vunpack.c.l.b16 %v1616
  %v1707 = vunpack.c.h.b16 %v1616
  %v1708 = vunpack.c.l.b16 %v1617
  %v1709 = vunpack.c.h.b16 %v1617
  %v1710 = vunpack.c.l.b16 %v1618
  %v1711 = vunpack.c.h.b16 %v1618
  %v1712 = vunpack.c.l.b16 %v1619
  %v1713 = vunpack.c.h.b16 %v1619
  %v1714 = vpack.c.b16 %v1684, %v1682
  %v1715 = vpack.c.b16 %v1685, %v1683
  %v1716 = vpack.c.b16 %v1688, %v1686
  %v1717 = vpack.c.b16 %v1689, %v1687
  %v1718 = vpack.c.b16 %v1692, %v1690
  %v1719 = vpack.c.b16 %v1693, %v1691
  %v1720 = vpack.c.b16 %v1696, %v1694
  %v1721 = vpack.c.b16 %v1697, %v1695
  %v1722 = vpack.c.b16 %v1700, %v1698
  %v1723 = vpack.c.b16 %v1701, %v1699
  %v1724 = vpack.c.b16 %v1704, %v1702
  %v1725 = vpack.c.b16 %v1705, %v1703
  %v1726 = vpack.c.b16 %v1708, %v1706
  %v1727 = vpack.c.b16 %v1709, %v1707
  %v1728 = vpack.c.b16 %v1712, %v1710
  %v1729 = vpack.c.b16 %v1713, %v1711
  %1746 = vmatprep.subr.bf16.mxu0 %v1715
  %1747 = vmatpush1.bf16.msra.mxu0 %v1714
  %1748 = vmatprep.subr.bf16.mxu0 %v1717
  %1749 = vmatpush1.bf16.msra.mxu0 %v1716
  %1750 = vmatprep.subr.bf16.mxu0 %v1719
  %1751 = vmatpush1.bf16.msra.mxu0 %v1718
  %1752 = vmatprep.subr.bf16.mxu0 %v1721
  %1753 = vmatpush1.bf16.msra.mxu0 %v1720
  %1754 = vmatprep.subr.bf16.mxu0 %v1723
  %1755 = vmatpush1.bf16.msra.mxu0 %v1722
  %1756 = vmatprep.subr.bf16.mxu0 %v1725
  %1757 = vmatpush1.bf16.msra.mxu0 %v1724
  %1758 = vmatprep.subr.bf16.mxu0 %v1727
  %1759 = vmatpush1.bf16.msra.mxu0 %v1726
  %1760 = vmatprep.subr.bf16.mxu0 %v1729
  %1761 = vmatpush1.bf16.msra.mxu0 %v1728
  %1762 = vmatprep.subr.bf16.mxu0 0
  %1763 = vmatpush1.bf16.msra.mxu0 0
  %1764 = vmatprep.subr.bf16.mxu0 0
  %1765 = vmatpush1.bf16.msra.mxu0 0
  %1766 = vmatprep.subr.bf16.mxu0 0
  %1767 = vmatpush1.bf16.msra.mxu0 0
  %1768 = vmatprep.subr.bf16.mxu0 0
  %1769 = vmatpush1.bf16.msra.mxu0 0
  %1770 = vmatprep.subr.bf16.mxu0 0
  %1771 = vmatpush1.bf16.msra.mxu0 0
  %1772 = vmatprep.subr.bf16.mxu0 0
  %1773 = vmatpush1.bf16.msra.mxu0 0
  %1774 = vmatprep.subr.bf16.mxu0 0
  %1775 = vmatpush1.bf16.msra.mxu0 0
  %1776 = vmatprep.subr.bf16.mxu0 0
  %1777 = vmatpush1.bf16.msra.mxu0 0
  %1778 = vmatprep.mubr.bf16.mxu0 0
  %1779 = vmatmul.mubr.bf16.gmra.mrb[0].mxu0 %v1654
  %v1780 = vpop.f32.mrb[0].mxu0
  %v1781 = vadd.f32 %v1659, %v1780
  %v1782 = vpop.f32.mrb[0].mxu0
  %v1783 = vadd.f32 %v1663, %v1782
  %v1784 = vpop.f32.mrb[0].mxu0
  %v1785 = vpop.f32.mrb[0].mxu0
  %1786 = vdwg.mxu0
  %v1787 = vmax.f32 %v1781, 0.0
  %v1788 = vmax.f32 %v1783, 0.0
  %v1789 = vpack.c.bf16 %v1787, %v1787
  %v1790 = vpack.c.bf16 %v1788, %v1788
  %v1792 = vlaneseq
  %v1793 = vshrl.u32 %v1792, 7
  %v1794 = vsub.s32 0, %v1793
  %v1795 = vrot.slane %v1653, %v1794
  %v1829 = vunpack.c.l.b16 %v1621
  %v1830 = vunpack.c.l.b16 %v1622
  %v1831 = vunpack.c.l.b16 %v1623
  %v1832 = vunpack.c.l.b16 %v1624
  %v1833 = vunpack.c.l.b16 %v1625
  %v1834 = vunpack.c.l.b16 %v1626
  %v1835 = vunpack.c.l.b16 %v1627
  %v1836 = vunpack.c.l.b16 %v1628
  %v1837 = vunpack.c.l.b16 %v1629
  %v1838 = vunpack.c.l.b16 %v1630
  %v1839 = vunpack.c.l.b16 %v1631
  %v1840 = vunpack.c.l.b16 %v1632
  %v1841 = vunpack.c.l.b16 %v1633
  %v1842 = vunpack.c.l.b16 %v1634
  %v1843 = vunpack.c.l.b16 %v1635
  %v1844 = vunpack.c.l.b16 %v1636
  %v1845 = vunpack.c.l.b16 %v1637
  %v1846 = vunpack.c.l.b16 %v1638
  %v1847 = vunpack.c.l.b16 %v1639
  %v1848 = vunpack.c.l.b16 %v1640
  %v1849 = vunpack.c.l.b16 %v1641
  %v1850 = vunpack.c.l.b16 %v1642
  %v1851 = vunpack.c.l.b16 %v1643
  %v1852 = vunpack.c.l.b16 %v1644
  %v1853 = vunpack.c.l.b16 %v1645
  %v1854 = vunpack.c.l.b16 %v1646
  %v1855 = vunpack.c.l.b16 %v1647
  %v1856 = vunpack.c.l.b16 %v1648
  %v1857 = vunpack.c.l.b16 %v1649
  %v1858 = vunpack.c.l.b16 %v1650
  %v1859 = vunpack.c.l.b16 %v1651
  %v1860 = vunpack.c.l.b16 %v1652
  %v1861 = vpack.c.b16 %v1830, %v1829
  %v1862 = vpack.c.b16 %v1832, %v1831
  %v1863 = vpack.c.b16 %v1834, %v1833
  %v1864 = vpack.c.b16 %v1836, %v1835
  %v1865 = vpack.c.b16 %v1838, %v1837
  %v1866 = vpack.c.b16 %v1840, %v1839
  %v1867 = vpack.c.b16 %v1842, %v1841
  %v1868 = vpack.c.b16 %v1844, %v1843
  %v1869 = vpack.c.b16 %v1846, %v1845
  %v1870 = vpack.c.b16 %v1848, %v1847
  %v1871 = vpack.c.b16 %v1850, %v1849
  %v1872 = vpack.c.b16 %v1852, %v1851
  %v1873 = vpack.c.b16 %v1854, %v1853
  %v1874 = vpack.c.b16 %v1856, %v1855
  %v1875 = vpack.c.b16 %v1858, %v1857
  %v1876 = vpack.c.b16 %v1860, %v1859
  %1893 = vmatprep.subr.bf16.mxu0 0
  %1894 = vmatpush1.bf16.msra.mxu0 %v1861
  %1895 = vmatprep.subr.bf16.mxu0 0
  %1896 = vmatpush1.bf16.msra.mxu0 %v1862
  %1897 = vmatprep.subr.bf16.mxu0 0
  %1898 = vmatpush1.bf16.msra.mxu0 %v1863
  %1899 = vmatprep.subr.bf16.mxu0 0
  %1900 = vmatpush1.bf16.msra.mxu0 %v1864
  %1901 = vmatprep.subr.bf16.mxu0 0
  %1902 = vmatpush1.bf16.msra.mxu0 %v1865
  %1903 = vmatprep.subr.bf16.mxu0 0
  %1904 = vmatpush1.bf16.msra.mxu0 %v1866
  %1905 = vmatprep.subr.bf16.mxu0 0
  %1906 = vmatpush1.bf16.msra.mxu0 %v1867
  %1907 = vmatprep.subr.bf16.mxu0 0
  %1908 = vmatpush1.bf16.msra.mxu0 %v1868
  %1909 = vmatprep.subr.bf16.mxu0 0
  %1910 = vmatpush1.bf16.msra.mxu0 %v1869
  %1911 = vmatprep.subr.bf16.mxu0 0
  %1912 = vmatpush1.bf16.msra.mxu0 %v1870
  %1913 = vmatprep.subr.bf16.mxu0 0
  %1914 = vmatpush1.bf16.msra.mxu0 %v1871
  %1915 = vmatprep.subr.bf16.mxu0 0
  %1916 = vmatpush1.bf16.msra.mxu0 %v1872
  %1917 = vmatprep.subr.bf16.mxu0 0
  %1918 = vmatpush1.bf16.msra.mxu0 %v1873
  %1919 = vmatprep.subr.bf16.mxu0 0
  %1920 = vmatpush1.bf16.msra.mxu0 %v1874
  %1921 = vmatprep.subr.bf16.mxu0 0
  %1922 = vmatpush1.bf16.msra.mxu0 %v1875
  %1923 = vmatprep.subr.bf16.mxu0 0
  %1924 = vmatpush1.bf16.msra.mxu0 %v1876
  %1925 = vmatprep.mubr.bf16.mxu0 %v1790
  %1926 = vmatmul.mubr.bf16.gmra.mrb[0].mxu0 %v1789
  %v1927 = vpop.f32.mrb[0].mxu0
  %v1928 = vadd.f32 %v1795, %v1927
  %v1929 = vpop.f32.mrb[0].mxu0
  %v1930 = vpop.f32.mrb[0].mxu0
  %v1931 = vpop.f32.mrb[0].mxu0
  %1932 = vdwg.mxu0
  %v1933 = vld [vmem:[%s17] sm:$0xf]
  %v1934 = vld [vmem:[%s17 + $0x4] sm:$0xf]
  %v1935 = vld [vmem:[%s17 + $0x8] sm:$0xf]
  %v1936 = vld [vmem:[%s17 + $0xc] sm:$0xf]
  %v1937 = vld [vmem:[%s17 + $0x10] sm:$0xf]
  %v1938 = vld [vmem:[%s17 + $0x14] sm:$0xf]
  %v1939 = vld [vmem:[%s17 + $0x18] sm:$0xf]
  %v1940 = vld [vmem:[%s17 + $0x1c] sm:$0xf]
  %v1941 = vld [vmem:[%s17 + $0x20] sm:$0xf]
  %v1942 = vld [vmem:[%s17 + $0x24] sm:$0xf]
  %v1943 = vld [vmem:[%s17 + $0x28] sm:$0xf]
  %v1944 = vld [vmem:[%s17 + $0x2c] sm:$0xf]
  %v1945 = vld [vmem:[%s17 + $0x30] sm:$0xf]
  %v1946 = vld [vmem:[%s17 + $0x34] sm:$0xf]
  %v1947 = vld [vmem:[%s17 + $0x38] sm:$0xf]
  %v1948 = vld [vmem:[%s17 + $0x3c] sm:$0xf]
  %v1949 = vld [vmem:[%s18] sm:$0x1]
  %v1950 = vld [vmem:[%s19] sm:$0xf]
  %v1951 = vld [vmem:[%s19 + $0x4] sm:$0xf]
  %v1952 = vld [vmem:[%s19 + $0x8] sm:$0xf]
  %v1953 = vld [vmem:[%s19 + $0xc] sm:$0xf]
  %v1954 = vld [vmem:[%s19 + $0x10] sm:$0xf]
  %v1955 = vld [vmem:[%s19 + $0x14] sm:$0xf]
  %v1956 = vld [vmem:[%s19 + $0x18] sm:$0xf]
  %v1957 = vld [vmem:[%s19 + $0x1c] sm:$0xf]
  %v1958 = vld [vmem:[#allocation2] sm:$0x1]
  %v1959 = vpack.c.bf16 %v1928, %v1928
  %v1961 = vlaneseq
  %v1962 = vshrl.u32 %v1961, 7
  %v1963 = vsub.s32 0, %v1962
  %v1964 = vrot.slane %v1949, %v1963
  %v1982 = vunpack.c.l.b16 %v1933
  %v1983 = vunpack.c.l.b16 %v1934
  %v1984 = vunpack.c.l.b16 %v1935
  %v1985 = vunpack.c.l.b16 %v1936
  %v1986 = vunpack.c.l.b16 %v1937
  %v1987 = vunpack.c.l.b16 %v1938
  %v1988 = vunpack.c.l.b16 %v1939
  %v1989 = vunpack.c.l.b16 %v1940
  %v1990 = vunpack.c.l.b16 %v1941
  %v1991 = vunpack.c.l.b16 %v1942
  %v1992 = vunpack.c.l.b16 %v1943
  %v1993 = vunpack.c.l.b16 %v1944
  %v1994 = vunpack.c.l.b16 %v1945
  %v1995 = vunpack.c.l.b16 %v1946
  %v1996 = vunpack.c.l.b16 %v1947
  %v1997 = vunpack.c.l.b16 %v1948
  %v1998 = vpack.c.b16 %v1983, %v1982
  %v1999 = vpack.c.b16 %v1985, %v1984
  %v2000 = vpack.c.b16 %v1987, %v1986
  %v2001 = vpack.c.b16 %v1989, %v1988
  %v2002 = vpack.c.b16 %v1991, %v1990
  %v2003 = vpack.c.b16 %v1993, %v1992
  %v2004 = vpack.c.b16 %v1995, %v1994
  %v2005 = vpack.c.b16 %v1997, %v1996
  %2014 = vmatprep.subr.bf16.mxu0 0
  %2015 = vmatpush1.bf16.msra.mxu0 %v1998
  %2016 = vmatprep.subr.bf16.mxu0 0
  %2017 = vmatpush1.bf16.msra.mxu0 %v1999
  %2018 = vmatprep.subr.bf16.mxu0 0
  %2019 = vmatpush1.bf16.msra.mxu0 %v2000
  %2020 = vmatprep.subr.bf16.mxu0 0
  %2021 = vmatpush1.bf16.msra.mxu0 %v2001
  %2022 = vmatprep.subr.bf16.mxu0 0
  %2023 = vmatpush1.bf16.msra.mxu0 %v2002
  %2024 = vmatprep.subr.bf16.mxu0 0
  %2025 = vmatpush1.bf16.msra.mxu0 %v2003
  %2026 = vmatprep.subr.bf16.mxu0 0
  %2027 = vmatpush1.bf16.msra.mxu0 %v2004
  %2028 = vmatprep.subr.bf16.mxu0 0
  %2029 = vmatpush1.bf16.msra.mxu0 %v2005
  %2030 = vmatprep.subr.bf16.mxu0 0
  %2031 = vmatpush1.bf16.msra.mxu0 0
  %2032 = vmatprep.subr.bf16.mxu0 0
  %2033 = vmatpush1.bf16.msra.mxu0 0
  %2034 = vmatprep.subr.bf16.mxu0 0
  %2035 = vmatpush1.bf16.msra.mxu0 0
  %2036 = vmatprep.subr.bf16.mxu0 0
  %2037 = vmatpush1.bf16.msra.mxu0 0
  %2038 = vmatprep.subr.bf16.mxu0 0
  %2039 = vmatpush1.bf16.msra.mxu0 0
  %2040 = vmatprep.subr.bf16.mxu0 0
  %2041 = vmatpush1.bf16.msra.mxu0 0
  %2042 = vmatprep.subr.bf16.mxu0 0
  %2043 = vmatpush1.bf16.msra.mxu0 0
  %2044 = vmatprep.subr.bf16.mxu0 0
  %2045 = vmatpush1.bf16.msra.mxu0 0
  %2046 = vmatprep.mubr.bf16.mxu0 0
  %2047 = vmatmul.mubr.bf16.gmra.mrb[0].mxu0 %v1959
  %v2048 = vpop.f32.mrb[0].mxu0
  %v2049 = vadd.f32 %v1964, %v2048
  %v2050 = vpop.f32.mrb[0].mxu0
  %v2051 = vpop.f32.mrb[0].mxu0
  %v2052 = vpop.f32.mrb[0].mxu0
  %2053 = vdwg.mxu0
  %v2054 = vmax.f32 %v2049, 0.0
  %v2055 = vpack.c.bf16 %v2054, %v2054
  %v2057 = vlaneseq
  %v2058 = vshrl.u32 %v2057, 7
  %v2059 = vsub.s32 0, %v2058
  %v2060 = vrot.slane %v1958, %v2059
  %v2070 = vunpack.c.l.b16 %v1950
  %v2071 = vunpack.c.l.b16 %v1951
  %v2072 = vunpack.c.l.b16 %v1952
  %v2073 = vunpack.c.l.b16 %v1953
  %v2074 = vunpack.c.l.b16 %v1954
  %v2075 = vunpack.c.l.b16 %v1955
  %v2076 = vunpack.c.l.b16 %v1956
  %v2077 = vunpack.c.l.b16 %v1957
  %v2078 = vpack.c.b16 %v2071, %v2070
  %v2079 = vpack.c.b16 %v2073, %v2072
  %v2080 = vpack.c.b16 %v2075, %v2074
  %v2081 = vpack.c.b16 %v2077, %v2076
  %v2087 = vsel %vm74, %v2055, 0
  %2089 = vmatprep.subr.bf16.mxu0 0
  %2090 = vmatpush1.bf16.msra.mxu0 %v2078
  %2091 = vmatprep.subr.bf16.mxu0 0
  %2092 = vmatpush1.bf16.msra.mxu0 %v2079
  %2093 = vmatprep.subr.bf16.mxu0 0
  %2094 = vmatpush1.bf16.msra.mxu0 %v2080
  %2095 = vmatprep.subr.bf16.mxu0 0
  %2096 = vmatpush1.bf16.msra.mxu0 %v2081
  %2097 = vmatprep.subr.bf16.mxu0 0
  %2098 = vmatpush1.bf16.msra.mxu0 0
  %2099 = vmatprep.subr.bf16.mxu0 0
  %2100 = vmatpush1.bf16.msra.mxu0 0
  %2101 = vmatprep.subr.bf16.mxu0 0
  %2102 = vmatpush1.bf16.msra.mxu0 0
  %2103 = vmatprep.subr.bf16.mxu0 0
  %2104 = vmatpush1.bf16.msra.mxu0 0
  %2105 = vmatprep.subr.bf16.mxu0 0
  %2106 = vmatpush1.bf16.msra.mxu0 0
  %2107 = vmatprep.subr.bf16.mxu0 0
  %2108 = vmatpush1.bf16.msra.mxu0 0
  %2109 = vmatprep.subr.bf16.mxu0 0
  %2110 = vmatpush1.bf16.msra.mxu0 0
  %2111 = vmatprep.subr.bf16.mxu0 0
  %2112 = vmatpush1.bf16.msra.mxu0 0
  %2113 = vmatprep.subr.bf16.mxu0 0
  %2114 = vmatpush1.bf16.msra.mxu0 0
  %2115 = vmatprep.subr.bf16.mxu0 0
  %2116 = vmatpush1.bf16.msra.mxu0 0
  %2117 = vmatprep.subr.bf16.mxu0 0
  %2118 = vmatpush1.bf16.msra.mxu0 0
  %2119 = vmatprep.subr.bf16.mxu0 0
  %2120 = vmatpush1.bf16.msra.mxu0 0
  %2121 = vmatprep.mubr.bf16.mxu0 0
  %2122 = vmatmul.mubr.bf16.gmra.mrb[0].mxu0 %v2087
  %v2123 = vpop.f32.mrb[0].mxu0
  %v2124 = vadd.f32 %v2060, %v2123
  %v2125 = vpop.f32.mrb[0].mxu0
  %v2126 = vpop.f32.mrb[0].mxu0
  %v2127 = vpop.f32.mrb[0].mxu0
  %2128 = vdwg.mxu0
  %vm2129 = vcmask 7168
  %2130 = vst.msk [vmem:[%s21] sm:$0xff] %vm2129, %v2124
  // Predicated region
  $region86: #{forward.15} parent=0 // pred_check
    _
  $region87: #{forward.15} parent=0 // pred_check_branch
    %2132 = sbr.rel (0) target = $region89
  $region88: #{forward.15} parent=0 // pred_region
    _
  $region89: #{forward.15} parent=0 // pred_fallthru
    _
  // Predicated region
  $region90: #{forward.15} parent=0 // pred_check
    _
  $region91: #{forward.15} parent=0 // pred_check_branch
    %2134 = sbr.rel (0) target = $region93
  $region92: #{forward.15} parent=0 // pred_region
    _
  $region93: #{forward.15} parent=0 // pred_fallthru
    _

</llo_original>
